<compile_context>
chip_gen: v6e
topology: v6e:2x2x1
jax: 0.10.0
libtpu: 0.0.40
codegen_flags: <defaults>
</compile_context>

<pallas_src>
import functools

import jax
import jax.numpy as jnp
from jax import lax
from jax.experimental import pallas as pl
from jax.experimental.pallas import tpu as pltpu

BN_EPS = 1e-5


# ----------------------------------------------------------------------------- in-kernel helpers
def _maxpool2x2(y):
    """2x2 / stride-2 max pool on an (N, H, W, C) value (H, W even)."""
    n, h, w, c = y.shape
    y = y.reshape(n, h // 2, 2, w, c).max(axis=2)
    y = y.reshape(n, h // 2, w // 2, 2, c).max(axis=3)
    return y


def _conv_bias_relu_pool(x, pad_ref, pat_ref, w_ref, b_ref):
    """Conv2d(3x3, pad=1, BN scale pre-folded into W) -> +bias -> ReLU -> MaxPool2d(2).

    x:       (N, H, W, Cin)      f32 value (previous stage output)
    pad_ref: (N, H+2, W+2, Cin)  bf16 scratch — zero-padded copy of x
    pat_ref: (N*H*W, 9*Cin)      bf16 scratch — im2col patch matrix
    w_ref:   (9*Cin, Cout)       bf16 conv weights (BN scale folded in)
    b_ref:   (1, Cout)           f32 folded conv-bias + BN shift
    returns  (N, H//2, W//2, Cout) f32
    """
    n, h, w, cin = x.shape
    cout = w_ref.shape[-1]
    m = n * h * w

    # Zero-pad into bf16 VMEM scratch (values feed the MXU, so cast here once).
    pad_ref[...] = jnp.zeros_like(pad_ref)
    pad_ref[:, 1:h + 1, 1:w + 1, :] = x.astype(pad_ref.dtype)

    # im2col: 9 shifted windows written side-by-side -> (M, 9*Cin) patch matrix,
    # so the conv is ONE matmul with K = 9*Cin instead of 9 K=Cin matmuls + adds.
    for ky in range(3):
        for kx in range(3):
            t = ky * 3 + kx
            win = pad_ref[:, ky:ky + h, kx:kx + w, :]            # (N, H, W, Cin) bf16
            pat_ref[:, t * cin:(t + 1) * cin] = win.reshape(m, cin)

    acc = jnp.dot(pat_ref[...], w_ref[...],
                  preferred_element_type=jnp.float32)            # (M, Cout) f32 accumulation

    y = jnp.maximum(acc + b_ref[...], 0.0)                       # folded bias + ReLU (f32 VPU)
    return _maxpool2x2(y.reshape(n, h, w, cout))


# ----------------------------------------------------------------------------- fused kernel
def _fused_cnn_kernel(p1_ref,
                      w1_ref, b1_ref,
                      w2_ref, b2_ref,
                      w3_ref, b3_ref,
                      w4_ref, b4_ref,
                      fw1_ref, fb1_ref, fw2_ref, fb2_ref,
                      out_ref,
                      pad2_ref, pat2_ref, pad3_ref, pat3_ref, pad4_ref, pat4_ref,
                      *, nb, h0, w0):
    """Entire EnhancedCNN forward for a batch block of `nb` samples."""
    # ---- block 1: conv(1 -> 32) as a pre-built im2col matmul (K = 9) ----
    c1 = w1_ref.shape[-1]
    acc = jnp.dot(p1_ref[...], w1_ref[...],
                  preferred_element_type=jnp.float32)            # (nb*h0*w0, 32)
    y = jnp.maximum(acc + b1_ref[...], 0.0)
    y = _maxpool2x2(y.reshape(nb, h0, w0, c1))                   # (nb, h0/2, w0/2, 32)

    # ---- blocks 2..4: in-VMEM im2col conv blocks ----
    y = _conv_bias_relu_pool(y, pad2_ref, pat2_ref, w2_ref, b2_ref)
    y = _conv_bias_relu_pool(y, pad3_ref, pat3_ref, w3_ref, b3_ref)
    y = _conv_bias_relu_pool(y, pad4_ref, pat4_ref, w4_ref, b4_ref)

    # ---- classifier: GAP -> Linear(256,512) -> ReLU -> Linear(512,1) -> Sigmoid ----
    # (nn.Dropout is identity in inference mode.)
    pooled = y.mean(axis=1).mean(axis=1)                         # (nb, 256) f32
    h = jnp.dot(pooled.astype(jnp.bfloat16), fw1_ref[...],
                preferred_element_type=jnp.float32) + fb1_ref[...]
    h = jnp.maximum(h, 0.0)
    # 512 -> 1 projection as VPU multiply + lane reduction (avoids a 1-wide matmul).
    logit = jnp.sum(h * fw2_ref[...], axis=-1, keepdims=True) + fb2_ref[...]
    out_ref[...] = (1.0 / (1.0 + jnp.exp(-logit))).astype(out_ref.dtype)


# ----------------------------------------------------------------------------- wrapper
@functools.partial(jax.jit, static_argnames=("batch_block",))
def enhanced_cnn_forward(x_nchw, params, *, batch_block=None):
    """x_nchw: (N, 1, H, W) f32 -> (N, 1) sigmoid probabilities."""
    N, cin0, H, W = x_nchw.shape
    assert cin0 == 1 and H % 16 == 0 and W % 16 == 0
    nb = N if batch_block is None else batch_block               # samples per grid step
    assert N % nb == 0

    # Block-1 im2col at the XLA level: with Cin == 1, in-kernel patches would put a
    # size-1 channel on the 128-wide lane axis.  Here it becomes a lane-friendly
    # (N*H*W, 9) bf16 matrix (tiny at the test shape).
    x = x_nchw[:, 0]                                             # (N, H, W)
    xp = jnp.pad(x, ((0, 0), (1, 1), (1, 1)))
    p1 = jnp.stack([xp[:, ky:ky + H, kx:kx + W]
                    for ky in range(3) for kx in range(3)], axis=-1)
    p1 = p1.reshape(N * H * W, 9).astype(jnp.bfloat16)

    # Kernel-ready weights: conv kernels as (9*Cin, Cout) bf16 MXU operands with the
    # folded-BN scale multiplied in (f32 fold, then bf16 cast); biases stay f32 VPU.
    conv_w, conv_b = [], []
    for (w_hwio, scale, bias) in params["blocks"]:
        cin, cout = w_hwio.shape[2], w_hwio.shape[3]
        conv_w.append((w_hwio.reshape(9 * cin, cout) * scale).astype(jnp.bfloat16))
        conv_b.append(bias)
    fw1 = params["w1"].astype(jnp.bfloat16)                      # (256, 512) bf16
    fb1 = params["b1"]                                           # (1, 512)   f32
    fw2 = params["w2"].reshape(1, -1)                            # (1, 512)   f32 (VPU use)
    fb2 = params["b2"]                                           # (1, 1)     f32

    c1, c2, c3 = conv_w[0].shape[-1], conv_w[1].shape[-1], conv_w[2].shape[-1]
    h2, w2 = H // 2, W // 2                                      # block-2 input spatial
    h3, w3 = H // 4, W // 4                                      # block-3 input spatial
    h4, w4 = H // 8, W // 8                                      # block-4 input spatial

    def _rep(arr):  # whole-array block, resident across every grid step
        return pl.BlockSpec(arr.shape, lambda i: (0, 0))

    operands = (p1,
                conv_w[0], conv_b[0],
                conv_w[1], conv_b[1],
                conv_w[2], conv_b[2],
                conv_w[3], conv_b[3],
                fw1, fb1, fw2, fb2)
    in_specs = [pl.BlockSpec((nb * H * W, 9), lambda i: (i, 0))] \
             + [_rep(a) for a in operands[1:]]

    kernel = functools.partial(_fused_cnn_kernel, nb=nb, h0=H, w0=W)
    return pl.pallas_call(
        kernel,
        out_shape=jax.ShapeDtypeStruct((N, 1), jnp.float32),
        grid=(N // nb,),                                         # "parallel" batch-block axis:
        in_specs=in_specs,                                       # with batch_block < N this lets
        out_specs=pl.BlockSpec((nb, 1), lambda i: (i, 0)),       # v7x split blocks over its 2 TCs
        scratch_shapes=[
            pltpu.VMEM((nb, h2 + 2, w2 + 2, c1), jnp.bfloat16),  # zero-padded input, block 2
            pltpu.VMEM((nb * h2 * w2, 9 * c1), jnp.bfloat16),    # im2col patches,    block 2
            pltpu.VMEM((nb, h3 + 2, w3 + 2, c2), jnp.bfloat16),  # block 3
            pltpu.VMEM((nb * h3 * w3, 9 * c2), jnp.bfloat16),
            pltpu.VMEM((nb, h4 + 2, w4 + 2, c3), jnp.bfloat16),  # block 4
            pltpu.VMEM((nb * h4 * w4, 9 * c3), jnp.bfloat16),
        ],
        compiler_params=pltpu.CompilerParams(dimension_semantics=("parallel",)),
    )(*operands)


# ----------------------------------------------------------------------------- params
def init_params(key):
    """Deterministic synthetic parameters with the shapes of EnhancedCNN.__init__."""
    channels = [1, 32, 64, 128, 256]
    keys = jax.random.split(key, 4 * 6 + 4)
    ki = 0
    blocks = []
    for i in range(4):
        cin, cout = channels[i], channels[i + 1]
        w_hwio = 0.05 * jax.random.normal(keys[ki], (3, 3, cin, cout), jnp.float32); ki += 1
        conv_bias = 0.05 * jax.random.normal(keys[ki], (cout,), jnp.float32); ki += 1
        gamma = 1.0 + 0.1 * jax.random.normal(keys[ki], (cout,), jnp.float32); ki += 1
        beta = 0.1 * jax.random.normal(keys[ki], (cout,), jnp.float32); ki += 1
        rmean = 0.1 * jax.random.normal(keys[ki], (cout,), jnp.float32); ki += 1
        rvar = 1.0 + 0.1 * jnp.abs(jax.random.normal(keys[ki], (cout,), jnp.float32)); ki += 1
        # Fold conv bias + inference-mode BatchNorm into one affine: y = conv * scale + bias.
        scale = gamma / jnp.sqrt(rvar + BN_EPS)
        bias = beta + (conv_bias - rmean) * scale
        blocks.append((w_hwio, scale.reshape(1, cout), bias.reshape(1, cout)))
    w1 = 0.05 * jax.random.normal(keys[ki], (256, 512), jnp.float32); ki += 1
    b1 = 0.05 * jax.random.normal(keys[ki], (512,), jnp.float32).reshape(1, 512); ki += 1
    w2 = 0.05 * jax.random.normal(keys[ki], (512, 1), jnp.float32); ki += 1
    b2 = 0.05 * jax.random.normal(keys[ki], (1,), jnp.float32).reshape(1, 1); ki += 1
    return {"blocks": blocks, "w1": w1, "b1": b1, "w2": w2, "b2": b2}


# ----------------------------------------------------------------------------- pure-JAX reference
def reference_forward(x_nchw, params):
    x = jnp.transpose(x_nchw, (0, 2, 3, 1))
    for (w_hwio, scale, bias) in params["blocks"]:
        cout = w_hwio.shape[-1]
        y = lax.conv_general_dilated(
            x, w_hwio, window_strides=(1, 1), padding="SAME",
            dimension_numbers=("NHWC", "HWIO", "NHWC"),
            precision=lax.Precision.HIGHEST)
        y = y * scale.reshape(1, 1, 1, cout) + bias.reshape(1, 1, 1, cout)
        y = jnp.maximum(y, 0.0)
        x = lax.reduce_window(y, -jnp.inf, lax.max, (1, 2, 2, 1), (1, 2, 2, 1), "VALID")
    pooled = jnp.mean(x, axis=(1, 2))
    h = jnp.maximum(pooled @ params["w1"] + params["b1"], 0.0)
    logit = h @ params["w2"] + params["b2"]
    return jax.nn.sigmoid(logit)


# ----------------------------------------------------------------------------- main
if __name__ == "__main__":
    root = jax.random.PRNGKey(0)
    pkey, xkey = jax.random.split(root)
    params = init_params(pkey)

    # NCHW input consistent with the module: 1 input channel, 16x16 spatial
    # (16 -> 8 -> 4 -> 2 -> 1 across the four MaxPool2d(2) stages).
    x = jax.random.normal(xkey, (2, 1, 16, 16), jnp.float32)

    out = jax.block_until_ready(enhanced_cnn_forward(x, params))

    ref = reference_forward(x, params)
    assert out.shape == (2, 1), out.shape
    # bf16 MXU operands with f32 accumulation -> small tolerance vs the f32 reference.
    if not jnp.allclose(out, ref, atol=2e-2, rtol=2e-2):
        raise AssertionError(f"Pallas output mismatch:\n{out}\nvs reference:\n{ref}")

    print("KERNEL_OK")
</pallas_src>

<mosaic_0001>
module attributes {stable_mosaic.version = 11 : i64} {
  func.func @_fused_cnn_kernel(%arg0: i32, %arg1: memref<512x9xbf16, #tpu.memory_space<vmem>>, %arg2: memref<9x32xbf16, #tpu.memory_space<vmem>>, %arg3: memref<1x32xf32, #tpu.memory_space<vmem>>, %arg4: memref<288x64xbf16, #tpu.memory_space<vmem>>, %arg5: memref<1x64xf32, #tpu.memory_space<vmem>>, %arg6: memref<576x128xbf16, #tpu.memory_space<vmem>>, %arg7: memref<1x128xf32, #tpu.memory_space<vmem>>, %arg8: memref<1152x256xbf16, #tpu.memory_space<vmem>>, %arg9: memref<1x256xf32, #tpu.memory_space<vmem>>, %arg10: memref<256x512xbf16, #tpu.memory_space<vmem>>, %arg11: memref<1x512xf32, #tpu.memory_space<vmem>>, %arg12: memref<1x512xf32, #tpu.memory_space<vmem>>, %arg13: memref<1x1xf32, #tpu.memory_space<vmem>>, %arg14: memref<2x1xf32, #tpu.memory_space<vmem>>, %arg15: memref<2x10x10x32xbf16, #tpu.memory_space<vmem>>, %arg16: memref<128x288xbf16, #tpu.memory_space<vmem>>, %arg17: memref<2x6x6x64xbf16, #tpu.memory_space<vmem>>, %arg18: memref<32x576xbf16, #tpu.memory_space<vmem>>, %arg19: memref<2x4x4x128xbf16, #tpu.memory_space<vmem>>, %arg20: memref<8x1152xbf16, #tpu.memory_space<vmem>>) attributes {dimension_semantics = [#tpu.dimension_semantics<parallel>], iteration_bounds = array<i64: 1>, scalar_prefetch = 0 : i64, scratch_operands = 6 : i64, tpu.core_type = #tpu.core_type<tc>, window_params = [{transform_indices = @transform_0, window_bounds = array<i64: 512, 9>}, {pipeline_mode = #tpu.pipeline_mode<synchronous>, transform_indices = @transform_1, window_bounds = array<i64: 9, 32>}, {pipeline_mode = #tpu.pipeline_mode<synchronous>, transform_indices = @transform_2, window_bounds = array<i64: 1, 32>}, {pipeline_mode = #tpu.pipeline_mode<synchronous>, transform_indices = @transform_3, window_bounds = array<i64: 288, 64>}, {pipeline_mode = #tpu.pipeline_mode<synchronous>, transform_indices = @transform_4, window_bounds = array<i64: 1, 64>}, {pipeline_mode = #tpu.pipeline_mode<synchronous>, transform_indices = @transform_5, window_bounds = array<i64: 576, 128>}, {pipeline_mode = #tpu.pipeline_mode<synchronous>, transform_indices = @transform_6, window_bounds = array<i64: 1, 128>}, {pipeline_mode = #tpu.pipeline_mode<synchronous>, transform_indices = @transform_7, window_bounds = array<i64: 1152, 256>}, {pipeline_mode = #tpu.pipeline_mode<synchronous>, transform_indices = @transform_8, window_bounds = array<i64: 1, 256>}, {pipeline_mode = #tpu.pipeline_mode<synchronous>, transform_indices = @transform_9, window_bounds = array<i64: 256, 512>}, {pipeline_mode = #tpu.pipeline_mode<synchronous>, transform_indices = @transform_10, window_bounds = array<i64: 1, 512>}, {pipeline_mode = #tpu.pipeline_mode<synchronous>, transform_indices = @transform_11, window_bounds = array<i64: 1, 512>}, {pipeline_mode = #tpu.pipeline_mode<synchronous>, transform_indices = @transform_12, window_bounds = array<i64: 1, 1>}, {transform_indices = @transform_13, window_bounds = array<i64: 2, 1>}]} {
    %c0 = arith.constant 0 : index
    %c0_0 = arith.constant 0 : index
    %0 = vector.load %arg1[%c0, %c0_0] : memref<512x9xbf16, #tpu.memory_space<vmem>>, vector<512x9xbf16>
    %c0_1 = arith.constant 0 : index
    %c0_2 = arith.constant 0 : index
    %1 = vector.load %arg2[%c0_1, %c0_2] : memref<9x32xbf16, #tpu.memory_space<vmem>>, vector<9x32xbf16>
    %cst = arith.constant dense<0.000000e+00> : vector<512x32xf32>
    %2 = tpu.matmul %0, %1, %cst {dimension_numbers = #tpu.dot_dimension_numbers<[1], [0], [0], [1], [0, 0, 1, 1], [], []>} : vector<512x9xbf16>, vector<9x32xbf16>, vector<512x32xf32> -> vector<512x32xf32>
    %c0_3 = arith.constant 0 : index
    %c0_4 = arith.constant 0 : index
    %3 = vector.load %arg3[%c0_3, %c0_4] : memref<1x32xf32, #tpu.memory_space<vmem>>, vector<1x32xf32>
    %4 = vector.broadcast %3 : vector<1x32xf32> to vector<512x32xf32>
    %5 = arith.addf %2, %4 : vector<512x32xf32>
    %cst_5 = arith.constant 0.000000e+00 : f32
    %6 = vector.broadcast %cst_5 : f32 to vector<512x32xf32>
    %7 = arith.maximumf %5, %6 : vector<512x32xf32>
    %8 = vector.shape_cast %7 : vector<512x32xf32> to vector<2x16x16x32xf32>
    %9 = vector.shape_cast %8 : vector<2x16x16x32xf32> to vector<2x8x2x16x32xf32>
    %cst_6 = arith.constant dense<0xFF800000> : vector<2x8x16x32xf32>
    %10 = vector.multi_reduction <maximumf>, %9, %cst_6 [2] : vector<2x8x2x16x32xf32> to vector<2x8x16x32xf32>
    %11 = vector.shape_cast %10 : vector<2x8x16x32xf32> to vector<2x8x8x2x32xf32>
    %cst_7 = arith.constant dense<0xFF800000> : vector<2x8x8x32xf32>
    %12 = vector.multi_reduction <maximumf>, %11, %cst_7 [3] : vector<2x8x8x2x32xf32> to vector<2x8x8x32xf32>
    %cst_8 = arith.constant 0.000000e+00 : bf16
    %13 = vector.broadcast %cst_8 : bf16 to vector<2x10x10x32xbf16>
    %c0_9 = arith.constant 0 : index
    %c0_10 = arith.constant 0 : index
    %c0_11 = arith.constant 0 : index
    %c0_12 = arith.constant 0 : index
    %14 = vector.load %arg15[%c0_9, %c0_10, %c0_11, %c0_12] : memref<2x10x10x32xbf16, #tpu.memory_space<vmem>>, vector<2x10x10x32xbf16>
    tpu.vector_store %arg15[%c0_9, %c0_10, %c0_11, %c0_12], %13 {strides = array<i32>} : memref<2x10x10x32xbf16, #tpu.memory_space<vmem>>, vector<2x10x10x32xbf16>,
    %15 = arith.truncf %12 : vector<2x8x8x32xf32> to vector<2x8x8x32xbf16>
    %c0_13 = arith.constant 0 : index
    %c1 = arith.constant 1 : index
    %c1_14 = arith.constant 1 : index
    %c0_15 = arith.constant 0 : index
    %16 = vector.load %arg15[%c0_13, %c1, %c1_14, %c0_15] : memref<2x10x10x32xbf16, #tpu.memory_space<vmem>>, vector<2x8x8x32xbf16>
    tpu.vector_store %arg15[%c0_13, %c1, %c1_14, %c0_15], %15 {strides = array<i32>} : memref<2x10x10x32xbf16, #tpu.memory_space<vmem>>, vector<2x8x8x32xbf16>,
    %c0_16 = arith.constant 0 : index
    %c0_17 = arith.constant 0 : index
    %c0_18 = arith.constant 0 : index
    %c0_19 = arith.constant 0 : index
    %17 = vector.load %arg15[%c0_16, %c0_17, %c0_18, %c0_19] : memref<2x10x10x32xbf16, #tpu.memory_space<vmem>>, vector<2x8x8x32xbf16>
    %18 = vector.shape_cast %17 : vector<2x8x8x32xbf16> to vector<128x32xbf16>
    %c0_20 = arith.constant 0 : index
    %c0_21 = arith.constant 0 : index
    %19 = vector.load %arg16[%c0_20, %c0_21] : memref<128x288xbf16, #tpu.memory_space<vmem>>, vector<128x32xbf16>
    tpu.vector_store %arg16[%c0_20, %c0_21], %18 {strides = array<i32>} : memref<128x288xbf16, #tpu.memory_space<vmem>>, vector<128x32xbf16>,
    %c0_22 = arith.constant 0 : index
    %c0_23 = arith.constant 0 : index
    %c1_24 = arith.constant 1 : index
    %c0_25 = arith.constant 0 : index
    %20 = vector.load %arg15[%c0_22, %c0_23, %c1_24, %c0_25] : memref<2x10x10x32xbf16, #tpu.memory_space<vmem>>, vector<2x8x8x32xbf16>
    %21 = vector.shape_cast %20 : vector<2x8x8x32xbf16> to vector<128x32xbf16>
    %c0_26 = arith.constant 0 : index
    %c32 = arith.constant 32 : index
    %22 = vector.load %arg16[%c0_26, %c32] : memref<128x288xbf16, #tpu.memory_space<vmem>>, vector<128x32xbf16>
    tpu.vector_store %arg16[%c0_26, %c32], %21 {strides = array<i32>} : memref<128x288xbf16, #tpu.memory_space<vmem>>, vector<128x32xbf16>,
    %c0_27 = arith.constant 0 : index
    %c0_28 = arith.constant 0 : index
    %c2 = arith.constant 2 : index
    %c0_29 = arith.constant 0 : index
    %23 = vector.load %arg15[%c0_27, %c0_28, %c2, %c0_29] : memref<2x10x10x32xbf16, #tpu.memory_space<vmem>>, vector<2x8x8x32xbf16>
    %24 = vector.shape_cast %23 : vector<2x8x8x32xbf16> to vector<128x32xbf16>
    %c0_30 = arith.constant 0 : index
    %c64 = arith.constant 64 : index
    %25 = vector.load %arg16[%c0_30, %c64] : memref<128x288xbf16, #tpu.memory_space<vmem>>, vector<128x32xbf16>
    tpu.vector_store %arg16[%c0_30, %c64], %24 {strides = array<i32>} : memref<128x288xbf16, #tpu.memory_space<vmem>>, vector<128x32xbf16>,
    %c0_31 = arith.constant 0 : index
    %c1_32 = arith.constant 1 : index
    %c0_33 = arith.constant 0 : index
    %c0_34 = arith.constant 0 : index
    %26 = vector.load %arg15[%c0_31, %c1_32, %c0_33, %c0_34] : memref<2x10x10x32xbf16, #tpu.memory_space<vmem>>, vector<2x8x8x32xbf16>
    %27 = vector.shape_cast %26 : vector<2x8x8x32xbf16> to vector<128x32xbf16>
    %c0_35 = arith.constant 0 : index
    %c96 = arith.constant 96 : index
    %28 = vector.load %arg16[%c0_35, %c96] : memref<128x288xbf16, #tpu.memory_space<vmem>>, vector<128x32xbf16>
    tpu.vector_store %arg16[%c0_35, %c96], %27 {strides = array<i32>} : memref<128x288xbf16, #tpu.memory_space<vmem>>, vector<128x32xbf16>,
    %c0_36 = arith.constant 0 : index
    %c1_37 = arith.constant 1 : index
    %c1_38 = arith.constant 1 : index
    %c0_39 = arith.constant 0 : index
    %29 = vector.load %arg15[%c0_36, %c1_37, %c1_38, %c0_39] : memref<2x10x10x32xbf16, #tpu.memory_space<vmem>>, vector<2x8x8x32xbf16>
    %30 = vector.shape_cast %29 : vector<2x8x8x32xbf16> to vector<128x32xbf16>
    %c0_40 = arith.constant 0 : index
    %c128 = arith.constant 128 : index
    %31 = vector.load %arg16[%c0_40, %c128] : memref<128x288xbf16, #tpu.memory_space<vmem>>, vector<128x32xbf16>
    tpu.vector_store %arg16[%c0_40, %c128], %30 {strides = array<i32>} : memref<128x288xbf16, #tpu.memory_space<vmem>>, vector<128x32xbf16>,
    %c0_41 = arith.constant 0 : index
    %c1_42 = arith.constant 1 : index
    %c2_43 = arith.constant 2 : index
    %c0_44 = arith.constant 0 : index
    %32 = vector.load %arg15[%c0_41, %c1_42, %c2_43, %c0_44] : memref<2x10x10x32xbf16, #tpu.memory_space<vmem>>, vector<2x8x8x32xbf16>
    %33 = vector.shape_cast %32 : vector<2x8x8x32xbf16> to vector<128x32xbf16>
    %c0_45 = arith.constant 0 : index
    %c160 = arith.constant 160 : index
    %34 = vector.load %arg16[%c0_45, %c160] : memref<128x288xbf16, #tpu.memory_space<vmem>>, vector<128x32xbf16>
    tpu.vector_store %arg16[%c0_45, %c160], %33 {strides = array<i32>} : memref<128x288xbf16, #tpu.memory_space<vmem>>, vector<128x32xbf16>,
    %c0_46 = arith.constant 0 : index
    %c2_47 = arith.constant 2 : index
    %c0_48 = arith.constant 0 : index
    %c0_49 = arith.constant 0 : index
    %35 = vector.load %arg15[%c0_46, %c2_47, %c0_48, %c0_49] : memref<2x10x10x32xbf16, #tpu.memory_space<vmem>>, vector<2x8x8x32xbf16>
    %36 = vector.shape_cast %35 : vector<2x8x8x32xbf16> to vector<128x32xbf16>
    %c0_50 = arith.constant 0 : index
    %c192 = arith.constant 192 : index
    %37 = vector.load %arg16[%c0_50, %c192] : memref<128x288xbf16, #tpu.memory_space<vmem>>, vector<128x32xbf16>
    tpu.vector_store %arg16[%c0_50, %c192], %36 {strides = array<i32>} : memref<128x288xbf16, #tpu.memory_space<vmem>>, vector<128x32xbf16>,
    %c0_51 = arith.constant 0 : index
    %c2_52 = arith.constant 2 : index
    %c1_53 = arith.constant 1 : index
    %c0_54 = arith.constant 0 : index
    %38 = vector.load %arg15[%c0_51, %c2_52, %c1_53, %c0_54] : memref<2x10x10x32xbf16, #tpu.memory_space<vmem>>, vector<2x8x8x32xbf16>
    %39 = vector.shape_cast %38 : vector<2x8x8x32xbf16> to vector<128x32xbf16>
    %c0_55 = arith.constant 0 : index
    %c224 = arith.constant 224 : index
    %40 = vector.load %arg16[%c0_55, %c224] : memref<128x288xbf16, #tpu.memory_space<vmem>>, vector<128x32xbf16>
    tpu.vector_store %arg16[%c0_55, %c224], %39 {strides = array<i32>} : memref<128x288xbf16, #tpu.memory_space<vmem>>, vector<128x32xbf16>,
    %c0_56 = arith.constant 0 : index
    %c2_57 = arith.constant 2 : index
    %c2_58 = arith.constant 2 : index
    %c0_59 = arith.constant 0 : index
    %41 = vector.load %arg15[%c0_56, %c2_57, %c2_58, %c0_59] : memref<2x10x10x32xbf16, #tpu.memory_space<vmem>>, vector<2x8x8x32xbf16>
    %42 = vector.shape_cast %41 : vector<2x8x8x32xbf16> to vector<128x32xbf16>
    %c0_60 = arith.constant 0 : index
    %c256 = arith.constant 256 : index
    %43 = vector.load %arg16[%c0_60, %c256] : memref<128x288xbf16, #tpu.memory_space<vmem>>, vector<128x32xbf16>
    tpu.vector_store %arg16[%c0_60, %c256], %42 {strides = array<i32>} : memref<128x288xbf16, #tpu.memory_space<vmem>>, vector<128x32xbf16>,
    %c0_61 = arith.constant 0 : index
    %c0_62 = arith.constant 0 : index
    %44 = vector.load %arg16[%c0_61, %c0_62] : memref<128x288xbf16, #tpu.memory_space<vmem>>, vector<128x288xbf16>
    %c0_63 = arith.constant 0 : index
    %c0_64 = arith.constant 0 : index
    %45 = vector.load %arg4[%c0_63, %c0_64] : memref<288x64xbf16, #tpu.memory_space<vmem>>, vector<288x64xbf16>
    %cst_65 = arith.constant dense<0.000000e+00> : vector<128x64xf32>
    %46 = tpu.matmul %44, %45, %cst_65 {dimension_numbers = #tpu.dot_dimension_numbers<[1], [0], [0], [1], [0, 0, 1, 1], [], []>} : vector<128x288xbf16>, vector<288x64xbf16>, vector<128x64xf32> -> vector<128x64xf32>
    %c0_66 = arith.constant 0 : index
    %c0_67 = arith.constant 0 : index
    %47 = vector.load %arg5[%c0_66, %c0_67] : memref<1x64xf32, #tpu.memory_space<vmem>>, vector<1x64xf32>
    %48 = vector.broadcast %47 : vector<1x64xf32> to vector<128x64xf32>
    %49 = arith.addf %46, %48 : vector<128x64xf32>
    %cst_68 = arith.constant 0.000000e+00 : f32
    %50 = vector.broadcast %cst_68 : f32 to vector<128x64xf32>
    %51 = arith.maximumf %49, %50 : vector<128x64xf32>
    %52 = vector.shape_cast %51 : vector<128x64xf32> to vector<2x8x8x64xf32>
    %53 = vector.shape_cast %52 : vector<2x8x8x64xf32> to vector<2x4x2x8x64xf32>
    %cst_69 = arith.constant dense<0xFF800000> : vector<2x4x8x64xf32>
    %54 = vector.multi_reduction <maximumf>, %53, %cst_69 [2] : vector<2x4x2x8x64xf32> to vector<2x4x8x64xf32>
    %55 = vector.shape_cast %54 : vector<2x4x8x64xf32> to vector<2x4x4x2x64xf32>
    %cst_70 = arith.constant dense<0xFF800000> : vector<2x4x4x64xf32>
    %56 = vector.multi_reduction <maximumf>, %55, %cst_70 [3] : vector<2x4x4x2x64xf32> to vector<2x4x4x64xf32>
    %cst_71 = arith.constant 0.000000e+00 : bf16
    %57 = vector.broadcast %cst_71 : bf16 to vector<2x6x6x64xbf16>
    %c0_72 = arith.constant 0 : index
    %c0_73 = arith.constant 0 : index
    %c0_74 = arith.constant 0 : index
    %c0_75 = arith.constant 0 : index
    %58 = vector.load %arg17[%c0_72, %c0_73, %c0_74, %c0_75] : memref<2x6x6x64xbf16, #tpu.memory_space<vmem>>, vector<2x6x6x64xbf16>
    tpu.vector_store %arg17[%c0_72, %c0_73, %c0_74, %c0_75], %57 {strides = array<i32>} : memref<2x6x6x64xbf16, #tpu.memory_space<vmem>>, vector<2x6x6x64xbf16>,
    %59 = arith.truncf %56 : vector<2x4x4x64xf32> to vector<2x4x4x64xbf16>
    %c0_76 = arith.constant 0 : index
    %c1_77 = arith.constant 1 : index
    %c1_78 = arith.constant 1 : index
    %c0_79 = arith.constant 0 : index
    %60 = vector.load %arg17[%c0_76, %c1_77, %c1_78, %c0_79] : memref<2x6x6x64xbf16, #tpu.memory_space<vmem>>, vector<2x4x4x64xbf16>
    tpu.vector_store %arg17[%c0_76, %c1_77, %c1_78, %c0_79], %59 {strides = array<i32>} : memref<2x6x6x64xbf16, #tpu.memory_space<vmem>>, vector<2x4x4x64xbf16>,
    %c0_80 = arith.constant 0 : index
    %c0_81 = arith.constant 0 : index
    %c0_82 = arith.constant 0 : index
    %c0_83 = arith.constant 0 : index
    %61 = vector.load %arg17[%c0_80, %c0_81, %c0_82, %c0_83] : memref<2x6x6x64xbf16, #tpu.memory_space<vmem>>, vector<2x4x4x64xbf16>
    %62 = vector.shape_cast %61 : vector<2x4x4x64xbf16> to vector<32x64xbf16>
    %c0_84 = arith.constant 0 : index
    %c0_85 = arith.constant 0 : index
    %63 = vector.load %arg18[%c0_84, %c0_85] : memref<32x576xbf16, #tpu.memory_space<vmem>>, vector<32x64xbf16>
    tpu.vector_store %arg18[%c0_84, %c0_85], %62 {strides = array<i32>} : memref<32x576xbf16, #tpu.memory_space<vmem>>, vector<32x64xbf16>,
    %c0_86 = arith.constant 0 : index
    %c0_87 = arith.constant 0 : index
    %c1_88 = arith.constant 1 : index
    %c0_89 = arith.constant 0 : index
    %64 = vector.load %arg17[%c0_86, %c0_87, %c1_88, %c0_89] : memref<2x6x6x64xbf16, #tpu.memory_space<vmem>>, vector<2x4x4x64xbf16>
    %65 = vector.shape_cast %64 : vector<2x4x4x64xbf16> to vector<32x64xbf16>
    %c0_90 = arith.constant 0 : index
    %c64_91 = arith.constant 64 : index
    %66 = vector.load %arg18[%c0_90, %c64_91] : memref<32x576xbf16, #tpu.memory_space<vmem>>, vector<32x64xbf16>
    tpu.vector_store %arg18[%c0_90, %c64_91], %65 {strides = array<i32>} : memref<32x576xbf16, #tpu.memory_space<vmem>>, vector<32x64xbf16>,
    %c0_92 = arith.constant 0 : index
    %c0_93 = arith.constant 0 : index
    %c2_94 = arith.constant 2 : index
    %c0_95 = arith.constant 0 : index
    %67 = vector.load %arg17[%c0_92, %c0_93, %c2_94, %c0_95] : memref<2x6x6x64xbf16, #tpu.memory_space<vmem>>, vector<2x4x4x64xbf16>
    %68 = vector.shape_cast %67 : vector<2x4x4x64xbf16> to vector<32x64xbf16>
    %c0_96 = arith.constant 0 : index
    %c128_97 = arith.constant 128 : index
    %69 = vector.load %arg18[%c0_96, %c128_97] : memref<32x576xbf16, #tpu.memory_space<vmem>>, vector<32x64xbf16>
    tpu.vector_store %arg18[%c0_96, %c128_97], %68 {strides = array<i32>} : memref<32x576xbf16, #tpu.memory_space<vmem>>, vector<32x64xbf16>,
    %c0_98 = arith.constant 0 : index
    %c1_99 = arith.constant 1 : index
    %c0_100 = arith.constant 0 : index
    %c0_101 = arith.constant 0 : index
    %70 = vector.load %arg17[%c0_98, %c1_99, %c0_100, %c0_101] : memref<2x6x6x64xbf16, #tpu.memory_space<vmem>>, vector<2x4x4x64xbf16>
    %71 = vector.shape_cast %70 : vector<2x4x4x64xbf16> to vector<32x64xbf16>
    %c0_102 = arith.constant 0 : index
    %c192_103 = arith.constant 192 : index
    %72 = vector.load %arg18[%c0_102, %c192_103] : memref<32x576xbf16, #tpu.memory_space<vmem>>, vector<32x64xbf16>
    tpu.vector_store %arg18[%c0_102, %c192_103], %71 {strides = array<i32>} : memref<32x576xbf16, #tpu.memory_space<vmem>>, vector<32x64xbf16>,
    %c0_104 = arith.constant 0 : index
    %c1_105 = arith.constant 1 : index
    %c1_106 = arith.constant 1 : index
    %c0_107 = arith.constant 0 : index
    %73 = vector.load %arg17[%c0_104, %c1_105, %c1_106, %c0_107] : memref<2x6x6x64xbf16, #tpu.memory_space<vmem>>, vector<2x4x4x64xbf16>
    %74 = vector.shape_cast %73 : vector<2x4x4x64xbf16> to vector<32x64xbf16>
    %c0_108 = arith.constant 0 : index
    %c256_109 = arith.constant 256 : index
    %75 = vector.load %arg18[%c0_108, %c256_109] : memref<32x576xbf16, #tpu.memory_space<vmem>>, vector<32x64xbf16>
    tpu.vector_store %arg18[%c0_108, %c256_109], %74 {strides = array<i32>} : memref<32x576xbf16, #tpu.memory_space<vmem>>, vector<32x64xbf16>,
    %c0_110 = arith.constant 0 : index
    %c1_111 = arith.constant 1 : index
    %c2_112 = arith.constant 2 : index
    %c0_113 = arith.constant 0 : index
    %76 = vector.load %arg17[%c0_110, %c1_111, %c2_112, %c0_113] : memref<2x6x6x64xbf16, #tpu.memory_space<vmem>>, vector<2x4x4x64xbf16>
    %77 = vector.shape_cast %76 : vector<2x4x4x64xbf16> to vector<32x64xbf16>
    %c0_114 = arith.constant 0 : index
    %c320 = arith.constant 320 : index
    %78 = vector.load %arg18[%c0_114, %c320] : memref<32x576xbf16, #tpu.memory_space<vmem>>, vector<32x64xbf16>
    tpu.vector_store %arg18[%c0_114, %c320], %77 {strides = array<i32>} : memref<32x576xbf16, #tpu.memory_space<vmem>>, vector<32x64xbf16>,
    %c0_115 = arith.constant 0 : index
    %c2_116 = arith.constant 2 : index
    %c0_117 = arith.constant 0 : index
    %c0_118 = arith.constant 0 : index
    %79 = vector.load %arg17[%c0_115, %c2_116, %c0_117, %c0_118] : memref<2x6x6x64xbf16, #tpu.memory_space<vmem>>, vector<2x4x4x64xbf16>
    %80 = vector.shape_cast %79 : vector<2x4x4x64xbf16> to vector<32x64xbf16>
    %c0_119 = arith.constant 0 : index
    %c384 = arith.constant 384 : index
    %81 = vector.load %arg18[%c0_119, %c384] : memref<32x576xbf16, #tpu.memory_space<vmem>>, vector<32x64xbf16>
    tpu.vector_store %arg18[%c0_119, %c384], %80 {strides = array<i32>} : memref<32x576xbf16, #tpu.memory_space<vmem>>, vector<32x64xbf16>,
    %c0_120 = arith.constant 0 : index
    %c2_121 = arith.constant 2 : index
    %c1_122 = arith.constant 1 : index
    %c0_123 = arith.constant 0 : index
    %82 = vector.load %arg17[%c0_120, %c2_121, %c1_122, %c0_123] : memref<2x6x6x64xbf16, #tpu.memory_space<vmem>>, vector<2x4x4x64xbf16>
    %83 = vector.shape_cast %82 : vector<2x4x4x64xbf16> to vector<32x64xbf16>
    %c0_124 = arith.constant 0 : index
    %c448 = arith.constant 448 : index
    %84 = vector.load %arg18[%c0_124, %c448] : memref<32x576xbf16, #tpu.memory_space<vmem>>, vector<32x64xbf16>
    tpu.vector_store %arg18[%c0_124, %c448], %83 {strides = array<i32>} : memref<32x576xbf16, #tpu.memory_space<vmem>>, vector<32x64xbf16>,
    %c0_125 = arith.constant 0 : index
    %c2_126 = arith.constant 2 : index
    %c2_127 = arith.constant 2 : index
    %c0_128 = arith.constant 0 : index
    %85 = vector.load %arg17[%c0_125, %c2_126, %c2_127, %c0_128] : memref<2x6x6x64xbf16, #tpu.memory_space<vmem>>, vector<2x4x4x64xbf16>
    %86 = vector.shape_cast %85 : vector<2x4x4x64xbf16> to vector<32x64xbf16>
    %c0_129 = arith.constant 0 : index
    %c512 = arith.constant 512 : index
    %87 = vector.load %arg18[%c0_129, %c512] : memref<32x576xbf16, #tpu.memory_space<vmem>>, vector<32x64xbf16>
    tpu.vector_store %arg18[%c0_129, %c512], %86 {strides = array<i32>} : memref<32x576xbf16, #tpu.memory_space<vmem>>, vector<32x64xbf16>,
    %c0_130 = arith.constant 0 : index
    %c0_131 = arith.constant 0 : index
    %88 = vector.load %arg18[%c0_130, %c0_131] : memref<32x576xbf16, #tpu.memory_space<vmem>>, vector<32x576xbf16>
    %c0_132 = arith.constant 0 : index
    %c0_133 = arith.constant 0 : index
    %89 = vector.load %arg6[%c0_132, %c0_133] : memref<576x128xbf16, #tpu.memory_space<vmem>>, vector<576x128xbf16>
    %cst_134 = arith.constant dense<0.000000e+00> : vector<32x128xf32>
    %90 = tpu.matmul %88, %89, %cst_134 {dimension_numbers = #tpu.dot_dimension_numbers<[1], [0], [0], [1], [0, 0, 1, 1], [], []>} : vector<32x576xbf16>, vector<576x128xbf16>, vector<32x128xf32> -> vector<32x128xf32>
    %c0_135 = arith.constant 0 : index
    %c0_136 = arith.constant 0 : index
    %91 = vector.load %arg7[%c0_135, %c0_136] : memref<1x128xf32, #tpu.memory_space<vmem>>, vector<1x128xf32>
    %92 = vector.broadcast %91 : vector<1x128xf32> to vector<32x128xf32>
    %93 = arith.addf %90, %92 : vector<32x128xf32>
    %cst_137 = arith.constant 0.000000e+00 : f32
    %94 = vector.broadcast %cst_137 : f32 to vector<32x128xf32>
    %95 = arith.maximumf %93, %94 : vector<32x128xf32>
    %96 = vector.shape_cast %95 : vector<32x128xf32> to vector<2x4x4x128xf32>
    %97 = vector.shape_cast %96 : vector<2x4x4x128xf32> to vector<2x2x2x4x128xf32>
    %cst_138 = arith.constant dense<0xFF800000> : vector<2x2x4x128xf32>
    %98 = vector.multi_reduction <maximumf>, %97, %cst_138 [2] : vector<2x2x2x4x128xf32> to vector<2x2x4x128xf32>
    %99 = vector.shape_cast %98 : vector<2x2x4x128xf32> to vector<2x2x2x2x128xf32>
    %cst_139 = arith.constant dense<0xFF800000> : vector<2x2x2x128xf32>
    %100 = vector.multi_reduction <maximumf>, %99, %cst_139 [3] : vector<2x2x2x2x128xf32> to vector<2x2x2x128xf32>
    %cst_140 = arith.constant 0.000000e+00 : bf16
    %101 = vector.broadcast %cst_140 : bf16 to vector<2x4x4x128xbf16>
    %c0_141 = arith.constant 0 : index
    %c0_142 = arith.constant 0 : index
    %c0_143 = arith.constant 0 : index
    %c0_144 = arith.constant 0 : index
    %102 = vector.load %arg19[%c0_141, %c0_142, %c0_143, %c0_144] : memref<2x4x4x128xbf16, #tpu.memory_space<vmem>>, vector<2x4x4x128xbf16>
    tpu.vector_store %arg19[%c0_141, %c0_142, %c0_143, %c0_144], %101 {strides = array<i32>} : memref<2x4x4x128xbf16, #tpu.memory_space<vmem>>, vector<2x4x4x128xbf16>,
    %103 = arith.truncf %100 : vector<2x2x2x128xf32> to vector<2x2x2x128xbf16>
    %c0_145 = arith.constant 0 : index
    %c1_146 = arith.constant 1 : index
    %c1_147 = arith.constant 1 : index
    %c0_148 = arith.constant 0 : index
    %104 = vector.load %arg19[%c0_145, %c1_146, %c1_147, %c0_148] : memref<2x4x4x128xbf16, #tpu.memory_space<vmem>>, vector<2x2x2x128xbf16>
    tpu.vector_store %arg19[%c0_145, %c1_146, %c1_147, %c0_148], %103 {strides = array<i32>} : memref<2x4x4x128xbf16, #tpu.memory_space<vmem>>, vector<2x2x2x128xbf16>,
    %c0_149 = arith.constant 0 : index
    %c0_150 = arith.constant 0 : index
    %c0_151 = arith.constant 0 : index
    %c0_152 = arith.constant 0 : index
    %105 = vector.load %arg19[%c0_149, %c0_150, %c0_151, %c0_152] : memref<2x4x4x128xbf16, #tpu.memory_space<vmem>>, vector<2x2x2x128xbf16>
    %106 = vector.shape_cast %105 : vector<2x2x2x128xbf16> to vector<8x128xbf16>
    %c0_153 = arith.constant 0 : index
    %c0_154 = arith.constant 0 : index
    %107 = vector.load %arg20[%c0_153, %c0_154] : memref<8x1152xbf16, #tpu.memory_space<vmem>>, vector<8x128xbf16>
    tpu.vector_store %arg20[%c0_153, %c0_154], %106 {strides = array<i32>} : memref<8x1152xbf16, #tpu.memory_space<vmem>>, vector<8x128xbf16>,
    %c0_155 = arith.constant 0 : index
    %c0_156 = arith.constant 0 : index
    %c1_157 = arith.constant 1 : index
    %c0_158 = arith.constant 0 : index
    %108 = vector.load %arg19[%c0_155, %c0_156, %c1_157, %c0_158] : memref<2x4x4x128xbf16, #tpu.memory_space<vmem>>, vector<2x2x2x128xbf16>
    %109 = vector.shape_cast %108 : vector<2x2x2x128xbf16> to vector<8x128xbf16>
    %c0_159 = arith.constant 0 : index
    %c128_160 = arith.constant 128 : index
    %110 = vector.load %arg20[%c0_159, %c128_160] : memref<8x1152xbf16, #tpu.memory_space<vmem>>, vector<8x128xbf16>
    tpu.vector_store %arg20[%c0_159, %c128_160], %109 {strides = array<i32>} : memref<8x1152xbf16, #tpu.memory_space<vmem>>, vector<8x128xbf16>,
    %c0_161 = arith.constant 0 : index
    %c0_162 = arith.constant 0 : index
    %c2_163 = arith.constant 2 : index
    %c0_164 = arith.constant 0 : index
    %111 = vector.load %arg19[%c0_161, %c0_162, %c2_163, %c0_164] : memref<2x4x4x128xbf16, #tpu.memory_space<vmem>>, vector<2x2x2x128xbf16>
    %112 = vector.shape_cast %111 : vector<2x2x2x128xbf16> to vector<8x128xbf16>
    %c0_165 = arith.constant 0 : index
    %c256_166 = arith.constant 256 : index
    %113 = vector.load %arg20[%c0_165, %c256_166] : memref<8x1152xbf16, #tpu.memory_space<vmem>>, vector<8x128xbf16>
    tpu.vector_store %arg20[%c0_165, %c256_166], %112 {strides = array<i32>} : memref<8x1152xbf16, #tpu.memory_space<vmem>>, vector<8x128xbf16>,
    %c0_167 = arith.constant 0 : index
    %c1_168 = arith.constant 1 : index
    %c0_169 = arith.constant 0 : index
    %c0_170 = arith.constant 0 : index
    %114 = vector.load %arg19[%c0_167, %c1_168, %c0_169, %c0_170] : memref<2x4x4x128xbf16, #tpu.memory_space<vmem>>, vector<2x2x2x128xbf16>
    %115 = vector.shape_cast %114 : vector<2x2x2x128xbf16> to vector<8x128xbf16>
    %c0_171 = arith.constant 0 : index
    %c384_172 = arith.constant 384 : index
    %116 = vector.load %arg20[%c0_171, %c384_172] : memref<8x1152xbf16, #tpu.memory_space<vmem>>, vector<8x128xbf16>
    tpu.vector_store %arg20[%c0_171, %c384_172], %115 {strides = array<i32>} : memref<8x1152xbf16, #tpu.memory_space<vmem>>, vector<8x128xbf16>,
    %c0_173 = arith.constant 0 : index
    %c1_174 = arith.constant 1 : index
    %c1_175 = arith.constant 1 : index
    %c0_176 = arith.constant 0 : index
    %117 = vector.load %arg19[%c0_173, %c1_174, %c1_175, %c0_176] : memref<2x4x4x128xbf16, #tpu.memory_space<vmem>>, vector<2x2x2x128xbf16>
    %118 = vector.shape_cast %117 : vector<2x2x2x128xbf16> to vector<8x128xbf16>
    %c0_177 = arith.constant 0 : index
    %c512_178 = arith.constant 512 : index
    %119 = vector.load %arg20[%c0_177, %c512_178] : memref<8x1152xbf16, #tpu.memory_space<vmem>>, vector<8x128xbf16>
    tpu.vector_store %arg20[%c0_177, %c512_178], %118 {strides = array<i32>} : memref<8x1152xbf16, #tpu.memory_space<vmem>>, vector<8x128xbf16>,
    %c0_179 = arith.constant 0 : index
    %c1_180 = arith.constant 1 : index
    %c2_181 = arith.constant 2 : index
    %c0_182 = arith.constant 0 : index
    %120 = vector.load %arg19[%c0_179, %c1_180, %c2_181, %c0_182] : memref<2x4x4x128xbf16, #tpu.memory_space<vmem>>, vector<2x2x2x128xbf16>
    %121 = vector.shape_cast %120 : vector<2x2x2x128xbf16> to vector<8x128xbf16>
    %c0_183 = arith.constant 0 : index
    %c640 = arith.constant 640 : index
    %122 = vector.load %arg20[%c0_183, %c640] : memref<8x1152xbf16, #tpu.memory_space<vmem>>, vector<8x128xbf16>
    tpu.vector_store %arg20[%c0_183, %c640], %121 {strides = array<i32>} : memref<8x1152xbf16, #tpu.memory_space<vmem>>, vector<8x128xbf16>,
    %c0_184 = arith.constant 0 : index
    %c2_185 = arith.constant 2 : index
    %c0_186 = arith.constant 0 : index
    %c0_187 = arith.constant 0 : index
    %123 = vector.load %arg19[%c0_184, %c2_185, %c0_186, %c0_187] : memref<2x4x4x128xbf16, #tpu.memory_space<vmem>>, vector<2x2x2x128xbf16>
    %124 = vector.shape_cast %123 : vector<2x2x2x128xbf16> to vector<8x128xbf16>
    %c0_188 = arith.constant 0 : index
    %c768 = arith.constant 768 : index
    %125 = vector.load %arg20[%c0_188, %c768] : memref<8x1152xbf16, #tpu.memory_space<vmem>>, vector<8x128xbf16>
    tpu.vector_store %arg20[%c0_188, %c768], %124 {strides = array<i32>} : memref<8x1152xbf16, #tpu.memory_space<vmem>>, vector<8x128xbf16>,
    %c0_189 = arith.constant 0 : index
    %c2_190 = arith.constant 2 : index
    %c1_191 = arith.constant 1 : index
    %c0_192 = arith.constant 0 : index
    %126 = vector.load %arg19[%c0_189, %c2_190, %c1_191, %c0_192] : memref<2x4x4x128xbf16, #tpu.memory_space<vmem>>, vector<2x2x2x128xbf16>
    %127 = vector.shape_cast %126 : vector<2x2x2x128xbf16> to vector<8x128xbf16>
    %c0_193 = arith.constant 0 : index
    %c896 = arith.constant 896 : index
    %128 = vector.load %arg20[%c0_193, %c896] : memref<8x1152xbf16, #tpu.memory_space<vmem>>, vector<8x128xbf16>
    tpu.vector_store %arg20[%c0_193, %c896], %127 {strides = array<i32>} : memref<8x1152xbf16, #tpu.memory_space<vmem>>, vector<8x128xbf16>,
    %c0_194 = arith.constant 0 : index
    %c2_195 = arith.constant 2 : index
    %c2_196 = arith.constant 2 : index
    %c0_197 = arith.constant 0 : index
    %129 = vector.load %arg19[%c0_194, %c2_195, %c2_196, %c0_197] : memref<2x4x4x128xbf16, #tpu.memory_space<vmem>>, vector<2x2x2x128xbf16>
    %130 = vector.shape_cast %129 : vector<2x2x2x128xbf16> to vector<8x128xbf16>
    %c0_198 = arith.constant 0 : index
    %c1024 = arith.constant 1024 : index
    %131 = vector.load %arg20[%c0_198, %c1024] : memref<8x1152xbf16, #tpu.memory_space<vmem>>, vector<8x128xbf16>
    tpu.vector_store %arg20[%c0_198, %c1024], %130 {strides = array<i32>} : memref<8x1152xbf16, #tpu.memory_space<vmem>>, vector<8x128xbf16>,
    %c0_199 = arith.constant 0 : index
    %c0_200 = arith.constant 0 : index
    %132 = vector.load %arg20[%c0_199, %c0_200] : memref<8x1152xbf16, #tpu.memory_space<vmem>>, vector<8x1152xbf16>
    %c0_201 = arith.constant 0 : index
    %c0_202 = arith.constant 0 : index
    %133 = vector.load %arg8[%c0_201, %c0_202] : memref<1152x256xbf16, #tpu.memory_space<vmem>>, vector<1152x256xbf16>
    %cst_203 = arith.constant dense<0.000000e+00> : vector<8x256xf32>
    %134 = tpu.matmul %132, %133, %cst_203 {dimension_numbers = #tpu.dot_dimension_numbers<[1], [0], [0], [1], [0, 0, 1, 1], [], []>} : vector<8x1152xbf16>, vector<1152x256xbf16>, vector<8x256xf32> -> vector<8x256xf32>
    %c0_204 = arith.constant 0 : index
    %c0_205 = arith.constant 0 : index
    %135 = vector.load %arg9[%c0_204, %c0_205] : memref<1x256xf32, #tpu.memory_space<vmem>>, vector<1x256xf32>
    %136 = vector.broadcast %135 : vector<1x256xf32> to vector<8x256xf32>
    %137 = arith.addf %134, %136 : vector<8x256xf32>
    %cst_206 = arith.constant 0.000000e+00 : f32
    %138 = vector.broadcast %cst_206 : f32 to vector<8x256xf32>
    %139 = arith.maximumf %137, %138 : vector<8x256xf32>
    %140 = vector.shape_cast %139 : vector<8x256xf32> to vector<2x2x2x256xf32>
    %141 = vector.shape_cast %140 : vector<2x2x2x256xf32> to vector<2x1x2x2x256xf32>
    %cst_207 = arith.constant dense<0xFF800000> : vector<2x1x2x256xf32>
    %142 = vector.multi_reduction <maximumf>, %141, %cst_207 [2] : vector<2x1x2x2x256xf32> to vector<2x1x2x256xf32>
    %143 = vector.shape_cast %142 : vector<2x1x2x256xf32> to vector<2x1x1x2x256xf32>
    %cst_208 = arith.constant dense<0xFF800000> : vector<2x1x1x256xf32>
    %144 = vector.multi_reduction <maximumf>, %143, %cst_208 [3] : vector<2x1x1x2x256xf32> to vector<2x1x1x256xf32>
    %cst_209 = arith.constant dense<0.000000e+00> : vector<2x1x256xf32>
    %145 = vector.multi_reduction <add>, %144, %cst_209 [1] : vector<2x1x1x256xf32> to vector<2x1x256xf32>
    %cst_210 = arith.constant 1.000000e+00 : f32
    %146 = vector.broadcast %cst_210 : f32 to vector<2x1x256xf32>
    %147 = arith.divf %145, %146 : vector<2x1x256xf32>
    %cst_211 = arith.constant dense<0.000000e+00> : vector<2x256xf32>
    %148 = vector.multi_reduction <add>, %147, %cst_211 [1] : vector<2x1x256xf32> to vector<2x256xf32>
    %cst_212 = arith.constant 1.000000e+00 : f32
    %149 = vector.broadcast %cst_212 : f32 to vector<2x256xf32>
    %150 = arith.divf %148, %149 : vector<2x256xf32>
    %151 = arith.truncf %150 : vector<2x256xf32> to vector<2x256xbf16>
    %c0_213 = arith.constant 0 : index
    %c0_214 = arith.constant 0 : index
    %152 = vector.load %arg10[%c0_213, %c0_214] : memref<256x512xbf16, #tpu.memory_space<vmem>>, vector<256x512xbf16>
    %cst_215 = arith.constant dense<0.000000e+00> : vector<2x512xf32>
    %153 = tpu.matmul %151, %152, %cst_215 {dimension_numbers = #tpu.dot_dimension_numbers<[1], [0], [0], [1], [0, 0, 1, 1], [], []>} : vector<2x256xbf16>, vector<256x512xbf16>, vector<2x512xf32> -> vector<2x512xf32>
    %c0_216 = arith.constant 0 : index
    %c0_217 = arith.constant 0 : index
    %154 = vector.load %arg11[%c0_216, %c0_217] : memref<1x512xf32, #tpu.memory_space<vmem>>, vector<1x512xf32>
    %155 = vector.broadcast %154 : vector<1x512xf32> to vector<2x512xf32>
    %156 = arith.addf %153, %155 : vector<2x512xf32>
    %cst_218 = arith.constant 0.000000e+00 : f32
    %157 = vector.broadcast %cst_218 : f32 to vector<2x512xf32>
    %158 = arith.maximumf %156, %157 : vector<2x512xf32>
    %c0_219 = arith.constant 0 : index
    %c0_220 = arith.constant 0 : index
    %159 = vector.load %arg12[%c0_219, %c0_220] : memref<1x512xf32, #tpu.memory_space<vmem>>, vector<1x512xf32>
    %160 = vector.broadcast %159 : vector<1x512xf32> to vector<2x512xf32>
    %161 = arith.mulf %158, %160 : vector<2x512xf32>
    %cst_221 = arith.constant dense<0.000000e+00> : vector<2xf32>
    %162 = vector.multi_reduction <add>, %161, %cst_221 [1] : vector<2x512xf32> to vector<2xf32>
    %163 = vector.shape_cast %162 : vector<2xf32> to vector<2x1xf32>
    %c0_222 = arith.constant 0 : index
    %c0_223 = arith.constant 0 : index
    %164 = vector.load %arg13[%c0_222, %c0_223] : memref<1x1xf32, #tpu.memory_space<vmem>>, vector<1x1xf32>
    %165 = vector.broadcast %164 : vector<1x1xf32> to vector<2x1xf32>
    %166 = arith.addf %163, %165 : vector<2x1xf32>
    %cst_224 = arith.constant 0.000000e+00 : f32
    %167 = vector.broadcast %cst_224 : f32 to vector<2x1xf32>
    %168 = arith.subf %167, %166 : vector<2x1xf32>
    %169 = math.exp %168 : vector<2x1xf32>
    %cst_225 = arith.constant 1.000000e+00 : f32
    %170 = vector.broadcast %cst_225 : f32 to vector<2x1xf32>
    %171 = arith.addf %170, %169 : vector<2x1xf32>
    %cst_226 = arith.constant 1.000000e+00 : f32
    %172 = vector.broadcast %cst_226 : f32 to vector<2x1xf32>
    %173 = arith.divf %172, %171 : vector<2x1xf32>
    %c0_227 = arith.constant 0 : index
    %c0_228 = arith.constant 0 : index
    %174 = vector.load %arg14[%c0_227, %c0_228] : memref<2x1xf32, #tpu.memory_space<vmem>>, vector<2x1xf32>
    tpu.vector_store %arg14[%c0_227, %c0_228], %173 {strides = array<i32>} : memref<2x1xf32, #tpu.memory_space<vmem>>, vector<2x1xf32>,
    return
  }
  func.func @transform_0(%arg0: i32) -> (i32, i32) {
    %c0_i32 = arith.constant 0 : i32
    %c0_i32_0 = arith.constant 0 : i32
    return %arg0, %c0_i32 : i32, i32
  }
  func.func @transform_1(%arg0: i32) -> (i32, i32) {
    %c0_i32 = arith.constant 0 : i32
    %c0_i32_0 = arith.constant 0 : i32
    %c0_i32_1 = arith.constant 0 : i32
    return %c0_i32, %c0_i32_0 : i32, i32
  }
  func.func @transform_2(%arg0: i32) -> (i32, i32) {
    %c0_i32 = arith.constant 0 : i32
    %c0_i32_0 = arith.constant 0 : i32
    %c0_i32_1 = arith.constant 0 : i32
    return %c0_i32, %c0_i32_0 : i32, i32
  }
  func.func @transform_3(%arg0: i32) -> (i32, i32) {
    %c0_i32 = arith.constant 0 : i32
    %c0_i32_0 = arith.constant 0 : i32
    %c0_i32_1 = arith.constant 0 : i32
    return %c0_i32, %c0_i32_0 : i32, i32
  }
  func.func @transform_4(%arg0: i32) -> (i32, i32) {
    %c0_i32 = arith.constant 0 : i32
    %c0_i32_0 = arith.constant 0 : i32
    %c0_i32_1 = arith.constant 0 : i32
    return %c0_i32, %c0_i32_0 : i32, i32
  }
  func.func @transform_5(%arg0: i32) -> (i32, i32) {
    %c0_i32 = arith.constant 0 : i32
    %c0_i32_0 = arith.constant 0 : i32
    %c0_i32_1 = arith.constant 0 : i32
    return %c0_i32, %c0_i32_0 : i32, i32
  }
  func.func @transform_6(%arg0: i32) -> (i32, i32) {
    %c0_i32 = arith.constant 0 : i32
    %c0_i32_0 = arith.constant 0 : i32
    %c0_i32_1 = arith.constant 0 : i32
    return %c0_i32, %c0_i32_0 : i32, i32
  }
  func.func @transform_7(%arg0: i32) -> (i32, i32) {
    %c0_i32 = arith.constant 0 : i32
    %c0_i32_0 = arith.constant 0 : i32
    %c0_i32_1 = arith.constant 0 : i32
    return %c0_i32, %c0_i32_0 : i32, i32
  }
  func.func @transform_8(%arg0: i32) -> (i32, i32) {
    %c0_i32 = arith.constant 0 : i32
    %c0_i32_0 = arith.constant 0 : i32
    %c0_i32_1 = arith.constant 0 : i32
    return %c0_i32, %c0_i32_0 : i32, i32
  }
  func.func @transform_9(%arg0: i32) -> (i32, i32) {
    %c0_i32 = arith.constant 0 : i32
    %c0_i32_0 = arith.constant 0 : i32
    %c0_i32_1 = arith.constant 0 : i32
    return %c0_i32, %c0_i32_0 : i32, i32
  }
  func.func @transform_10(%arg0: i32) -> (i32, i32) {
    %c0_i32 = arith.constant 0 : i32
    %c0_i32_0 = arith.constant 0 : i32
    %c0_i32_1 = arith.constant 0 : i32
    return %c0_i32, %c0_i32_0 : i32, i32
  }
  func.func @transform_11(%arg0: i32) -> (i32, i32) {
    %c0_i32 = arith.constant 0 : i32
    %c0_i32_0 = arith.constant 0 : i32
    %c0_i32_1 = arith.constant 0 : i32
    return %c0_i32, %c0_i32_0 : i32, i32
  }
  func.func @transform_12(%arg0: i32) -> (i32, i32) {
    %c0_i32 = arith.constant 0 : i32
    %c0_i32_0 = arith.constant 0 : i32
    %c0_i32_1 = arith.constant 0 : i32
    return %c0_i32, %c0_i32_0 : i32, i32
  }
  func.func @transform_13(%arg0: i32) -> (i32, i32) {
    %c0_i32 = arith.constant 0 : i32
    %c0_i32_0 = arith.constant 0 : i32
    return %arg0, %c0_i32 : i32, i32
  }
}

</mosaic_0001>

<llo_original>
// kernel: enhanced_cnn_forward.1
$region0: #{enhanced_cnn_forward.1}
  #allocation0 [shape = 'u32[]', space=smem, size = 0x4, offset = 0x4, fixed_abs, tag = 'smem constant byte address 0x4 - core index']
  #allocation1 [shape = 'u32[144,128]{1,0:T(1,128)}', space=vmem, size = 0x12000, scoped, tag = 'internal scratch']
  #allocation2 [shape = 'bf16[2,10,10,32]{3,2,1,0:T(8,128)(2,1)}', space=vmem, size = 0x14000, scoped, tag = 'scratch operand']
  #allocation3 [shape = 'bf16[128,288]{1,0:T(8,128)(2,1)}', space=vmem, size = 0x18000, scoped, tag = 'scratch operand']
  #allocation4 [shape = 'bf16[2,6,6,64]{3,2,1,0:T(8,128)(2,1)}', space=vmem, size = 0x6000, scoped, tag = 'scratch operand']
  #allocation5 [shape = 'bf16[32,576]{1,0:T(8,128)(2,1)}', space=vmem, size = 0xa000, scoped, tag = 'scratch operand']
  #allocation6 [shape = 'bf16[2,4,4,128]{3,2,1,0:T(4,128)(2,1)}', space=vmem, size = 0x2000, scoped, tag = 'scratch operand']
  #allocation7 [shape = 'bf16[8,1152]{1,0:T(8,128)(2,1)}', space=vmem, size = 0x4800, scoped, tag = 'scratch operand']
  #allocation8 [shape = 'f32[1,1]{1,0:T(1,128)S(1)}', space=vmem, size = 0x200, scoped, tag = 'scoped memory for enhanced_cnn_forward.1']
  %s0 = inlined_call_operand.vmem [shape: bf16[512,9], index: 0, kind: input, shape index: {}]
  %s1 = inlined_call_operand.vmem [shape: bf16[9,32], index: 1, kind: input, shape index: {}]
  %s2 = inlined_call_operand.vmem [shape: f32[1,32], index: 2, kind: input, shape index: {}]
  %s3 = inlined_call_operand.vmem [shape: bf16[288,64], index: 3, kind: input, shape index: {}]
  %s4 = inlined_call_operand.vmem [shape: f32[1,64], index: 4, kind: input, shape index: {}]
  %s5 = inlined_call_operand.vmem [shape: bf16[576,128], index: 5, kind: input, shape index: {}]
  %s6 = inlined_call_operand.vmem [shape: f32[1,128], index: 6, kind: input, shape index: {}]
  %s7 = inlined_call_operand.vmem [shape: bf16[1152,256], index: 7, kind: input, shape index: {}]
  %s8 = inlined_call_operand.vmem [shape: f32[1,256], index: 8, kind: input, shape index: {}]
  %s9 = inlined_call_operand.vmem [shape: bf16[256,512], index: 9, kind: input, shape index: {}]
  %s10 = inlined_call_operand.vmem [shape: f32[1,512], index: 10, kind: input, shape index: {}]
  %s11 = inlined_call_operand.vmem [shape: f32[1,512], index: 11, kind: input, shape index: {}]
  %s12 = inlined_call_operand.<no memory space> [shape: f32[1,1], index: 12, kind: input, shape index: {}]
  %s13 = inlined_call_operand.vmem [shape: f32[2,1], index: 13, kind: output, shape index: {}]
  %s14 = sld [smem:[#allocation0]]
  $region62: #{enhanced_cnn_forward.1} parent=0
    _
  %s16 = ssub.s32 1, %s14
  %s17 = scalar_select 0, %s16, %s14
  %v18 = vstv %s12
  %19 = vst [vmem:[#allocation8] sm:$0x1] %v18
  // Predicated region
  $region2: #{enhanced_cnn_forward.1} parent=0 // pred_check
    _
  $region3: #{enhanced_cnn_forward.1} parent=0 // pred_check_branch
    %21 = sbr.rel (0) target = $region5
  $region4: #{enhanced_cnn_forward.1} parent=0 // pred_region
    _
  $region5: #{enhanced_cnn_forward.1} parent=0 // pred_fallthru
    _
  // Predicated region
  $region6: #{enhanced_cnn_forward.1} parent=0 // pred_check
    _
  $region7: #{enhanced_cnn_forward.1} parent=0 // pred_check_branch
    %23 = sbr.rel (0) target = $region9
  $region8: #{enhanced_cnn_forward.1} parent=0 // pred_region
    _
  $region9: #{enhanced_cnn_forward.1} parent=0 // pred_fallthru
    _
  // Predicated region
  $region10: #{enhanced_cnn_forward.1} parent=0 // pred_check
    _
  $region11: #{enhanced_cnn_forward.1} parent=0 // pred_check_branch
    %25 = sbr.rel (0) target = $region13
  $region12: #{enhanced_cnn_forward.1} parent=0 // pred_region
    _
  $region13: #{enhanced_cnn_forward.1} parent=0 // pred_fallthru
    _
  // Predicated region
  $region14: #{enhanced_cnn_forward.1} parent=0 // pred_check
    _
  $region15: #{enhanced_cnn_forward.1} parent=0 // pred_check_branch
    %27 = sbr.rel (0) target = $region17
  $region16: #{enhanced_cnn_forward.1} parent=0 // pred_region
    _
  $region17: #{enhanced_cnn_forward.1} parent=0 // pred_fallthru
    _
  // Predicated region
  $region18: #{enhanced_cnn_forward.1} parent=0 // pred_check
    _
  $region19: #{enhanced_cnn_forward.1} parent=0 // pred_check_branch
    %29 = sbr.rel (0) target = $region21
  $region20: #{enhanced_cnn_forward.1} parent=0 // pred_region
    _
  $region21: #{enhanced_cnn_forward.1} parent=0 // pred_fallthru
    _
  // Predicated region
  $region22: #{enhanced_cnn_forward.1} parent=0 // pred_check
    _
  $region23: #{enhanced_cnn_forward.1} parent=0 // pred_check_branch
    %31 = sbr.rel (0) target = $region25
  $region24: #{enhanced_cnn_forward.1} parent=0 // pred_region
    _
  $region25: #{enhanced_cnn_forward.1} parent=0 // pred_fallthru
    _
  // Predicated region
  $region26: #{enhanced_cnn_forward.1} parent=0 // pred_check
    _
  $region27: #{enhanced_cnn_forward.1} parent=0 // pred_check_branch
    %33 = sbr.rel (0) target = $region29
  $region28: #{enhanced_cnn_forward.1} parent=0 // pred_region
    _
  $region29: #{enhanced_cnn_forward.1} parent=0 // pred_fallthru
    _
  // Predicated region
  $region30: #{enhanced_cnn_forward.1} parent=0 // pred_check
    _
  $region31: #{enhanced_cnn_forward.1} parent=0 // pred_check_branch
    %35 = sbr.rel (0) target = $region33
  $region32: #{enhanced_cnn_forward.1} parent=0 // pred_region
    _
  $region33: #{enhanced_cnn_forward.1} parent=0 // pred_fallthru
    _
  // Predicated region
  $region34: #{enhanced_cnn_forward.1} parent=0 // pred_check
    _
  $region35: #{enhanced_cnn_forward.1} parent=0 // pred_check_branch
    %37 = sbr.rel (0) target = $region37
  $region36: #{enhanced_cnn_forward.1} parent=0 // pred_region
    _
  $region37: #{enhanced_cnn_forward.1} parent=0 // pred_fallthru
    _
  // Predicated region
  $region38: #{enhanced_cnn_forward.1} parent=0 // pred_check
    _
  $region39: #{enhanced_cnn_forward.1} parent=0 // pred_check_branch
    %39 = sbr.rel (0) target = $region41
  $region40: #{enhanced_cnn_forward.1} parent=0 // pred_region
    _
  $region41: #{enhanced_cnn_forward.1} parent=0 // pred_fallthru
    _
  // Predicated region
  $region42: #{enhanced_cnn_forward.1} parent=0 // pred_check
    _
  $region43: #{enhanced_cnn_forward.1} parent=0 // pred_check_branch
    %41 = sbr.rel (0) target = $region45
  $region44: #{enhanced_cnn_forward.1} parent=0 // pred_region
    _
  $region45: #{enhanced_cnn_forward.1} parent=0 // pred_fallthru
    _
  // Predicated region
  $region46: #{enhanced_cnn_forward.1} parent=0 // pred_check
    _
  $region47: #{enhanced_cnn_forward.1} parent=0 // pred_check_branch
    %43 = sbr.rel (0) target = $region49
  $region48: #{enhanced_cnn_forward.1} parent=0 // pred_region
    _
  $region49: #{enhanced_cnn_forward.1} parent=0 // pred_fallthru
    _
  // Predicated region
  $region50: #{enhanced_cnn_forward.1} parent=0 // pred_check
    _
  $region51: #{enhanced_cnn_forward.1} parent=0 // pred_check_branch
    %45 = sbr.rel (0) target = $region53
  $region52: #{enhanced_cnn_forward.1} parent=0 // pred_region
    _
  $region53: #{enhanced_cnn_forward.1} parent=0 // pred_fallthru
    _
  %v47 = vld [vmem:[%s0] sm:$0xf]
  %v48 = vld [vmem:[%s0 + $0x4] sm:$0xf]
  %v49 = vld [vmem:[%s0 + $0x8] sm:$0xf]
  %v50 = vld [vmem:[%s0 + $0xc] sm:$0xf]
  %v51 = vld [vmem:[%s0 + $0x10] sm:$0xf]
  %v52 = vld [vmem:[%s0 + $0x14] sm:$0xf]
  %v53 = vld [vmem:[%s0 + $0x18] sm:$0xf]
  %v54 = vld [vmem:[%s0 + $0x1c] sm:$0xf]
  %v55 = vld [vmem:[%s0 + $0x20] sm:$0xf]
  %v56 = vld [vmem:[%s0 + $0x24] sm:$0xf]
  %v57 = vld [vmem:[%s0 + $0x28] sm:$0xf]
  %v58 = vld [vmem:[%s0 + $0x2c] sm:$0xf]
  %v59 = vld [vmem:[%s0 + $0x30] sm:$0xf]
  %v60 = vld [vmem:[%s0 + $0x34] sm:$0xf]
  %v61 = vld [vmem:[%s0 + $0x38] sm:$0xf]
  %v62 = vld [vmem:[%s0 + $0x3c] sm:$0xf]
  %v63 = vld [vmem:[%s0 + $0x40] sm:$0xf]
  %v64 = vld [vmem:[%s0 + $0x44] sm:$0xf]
  %v65 = vld [vmem:[%s0 + $0x48] sm:$0xf]
  %v66 = vld [vmem:[%s0 + $0x4c] sm:$0xf]
  %v67 = vld [vmem:[%s0 + $0x50] sm:$0xf]
  %v68 = vld [vmem:[%s0 + $0x54] sm:$0xf]
  %v69 = vld [vmem:[%s0 + $0x58] sm:$0xf]
  %v70 = vld [vmem:[%s0 + $0x5c] sm:$0xf]
  %v71 = vld [vmem:[%s0 + $0x60] sm:$0xf]
  %v72 = vld [vmem:[%s0 + $0x64] sm:$0xf]
  %v73 = vld [vmem:[%s0 + $0x68] sm:$0xf]
  %v74 = vld [vmem:[%s0 + $0x6c] sm:$0xf]
  %v75 = vld [vmem:[%s0 + $0x70] sm:$0xf]
  %v76 = vld [vmem:[%s0 + $0x74] sm:$0xf]
  %v77 = vld [vmem:[%s0 + $0x78] sm:$0xf]
  %v78 = vld [vmem:[%s0 + $0x7c] sm:$0xf]
  %v79 = vld [vmem:[%s0 + $0x80] sm:$0xf]
  %v80 = vld [vmem:[%s0 + $0x84] sm:$0xf]
  %v81 = vld [vmem:[%s0 + $0x88] sm:$0xf]
  %v82 = vld [vmem:[%s0 + $0x8c] sm:$0xf]
  %v83 = vld [vmem:[%s0 + $0x90] sm:$0xf]
  %v84 = vld [vmem:[%s0 + $0x94] sm:$0xf]
  %v85 = vld [vmem:[%s0 + $0x98] sm:$0xf]
  %v86 = vld [vmem:[%s0 + $0x9c] sm:$0xf]
  %v87 = vld [vmem:[%s0 + $0xa0] sm:$0xf]
  %v88 = vld [vmem:[%s0 + $0xa4] sm:$0xf]
  %v89 = vld [vmem:[%s0 + $0xa8] sm:$0xf]
  %v90 = vld [vmem:[%s0 + $0xac] sm:$0xf]
  %v91 = vld [vmem:[%s0 + $0xb0] sm:$0xf]
  %v92 = vld [vmem:[%s0 + $0xb4] sm:$0xf]
  %v93 = vld [vmem:[%s0 + $0xb8] sm:$0xf]
  %v94 = vld [vmem:[%s0 + $0xbc] sm:$0xf]
  %v95 = vld [vmem:[%s0 + $0xc0] sm:$0xf]
  %v96 = vld [vmem:[%s0 + $0xc4] sm:$0xf]
  %v97 = vld [vmem:[%s0 + $0xc8] sm:$0xf]
  %v98 = vld [vmem:[%s0 + $0xcc] sm:$0xf]
  %v99 = vld [vmem:[%s0 + $0xd0] sm:$0xf]
  %v100 = vld [vmem:[%s0 + $0xd4] sm:$0xf]
  %v101 = vld [vmem:[%s0 + $0xd8] sm:$0xf]
  %v102 = vld [vmem:[%s0 + $0xdc] sm:$0xf]
  %v103 = vld [vmem:[%s0 + $0xe0] sm:$0xf]
  %v104 = vld [vmem:[%s0 + $0xe4] sm:$0xf]
  %v105 = vld [vmem:[%s0 + $0xe8] sm:$0xf]
  %v106 = vld [vmem:[%s0 + $0xec] sm:$0xf]
  %v107 = vld [vmem:[%s0 + $0xf0] sm:$0xf]
  %v108 = vld [vmem:[%s0 + $0xf4] sm:$0xf]
  %v109 = vld [vmem:[%s0 + $0xf8] sm:$0xf]
  %v110 = vld [vmem:[%s0 + $0xfc] sm:$0xf]
  %v111 = vld [vmem:[%s1] sm:$0xf]
  %v112 = vld [vmem:[%s1 + $0x4] sm:$0x1]
  %v113 = vld [vmem:[%s2] sm:$0x1]
  %v115 = vlaneseq
  %v116 = vshrl.u32 %v115, 7
  %v117 = vsub.s32 0, %v116
  %v118 = vrot.slane %v113, %v117
  %v184 = vunpack.c.l.b16 %v47
  %v185 = vunpack.c.l.b16 %v48
  %v186 = vunpack.c.l.b16 %v49
  %v187 = vunpack.c.l.b16 %v50
  %v188 = vunpack.c.l.b16 %v51
  %v189 = vunpack.c.l.b16 %v52
  %v190 = vunpack.c.l.b16 %v53
  %v191 = vunpack.c.l.b16 %v54
  %v192 = vunpack.c.l.b16 %v55
  %v193 = vunpack.c.l.b16 %v56
  %v194 = vunpack.c.l.b16 %v57
  %v195 = vunpack.c.l.b16 %v58
  %v196 = vunpack.c.l.b16 %v59
  %v197 = vunpack.c.l.b16 %v60
  %v198 = vunpack.c.l.b16 %v61
  %v199 = vunpack.c.l.b16 %v62
  %v200 = vunpack.c.l.b16 %v63
  %v201 = vunpack.c.l.b16 %v64
  %v202 = vunpack.c.l.b16 %v65
  %v203 = vunpack.c.l.b16 %v66
  %v204 = vunpack.c.l.b16 %v67
  %v205 = vunpack.c.l.b16 %v68
  %v206 = vunpack.c.l.b16 %v69
  %v207 = vunpack.c.l.b16 %v70
  %v208 = vunpack.c.l.b16 %v71
  %v209 = vunpack.c.l.b16 %v72
  %v210 = vunpack.c.l.b16 %v73
  %v211 = vunpack.c.l.b16 %v74
  %v212 = vunpack.c.l.b16 %v75
  %v213 = vunpack.c.l.b16 %v76
  %v214 = vunpack.c.l.b16 %v77
  %v215 = vunpack.c.l.b16 %v78
  %v216 = vunpack.c.l.b16 %v79
  %v217 = vunpack.c.l.b16 %v80
  %v218 = vunpack.c.l.b16 %v81
  %v219 = vunpack.c.l.b16 %v82
  %v220 = vunpack.c.l.b16 %v83
  %v221 = vunpack.c.l.b16 %v84
  %v222 = vunpack.c.l.b16 %v85
  %v223 = vunpack.c.l.b16 %v86
  %v224 = vunpack.c.l.b16 %v87
  %v225 = vunpack.c.l.b16 %v88
  %v226 = vunpack.c.l.b16 %v89
  %v227 = vunpack.c.l.b16 %v90
  %v228 = vunpack.c.l.b16 %v91
  %v229 = vunpack.c.l.b16 %v92
  %v230 = vunpack.c.l.b16 %v93
  %v231 = vunpack.c.l.b16 %v94
  %v232 = vunpack.c.l.b16 %v95
  %v233 = vunpack.c.l.b16 %v96
  %v234 = vunpack.c.l.b16 %v97
  %v235 = vunpack.c.l.b16 %v98
  %v236 = vunpack.c.l.b16 %v99
  %v237 = vunpack.c.l.b16 %v100
  %v238 = vunpack.c.l.b16 %v101
  %v239 = vunpack.c.l.b16 %v102
  %v240 = vunpack.c.l.b16 %v103
  %v241 = vunpack.c.l.b16 %v104
  %v242 = vunpack.c.l.b16 %v105
  %v243 = vunpack.c.l.b16 %v106
  %v244 = vunpack.c.l.b16 %v107
  %v245 = vunpack.c.l.b16 %v108
  %v246 = vunpack.c.l.b16 %v109
  %v247 = vunpack.c.l.b16 %v110
  %v248 = vpack.c.b16 %v185, %v184
  %v249 = vpack.c.b16 %v187, %v186
  %v250 = vpack.c.b16 %v189, %v188
  %v251 = vpack.c.b16 %v191, %v190
  %v252 = vpack.c.b16 %v193, %v192
  %v253 = vpack.c.b16 %v195, %v194
  %v254 = vpack.c.b16 %v197, %v196
  %v255 = vpack.c.b16 %v199, %v198
  %v256 = vpack.c.b16 %v201, %v200
  %v257 = vpack.c.b16 %v203, %v202
  %v258 = vpack.c.b16 %v205, %v204
  %v259 = vpack.c.b16 %v207, %v206
  %v260 = vpack.c.b16 %v209, %v208
  %v261 = vpack.c.b16 %v211, %v210
  %v262 = vpack.c.b16 %v213, %v212
  %v263 = vpack.c.b16 %v215, %v214
  %v264 = vpack.c.b16 %v217, %v216
  %v265 = vpack.c.b16 %v219, %v218
  %v266 = vpack.c.b16 %v221, %v220
  %v267 = vpack.c.b16 %v223, %v222
  %v268 = vpack.c.b16 %v225, %v224
  %v269 = vpack.c.b16 %v227, %v226
  %v270 = vpack.c.b16 %v229, %v228
  %v271 = vpack.c.b16 %v231, %v230
  %v272 = vpack.c.b16 %v233, %v232
  %v273 = vpack.c.b16 %v235, %v234
  %v274 = vpack.c.b16 %v237, %v236
  %v275 = vpack.c.b16 %v239, %v238
  %v276 = vpack.c.b16 %v241, %v240
  %v277 = vpack.c.b16 %v243, %v242
  %v278 = vpack.c.b16 %v245, %v244
  %v279 = vpack.c.b16 %v247, %v246
  %v282 = vunpack.c.l.b16 %v111
  %v283 = vunpack.c.l.b16 %v112
  %v284 = vpack.c.b16 %v283, %v282
  %vm285 = vcmask 72704
  %v287 = vsel %vm285, %v248, 0
  %v290 = vsel %vm285, %v249, 0
  %v293 = vsel %vm285, %v250, 0
  %v296 = vsel %vm285, %v251, 0
  %v299 = vsel %vm285, %v252, 0
  %v302 = vsel %vm285, %v253, 0
  %v305 = vsel %vm285, %v254, 0
  %v308 = vsel %vm285, %v255, 0
  %v311 = vsel %vm285, %v256, 0
  %v314 = vsel %vm285, %v257, 0
  %v317 = vsel %vm285, %v258, 0
  %v320 = vsel %vm285, %v259, 0
  %v323 = vsel %vm285, %v260, 0
  %v326 = vsel %vm285, %v261, 0
  %v329 = vsel %vm285, %v262, 0
  %v332 = vsel %vm285, %v263, 0
  %v335 = vsel %vm285, %v264, 0
  %v338 = vsel %vm285, %v265, 0
  %v341 = vsel %vm285, %v266, 0
  %v344 = vsel %vm285, %v267, 0
  %v347 = vsel %vm285, %v268, 0
  %v350 = vsel %vm285, %v269, 0
  %v353 = vsel %vm285, %v270, 0
  %v356 = vsel %vm285, %v271, 0
  %v359 = vsel %vm285, %v272, 0
  %v362 = vsel %vm285, %v273, 0
  %v365 = vsel %vm285, %v274, 0
  %v368 = vsel %vm285, %v275, 0
  %v371 = vsel %vm285, %v276, 0
  %v374 = vsel %vm285, %v277, 0
  %v377 = vsel %vm285, %v278, 0
  %v380 = vsel %vm285, %v279, 0
  %vm382 = vcmask 1043456
  %vm383 = vcmask 1044480
  %v384 = vsel %vm382, 4294967295, 65535
  %v385 = vsel %vm383, %v384, 0
  %v387 = vand.u32 %v284, %v385
  %389 = vmatprep.subr.bf16.mxu0 0
  %390 = vmatpush1.bf16.msra.mxu0 0
  %391 = vmatprep.subr.bf16.mxu0 0
  %392 = vmatpush1.bf16.msra.mxu0 0
  %393 = vmatprep.subr.bf16.mxu0 0
  %394 = vmatpush1.bf16.msra.mxu0 0
  %395 = vmatprep.subr.bf16.mxu0 0
  %396 = vmatpush1.bf16.msra.mxu0 0
  %397 = vmatprep.subr.bf16.mxu0 0
  %398 = vmatpush1.bf16.msra.mxu0 0
  %399 = vmatprep.subr.bf16.mxu0 0
  %400 = vmatpush1.bf16.msra.mxu0 0
  %401 = vmatprep.subr.bf16.mxu0 0
  %402 = vmatpush1.bf16.msra.mxu0 0
  %403 = vmatprep.subr.bf16.mxu0 0
  %404 = vmatpush1.bf16.msra.mxu0 %v387
  %405 = vmatprep.subr.bf16.mxu0 0
  %406 = vmatpush2.bf16.msra.mxu0 0
  %407 = vmatprep.subr.bf16.mxu0 0
  %408 = vmatpush2.bf16.msra.mxu0 0
  %409 = vmatprep.subr.bf16.mxu0 0
  %410 = vmatpush2.bf16.msra.mxu0 0
  %411 = vmatprep.subr.bf16.mxu0 0
  %412 = vmatpush2.bf16.msra.mxu0 0
  %413 = vmatprep.subr.bf16.mxu0 0
  %414 = vmatpush2.bf16.msra.mxu0 0
  %415 = vmatprep.subr.bf16.mxu0 0
  %416 = vmatpush2.bf16.msra.mxu0 0
  %417 = vmatprep.subr.bf16.mxu0 0
  %418 = vmatpush2.bf16.msra.mxu0 0
  %419 = vmatprep.subr.bf16.mxu0 0
  %420 = vmatpush2.bf16.msra.mxu0 0
  %421 = vmatprep.mubr.bf16.mxu0 0
  %422 = vmatmul.mubr.bf16.gmra.mxu0 %v287
  %v423 = vpop.f32.mrf.mxu0
  %v424 = vadd.f32 %v118, %v423
  %v425 = vpop.f32.mrf.mxu0
  %v426 = vpop.f32.mrf.mxu0
  %v427 = vadd.f32 %v118, %v426
  %v428 = vpop.f32.mrf.mxu0
  %429 = vmatprep.mubr.bf16.mxu0 0
  %430 = vmatmul.mubr.bf16.gmra.mxu0 %v290
  %v431 = vpop.f32.mrf.mxu0
  %v432 = vadd.f32 %v118, %v431
  %v433 = vpop.f32.mrf.mxu0
  %v434 = vpop.f32.mrf.mxu0
  %v435 = vadd.f32 %v118, %v434
  %v436 = vpop.f32.mrf.mxu0
  %437 = vmatprep.mubr.bf16.mxu0 0
  %438 = vmatmul.mubr.bf16.gmra.mxu0 %v293
  %v439 = vpop.f32.mrf.mxu0
  %v440 = vadd.f32 %v118, %v439
  %v441 = vpop.f32.mrf.mxu0
  %v442 = vpop.f32.mrf.mxu0
  %v443 = vadd.f32 %v118, %v442
  %v444 = vpop.f32.mrf.mxu0
  %445 = vmatprep.mubr.bf16.mxu0 0
  %446 = vmatmul.mubr.bf16.gmra.mxu0 %v296
  %v447 = vpop.f32.mrf.mxu0
  %v448 = vadd.f32 %v118, %v447
  %v449 = vpop.f32.mrf.mxu0
  %v450 = vpop.f32.mrf.mxu0
  %v451 = vadd.f32 %v118, %v450
  %v452 = vpop.f32.mrf.mxu0
  %453 = vmatprep.mubr.bf16.mxu0 0
  %454 = vmatmul.mubr.bf16.gmra.mxu0 %v299
  %v455 = vpop.f32.mrf.mxu0
  %v456 = vadd.f32 %v118, %v455
  %v457 = vpop.f32.mrf.mxu0
  %v458 = vpop.f32.mrf.mxu0
  %v459 = vadd.f32 %v118, %v458
  %v460 = vpop.f32.mrf.mxu0
  %461 = vmatprep.mubr.bf16.mxu0 0
  %462 = vmatmul.mubr.bf16.gmra.mxu0 %v302
  %v463 = vpop.f32.mrf.mxu0
  %v464 = vadd.f32 %v118, %v463
  %v465 = vpop.f32.mrf.mxu0
  %v466 = vpop.f32.mrf.mxu0
  %v467 = vadd.f32 %v118, %v466
  %v468 = vpop.f32.mrf.mxu0
  %469 = vmatprep.mubr.bf16.mxu0 0
  %470 = vmatmul.mubr.bf16.gmra.mxu0 %v305
  %v471 = vpop.f32.mrf.mxu0
  %v472 = vadd.f32 %v118, %v471
  %v473 = vpop.f32.mrf.mxu0
  %v474 = vpop.f32.mrf.mxu0
  %v475 = vadd.f32 %v118, %v474
  %v476 = vpop.f32.mrf.mxu0
  %477 = vmatprep.mubr.bf16.mxu0 0
  %478 = vmatmul.mubr.bf16.gmra.mxu0 %v308
  %v479 = vpop.f32.mrf.mxu0
  %v480 = vadd.f32 %v118, %v479
  %v481 = vpop.f32.mrf.mxu0
  %v482 = vpop.f32.mrf.mxu0
  %v483 = vadd.f32 %v118, %v482
  %v484 = vpop.f32.mrf.mxu0
  %485 = vmatprep.mubr.bf16.mxu0 0
  %486 = vmatmul.mubr.bf16.gmra.mxu0 %v311
  %v487 = vpop.f32.mrf.mxu0
  %v488 = vadd.f32 %v118, %v487
  %v489 = vpop.f32.mrf.mxu0
  %v490 = vpop.f32.mrf.mxu0
  %v491 = vadd.f32 %v118, %v490
  %v492 = vpop.f32.mrf.mxu0
  %493 = vmatprep.mubr.bf16.mxu0 0
  %494 = vmatmul.mubr.bf16.gmra.mxu0 %v314
  %v495 = vpop.f32.mrf.mxu0
  %v496 = vadd.f32 %v118, %v495
  %v497 = vpop.f32.mrf.mxu0
  %v498 = vpop.f32.mrf.mxu0
  %v499 = vadd.f32 %v118, %v498
  %v500 = vpop.f32.mrf.mxu0
  %501 = vmatprep.mubr.bf16.mxu0 0
  %502 = vmatmul.mubr.bf16.gmra.mxu0 %v317
  %v503 = vpop.f32.mrf.mxu0
  %v504 = vadd.f32 %v118, %v503
  %v505 = vpop.f32.mrf.mxu0
  %v506 = vpop.f32.mrf.mxu0
  %v507 = vadd.f32 %v118, %v506
  %v508 = vpop.f32.mrf.mxu0
  %509 = vmatprep.mubr.bf16.mxu0 0
  %510 = vmatmul.mubr.bf16.gmra.mxu0 %v320
  %v511 = vpop.f32.mrf.mxu0
  %v512 = vadd.f32 %v118, %v511
  %v513 = vpop.f32.mrf.mxu0
  %v514 = vpop.f32.mrf.mxu0
  %v515 = vadd.f32 %v118, %v514
  %v516 = vpop.f32.mrf.mxu0
  %517 = vmatprep.mubr.bf16.mxu0 0
  %518 = vmatmul.mubr.bf16.gmra.mxu0 %v323
  %v519 = vpop.f32.mrf.mxu0
  %v520 = vadd.f32 %v118, %v519
  %v521 = vpop.f32.mrf.mxu0
  %v522 = vpop.f32.mrf.mxu0
  %v523 = vadd.f32 %v118, %v522
  %v524 = vpop.f32.mrf.mxu0
  %525 = vmatprep.mubr.bf16.mxu0 0
  %526 = vmatmul.mubr.bf16.gmra.mxu0 %v326
  %v527 = vpop.f32.mrf.mxu0
  %v528 = vadd.f32 %v118, %v527
  %v529 = vpop.f32.mrf.mxu0
  %v530 = vpop.f32.mrf.mxu0
  %v531 = vadd.f32 %v118, %v530
  %v532 = vpop.f32.mrf.mxu0
  %533 = vmatprep.mubr.bf16.mxu0 0
  %534 = vmatmul.mubr.bf16.gmra.mxu0 %v329
  %v535 = vpop.f32.mrf.mxu0
  %v536 = vadd.f32 %v118, %v535
  %v537 = vpop.f32.mrf.mxu0
  %v538 = vpop.f32.mrf.mxu0
  %v539 = vadd.f32 %v118, %v538
  %v540 = vpop.f32.mrf.mxu0
  %541 = vmatprep.mubr.bf16.mxu0 0
  %542 = vmatmul.mubr.bf16.gmra.mxu0 %v332
  %v543 = vpop.f32.mrf.mxu0
  %v544 = vadd.f32 %v118, %v543
  %v545 = vpop.f32.mrf.mxu0
  %v546 = vpop.f32.mrf.mxu0
  %v547 = vadd.f32 %v118, %v546
  %v548 = vpop.f32.mrf.mxu0
  %549 = vmatprep.mubr.bf16.mxu0 0
  %550 = vmatmul.mubr.bf16.gmra.mxu0 %v335
  %v551 = vpop.f32.mrf.mxu0
  %v552 = vadd.f32 %v118, %v551
  %v553 = vpop.f32.mrf.mxu0
  %v554 = vpop.f32.mrf.mxu0
  %v555 = vadd.f32 %v118, %v554
  %v556 = vpop.f32.mrf.mxu0
  %557 = vmatprep.mubr.bf16.mxu0 0
  %558 = vmatmul.mubr.bf16.gmra.mxu0 %v338
  %v559 = vpop.f32.mrf.mxu0
  %v560 = vadd.f32 %v118, %v559
  %v561 = vpop.f32.mrf.mxu0
  %v562 = vpop.f32.mrf.mxu0
  %v563 = vadd.f32 %v118, %v562
  %v564 = vpop.f32.mrf.mxu0
  %565 = vmatprep.mubr.bf16.mxu0 0
  %566 = vmatmul.mubr.bf16.gmra.mxu0 %v341
  %v567 = vpop.f32.mrf.mxu0
  %v568 = vadd.f32 %v118, %v567
  %v569 = vpop.f32.mrf.mxu0
  %v570 = vpop.f32.mrf.mxu0
  %v571 = vadd.f32 %v118, %v570
  %v572 = vpop.f32.mrf.mxu0
  %573 = vmatprep.mubr.bf16.mxu0 0
  %574 = vmatmul.mubr.bf16.gmra.mxu0 %v344
  %v575 = vpop.f32.mrf.mxu0
  %v576 = vadd.f32 %v118, %v575
  %v577 = vpop.f32.mrf.mxu0
  %v578 = vpop.f32.mrf.mxu0
  %v579 = vadd.f32 %v118, %v578
  %v580 = vpop.f32.mrf.mxu0
  %581 = vmatprep.mubr.bf16.mxu0 0
  %582 = vmatmul.mubr.bf16.gmra.mxu0 %v347
  %v583 = vpop.f32.mrf.mxu0
  %v584 = vadd.f32 %v118, %v583
  %v585 = vpop.f32.mrf.mxu0
  %v586 = vpop.f32.mrf.mxu0
  %v587 = vadd.f32 %v118, %v586
  %v588 = vpop.f32.mrf.mxu0
  %589 = vmatprep.mubr.bf16.mxu0 0
  %590 = vmatmul.mubr.bf16.gmra.mxu0 %v350
  %v591 = vpop.f32.mrf.mxu0
  %v592 = vadd.f32 %v118, %v591
  %v593 = vpop.f32.mrf.mxu0
  %v594 = vpop.f32.mrf.mxu0
  %v595 = vadd.f32 %v118, %v594
  %v596 = vpop.f32.mrf.mxu0
  %597 = vmatprep.mubr.bf16.mxu0 0
  %598 = vmatmul.mubr.bf16.gmra.mxu0 %v353
  %v599 = vpop.f32.mrf.mxu0
  %v600 = vadd.f32 %v118, %v599
  %v601 = vpop.f32.mrf.mxu0
  %v602 = vpop.f32.mrf.mxu0
  %v603 = vadd.f32 %v118, %v602
  %v604 = vpop.f32.mrf.mxu0
  %605 = vmatprep.mubr.bf16.mxu0 0
  %606 = vmatmul.mubr.bf16.gmra.mxu0 %v356
  %v607 = vpop.f32.mrf.mxu0
  %v608 = vadd.f32 %v118, %v607
  %v609 = vpop.f32.mrf.mxu0
  %v610 = vpop.f32.mrf.mxu0
  %v611 = vadd.f32 %v118, %v610
  %v612 = vpop.f32.mrf.mxu0
  %613 = vmatprep.mubr.bf16.mxu0 0
  %614 = vmatmul.mubr.bf16.gmra.mxu0 %v359
  %v615 = vpop.f32.mrf.mxu0
  %v616 = vadd.f32 %v118, %v615
  %v617 = vpop.f32.mrf.mxu0
  %v618 = vpop.f32.mrf.mxu0
  %v619 = vadd.f32 %v118, %v618
  %v620 = vpop.f32.mrf.mxu0
  %621 = vmatprep.mubr.bf16.mxu0 0
  %622 = vmatmul.mubr.bf16.gmra.mxu0 %v362
  %v623 = vpop.f32.mrf.mxu0
  %v624 = vadd.f32 %v118, %v623
  %v625 = vpop.f32.mrf.mxu0
  %v626 = vpop.f32.mrf.mxu0
  %v627 = vadd.f32 %v118, %v626
  %v628 = vpop.f32.mrf.mxu0
  %629 = vmatprep.mubr.bf16.mxu0 0
  %630 = vmatmul.mubr.bf16.gmra.mxu0 %v365
  %v631 = vpop.f32.mrf.mxu0
  %v632 = vadd.f32 %v118, %v631
  %v633 = vpop.f32.mrf.mxu0
  %v634 = vpop.f32.mrf.mxu0
  %v635 = vadd.f32 %v118, %v634
  %v636 = vpop.f32.mrf.mxu0
  %637 = vmatprep.mubr.bf16.mxu0 0
  %638 = vmatmul.mubr.bf16.gmra.mxu0 %v368
  %v639 = vpop.f32.mrf.mxu0
  %v640 = vadd.f32 %v118, %v639
  %v641 = vpop.f32.mrf.mxu0
  %v642 = vpop.f32.mrf.mxu0
  %v643 = vadd.f32 %v118, %v642
  %v644 = vpop.f32.mrf.mxu0
  %645 = vmatprep.mubr.bf16.mxu0 0
  %646 = vmatmul.mubr.bf16.gmra.mxu0 %v371
  %v647 = vpop.f32.mrf.mxu0
  %v648 = vadd.f32 %v118, %v647
  %v649 = vpop.f32.mrf.mxu0
  %v650 = vpop.f32.mrf.mxu0
  %v651 = vadd.f32 %v118, %v650
  %v652 = vpop.f32.mrf.mxu0
  %653 = vmatprep.mubr.bf16.mxu0 0
  %654 = vmatmul.mubr.bf16.gmra.mxu0 %v374
  %v655 = vpop.f32.mrf.mxu0
  %v656 = vadd.f32 %v118, %v655
  %v657 = vpop.f32.mrf.mxu0
  %v658 = vpop.f32.mrf.mxu0
  %v659 = vadd.f32 %v118, %v658
  %v660 = vpop.f32.mrf.mxu0
  %661 = vmatprep.mubr.bf16.mxu0 0
  %662 = vmatmul.mubr.bf16.gmra.mxu0 %v377
  %v663 = vpop.f32.mrf.mxu0
  %v664 = vadd.f32 %v118, %v663
  %v665 = vpop.f32.mrf.mxu0
  %v666 = vpop.f32.mrf.mxu0
  %v667 = vadd.f32 %v118, %v666
  %v668 = vpop.f32.mrf.mxu0
  %669 = vmatprep.mubr.bf16.mxu0 0
  %670 = vmatmul.mubr.bf16.gmra.mxu0 %v380
  %v671 = vpop.f32.mrf.mxu0
  %v672 = vadd.f32 %v118, %v671
  %v673 = vpop.f32.mrf.mxu0
  %v674 = vpop.f32.mrf.mxu0
  %v675 = vadd.f32 %v118, %v674
  %v676 = vpop.f32.mrf.mxu0
  %677 = vdwg.mxu0
  %v678 = vmax.f32 %v424, 0.0
  %v679 = vmax.f32 %v427, 0.0
  %v680 = vmax.f32 %v432, 0.0
  %v681 = vmax.f32 %v435, 0.0
  %v682 = vmax.f32 %v440, 0.0
  %v683 = vmax.f32 %v443, 0.0
  %v684 = vmax.f32 %v448, 0.0
  %v685 = vmax.f32 %v451, 0.0
  %v686 = vmax.f32 %v456, 0.0
  %v687 = vmax.f32 %v459, 0.0
  %v688 = vmax.f32 %v464, 0.0
  %v689 = vmax.f32 %v467, 0.0
  %v690 = vmax.f32 %v472, 0.0
  %v691 = vmax.f32 %v475, 0.0
  %v692 = vmax.f32 %v480, 0.0
  %v693 = vmax.f32 %v483, 0.0
  %v694 = vmax.f32 %v488, 0.0
  %v695 = vmax.f32 %v491, 0.0
  %v696 = vmax.f32 %v496, 0.0
  %v697 = vmax.f32 %v499, 0.0
  %v698 = vmax.f32 %v504, 0.0
  %v699 = vmax.f32 %v507, 0.0
  %v700 = vmax.f32 %v512, 0.0
  %v701 = vmax.f32 %v515, 0.0
  %v702 = vmax.f32 %v520, 0.0
  %v703 = vmax.f32 %v523, 0.0
  %v704 = vmax.f32 %v528, 0.0
  %v705 = vmax.f32 %v531, 0.0
  %v706 = vmax.f32 %v536, 0.0
  %v707 = vmax.f32 %v539, 0.0
  %v708 = vmax.f32 %v544, 0.0
  %v709 = vmax.f32 %v547, 0.0
  %v710 = vmax.f32 %v552, 0.0
  %v711 = vmax.f32 %v555, 0.0
  %v712 = vmax.f32 %v560, 0.0
  %v713 = vmax.f32 %v563, 0.0
  %v714 = vmax.f32 %v568, 0.0
  %v715 = vmax.f32 %v571, 0.0
  %v716 = vmax.f32 %v576, 0.0
  %v717 = vmax.f32 %v579, 0.0
  %v718 = vmax.f32 %v584, 0.0
  %v719 = vmax.f32 %v587, 0.0
  %v720 = vmax.f32 %v592, 0.0
  %v721 = vmax.f32 %v595, 0.0
  %v722 = vmax.f32 %v600, 0.0
  %v723 = vmax.f32 %v603, 0.0
  %v724 = vmax.f32 %v608, 0.0
  %v725 = vmax.f32 %v611, 0.0
  %v726 = vmax.f32 %v616, 0.0
  %v727 = vmax.f32 %v619, 0.0
  %v728 = vmax.f32 %v624, 0.0
  %v729 = vmax.f32 %v627, 0.0
  %v730 = vmax.f32 %v632, 0.0
  %v731 = vmax.f32 %v635, 0.0
  %v732 = vmax.f32 %v640, 0.0
  %v733 = vmax.f32 %v643, 0.0
  %v734 = vmax.f32 %v648, 0.0
  %v735 = vmax.f32 %v651, 0.0
  %v736 = vmax.f32 %v656, 0.0
  %v737 = vmax.f32 %v659, 0.0
  %v738 = vmax.f32 %v664, 0.0
  %v739 = vmax.f32 %v667, 0.0
  %v740 = vmax.f32 %v672, 0.0
  %v741 = vmax.f32 %v675, 0.0
  %vm742 = vcmask 261120
  %v743 = vsel %vm742, %v678, -inf
  %v744 = vsel %vm742, %v680, -inf
  %v745 = vmax.f32 %v743, %v744
  %v746 = vsel %vm742, %v679, -inf
  %v747 = vsel %vm742, %v681, -inf
  %v748 = vmax.f32 %v746, %v747
  %v749 = vsel %vm742, %v682, -inf
  %v750 = vsel %vm742, %v684, -inf
  %v751 = vmax.f32 %v749, %v750
  %v752 = vsel %vm742, %v683, -inf
  %v753 = vsel %vm742, %v685, -inf
  %v754 = vmax.f32 %v752, %v753
  %v755 = vsel %vm742, %v686, -inf
  %v756 = vsel %vm742, %v688, -inf
  %v757 = vmax.f32 %v755, %v756
  %v758 = vsel %vm742, %v687, -inf
  %v759 = vsel %vm742, %v689, -inf
  %v760 = vmax.f32 %v758, %v759
  %v761 = vsel %vm742, %v690, -inf
  %v762 = vsel %vm742, %v692, -inf
  %v763 = vmax.f32 %v761, %v762
  %v764 = vsel %vm742, %v691, -inf
  %v765 = vsel %vm742, %v693, -inf
  %v766 = vmax.f32 %v764, %v765
  %v767 = vsel %vm742, %v694, -inf
  %v768 = vsel %vm742, %v696, -inf
  %v769 = vmax.f32 %v767, %v768
  %v770 = vsel %vm742, %v695, -inf
  %v771 = vsel %vm742, %v697, -inf
  %v772 = vmax.f32 %v770, %v771
  %v773 = vsel %vm742, %v698, -inf
  %v774 = vsel %vm742, %v700, -inf
  %v775 = vmax.f32 %v773, %v774
  %v776 = vsel %vm742, %v699, -inf
  %v777 = vsel %vm742, %v701, -inf
  %v778 = vmax.f32 %v776, %v777
  %v779 = vsel %vm742, %v702, -inf
  %v780 = vsel %vm742, %v704, -inf
  %v781 = vmax.f32 %v779, %v780
  %v782 = vsel %vm742, %v703, -inf
  %v783 = vsel %vm742, %v705, -inf
  %v784 = vmax.f32 %v782, %v783
  %v785 = vsel %vm742, %v706, -inf
  %v786 = vsel %vm742, %v708, -inf
  %v787 = vmax.f32 %v785, %v786
  %v788 = vsel %vm742, %v707, -inf
  %v789 = vsel %vm742, %v709, -inf
  %v790 = vmax.f32 %v788, %v789
  %v791 = vsel %vm742, %v710, -inf
  %v792 = vsel %vm742, %v712, -inf
  %v793 = vmax.f32 %v791, %v792
  %v794 = vsel %vm742, %v711, -inf
  %v795 = vsel %vm742, %v713, -inf
  %v796 = vmax.f32 %v794, %v795
  %v797 = vsel %vm742, %v714, -inf
  %v798 = vsel %vm742, %v716, -inf
  %v799 = vmax.f32 %v797, %v798
  %v800 = vsel %vm742, %v715, -inf
  %v801 = vsel %vm742, %v717, -inf
  %v802 = vmax.f32 %v800, %v801
  %v803 = vsel %vm742, %v718, -inf
  %v804 = vsel %vm742, %v720, -inf
  %v805 = vmax.f32 %v803, %v804
  %v806 = vsel %vm742, %v719, -inf
  %v807 = vsel %vm742, %v721, -inf
  %v808 = vmax.f32 %v806, %v807
  %v809 = vsel %vm742, %v722, -inf
  %v810 = vsel %vm742, %v724, -inf
  %v811 = vmax.f32 %v809, %v810
  %v812 = vsel %vm742, %v723, -inf
  %v813 = vsel %vm742, %v725, -inf
  %v814 = vmax.f32 %v812, %v813
  %v815 = vsel %vm742, %v726, -inf
  %v816 = vsel %vm742, %v728, -inf
  %v817 = vmax.f32 %v815, %v816
  %v818 = vsel %vm742, %v727, -inf
  %v819 = vsel %vm742, %v729, -inf
  %v820 = vmax.f32 %v818, %v819
  %v821 = vsel %vm742, %v730, -inf
  %v822 = vsel %vm742, %v732, -inf
  %v823 = vmax.f32 %v821, %v822
  %v824 = vsel %vm742, %v731, -inf
  %v825 = vsel %vm742, %v733, -inf
  %v826 = vmax.f32 %v824, %v825
  %v827 = vsel %vm742, %v734, -inf
  %v828 = vsel %vm742, %v736, -inf
  %v829 = vmax.f32 %v827, %v828
  %v830 = vsel %vm742, %v735, -inf
  %v831 = vsel %vm742, %v737, -inf
  %v832 = vmax.f32 %v830, %v831
  %v833 = vsel %vm742, %v738, -inf
  %v834 = vsel %vm742, %v740, -inf
  %v835 = vmax.f32 %v833, %v834
  %v836 = vsel %vm742, %v739, -inf
  %v837 = vsel %vm742, %v741, -inf
  %v838 = vmax.f32 %v836, %v837
  %v871 = vcombine.high %v745, %v745
  %v873 = vunpack.c.l.s4 1983009808
  %v874 = vunpack.c.0.s8 %v873
  %v875 = vlaneseq
  %v876 = vshrl.u32 %v875, 7
  %v877 = vsub.s32 %v874, %v876
  %v878 = vrot.slane %v745, %v877
  %v880 = vunpack.c.l.s4 1983009808
  %v881 = vunpack.c.0.s8 %v880
  %v882 = vlaneseq
  %v883 = vshrl.u32 %v882, 7
  %v884 = vsub.s32 %v881, %v883
  %v885 = vrot.slane %v871, %v884
  %v886 = vcombine.high %v878, %v878
  %v887 = vcombine.high %v885, %v885
  %v888 = vcombine.high %v748, %v748
  %v890 = vunpack.c.l.s4 1983009808
  %v891 = vunpack.c.0.s8 %v890
  %v892 = vlaneseq
  %v893 = vshrl.u32 %v892, 7
  %v894 = vsub.s32 %v891, %v893
  %v895 = vrot.slane %v748, %v894
  %v897 = vunpack.c.l.s4 1983009808
  %v898 = vunpack.c.0.s8 %v897
  %v899 = vlaneseq
  %v900 = vshrl.u32 %v899, 7
  %v901 = vsub.s32 %v898, %v900
  %v902 = vrot.slane %v888, %v901
  %v903 = vcombine.high %v895, %v895
  %v904 = vcombine.high %v902, %v902
  %v905 = vcombine.high %v751, %v751
  %v907 = vunpack.c.l.s4 1983009808
  %v908 = vunpack.c.0.s8 %v907
  %v909 = vlaneseq
  %v910 = vshrl.u32 %v909, 7
  %v911 = vsub.s32 %v908, %v910
  %v912 = vrot.slane %v751, %v911
  %v914 = vunpack.c.l.s4 1983009808
  %v915 = vunpack.c.0.s8 %v914
  %v916 = vlaneseq
  %v917 = vshrl.u32 %v916, 7
  %v918 = vsub.s32 %v915, %v917
  %v919 = vrot.slane %v905, %v918
  %v920 = vcombine.high %v912, %v912
  %v921 = vcombine.high %v919, %v919
  %v922 = vcombine.high %v754, %v754
  %v924 = vunpack.c.l.s4 1983009808
  %v925 = vunpack.c.0.s8 %v924
  %v926 = vlaneseq
  %v927 = vshrl.u32 %v926, 7
  %v928 = vsub.s32 %v925, %v927
  %v929 = vrot.slane %v754, %v928
  %v931 = vunpack.c.l.s4 1983009808
  %v932 = vunpack.c.0.s8 %v931
  %v933 = vlaneseq
  %v934 = vshrl.u32 %v933, 7
  %v935 = vsub.s32 %v932, %v934
  %v936 = vrot.slane %v922, %v935
  %v937 = vcombine.high %v929, %v929
  %v938 = vcombine.high %v936, %v936
  %v939 = vcombine.high %v757, %v757
  %v941 = vunpack.c.l.s4 1983009808
  %v942 = vunpack.c.0.s8 %v941
  %v943 = vlaneseq
  %v944 = vshrl.u32 %v943, 7
  %v945 = vsub.s32 %v942, %v944
  %v946 = vrot.slane %v757, %v945
  %v948 = vunpack.c.l.s4 1983009808
  %v949 = vunpack.c.0.s8 %v948
  %v950 = vlaneseq
  %v951 = vshrl.u32 %v950, 7
  %v952 = vsub.s32 %v949, %v951
  %v953 = vrot.slane %v939, %v952
  %v954 = vcombine.high %v946, %v946
  %v955 = vcombine.high %v953, %v953
  %v956 = vcombine.high %v760, %v760
  %v958 = vunpack.c.l.s4 1983009808
  %v959 = vunpack.c.0.s8 %v958
  %v960 = vlaneseq
  %v961 = vshrl.u32 %v960, 7
  %v962 = vsub.s32 %v959, %v961
  %v963 = vrot.slane %v760, %v962
  %v965 = vunpack.c.l.s4 1983009808
  %v966 = vunpack.c.0.s8 %v965
  %v967 = vlaneseq
  %v968 = vshrl.u32 %v967, 7
  %v969 = vsub.s32 %v966, %v968
  %v970 = vrot.slane %v956, %v969
  %v971 = vcombine.high %v963, %v963
  %v972 = vcombine.high %v970, %v970
  %v973 = vcombine.high %v763, %v763
  %v975 = vunpack.c.l.s4 1983009808
  %v976 = vunpack.c.0.s8 %v975
  %v977 = vlaneseq
  %v978 = vshrl.u32 %v977, 7
  %v979 = vsub.s32 %v976, %v978
  %v980 = vrot.slane %v763, %v979
  %v982 = vunpack.c.l.s4 1983009808
  %v983 = vunpack.c.0.s8 %v982
  %v984 = vlaneseq
  %v985 = vshrl.u32 %v984, 7
  %v986 = vsub.s32 %v983, %v985
  %v987 = vrot.slane %v973, %v986
  %v988 = vcombine.high %v980, %v980
  %v989 = vcombine.high %v987, %v987
  %v990 = vcombine.high %v766, %v766
  %v992 = vunpack.c.l.s4 1983009808
  %v993 = vunpack.c.0.s8 %v992
  %v994 = vlaneseq
  %v995 = vshrl.u32 %v994, 7
  %v996 = vsub.s32 %v993, %v995
  %v997 = vrot.slane %v766, %v996
  %v999 = vunpack.c.l.s4 1983009808
  %v1000 = vunpack.c.0.s8 %v999
  %v1001 = vlaneseq
  %v1002 = vshrl.u32 %v1001, 7
  %v1003 = vsub.s32 %v1000, %v1002
  %v1004 = vrot.slane %v990, %v1003
  %v1005 = vcombine.high %v997, %v997
  %v1006 = vcombine.high %v1004, %v1004
  %v1007 = vcombine.high %v769, %v769
  %v1009 = vunpack.c.l.s4 1983009808
  %v1010 = vunpack.c.0.s8 %v1009
  %v1011 = vlaneseq
  %v1012 = vshrl.u32 %v1011, 7
  %v1013 = vsub.s32 %v1010, %v1012
  %v1014 = vrot.slane %v769, %v1013
  %v1016 = vunpack.c.l.s4 1983009808
  %v1017 = vunpack.c.0.s8 %v1016
  %v1018 = vlaneseq
  %v1019 = vshrl.u32 %v1018, 7
  %v1020 = vsub.s32 %v1017, %v1019
  %v1021 = vrot.slane %v1007, %v1020
  %v1022 = vcombine.high %v1014, %v1014
  %v1023 = vcombine.high %v1021, %v1021
  %v1024 = vcombine.high %v772, %v772
  %v1026 = vunpack.c.l.s4 1983009808
  %v1027 = vunpack.c.0.s8 %v1026
  %v1028 = vlaneseq
  %v1029 = vshrl.u32 %v1028, 7
  %v1030 = vsub.s32 %v1027, %v1029
  %v1031 = vrot.slane %v772, %v1030
  %v1033 = vunpack.c.l.s4 1983009808
  %v1034 = vunpack.c.0.s8 %v1033
  %v1035 = vlaneseq
  %v1036 = vshrl.u32 %v1035, 7
  %v1037 = vsub.s32 %v1034, %v1036
  %v1038 = vrot.slane %v1024, %v1037
  %v1039 = vcombine.high %v1031, %v1031
  %v1040 = vcombine.high %v1038, %v1038
  %v1041 = vcombine.high %v775, %v775
  %v1043 = vunpack.c.l.s4 1983009808
  %v1044 = vunpack.c.0.s8 %v1043
  %v1045 = vlaneseq
  %v1046 = vshrl.u32 %v1045, 7
  %v1047 = vsub.s32 %v1044, %v1046
  %v1048 = vrot.slane %v775, %v1047
  %v1050 = vunpack.c.l.s4 1983009808
  %v1051 = vunpack.c.0.s8 %v1050
  %v1052 = vlaneseq
  %v1053 = vshrl.u32 %v1052, 7
  %v1054 = vsub.s32 %v1051, %v1053
  %v1055 = vrot.slane %v1041, %v1054
  %v1056 = vcombine.high %v1048, %v1048
  %v1057 = vcombine.high %v1055, %v1055
  %v1058 = vcombine.high %v778, %v778
  %v1060 = vunpack.c.l.s4 1983009808
  %v1061 = vunpack.c.0.s8 %v1060
  %v1062 = vlaneseq
  %v1063 = vshrl.u32 %v1062, 7
  %v1064 = vsub.s32 %v1061, %v1063
  %v1065 = vrot.slane %v778, %v1064
  %v1067 = vunpack.c.l.s4 1983009808
  %v1068 = vunpack.c.0.s8 %v1067
  %v1069 = vlaneseq
  %v1070 = vshrl.u32 %v1069, 7
  %v1071 = vsub.s32 %v1068, %v1070
  %v1072 = vrot.slane %v1058, %v1071
  %v1073 = vcombine.high %v1065, %v1065
  %v1074 = vcombine.high %v1072, %v1072
  %v1075 = vcombine.high %v781, %v781
  %v1077 = vunpack.c.l.s4 1983009808
  %v1078 = vunpack.c.0.s8 %v1077
  %v1079 = vlaneseq
  %v1080 = vshrl.u32 %v1079, 7
  %v1081 = vsub.s32 %v1078, %v1080
  %v1082 = vrot.slane %v781, %v1081
  %v1084 = vunpack.c.l.s4 1983009808
  %v1085 = vunpack.c.0.s8 %v1084
  %v1086 = vlaneseq
  %v1087 = vshrl.u32 %v1086, 7
  %v1088 = vsub.s32 %v1085, %v1087
  %v1089 = vrot.slane %v1075, %v1088
  %v1090 = vcombine.high %v1082, %v1082
  %v1091 = vcombine.high %v1089, %v1089
  %v1092 = vcombine.high %v784, %v784
  %v1094 = vunpack.c.l.s4 1983009808
  %v1095 = vunpack.c.0.s8 %v1094
  %v1096 = vlaneseq
  %v1097 = vshrl.u32 %v1096, 7
  %v1098 = vsub.s32 %v1095, %v1097
  %v1099 = vrot.slane %v784, %v1098
  %v1101 = vunpack.c.l.s4 1983009808
  %v1102 = vunpack.c.0.s8 %v1101
  %v1103 = vlaneseq
  %v1104 = vshrl.u32 %v1103, 7
  %v1105 = vsub.s32 %v1102, %v1104
  %v1106 = vrot.slane %v1092, %v1105
  %v1107 = vcombine.high %v1099, %v1099
  %v1108 = vcombine.high %v1106, %v1106
  %v1109 = vcombine.high %v787, %v787
  %v1111 = vunpack.c.l.s4 1983009808
  %v1112 = vunpack.c.0.s8 %v1111
  %v1113 = vlaneseq
  %v1114 = vshrl.u32 %v1113, 7
  %v1115 = vsub.s32 %v1112, %v1114
  %v1116 = vrot.slane %v787, %v1115
  %v1118 = vunpack.c.l.s4 1983009808
  %v1119 = vunpack.c.0.s8 %v1118
  %v1120 = vlaneseq
  %v1121 = vshrl.u32 %v1120, 7
  %v1122 = vsub.s32 %v1119, %v1121
  %v1123 = vrot.slane %v1109, %v1122
  %v1124 = vcombine.high %v1116, %v1116
  %v1125 = vcombine.high %v1123, %v1123
  %v1126 = vcombine.high %v790, %v790
  %v1128 = vunpack.c.l.s4 1983009808
  %v1129 = vunpack.c.0.s8 %v1128
  %v1130 = vlaneseq
  %v1131 = vshrl.u32 %v1130, 7
  %v1132 = vsub.s32 %v1129, %v1131
  %v1133 = vrot.slane %v790, %v1132
  %v1135 = vunpack.c.l.s4 1983009808
  %v1136 = vunpack.c.0.s8 %v1135
  %v1137 = vlaneseq
  %v1138 = vshrl.u32 %v1137, 7
  %v1139 = vsub.s32 %v1136, %v1138
  %v1140 = vrot.slane %v1126, %v1139
  %v1141 = vcombine.high %v1133, %v1133
  %v1142 = vcombine.high %v1140, %v1140
  %v1143 = vcombine.high %v793, %v793
  %v1145 = vunpack.c.l.s4 1983009808
  %v1146 = vunpack.c.0.s8 %v1145
  %v1147 = vlaneseq
  %v1148 = vshrl.u32 %v1147, 7
  %v1149 = vsub.s32 %v1146, %v1148
  %v1150 = vrot.slane %v793, %v1149
  %v1152 = vunpack.c.l.s4 1983009808
  %v1153 = vunpack.c.0.s8 %v1152
  %v1154 = vlaneseq
  %v1155 = vshrl.u32 %v1154, 7
  %v1156 = vsub.s32 %v1153, %v1155
  %v1157 = vrot.slane %v1143, %v1156
  %v1158 = vcombine.high %v1150, %v1150
  %v1159 = vcombine.high %v1157, %v1157
  %v1160 = vcombine.high %v796, %v796
  %v1162 = vunpack.c.l.s4 1983009808
  %v1163 = vunpack.c.0.s8 %v1162
  %v1164 = vlaneseq
  %v1165 = vshrl.u32 %v1164, 7
  %v1166 = vsub.s32 %v1163, %v1165
  %v1167 = vrot.slane %v796, %v1166
  %v1169 = vunpack.c.l.s4 1983009808
  %v1170 = vunpack.c.0.s8 %v1169
  %v1171 = vlaneseq
  %v1172 = vshrl.u32 %v1171, 7
  %v1173 = vsub.s32 %v1170, %v1172
  %v1174 = vrot.slane %v1160, %v1173
  %v1175 = vcombine.high %v1167, %v1167
  %v1176 = vcombine.high %v1174, %v1174
  %v1177 = vcombine.high %v799, %v799
  %v1179 = vunpack.c.l.s4 1983009808
  %v1180 = vunpack.c.0.s8 %v1179
  %v1181 = vlaneseq
  %v1182 = vshrl.u32 %v1181, 7
  %v1183 = vsub.s32 %v1180, %v1182
  %v1184 = vrot.slane %v799, %v1183
  %v1186 = vunpack.c.l.s4 1983009808
  %v1187 = vunpack.c.0.s8 %v1186
  %v1188 = vlaneseq
  %v1189 = vshrl.u32 %v1188, 7
  %v1190 = vsub.s32 %v1187, %v1189
  %v1191 = vrot.slane %v1177, %v1190
  %v1192 = vcombine.high %v1184, %v1184
  %v1193 = vcombine.high %v1191, %v1191
  %v1194 = vcombine.high %v802, %v802
  %v1196 = vunpack.c.l.s4 1983009808
  %v1197 = vunpack.c.0.s8 %v1196
  %v1198 = vlaneseq
  %v1199 = vshrl.u32 %v1198, 7
  %v1200 = vsub.s32 %v1197, %v1199
  %v1201 = vrot.slane %v802, %v1200
  %v1203 = vunpack.c.l.s4 1983009808
  %v1204 = vunpack.c.0.s8 %v1203
  %v1205 = vlaneseq
  %v1206 = vshrl.u32 %v1205, 7
  %v1207 = vsub.s32 %v1204, %v1206
  %v1208 = vrot.slane %v1194, %v1207
  %v1209 = vcombine.high %v1201, %v1201
  %v1210 = vcombine.high %v1208, %v1208
  %v1211 = vcombine.high %v805, %v805
  %v1213 = vunpack.c.l.s4 1983009808
  %v1214 = vunpack.c.0.s8 %v1213
  %v1215 = vlaneseq
  %v1216 = vshrl.u32 %v1215, 7
  %v1217 = vsub.s32 %v1214, %v1216
  %v1218 = vrot.slane %v805, %v1217
  %v1220 = vunpack.c.l.s4 1983009808
  %v1221 = vunpack.c.0.s8 %v1220
  %v1222 = vlaneseq
  %v1223 = vshrl.u32 %v1222, 7
  %v1224 = vsub.s32 %v1221, %v1223
  %v1225 = vrot.slane %v1211, %v1224
  %v1226 = vcombine.high %v1218, %v1218
  %v1227 = vcombine.high %v1225, %v1225
  %v1228 = vcombine.high %v808, %v808
  %v1230 = vunpack.c.l.s4 1983009808
  %v1231 = vunpack.c.0.s8 %v1230
  %v1232 = vlaneseq
  %v1233 = vshrl.u32 %v1232, 7
  %v1234 = vsub.s32 %v1231, %v1233
  %v1235 = vrot.slane %v808, %v1234
  %v1237 = vunpack.c.l.s4 1983009808
  %v1238 = vunpack.c.0.s8 %v1237
  %v1239 = vlaneseq
  %v1240 = vshrl.u32 %v1239, 7
  %v1241 = vsub.s32 %v1238, %v1240
  %v1242 = vrot.slane %v1228, %v1241
  %v1243 = vcombine.high %v1235, %v1235
  %v1244 = vcombine.high %v1242, %v1242
  %v1245 = vcombine.high %v811, %v811
  %v1247 = vunpack.c.l.s4 1983009808
  %v1248 = vunpack.c.0.s8 %v1247
  %v1249 = vlaneseq
  %v1250 = vshrl.u32 %v1249, 7
  %v1251 = vsub.s32 %v1248, %v1250
  %v1252 = vrot.slane %v811, %v1251
  %v1254 = vunpack.c.l.s4 1983009808
  %v1255 = vunpack.c.0.s8 %v1254
  %v1256 = vlaneseq
  %v1257 = vshrl.u32 %v1256, 7
  %v1258 = vsub.s32 %v1255, %v1257
  %v1259 = vrot.slane %v1245, %v1258
  %v1260 = vcombine.high %v1252, %v1252
  %v1261 = vcombine.high %v1259, %v1259
  %v1262 = vcombine.high %v814, %v814
  %v1264 = vunpack.c.l.s4 1983009808
  %v1265 = vunpack.c.0.s8 %v1264
  %v1266 = vlaneseq
  %v1267 = vshrl.u32 %v1266, 7
  %v1268 = vsub.s32 %v1265, %v1267
  %v1269 = vrot.slane %v814, %v1268
  %v1271 = vunpack.c.l.s4 1983009808
  %v1272 = vunpack.c.0.s8 %v1271
  %v1273 = vlaneseq
  %v1274 = vshrl.u32 %v1273, 7
  %v1275 = vsub.s32 %v1272, %v1274
  %v1276 = vrot.slane %v1262, %v1275
  %v1277 = vcombine.high %v1269, %v1269
  %v1278 = vcombine.high %v1276, %v1276
  %v1279 = vcombine.high %v817, %v817
  %v1281 = vunpack.c.l.s4 1983009808
  %v1282 = vunpack.c.0.s8 %v1281
  %v1283 = vlaneseq
  %v1284 = vshrl.u32 %v1283, 7
  %v1285 = vsub.s32 %v1282, %v1284
  %v1286 = vrot.slane %v817, %v1285
  %v1288 = vunpack.c.l.s4 1983009808
  %v1289 = vunpack.c.0.s8 %v1288
  %v1290 = vlaneseq
  %v1291 = vshrl.u32 %v1290, 7
  %v1292 = vsub.s32 %v1289, %v1291
  %v1293 = vrot.slane %v1279, %v1292
  %v1294 = vcombine.high %v1286, %v1286
  %v1295 = vcombine.high %v1293, %v1293
  %v1296 = vcombine.high %v820, %v820
  %v1298 = vunpack.c.l.s4 1983009808
  %v1299 = vunpack.c.0.s8 %v1298
  %v1300 = vlaneseq
  %v1301 = vshrl.u32 %v1300, 7
  %v1302 = vsub.s32 %v1299, %v1301
  %v1303 = vrot.slane %v820, %v1302
  %v1305 = vunpack.c.l.s4 1983009808
  %v1306 = vunpack.c.0.s8 %v1305
  %v1307 = vlaneseq
  %v1308 = vshrl.u32 %v1307, 7
  %v1309 = vsub.s32 %v1306, %v1308
  %v1310 = vrot.slane %v1296, %v1309
  %v1311 = vcombine.high %v1303, %v1303
  %v1312 = vcombine.high %v1310, %v1310
  %v1313 = vcombine.high %v823, %v823
  %v1315 = vunpack.c.l.s4 1983009808
  %v1316 = vunpack.c.0.s8 %v1315
  %v1317 = vlaneseq
  %v1318 = vshrl.u32 %v1317, 7
  %v1319 = vsub.s32 %v1316, %v1318
  %v1320 = vrot.slane %v823, %v1319
  %v1322 = vunpack.c.l.s4 1983009808
  %v1323 = vunpack.c.0.s8 %v1322
  %v1324 = vlaneseq
  %v1325 = vshrl.u32 %v1324, 7
  %v1326 = vsub.s32 %v1323, %v1325
  %v1327 = vrot.slane %v1313, %v1326
  %v1328 = vcombine.high %v1320, %v1320
  %v1329 = vcombine.high %v1327, %v1327
  %v1330 = vcombine.high %v826, %v826
  %v1332 = vunpack.c.l.s4 1983009808
  %v1333 = vunpack.c.0.s8 %v1332
  %v1334 = vlaneseq
  %v1335 = vshrl.u32 %v1334, 7
  %v1336 = vsub.s32 %v1333, %v1335
  %v1337 = vrot.slane %v826, %v1336
  %v1339 = vunpack.c.l.s4 1983009808
  %v1340 = vunpack.c.0.s8 %v1339
  %v1341 = vlaneseq
  %v1342 = vshrl.u32 %v1341, 7
  %v1343 = vsub.s32 %v1340, %v1342
  %v1344 = vrot.slane %v1330, %v1343
  %v1345 = vcombine.high %v1337, %v1337
  %v1346 = vcombine.high %v1344, %v1344
  %v1347 = vcombine.high %v829, %v829
  %v1349 = vunpack.c.l.s4 1983009808
  %v1350 = vunpack.c.0.s8 %v1349
  %v1351 = vlaneseq
  %v1352 = vshrl.u32 %v1351, 7
  %v1353 = vsub.s32 %v1350, %v1352
  %v1354 = vrot.slane %v829, %v1353
  %v1356 = vunpack.c.l.s4 1983009808
  %v1357 = vunpack.c.0.s8 %v1356
  %v1358 = vlaneseq
  %v1359 = vshrl.u32 %v1358, 7
  %v1360 = vsub.s32 %v1357, %v1359
  %v1361 = vrot.slane %v1347, %v1360
  %v1362 = vcombine.high %v1354, %v1354
  %v1363 = vcombine.high %v1361, %v1361
  %v1364 = vcombine.high %v832, %v832
  %v1366 = vunpack.c.l.s4 1983009808
  %v1367 = vunpack.c.0.s8 %v1366
  %v1368 = vlaneseq
  %v1369 = vshrl.u32 %v1368, 7
  %v1370 = vsub.s32 %v1367, %v1369
  %v1371 = vrot.slane %v832, %v1370
  %v1373 = vunpack.c.l.s4 1983009808
  %v1374 = vunpack.c.0.s8 %v1373
  %v1375 = vlaneseq
  %v1376 = vshrl.u32 %v1375, 7
  %v1377 = vsub.s32 %v1374, %v1376
  %v1378 = vrot.slane %v1364, %v1377
  %v1379 = vcombine.high %v1371, %v1371
  %v1380 = vcombine.high %v1378, %v1378
  %v1381 = vcombine.high %v835, %v835
  %v1383 = vunpack.c.l.s4 1983009808
  %v1384 = vunpack.c.0.s8 %v1383
  %v1385 = vlaneseq
  %v1386 = vshrl.u32 %v1385, 7
  %v1387 = vsub.s32 %v1384, %v1386
  %v1388 = vrot.slane %v835, %v1387
  %v1390 = vunpack.c.l.s4 1983009808
  %v1391 = vunpack.c.0.s8 %v1390
  %v1392 = vlaneseq
  %v1393 = vshrl.u32 %v1392, 7
  %v1394 = vsub.s32 %v1391, %v1393
  %v1395 = vrot.slane %v1381, %v1394
  %v1396 = vcombine.high %v1388, %v1388
  %v1397 = vcombine.high %v1395, %v1395
  %v1398 = vcombine.high %v838, %v838
  %v1400 = vunpack.c.l.s4 1983009808
  %v1401 = vunpack.c.0.s8 %v1400
  %v1402 = vlaneseq
  %v1403 = vshrl.u32 %v1402, 7
  %v1404 = vsub.s32 %v1401, %v1403
  %v1405 = vrot.slane %v838, %v1404
  %v1407 = vunpack.c.l.s4 1983009808
  %v1408 = vunpack.c.0.s8 %v1407
  %v1409 = vlaneseq
  %v1410 = vshrl.u32 %v1409, 7
  %v1411 = vsub.s32 %v1408, %v1410
  %v1412 = vrot.slane %v1398, %v1411
  %v1413 = vcombine.high %v1405, %v1405
  %v1414 = vcombine.high %v1412, %v1412
  %vm1543 = vcmask 254976
  %v1544 = vsel %vm1543, %v878, -inf
  %v1545 = vrot.slane %v1544, 4
  %v1546 = vmax.f32 %v1544, %v1545
  %v1547 = vrot.slane %v1546, 2
  %v1548 = vmax.f32 %v1546, %v1547
  %v1549 = vrot.slane %v1548, 1
  %v1550 = vmax.f32 %v1548, %v1549
  %v1551 = vsel %vm1543, %v886, -inf
  %v1552 = vrot.slane %v1551, 4
  %v1553 = vmax.f32 %v1551, %v1552
  %v1554 = vrot.slane %v1553, 2
  %v1555 = vmax.f32 %v1553, %v1554
  %v1556 = vrot.slane %v1555, 1
  %v1557 = vmax.f32 %v1555, %v1556
  %v1558 = vsel %vm1543, %v885, -inf
  %v1559 = vrot.slane %v1558, 4
  %v1560 = vmax.f32 %v1558, %v1559
  %v1561 = vrot.slane %v1560, 2
  %v1562 = vmax.f32 %v1560, %v1561
  %v1563 = vrot.slane %v1562, 1
  %v1564 = vmax.f32 %v1562, %v1563
  %v1565 = vsel %vm1543, %v887, -inf
  %v1566 = vrot.slane %v1565, 4
  %v1567 = vmax.f32 %v1565, %v1566
  %v1568 = vrot.slane %v1567, 2
  %v1569 = vmax.f32 %v1567, %v1568
  %v1570 = vrot.slane %v1569, 1
  %v1571 = vmax.f32 %v1569, %v1570
  %v1572 = vsel %vm1543, %v895, -inf
  %v1573 = vrot.slane %v1572, 4
  %v1574 = vmax.f32 %v1572, %v1573
  %v1575 = vrot.slane %v1574, 2
  %v1576 = vmax.f32 %v1574, %v1575
  %v1577 = vrot.slane %v1576, 1
  %v1578 = vmax.f32 %v1576, %v1577
  %v1579 = vsel %vm1543, %v903, -inf
  %v1580 = vrot.slane %v1579, 4
  %v1581 = vmax.f32 %v1579, %v1580
  %v1582 = vrot.slane %v1581, 2
  %v1583 = vmax.f32 %v1581, %v1582
  %v1584 = vrot.slane %v1583, 1
  %v1585 = vmax.f32 %v1583, %v1584
  %v1586 = vsel %vm1543, %v902, -inf
  %v1587 = vrot.slane %v1586, 4
  %v1588 = vmax.f32 %v1586, %v1587
  %v1589 = vrot.slane %v1588, 2
  %v1590 = vmax.f32 %v1588, %v1589
  %v1591 = vrot.slane %v1590, 1
  %v1592 = vmax.f32 %v1590, %v1591
  %v1593 = vsel %vm1543, %v904, -inf
  %v1594 = vrot.slane %v1593, 4
  %v1595 = vmax.f32 %v1593, %v1594
  %v1596 = vrot.slane %v1595, 2
  %v1597 = vmax.f32 %v1595, %v1596
  %v1598 = vrot.slane %v1597, 1
  %v1599 = vmax.f32 %v1597, %v1598
  %v1600 = vsel %vm1543, %v912, -inf
  %v1601 = vrot.slane %v1600, 4
  %v1602 = vmax.f32 %v1600, %v1601
  %v1603 = vrot.slane %v1602, 2
  %v1604 = vmax.f32 %v1602, %v1603
  %v1605 = vrot.slane %v1604, 1
  %v1606 = vmax.f32 %v1604, %v1605
  %v1607 = vsel %vm1543, %v920, -inf
  %v1608 = vrot.slane %v1607, 4
  %v1609 = vmax.f32 %v1607, %v1608
  %v1610 = vrot.slane %v1609, 2
  %v1611 = vmax.f32 %v1609, %v1610
  %v1612 = vrot.slane %v1611, 1
  %v1613 = vmax.f32 %v1611, %v1612
  %v1614 = vsel %vm1543, %v919, -inf
  %v1615 = vrot.slane %v1614, 4
  %v1616 = vmax.f32 %v1614, %v1615
  %v1617 = vrot.slane %v1616, 2
  %v1618 = vmax.f32 %v1616, %v1617
  %v1619 = vrot.slane %v1618, 1
  %v1620 = vmax.f32 %v1618, %v1619
  %v1621 = vsel %vm1543, %v921, -inf
  %v1622 = vrot.slane %v1621, 4
  %v1623 = vmax.f32 %v1621, %v1622
  %v1624 = vrot.slane %v1623, 2
  %v1625 = vmax.f32 %v1623, %v1624
  %v1626 = vrot.slane %v1625, 1
  %v1627 = vmax.f32 %v1625, %v1626
  %v1628 = vsel %vm1543, %v929, -inf
  %v1629 = vrot.slane %v1628, 4
  %v1630 = vmax.f32 %v1628, %v1629
  %v1631 = vrot.slane %v1630, 2
  %v1632 = vmax.f32 %v1630, %v1631
  %v1633 = vrot.slane %v1632, 1
  %v1634 = vmax.f32 %v1632, %v1633
  %v1635 = vsel %vm1543, %v937, -inf
  %v1636 = vrot.slane %v1635, 4
  %v1637 = vmax.f32 %v1635, %v1636
  %v1638 = vrot.slane %v1637, 2
  %v1639 = vmax.f32 %v1637, %v1638
  %v1640 = vrot.slane %v1639, 1
  %v1641 = vmax.f32 %v1639, %v1640
  %v1642 = vsel %vm1543, %v936, -inf
  %v1643 = vrot.slane %v1642, 4
  %v1644 = vmax.f32 %v1642, %v1643
  %v1645 = vrot.slane %v1644, 2
  %v1646 = vmax.f32 %v1644, %v1645
  %v1647 = vrot.slane %v1646, 1
  %v1648 = vmax.f32 %v1646, %v1647
  %v1649 = vsel %vm1543, %v938, -inf
  %v1650 = vrot.slane %v1649, 4
  %v1651 = vmax.f32 %v1649, %v1650
  %v1652 = vrot.slane %v1651, 2
  %v1653 = vmax.f32 %v1651, %v1652
  %v1654 = vrot.slane %v1653, 1
  %v1655 = vmax.f32 %v1653, %v1654
  %v1656 = vsel %vm1543, %v946, -inf
  %v1657 = vrot.slane %v1656, 4
  %v1658 = vmax.f32 %v1656, %v1657
  %v1659 = vrot.slane %v1658, 2
  %v1660 = vmax.f32 %v1658, %v1659
  %v1661 = vrot.slane %v1660, 1
  %v1662 = vmax.f32 %v1660, %v1661
  %v1663 = vsel %vm1543, %v954, -inf
  %v1664 = vrot.slane %v1663, 4
  %v1665 = vmax.f32 %v1663, %v1664
  %v1666 = vrot.slane %v1665, 2
  %v1667 = vmax.f32 %v1665, %v1666
  %v1668 = vrot.slane %v1667, 1
  %v1669 = vmax.f32 %v1667, %v1668
  %v1670 = vsel %vm1543, %v953, -inf
  %v1671 = vrot.slane %v1670, 4
  %v1672 = vmax.f32 %v1670, %v1671
  %v1673 = vrot.slane %v1672, 2
  %v1674 = vmax.f32 %v1672, %v1673
  %v1675 = vrot.slane %v1674, 1
  %v1676 = vmax.f32 %v1674, %v1675
  %v1677 = vsel %vm1543, %v955, -inf
  %v1678 = vrot.slane %v1677, 4
  %v1679 = vmax.f32 %v1677, %v1678
  %v1680 = vrot.slane %v1679, 2
  %v1681 = vmax.f32 %v1679, %v1680
  %v1682 = vrot.slane %v1681, 1
  %v1683 = vmax.f32 %v1681, %v1682
  %v1684 = vsel %vm1543, %v963, -inf
  %v1685 = vrot.slane %v1684, 4
  %v1686 = vmax.f32 %v1684, %v1685
  %v1687 = vrot.slane %v1686, 2
  %v1688 = vmax.f32 %v1686, %v1687
  %v1689 = vrot.slane %v1688, 1
  %v1690 = vmax.f32 %v1688, %v1689
  %v1691 = vsel %vm1543, %v971, -inf
  %v1692 = vrot.slane %v1691, 4
  %v1693 = vmax.f32 %v1691, %v1692
  %v1694 = vrot.slane %v1693, 2
  %v1695 = vmax.f32 %v1693, %v1694
  %v1696 = vrot.slane %v1695, 1
  %v1697 = vmax.f32 %v1695, %v1696
  %v1698 = vsel %vm1543, %v970, -inf
  %v1699 = vrot.slane %v1698, 4
  %v1700 = vmax.f32 %v1698, %v1699
  %v1701 = vrot.slane %v1700, 2
  %v1702 = vmax.f32 %v1700, %v1701
  %v1703 = vrot.slane %v1702, 1
  %v1704 = vmax.f32 %v1702, %v1703
  %v1705 = vsel %vm1543, %v972, -inf
  %v1706 = vrot.slane %v1705, 4
  %v1707 = vmax.f32 %v1705, %v1706
  %v1708 = vrot.slane %v1707, 2
  %v1709 = vmax.f32 %v1707, %v1708
  %v1710 = vrot.slane %v1709, 1
  %v1711 = vmax.f32 %v1709, %v1710
  %v1712 = vsel %vm1543, %v980, -inf
  %v1713 = vrot.slane %v1712, 4
  %v1714 = vmax.f32 %v1712, %v1713
  %v1715 = vrot.slane %v1714, 2
  %v1716 = vmax.f32 %v1714, %v1715
  %v1717 = vrot.slane %v1716, 1
  %v1718 = vmax.f32 %v1716, %v1717
  %v1719 = vsel %vm1543, %v988, -inf
  %v1720 = vrot.slane %v1719, 4
  %v1721 = vmax.f32 %v1719, %v1720
  %v1722 = vrot.slane %v1721, 2
  %v1723 = vmax.f32 %v1721, %v1722
  %v1724 = vrot.slane %v1723, 1
  %v1725 = vmax.f32 %v1723, %v1724
  %v1726 = vsel %vm1543, %v987, -inf
  %v1727 = vrot.slane %v1726, 4
  %v1728 = vmax.f32 %v1726, %v1727
  %v1729 = vrot.slane %v1728, 2
  %v1730 = vmax.f32 %v1728, %v1729
  %v1731 = vrot.slane %v1730, 1
  %v1732 = vmax.f32 %v1730, %v1731
  %v1733 = vsel %vm1543, %v989, -inf
  %v1734 = vrot.slane %v1733, 4
  %v1735 = vmax.f32 %v1733, %v1734
  %v1736 = vrot.slane %v1735, 2
  %v1737 = vmax.f32 %v1735, %v1736
  %v1738 = vrot.slane %v1737, 1
  %v1739 = vmax.f32 %v1737, %v1738
  %v1740 = vsel %vm1543, %v997, -inf
  %v1741 = vrot.slane %v1740, 4
  %v1742 = vmax.f32 %v1740, %v1741
  %v1743 = vrot.slane %v1742, 2
  %v1744 = vmax.f32 %v1742, %v1743
  %v1745 = vrot.slane %v1744, 1
  %v1746 = vmax.f32 %v1744, %v1745
  %v1747 = vsel %vm1543, %v1005, -inf
  %v1748 = vrot.slane %v1747, 4
  %v1749 = vmax.f32 %v1747, %v1748
  %v1750 = vrot.slane %v1749, 2
  %v1751 = vmax.f32 %v1749, %v1750
  %v1752 = vrot.slane %v1751, 1
  %v1753 = vmax.f32 %v1751, %v1752
  %v1754 = vsel %vm1543, %v1004, -inf
  %v1755 = vrot.slane %v1754, 4
  %v1756 = vmax.f32 %v1754, %v1755
  %v1757 = vrot.slane %v1756, 2
  %v1758 = vmax.f32 %v1756, %v1757
  %v1759 = vrot.slane %v1758, 1
  %v1760 = vmax.f32 %v1758, %v1759
  %v1761 = vsel %vm1543, %v1006, -inf
  %v1762 = vrot.slane %v1761, 4
  %v1763 = vmax.f32 %v1761, %v1762
  %v1764 = vrot.slane %v1763, 2
  %v1765 = vmax.f32 %v1763, %v1764
  %v1766 = vrot.slane %v1765, 1
  %v1767 = vmax.f32 %v1765, %v1766
  %v1768 = vsel %vm1543, %v1014, -inf
  %v1769 = vrot.slane %v1768, 4
  %v1770 = vmax.f32 %v1768, %v1769
  %v1771 = vrot.slane %v1770, 2
  %v1772 = vmax.f32 %v1770, %v1771
  %v1773 = vrot.slane %v1772, 1
  %v1774 = vmax.f32 %v1772, %v1773
  %v1775 = vsel %vm1543, %v1022, -inf
  %v1776 = vrot.slane %v1775, 4
  %v1777 = vmax.f32 %v1775, %v1776
  %v1778 = vrot.slane %v1777, 2
  %v1779 = vmax.f32 %v1777, %v1778
  %v1780 = vrot.slane %v1779, 1
  %v1781 = vmax.f32 %v1779, %v1780
  %v1782 = vsel %vm1543, %v1021, -inf
  %v1783 = vrot.slane %v1782, 4
  %v1784 = vmax.f32 %v1782, %v1783
  %v1785 = vrot.slane %v1784, 2
  %v1786 = vmax.f32 %v1784, %v1785
  %v1787 = vrot.slane %v1786, 1
  %v1788 = vmax.f32 %v1786, %v1787
  %v1789 = vsel %vm1543, %v1023, -inf
  %v1790 = vrot.slane %v1789, 4
  %v1791 = vmax.f32 %v1789, %v1790
  %v1792 = vrot.slane %v1791, 2
  %v1793 = vmax.f32 %v1791, %v1792
  %v1794 = vrot.slane %v1793, 1
  %v1795 = vmax.f32 %v1793, %v1794
  %v1796 = vsel %vm1543, %v1031, -inf
  %v1797 = vrot.slane %v1796, 4
  %v1798 = vmax.f32 %v1796, %v1797
  %v1799 = vrot.slane %v1798, 2
  %v1800 = vmax.f32 %v1798, %v1799
  %v1801 = vrot.slane %v1800, 1
  %v1802 = vmax.f32 %v1800, %v1801
  %v1803 = vsel %vm1543, %v1039, -inf
  %v1804 = vrot.slane %v1803, 4
  %v1805 = vmax.f32 %v1803, %v1804
  %v1806 = vrot.slane %v1805, 2
  %v1807 = vmax.f32 %v1805, %v1806
  %v1808 = vrot.slane %v1807, 1
  %v1809 = vmax.f32 %v1807, %v1808
  %v1810 = vsel %vm1543, %v1038, -inf
  %v1811 = vrot.slane %v1810, 4
  %v1812 = vmax.f32 %v1810, %v1811
  %v1813 = vrot.slane %v1812, 2
  %v1814 = vmax.f32 %v1812, %v1813
  %v1815 = vrot.slane %v1814, 1
  %v1816 = vmax.f32 %v1814, %v1815
  %v1817 = vsel %vm1543, %v1040, -inf
  %v1818 = vrot.slane %v1817, 4
  %v1819 = vmax.f32 %v1817, %v1818
  %v1820 = vrot.slane %v1819, 2
  %v1821 = vmax.f32 %v1819, %v1820
  %v1822 = vrot.slane %v1821, 1
  %v1823 = vmax.f32 %v1821, %v1822
  %v1824 = vsel %vm1543, %v1048, -inf
  %v1825 = vrot.slane %v1824, 4
  %v1826 = vmax.f32 %v1824, %v1825
  %v1827 = vrot.slane %v1826, 2
  %v1828 = vmax.f32 %v1826, %v1827
  %v1829 = vrot.slane %v1828, 1
  %v1830 = vmax.f32 %v1828, %v1829
  %v1831 = vsel %vm1543, %v1056, -inf
  %v1832 = vrot.slane %v1831, 4
  %v1833 = vmax.f32 %v1831, %v1832
  %v1834 = vrot.slane %v1833, 2
  %v1835 = vmax.f32 %v1833, %v1834
  %v1836 = vrot.slane %v1835, 1
  %v1837 = vmax.f32 %v1835, %v1836
  %v1838 = vsel %vm1543, %v1055, -inf
  %v1839 = vrot.slane %v1838, 4
  %v1840 = vmax.f32 %v1838, %v1839
  %v1841 = vrot.slane %v1840, 2
  %v1842 = vmax.f32 %v1840, %v1841
  %v1843 = vrot.slane %v1842, 1
  %v1844 = vmax.f32 %v1842, %v1843
  %v1845 = vsel %vm1543, %v1057, -inf
  %v1846 = vrot.slane %v1845, 4
  %v1847 = vmax.f32 %v1845, %v1846
  %v1848 = vrot.slane %v1847, 2
  %v1849 = vmax.f32 %v1847, %v1848
  %v1850 = vrot.slane %v1849, 1
  %v1851 = vmax.f32 %v1849, %v1850
  %v1852 = vsel %vm1543, %v1065, -inf
  %v1853 = vrot.slane %v1852, 4
  %v1854 = vmax.f32 %v1852, %v1853
  %v1855 = vrot.slane %v1854, 2
  %v1856 = vmax.f32 %v1854, %v1855
  %v1857 = vrot.slane %v1856, 1
  %v1858 = vmax.f32 %v1856, %v1857
  %v1859 = vsel %vm1543, %v1073, -inf
  %v1860 = vrot.slane %v1859, 4
  %v1861 = vmax.f32 %v1859, %v1860
  %v1862 = vrot.slane %v1861, 2
  %v1863 = vmax.f32 %v1861, %v1862
  %v1864 = vrot.slane %v1863, 1
  %v1865 = vmax.f32 %v1863, %v1864
  %v1866 = vsel %vm1543, %v1072, -inf
  %v1867 = vrot.slane %v1866, 4
  %v1868 = vmax.f32 %v1866, %v1867
  %v1869 = vrot.slane %v1868, 2
  %v1870 = vmax.f32 %v1868, %v1869
  %v1871 = vrot.slane %v1870, 1
  %v1872 = vmax.f32 %v1870, %v1871
  %v1873 = vsel %vm1543, %v1074, -inf
  %v1874 = vrot.slane %v1873, 4
  %v1875 = vmax.f32 %v1873, %v1874
  %v1876 = vrot.slane %v1875, 2
  %v1877 = vmax.f32 %v1875, %v1876
  %v1878 = vrot.slane %v1877, 1
  %v1879 = vmax.f32 %v1877, %v1878
  %v1880 = vsel %vm1543, %v1082, -inf
  %v1881 = vrot.slane %v1880, 4
  %v1882 = vmax.f32 %v1880, %v1881
  %v1883 = vrot.slane %v1882, 2
  %v1884 = vmax.f32 %v1882, %v1883
  %v1885 = vrot.slane %v1884, 1
  %v1886 = vmax.f32 %v1884, %v1885
  %v1887 = vsel %vm1543, %v1090, -inf
  %v1888 = vrot.slane %v1887, 4
  %v1889 = vmax.f32 %v1887, %v1888
  %v1890 = vrot.slane %v1889, 2
  %v1891 = vmax.f32 %v1889, %v1890
  %v1892 = vrot.slane %v1891, 1
  %v1893 = vmax.f32 %v1891, %v1892
  %v1894 = vsel %vm1543, %v1089, -inf
  %v1895 = vrot.slane %v1894, 4
  %v1896 = vmax.f32 %v1894, %v1895
  %v1897 = vrot.slane %v1896, 2
  %v1898 = vmax.f32 %v1896, %v1897
  %v1899 = vrot.slane %v1898, 1
  %v1900 = vmax.f32 %v1898, %v1899
  %v1901 = vsel %vm1543, %v1091, -inf
  %v1902 = vrot.slane %v1901, 4
  %v1903 = vmax.f32 %v1901, %v1902
  %v1904 = vrot.slane %v1903, 2
  %v1905 = vmax.f32 %v1903, %v1904
  %v1906 = vrot.slane %v1905, 1
  %v1907 = vmax.f32 %v1905, %v1906
  %v1908 = vsel %vm1543, %v1099, -inf
  %v1909 = vrot.slane %v1908, 4
  %v1910 = vmax.f32 %v1908, %v1909
  %v1911 = vrot.slane %v1910, 2
  %v1912 = vmax.f32 %v1910, %v1911
  %v1913 = vrot.slane %v1912, 1
  %v1914 = vmax.f32 %v1912, %v1913
  %v1915 = vsel %vm1543, %v1107, -inf
  %v1916 = vrot.slane %v1915, 4
  %v1917 = vmax.f32 %v1915, %v1916
  %v1918 = vrot.slane %v1917, 2
  %v1919 = vmax.f32 %v1917, %v1918
  %v1920 = vrot.slane %v1919, 1
  %v1921 = vmax.f32 %v1919, %v1920
  %v1922 = vsel %vm1543, %v1106, -inf
  %v1923 = vrot.slane %v1922, 4
  %v1924 = vmax.f32 %v1922, %v1923
  %v1925 = vrot.slane %v1924, 2
  %v1926 = vmax.f32 %v1924, %v1925
  %v1927 = vrot.slane %v1926, 1
  %v1928 = vmax.f32 %v1926, %v1927
  %v1929 = vsel %vm1543, %v1108, -inf
  %v1930 = vrot.slane %v1929, 4
  %v1931 = vmax.f32 %v1929, %v1930
  %v1932 = vrot.slane %v1931, 2
  %v1933 = vmax.f32 %v1931, %v1932
  %v1934 = vrot.slane %v1933, 1
  %v1935 = vmax.f32 %v1933, %v1934
  %v1936 = vsel %vm1543, %v1116, -inf
  %v1937 = vrot.slane %v1936, 4
  %v1938 = vmax.f32 %v1936, %v1937
  %v1939 = vrot.slane %v1938, 2
  %v1940 = vmax.f32 %v1938, %v1939
  %v1941 = vrot.slane %v1940, 1
  %v1942 = vmax.f32 %v1940, %v1941
  %v1943 = vsel %vm1543, %v1124, -inf
  %v1944 = vrot.slane %v1943, 4
  %v1945 = vmax.f32 %v1943, %v1944
  %v1946 = vrot.slane %v1945, 2
  %v1947 = vmax.f32 %v1945, %v1946
  %v1948 = vrot.slane %v1947, 1
  %v1949 = vmax.f32 %v1947, %v1948
  %v1950 = vsel %vm1543, %v1123, -inf
  %v1951 = vrot.slane %v1950, 4
  %v1952 = vmax.f32 %v1950, %v1951
  %v1953 = vrot.slane %v1952, 2
  %v1954 = vmax.f32 %v1952, %v1953
  %v1955 = vrot.slane %v1954, 1
  %v1956 = vmax.f32 %v1954, %v1955
  %v1957 = vsel %vm1543, %v1125, -inf
  %v1958 = vrot.slane %v1957, 4
  %v1959 = vmax.f32 %v1957, %v1958
  %v1960 = vrot.slane %v1959, 2
  %v1961 = vmax.f32 %v1959, %v1960
  %v1962 = vrot.slane %v1961, 1
  %v1963 = vmax.f32 %v1961, %v1962
  %v1964 = vsel %vm1543, %v1133, -inf
  %v1965 = vrot.slane %v1964, 4
  %v1966 = vmax.f32 %v1964, %v1965
  %v1967 = vrot.slane %v1966, 2
  %v1968 = vmax.f32 %v1966, %v1967
  %v1969 = vrot.slane %v1968, 1
  %v1970 = vmax.f32 %v1968, %v1969
  %v1971 = vsel %vm1543, %v1141, -inf
  %v1972 = vrot.slane %v1971, 4
  %v1973 = vmax.f32 %v1971, %v1972
  %v1974 = vrot.slane %v1973, 2
  %v1975 = vmax.f32 %v1973, %v1974
  %v1976 = vrot.slane %v1975, 1
  %v1977 = vmax.f32 %v1975, %v1976
  %v1978 = vsel %vm1543, %v1140, -inf
  %v1979 = vrot.slane %v1978, 4
  %v1980 = vmax.f32 %v1978, %v1979
  %v1981 = vrot.slane %v1980, 2
  %v1982 = vmax.f32 %v1980, %v1981
  %v1983 = vrot.slane %v1982, 1
  %v1984 = vmax.f32 %v1982, %v1983
  %v1985 = vsel %vm1543, %v1142, -inf
  %v1986 = vrot.slane %v1985, 4
  %v1987 = vmax.f32 %v1985, %v1986
  %v1988 = vrot.slane %v1987, 2
  %v1989 = vmax.f32 %v1987, %v1988
  %v1990 = vrot.slane %v1989, 1
  %v1991 = vmax.f32 %v1989, %v1990
  %v1992 = vsel %vm1543, %v1150, -inf
  %v1993 = vrot.slane %v1992, 4
  %v1994 = vmax.f32 %v1992, %v1993
  %v1995 = vrot.slane %v1994, 2
  %v1996 = vmax.f32 %v1994, %v1995
  %v1997 = vrot.slane %v1996, 1
  %v1998 = vmax.f32 %v1996, %v1997
  %v1999 = vsel %vm1543, %v1158, -inf
  %v2000 = vrot.slane %v1999, 4
  %v2001 = vmax.f32 %v1999, %v2000
  %v2002 = vrot.slane %v2001, 2
  %v2003 = vmax.f32 %v2001, %v2002
  %v2004 = vrot.slane %v2003, 1
  %v2005 = vmax.f32 %v2003, %v2004
  %v2006 = vsel %vm1543, %v1157, -inf
  %v2007 = vrot.slane %v2006, 4
  %v2008 = vmax.f32 %v2006, %v2007
  %v2009 = vrot.slane %v2008, 2
  %v2010 = vmax.f32 %v2008, %v2009
  %v2011 = vrot.slane %v2010, 1
  %v2012 = vmax.f32 %v2010, %v2011
  %v2013 = vsel %vm1543, %v1159, -inf
  %v2014 = vrot.slane %v2013, 4
  %v2015 = vmax.f32 %v2013, %v2014
  %v2016 = vrot.slane %v2015, 2
  %v2017 = vmax.f32 %v2015, %v2016
  %v2018 = vrot.slane %v2017, 1
  %v2019 = vmax.f32 %v2017, %v2018
  %v2020 = vsel %vm1543, %v1167, -inf
  %v2021 = vrot.slane %v2020, 4
  %v2022 = vmax.f32 %v2020, %v2021
  %v2023 = vrot.slane %v2022, 2
  %v2024 = vmax.f32 %v2022, %v2023
  %v2025 = vrot.slane %v2024, 1
  %v2026 = vmax.f32 %v2024, %v2025
  %v2027 = vsel %vm1543, %v1175, -inf
  %v2028 = vrot.slane %v2027, 4
  %v2029 = vmax.f32 %v2027, %v2028
  %v2030 = vrot.slane %v2029, 2
  %v2031 = vmax.f32 %v2029, %v2030
  %v2032 = vrot.slane %v2031, 1
  %v2033 = vmax.f32 %v2031, %v2032
  %v2034 = vsel %vm1543, %v1174, -inf
  %v2035 = vrot.slane %v2034, 4
  %v2036 = vmax.f32 %v2034, %v2035
  %v2037 = vrot.slane %v2036, 2
  %v2038 = vmax.f32 %v2036, %v2037
  %v2039 = vrot.slane %v2038, 1
  %v2040 = vmax.f32 %v2038, %v2039
  %v2041 = vsel %vm1543, %v1176, -inf
  %v2042 = vrot.slane %v2041, 4
  %v2043 = vmax.f32 %v2041, %v2042
  %v2044 = vrot.slane %v2043, 2
  %v2045 = vmax.f32 %v2043, %v2044
  %v2046 = vrot.slane %v2045, 1
  %v2047 = vmax.f32 %v2045, %v2046
  %v2048 = vsel %vm1543, %v1184, -inf
  %v2049 = vrot.slane %v2048, 4
  %v2050 = vmax.f32 %v2048, %v2049
  %v2051 = vrot.slane %v2050, 2
  %v2052 = vmax.f32 %v2050, %v2051
  %v2053 = vrot.slane %v2052, 1
  %v2054 = vmax.f32 %v2052, %v2053
  %v2055 = vsel %vm1543, %v1192, -inf
  %v2056 = vrot.slane %v2055, 4
  %v2057 = vmax.f32 %v2055, %v2056
  %v2058 = vrot.slane %v2057, 2
  %v2059 = vmax.f32 %v2057, %v2058
  %v2060 = vrot.slane %v2059, 1
  %v2061 = vmax.f32 %v2059, %v2060
  %v2062 = vsel %vm1543, %v1191, -inf
  %v2063 = vrot.slane %v2062, 4
  %v2064 = vmax.f32 %v2062, %v2063
  %v2065 = vrot.slane %v2064, 2
  %v2066 = vmax.f32 %v2064, %v2065
  %v2067 = vrot.slane %v2066, 1
  %v2068 = vmax.f32 %v2066, %v2067
  %v2069 = vsel %vm1543, %v1193, -inf
  %v2070 = vrot.slane %v2069, 4
  %v2071 = vmax.f32 %v2069, %v2070
  %v2072 = vrot.slane %v2071, 2
  %v2073 = vmax.f32 %v2071, %v2072
  %v2074 = vrot.slane %v2073, 1
  %v2075 = vmax.f32 %v2073, %v2074
  %v2076 = vsel %vm1543, %v1201, -inf
  %v2077 = vrot.slane %v2076, 4
  %v2078 = vmax.f32 %v2076, %v2077
  %v2079 = vrot.slane %v2078, 2
  %v2080 = vmax.f32 %v2078, %v2079
  %v2081 = vrot.slane %v2080, 1
  %v2082 = vmax.f32 %v2080, %v2081
  %v2083 = vsel %vm1543, %v1209, -inf
  %v2084 = vrot.slane %v2083, 4
  %v2085 = vmax.f32 %v2083, %v2084
  %v2086 = vrot.slane %v2085, 2
  %v2087 = vmax.f32 %v2085, %v2086
  %v2088 = vrot.slane %v2087, 1
  %v2089 = vmax.f32 %v2087, %v2088
  %v2090 = vsel %vm1543, %v1208, -inf
  %v2091 = vrot.slane %v2090, 4
  %v2092 = vmax.f32 %v2090, %v2091
  %v2093 = vrot.slane %v2092, 2
  %v2094 = vmax.f32 %v2092, %v2093
  %v2095 = vrot.slane %v2094, 1
  %v2096 = vmax.f32 %v2094, %v2095
  %v2097 = vsel %vm1543, %v1210, -inf
  %v2098 = vrot.slane %v2097, 4
  %v2099 = vmax.f32 %v2097, %v2098
  %v2100 = vrot.slane %v2099, 2
  %v2101 = vmax.f32 %v2099, %v2100
  %v2102 = vrot.slane %v2101, 1
  %v2103 = vmax.f32 %v2101, %v2102
  %v2104 = vsel %vm1543, %v1218, -inf
  %v2105 = vrot.slane %v2104, 4
  %v2106 = vmax.f32 %v2104, %v2105
  %v2107 = vrot.slane %v2106, 2
  %v2108 = vmax.f32 %v2106, %v2107
  %v2109 = vrot.slane %v2108, 1
  %v2110 = vmax.f32 %v2108, %v2109
  %v2111 = vsel %vm1543, %v1226, -inf
  %v2112 = vrot.slane %v2111, 4
  %v2113 = vmax.f32 %v2111, %v2112
  %v2114 = vrot.slane %v2113, 2
  %v2115 = vmax.f32 %v2113, %v2114
  %v2116 = vrot.slane %v2115, 1
  %v2117 = vmax.f32 %v2115, %v2116
  %v2118 = vsel %vm1543, %v1225, -inf
  %v2119 = vrot.slane %v2118, 4
  %v2120 = vmax.f32 %v2118, %v2119
  %v2121 = vrot.slane %v2120, 2
  %v2122 = vmax.f32 %v2120, %v2121
  %v2123 = vrot.slane %v2122, 1
  %v2124 = vmax.f32 %v2122, %v2123
  %v2125 = vsel %vm1543, %v1227, -inf
  %v2126 = vrot.slane %v2125, 4
  %v2127 = vmax.f32 %v2125, %v2126
  %v2128 = vrot.slane %v2127, 2
  %v2129 = vmax.f32 %v2127, %v2128
  %v2130 = vrot.slane %v2129, 1
  %v2131 = vmax.f32 %v2129, %v2130
  %v2132 = vsel %vm1543, %v1235, -inf
  %v2133 = vrot.slane %v2132, 4
  %v2134 = vmax.f32 %v2132, %v2133
  %v2135 = vrot.slane %v2134, 2
  %v2136 = vmax.f32 %v2134, %v2135
  %v2137 = vrot.slane %v2136, 1
  %v2138 = vmax.f32 %v2136, %v2137
  %v2139 = vsel %vm1543, %v1243, -inf
  %v2140 = vrot.slane %v2139, 4
  %v2141 = vmax.f32 %v2139, %v2140
  %v2142 = vrot.slane %v2141, 2
  %v2143 = vmax.f32 %v2141, %v2142
  %v2144 = vrot.slane %v2143, 1
  %v2145 = vmax.f32 %v2143, %v2144
  %v2146 = vsel %vm1543, %v1242, -inf
  %v2147 = vrot.slane %v2146, 4
  %v2148 = vmax.f32 %v2146, %v2147
  %v2149 = vrot.slane %v2148, 2
  %v2150 = vmax.f32 %v2148, %v2149
  %v2151 = vrot.slane %v2150, 1
  %v2152 = vmax.f32 %v2150, %v2151
  %v2153 = vsel %vm1543, %v1244, -inf
  %v2154 = vrot.slane %v2153, 4
  %v2155 = vmax.f32 %v2153, %v2154
  %v2156 = vrot.slane %v2155, 2
  %v2157 = vmax.f32 %v2155, %v2156
  %v2158 = vrot.slane %v2157, 1
  %v2159 = vmax.f32 %v2157, %v2158
  %v2160 = vsel %vm1543, %v1252, -inf
  %v2161 = vrot.slane %v2160, 4
  %v2162 = vmax.f32 %v2160, %v2161
  %v2163 = vrot.slane %v2162, 2
  %v2164 = vmax.f32 %v2162, %v2163
  %v2165 = vrot.slane %v2164, 1
  %v2166 = vmax.f32 %v2164, %v2165
  %v2167 = vsel %vm1543, %v1260, -inf
  %v2168 = vrot.slane %v2167, 4
  %v2169 = vmax.f32 %v2167, %v2168
  %v2170 = vrot.slane %v2169, 2
  %v2171 = vmax.f32 %v2169, %v2170
  %v2172 = vrot.slane %v2171, 1
  %v2173 = vmax.f32 %v2171, %v2172
  %v2174 = vsel %vm1543, %v1259, -inf
  %v2175 = vrot.slane %v2174, 4
  %v2176 = vmax.f32 %v2174, %v2175
  %v2177 = vrot.slane %v2176, 2
  %v2178 = vmax.f32 %v2176, %v2177
  %v2179 = vrot.slane %v2178, 1
  %v2180 = vmax.f32 %v2178, %v2179
  %v2181 = vsel %vm1543, %v1261, -inf
  %v2182 = vrot.slane %v2181, 4
  %v2183 = vmax.f32 %v2181, %v2182
  %v2184 = vrot.slane %v2183, 2
  %v2185 = vmax.f32 %v2183, %v2184
  %v2186 = vrot.slane %v2185, 1
  %v2187 = vmax.f32 %v2185, %v2186
  %v2188 = vsel %vm1543, %v1269, -inf
  %v2189 = vrot.slane %v2188, 4
  %v2190 = vmax.f32 %v2188, %v2189
  %v2191 = vrot.slane %v2190, 2
  %v2192 = vmax.f32 %v2190, %v2191
  %v2193 = vrot.slane %v2192, 1
  %v2194 = vmax.f32 %v2192, %v2193
  %v2195 = vsel %vm1543, %v1277, -inf
  %v2196 = vrot.slane %v2195, 4
  %v2197 = vmax.f32 %v2195, %v2196
  %v2198 = vrot.slane %v2197, 2
  %v2199 = vmax.f32 %v2197, %v2198
  %v2200 = vrot.slane %v2199, 1
  %v2201 = vmax.f32 %v2199, %v2200
  %v2202 = vsel %vm1543, %v1276, -inf
  %v2203 = vrot.slane %v2202, 4
  %v2204 = vmax.f32 %v2202, %v2203
  %v2205 = vrot.slane %v2204, 2
  %v2206 = vmax.f32 %v2204, %v2205
  %v2207 = vrot.slane %v2206, 1
  %v2208 = vmax.f32 %v2206, %v2207
  %v2209 = vsel %vm1543, %v1278, -inf
  %v2210 = vrot.slane %v2209, 4
  %v2211 = vmax.f32 %v2209, %v2210
  %v2212 = vrot.slane %v2211, 2
  %v2213 = vmax.f32 %v2211, %v2212
  %v2214 = vrot.slane %v2213, 1
  %v2215 = vmax.f32 %v2213, %v2214
  %v2216 = vsel %vm1543, %v1286, -inf
  %v2217 = vrot.slane %v2216, 4
  %v2218 = vmax.f32 %v2216, %v2217
  %v2219 = vrot.slane %v2218, 2
  %v2220 = vmax.f32 %v2218, %v2219
  %v2221 = vrot.slane %v2220, 1
  %v2222 = vmax.f32 %v2220, %v2221
  %v2223 = vsel %vm1543, %v1294, -inf
  %v2224 = vrot.slane %v2223, 4
  %v2225 = vmax.f32 %v2223, %v2224
  %v2226 = vrot.slane %v2225, 2
  %v2227 = vmax.f32 %v2225, %v2226
  %v2228 = vrot.slane %v2227, 1
  %v2229 = vmax.f32 %v2227, %v2228
  %v2230 = vsel %vm1543, %v1293, -inf
  %v2231 = vrot.slane %v2230, 4
  %v2232 = vmax.f32 %v2230, %v2231
  %v2233 = vrot.slane %v2232, 2
  %v2234 = vmax.f32 %v2232, %v2233
  %v2235 = vrot.slane %v2234, 1
  %v2236 = vmax.f32 %v2234, %v2235
  %v2237 = vsel %vm1543, %v1295, -inf
  %v2238 = vrot.slane %v2237, 4
  %v2239 = vmax.f32 %v2237, %v2238
  %v2240 = vrot.slane %v2239, 2
  %v2241 = vmax.f32 %v2239, %v2240
  %v2242 = vrot.slane %v2241, 1
  %v2243 = vmax.f32 %v2241, %v2242
  %v2244 = vsel %vm1543, %v1303, -inf
  %v2245 = vrot.slane %v2244, 4
  %v2246 = vmax.f32 %v2244, %v2245
  %v2247 = vrot.slane %v2246, 2
  %v2248 = vmax.f32 %v2246, %v2247
  %v2249 = vrot.slane %v2248, 1
  %v2250 = vmax.f32 %v2248, %v2249
  %v2251 = vsel %vm1543, %v1311, -inf
  %v2252 = vrot.slane %v2251, 4
  %v2253 = vmax.f32 %v2251, %v2252
  %v2254 = vrot.slane %v2253, 2
  %v2255 = vmax.f32 %v2253, %v2254
  %v2256 = vrot.slane %v2255, 1
  %v2257 = vmax.f32 %v2255, %v2256
  %v2258 = vsel %vm1543, %v1310, -inf
  %v2259 = vrot.slane %v2258, 4
  %v2260 = vmax.f32 %v2258, %v2259
  %v2261 = vrot.slane %v2260, 2
  %v2262 = vmax.f32 %v2260, %v2261
  %v2263 = vrot.slane %v2262, 1
  %v2264 = vmax.f32 %v2262, %v2263
  %v2265 = vsel %vm1543, %v1312, -inf
  %v2266 = vrot.slane %v2265, 4
  %v2267 = vmax.f32 %v2265, %v2266
  %v2268 = vrot.slane %v2267, 2
  %v2269 = vmax.f32 %v2267, %v2268
  %v2270 = vrot.slane %v2269, 1
  %v2271 = vmax.f32 %v2269, %v2270
  %v2272 = vsel %vm1543, %v1320, -inf
  %v2273 = vrot.slane %v2272, 4
  %v2274 = vmax.f32 %v2272, %v2273
  %v2275 = vrot.slane %v2274, 2
  %v2276 = vmax.f32 %v2274, %v2275
  %v2277 = vrot.slane %v2276, 1
  %v2278 = vmax.f32 %v2276, %v2277
  %v2279 = vsel %vm1543, %v1328, -inf
  %v2280 = vrot.slane %v2279, 4
  %v2281 = vmax.f32 %v2279, %v2280
  %v2282 = vrot.slane %v2281, 2
  %v2283 = vmax.f32 %v2281, %v2282
  %v2284 = vrot.slane %v2283, 1
  %v2285 = vmax.f32 %v2283, %v2284
  %v2286 = vsel %vm1543, %v1327, -inf
  %v2287 = vrot.slane %v2286, 4
  %v2288 = vmax.f32 %v2286, %v2287
  %v2289 = vrot.slane %v2288, 2
  %v2290 = vmax.f32 %v2288, %v2289
  %v2291 = vrot.slane %v2290, 1
  %v2292 = vmax.f32 %v2290, %v2291
  %v2293 = vsel %vm1543, %v1329, -inf
  %v2294 = vrot.slane %v2293, 4
  %v2295 = vmax.f32 %v2293, %v2294
  %v2296 = vrot.slane %v2295, 2
  %v2297 = vmax.f32 %v2295, %v2296
  %v2298 = vrot.slane %v2297, 1
  %v2299 = vmax.f32 %v2297, %v2298
  %v2300 = vsel %vm1543, %v1337, -inf
  %v2301 = vrot.slane %v2300, 4
  %v2302 = vmax.f32 %v2300, %v2301
  %v2303 = vrot.slane %v2302, 2
  %v2304 = vmax.f32 %v2302, %v2303
  %v2305 = vrot.slane %v2304, 1
  %v2306 = vmax.f32 %v2304, %v2305
  %v2307 = vsel %vm1543, %v1345, -inf
  %v2308 = vrot.slane %v2307, 4
  %v2309 = vmax.f32 %v2307, %v2308
  %v2310 = vrot.slane %v2309, 2
  %v2311 = vmax.f32 %v2309, %v2310
  %v2312 = vrot.slane %v2311, 1
  %v2313 = vmax.f32 %v2311, %v2312
  %v2314 = vsel %vm1543, %v1344, -inf
  %v2315 = vrot.slane %v2314, 4
  %v2316 = vmax.f32 %v2314, %v2315
  %v2317 = vrot.slane %v2316, 2
  %v2318 = vmax.f32 %v2316, %v2317
  %v2319 = vrot.slane %v2318, 1
  %v2320 = vmax.f32 %v2318, %v2319
  %v2321 = vsel %vm1543, %v1346, -inf
  %v2322 = vrot.slane %v2321, 4
  %v2323 = vmax.f32 %v2321, %v2322
  %v2324 = vrot.slane %v2323, 2
  %v2325 = vmax.f32 %v2323, %v2324
  %v2326 = vrot.slane %v2325, 1
  %v2327 = vmax.f32 %v2325, %v2326
  %v2328 = vsel %vm1543, %v1354, -inf
  %v2329 = vrot.slane %v2328, 4
  %v2330 = vmax.f32 %v2328, %v2329
  %v2331 = vrot.slane %v2330, 2
  %v2332 = vmax.f32 %v2330, %v2331
  %v2333 = vrot.slane %v2332, 1
  %v2334 = vmax.f32 %v2332, %v2333
  %v2335 = vsel %vm1543, %v1362, -inf
  %v2336 = vrot.slane %v2335, 4
  %v2337 = vmax.f32 %v2335, %v2336
  %v2338 = vrot.slane %v2337, 2
  %v2339 = vmax.f32 %v2337, %v2338
  %v2340 = vrot.slane %v2339, 1
  %v2341 = vmax.f32 %v2339, %v2340
  %v2342 = vsel %vm1543, %v1361, -inf
  %v2343 = vrot.slane %v2342, 4
  %v2344 = vmax.f32 %v2342, %v2343
  %v2345 = vrot.slane %v2344, 2
  %v2346 = vmax.f32 %v2344, %v2345
  %v2347 = vrot.slane %v2346, 1
  %v2348 = vmax.f32 %v2346, %v2347
  %v2349 = vsel %vm1543, %v1363, -inf
  %v2350 = vrot.slane %v2349, 4
  %v2351 = vmax.f32 %v2349, %v2350
  %v2352 = vrot.slane %v2351, 2
  %v2353 = vmax.f32 %v2351, %v2352
  %v2354 = vrot.slane %v2353, 1
  %v2355 = vmax.f32 %v2353, %v2354
  %v2356 = vsel %vm1543, %v1371, -inf
  %v2357 = vrot.slane %v2356, 4
  %v2358 = vmax.f32 %v2356, %v2357
  %v2359 = vrot.slane %v2358, 2
  %v2360 = vmax.f32 %v2358, %v2359
  %v2361 = vrot.slane %v2360, 1
  %v2362 = vmax.f32 %v2360, %v2361
  %v2363 = vsel %vm1543, %v1379, -inf
  %v2364 = vrot.slane %v2363, 4
  %v2365 = vmax.f32 %v2363, %v2364
  %v2366 = vrot.slane %v2365, 2
  %v2367 = vmax.f32 %v2365, %v2366
  %v2368 = vrot.slane %v2367, 1
  %v2369 = vmax.f32 %v2367, %v2368
  %v2370 = vsel %vm1543, %v1378, -inf
  %v2371 = vrot.slane %v2370, 4
  %v2372 = vmax.f32 %v2370, %v2371
  %v2373 = vrot.slane %v2372, 2
  %v2374 = vmax.f32 %v2372, %v2373
  %v2375 = vrot.slane %v2374, 1
  %v2376 = vmax.f32 %v2374, %v2375
  %v2377 = vsel %vm1543, %v1380, -inf
  %v2378 = vrot.slane %v2377, 4
  %v2379 = vmax.f32 %v2377, %v2378
  %v2380 = vrot.slane %v2379, 2
  %v2381 = vmax.f32 %v2379, %v2380
  %v2382 = vrot.slane %v2381, 1
  %v2383 = vmax.f32 %v2381, %v2382
  %v2384 = vsel %vm1543, %v1388, -inf
  %v2385 = vrot.slane %v2384, 4
  %v2386 = vmax.f32 %v2384, %v2385
  %v2387 = vrot.slane %v2386, 2
  %v2388 = vmax.f32 %v2386, %v2387
  %v2389 = vrot.slane %v2388, 1
  %v2390 = vmax.f32 %v2388, %v2389
  %v2391 = vsel %vm1543, %v1396, -inf
  %v2392 = vrot.slane %v2391, 4
  %v2393 = vmax.f32 %v2391, %v2392
  %v2394 = vrot.slane %v2393, 2
  %v2395 = vmax.f32 %v2393, %v2394
  %v2396 = vrot.slane %v2395, 1
  %v2397 = vmax.f32 %v2395, %v2396
  %v2398 = vsel %vm1543, %v1395, -inf
  %v2399 = vrot.slane %v2398, 4
  %v2400 = vmax.f32 %v2398, %v2399
  %v2401 = vrot.slane %v2400, 2
  %v2402 = vmax.f32 %v2400, %v2401
  %v2403 = vrot.slane %v2402, 1
  %v2404 = vmax.f32 %v2402, %v2403
  %v2405 = vsel %vm1543, %v1397, -inf
  %v2406 = vrot.slane %v2405, 4
  %v2407 = vmax.f32 %v2405, %v2406
  %v2408 = vrot.slane %v2407, 2
  %v2409 = vmax.f32 %v2407, %v2408
  %v2410 = vrot.slane %v2409, 1
  %v2411 = vmax.f32 %v2409, %v2410
  %v2412 = vsel %vm1543, %v1405, -inf
  %v2413 = vrot.slane %v2412, 4
  %v2414 = vmax.f32 %v2412, %v2413
  %v2415 = vrot.slane %v2414, 2
  %v2416 = vmax.f32 %v2414, %v2415
  %v2417 = vrot.slane %v2416, 1
  %v2418 = vmax.f32 %v2416, %v2417
  %v2419 = vsel %vm1543, %v1413, -inf
  %v2420 = vrot.slane %v2419, 4
  %v2421 = vmax.f32 %v2419, %v2420
  %v2422 = vrot.slane %v2421, 2
  %v2423 = vmax.f32 %v2421, %v2422
  %v2424 = vrot.slane %v2423, 1
  %v2425 = vmax.f32 %v2423, %v2424
  %v2426 = vsel %vm1543, %v1412, -inf
  %v2427 = vrot.slane %v2426, 4
  %v2428 = vmax.f32 %v2426, %v2427
  %v2429 = vrot.slane %v2428, 2
  %v2430 = vmax.f32 %v2428, %v2429
  %v2431 = vrot.slane %v2430, 1
  %v2432 = vmax.f32 %v2430, %v2431
  %v2433 = vsel %vm1543, %v1414, -inf
  %v2434 = vrot.slane %v2433, 4
  %v2435 = vmax.f32 %v2433, %v2434
  %v2436 = vrot.slane %v2435, 2
  %v2437 = vmax.f32 %v2435, %v2436
  %v2438 = vrot.slane %v2437, 1
  %v2439 = vmax.f32 %v2437, %v2438
  %vm2440 = vcmask 257024
  %2441 = vst.msk [vmem:[#allocation2] sm:$0xf] %vm2440, 0
  %vm2442 = vcmask 253952
  %2443 = vst.msk [vmem:[#allocation2 + $0x4] sm:$0x1] %vm2442, 0
  %2444 = vst.msk [vmem:[#allocation2 + $0x8] sm:$0xf] %vm2440, 0
  %2445 = vst.msk [vmem:[#allocation2 + $0xc] sm:$0x1] %vm2442, 0
  %2446 = vst.msk [vmem:[#allocation2 + $0x10] sm:$0xf] %vm2440, 0
  %2447 = vst.msk [vmem:[#allocation2 + $0x14] sm:$0x1] %vm2442, 0
  %2448 = vst.msk [vmem:[#allocation2 + $0x18] sm:$0xf] %vm2440, 0
  %2449 = vst.msk [vmem:[#allocation2 + $0x1c] sm:$0x1] %vm2442, 0
  %2450 = vst.msk [vmem:[#allocation2 + $0x20] sm:$0xf] %vm2440, 0
  %2451 = vst.msk [vmem:[#allocation2 + $0x24] sm:$0x1] %vm2442, 0
  %2452 = vst.msk [vmem:[#allocation2 + $0x28] sm:$0xf] %vm2440, 0
  %2453 = vst.msk [vmem:[#allocation2 + $0x2c] sm:$0x1] %vm2442, 0
  %2454 = vst.msk [vmem:[#allocation2 + $0x30] sm:$0xf] %vm2440, 0
  %2455 = vst.msk [vmem:[#allocation2 + $0x34] sm:$0x1] %vm2442, 0
  %2456 = vst.msk [vmem:[#allocation2 + $0x38] sm:$0xf] %vm2440, 0
  %2457 = vst.msk [vmem:[#allocation2 + $0x3c] sm:$0x1] %vm2442, 0
  %2458 = vst.msk [vmem:[#allocation2 + $0x40] sm:$0xf] %vm2440, 0
  %2459 = vst.msk [vmem:[#allocation2 + $0x44] sm:$0x1] %vm2442, 0
  %2460 = vst.msk [vmem:[#allocation2 + $0x48] sm:$0xf] %vm2440, 0
  %2461 = vst.msk [vmem:[#allocation2 + $0x4c] sm:$0x1] %vm2442, 0
  %2462 = vst.msk [vmem:[#allocation2 + $0x50] sm:$0xf] %vm2440, 0
  %2463 = vst.msk [vmem:[#allocation2 + $0x54] sm:$0x1] %vm2442, 0
  %2464 = vst.msk [vmem:[#allocation2 + $0x58] sm:$0xf] %vm2440, 0
  %2465 = vst.msk [vmem:[#allocation2 + $0x5c] sm:$0x1] %vm2442, 0
  %2466 = vst.msk [vmem:[#allocation2 + $0x60] sm:$0xf] %vm2440, 0
  %2467 = vst.msk [vmem:[#allocation2 + $0x64] sm:$0x1] %vm2442, 0
  %2468 = vst.msk [vmem:[#allocation2 + $0x68] sm:$0xf] %vm2440, 0
  %2469 = vst.msk [vmem:[#allocation2 + $0x6c] sm:$0x1] %vm2442, 0
  %2470 = vst.msk [vmem:[#allocation2 + $0x70] sm:$0xf] %vm2440, 0
  %2471 = vst.msk [vmem:[#allocation2 + $0x74] sm:$0x1] %vm2442, 0
  %2472 = vst.msk [vmem:[#allocation2 + $0x78] sm:$0xf] %vm2440, 0
  %2473 = vst.msk [vmem:[#allocation2 + $0x7c] sm:$0x1] %vm2442, 0
  %2474 = vst.msk [vmem:[#allocation2 + $0x80] sm:$0xf] %vm2440, 0
  %2475 = vst.msk [vmem:[#allocation2 + $0x84] sm:$0x1] %vm2442, 0
  %2476 = vst.msk [vmem:[#allocation2 + $0x88] sm:$0xf] %vm2440, 0
  %2477 = vst.msk [vmem:[#allocation2 + $0x8c] sm:$0x1] %vm2442, 0
  %2478 = vst.msk [vmem:[#allocation2 + $0x90] sm:$0xf] %vm2440, 0
  %2479 = vst.msk [vmem:[#allocation2 + $0x94] sm:$0x1] %vm2442, 0
  %2480 = vst.msk [vmem:[#allocation2 + $0x98] sm:$0xf] %vm2440, 0
  %2481 = vst.msk [vmem:[#allocation2 + $0x9c] sm:$0x1] %vm2442, 0
  %v2482 = vpack.c.bf16 %v1550, %v1550
  %v2483 = vpack.c.bf16 %v1557, %v1557
  %v2484 = vpack.c.bf16 %v1564, %v1564
  %v2485 = vpack.c.bf16 %v1571, %v1571
  %v2486 = vpack.c.bf16 %v1578, %v1578
  %v2487 = vpack.c.bf16 %v1585, %v1585
  %v2488 = vpack.c.bf16 %v1592, %v1592
  %v2489 = vpack.c.bf16 %v1599, %v1599
  %v2490 = vpack.c.bf16 %v1606, %v1606
  %v2491 = vpack.c.bf16 %v1613, %v1613
  %v2492 = vpack.c.bf16 %v1620, %v1620
  %v2493 = vpack.c.bf16 %v1627, %v1627
  %v2494 = vpack.c.bf16 %v1634, %v1634
  %v2495 = vpack.c.bf16 %v1641, %v1641
  %v2496 = vpack.c.bf16 %v1648, %v1648
  %v2497 = vpack.c.bf16 %v1655, %v1655
  %v2498 = vpack.c.bf16 %v1662, %v1662
  %v2499 = vpack.c.bf16 %v1669, %v1669
  %v2500 = vpack.c.bf16 %v1676, %v1676
  %v2501 = vpack.c.bf16 %v1683, %v1683
  %v2502 = vpack.c.bf16 %v1690, %v1690
  %v2503 = vpack.c.bf16 %v1697, %v1697
  %v2504 = vpack.c.bf16 %v1704, %v1704
  %v2505 = vpack.c.bf16 %v1711, %v1711
  %v2506 = vpack.c.bf16 %v1718, %v1718
  %v2507 = vpack.c.bf16 %v1725, %v1725
  %v2508 = vpack.c.bf16 %v1732, %v1732
  %v2509 = vpack.c.bf16 %v1739, %v1739
  %v2510 = vpack.c.bf16 %v1746, %v1746
  %v2511 = vpack.c.bf16 %v1753, %v1753
  %v2512 = vpack.c.bf16 %v1760, %v1760
  %v2513 = vpack.c.bf16 %v1767, %v1767
  %v2514 = vpack.c.bf16 %v1774, %v1774
  %v2515 = vpack.c.bf16 %v1781, %v1781
  %v2516 = vpack.c.bf16 %v1788, %v1788
  %v2517 = vpack.c.bf16 %v1795, %v1795
  %v2518 = vpack.c.bf16 %v1802, %v1802
  %v2519 = vpack.c.bf16 %v1809, %v1809
  %v2520 = vpack.c.bf16 %v1816, %v1816
  %v2521 = vpack.c.bf16 %v1823, %v1823
  %v2522 = vpack.c.bf16 %v1830, %v1830
  %v2523 = vpack.c.bf16 %v1837, %v1837
  %v2524 = vpack.c.bf16 %v1844, %v1844
  %v2525 = vpack.c.bf16 %v1851, %v1851
  %v2526 = vpack.c.bf16 %v1858, %v1858
  %v2527 = vpack.c.bf16 %v1865, %v1865
  %v2528 = vpack.c.bf16 %v1872, %v1872
  %v2529 = vpack.c.bf16 %v1879, %v1879
  %v2530 = vpack.c.bf16 %v1886, %v1886
  %v2531 = vpack.c.bf16 %v1893, %v1893
  %v2532 = vpack.c.bf16 %v1900, %v1900
  %v2533 = vpack.c.bf16 %v1907, %v1907
  %v2534 = vpack.c.bf16 %v1914, %v1914
  %v2535 = vpack.c.bf16 %v1921, %v1921
  %v2536 = vpack.c.bf16 %v1928, %v1928
  %v2537 = vpack.c.bf16 %v1935, %v1935
  %v2538 = vpack.c.bf16 %v1942, %v1942
  %v2539 = vpack.c.bf16 %v1949, %v1949
  %v2540 = vpack.c.bf16 %v1956, %v1956
  %v2541 = vpack.c.bf16 %v1963, %v1963
  %v2542 = vpack.c.bf16 %v1970, %v1970
  %v2543 = vpack.c.bf16 %v1977, %v1977
  %v2544 = vpack.c.bf16 %v1984, %v1984
  %v2545 = vpack.c.bf16 %v1991, %v1991
  %v2546 = vpack.c.bf16 %v1998, %v1998
  %v2547 = vpack.c.bf16 %v2005, %v2005
  %v2548 = vpack.c.bf16 %v2012, %v2012
  %v2549 = vpack.c.bf16 %v2019, %v2019
  %v2550 = vpack.c.bf16 %v2026, %v2026
  %v2551 = vpack.c.bf16 %v2033, %v2033
  %v2552 = vpack.c.bf16 %v2040, %v2040
  %v2553 = vpack.c.bf16 %v2047, %v2047
  %v2554 = vpack.c.bf16 %v2054, %v2054
  %v2555 = vpack.c.bf16 %v2061, %v2061
  %v2556 = vpack.c.bf16 %v2068, %v2068
  %v2557 = vpack.c.bf16 %v2075, %v2075
  %v2558 = vpack.c.bf16 %v2082, %v2082
  %v2559 = vpack.c.bf16 %v2089, %v2089
  %v2560 = vpack.c.bf16 %v2096, %v2096
  %v2561 = vpack.c.bf16 %v2103, %v2103
  %v2562 = vpack.c.bf16 %v2110, %v2110
  %v2563 = vpack.c.bf16 %v2117, %v2117
  %v2564 = vpack.c.bf16 %v2124, %v2124
  %v2565 = vpack.c.bf16 %v2131, %v2131
  %v2566 = vpack.c.bf16 %v2138, %v2138
  %v2567 = vpack.c.bf16 %v2145, %v2145
  %v2568 = vpack.c.bf16 %v2152, %v2152
  %v2569 = vpack.c.bf16 %v2159, %v2159
  %v2570 = vpack.c.bf16 %v2166, %v2166
  %v2571 = vpack.c.bf16 %v2173, %v2173
  %v2572 = vpack.c.bf16 %v2180, %v2180
  %v2573 = vpack.c.bf16 %v2187, %v2187
  %v2574 = vpack.c.bf16 %v2194, %v2194
  %v2575 = vpack.c.bf16 %v2201, %v2201
  %v2576 = vpack.c.bf16 %v2208, %v2208
  %v2577 = vpack.c.bf16 %v2215, %v2215
  %v2578 = vpack.c.bf16 %v2222, %v2222
  %v2579 = vpack.c.bf16 %v2229, %v2229
  %v2580 = vpack.c.bf16 %v2236, %v2236
  %v2581 = vpack.c.bf16 %v2243, %v2243
  %v2582 = vpack.c.bf16 %v2250, %v2250
  %v2583 = vpack.c.bf16 %v2257, %v2257
  %v2584 = vpack.c.bf16 %v2264, %v2264
  %v2585 = vpack.c.bf16 %v2271, %v2271
  %v2586 = vpack.c.bf16 %v2278, %v2278
  %v2587 = vpack.c.bf16 %v2285, %v2285
  %v2588 = vpack.c.bf16 %v2292, %v2292
  %v2589 = vpack.c.bf16 %v2299, %v2299
  %v2590 = vpack.c.bf16 %v2306, %v2306
  %v2591 = vpack.c.bf16 %v2313, %v2313
  %v2592 = vpack.c.bf16 %v2320, %v2320
  %v2593 = vpack.c.bf16 %v2327, %v2327
  %v2594 = vpack.c.bf16 %v2334, %v2334
  %v2595 = vpack.c.bf16 %v2341, %v2341
  %v2596 = vpack.c.bf16 %v2348, %v2348
  %v2597 = vpack.c.bf16 %v2355, %v2355
  %v2598 = vpack.c.bf16 %v2362, %v2362
  %v2599 = vpack.c.bf16 %v2369, %v2369
  %v2600 = vpack.c.bf16 %v2376, %v2376
  %v2601 = vpack.c.bf16 %v2383, %v2383
  %v2602 = vpack.c.bf16 %v2390, %v2390
  %v2603 = vpack.c.bf16 %v2397, %v2397
  %v2604 = vpack.c.bf16 %v2404, %v2404
  %v2605 = vpack.c.bf16 %v2411, %v2411
  %v2606 = vpack.c.bf16 %v2418, %v2418
  %v2607 = vpack.c.bf16 %v2425, %v2425
  %v2608 = vpack.c.bf16 %v2432, %v2432
  %v2609 = vpack.c.bf16 %v2439, %v2439
  %v2738 = vunpack.c.l.b16 %v2482
  %v2739 = vunpack.c.l.b16 %v2483
  %v2740 = vunpack.c.l.b16 %v2484
  %v2741 = vunpack.c.l.b16 %v2485
  %v2742 = vunpack.c.l.b16 %v2486
  %v2743 = vunpack.c.l.b16 %v2487
  %v2744 = vunpack.c.l.b16 %v2488
  %v2745 = vunpack.c.l.b16 %v2489
  %v2746 = vunpack.c.l.b16 %v2490
  %v2747 = vunpack.c.l.b16 %v2491
  %v2748 = vunpack.c.l.b16 %v2492
  %v2749 = vunpack.c.l.b16 %v2493
  %v2750 = vunpack.c.l.b16 %v2494
  %v2751 = vunpack.c.l.b16 %v2495
  %v2752 = vunpack.c.l.b16 %v2496
  %v2753 = vunpack.c.l.b16 %v2497
  %v2754 = vunpack.c.l.b16 %v2498
  %v2755 = vunpack.c.l.b16 %v2499
  %v2756 = vunpack.c.l.b16 %v2500
  %v2757 = vunpack.c.l.b16 %v2501
  %v2758 = vunpack.c.l.b16 %v2502
  %v2759 = vunpack.c.l.b16 %v2503
  %v2760 = vunpack.c.l.b16 %v2504
  %v2761 = vunpack.c.l.b16 %v2505
  %v2762 = vunpack.c.l.b16 %v2506
  %v2763 = vunpack.c.l.b16 %v2507
  %v2764 = vunpack.c.l.b16 %v2508
  %v2765 = vunpack.c.l.b16 %v2509
  %v2766 = vunpack.c.l.b16 %v2510
  %v2767 = vunpack.c.l.b16 %v2511
  %v2768 = vunpack.c.l.b16 %v2512
  %v2769 = vunpack.c.l.b16 %v2513
  %v2770 = vunpack.c.l.b16 %v2514
  %v2771 = vunpack.c.l.b16 %v2515
  %v2772 = vunpack.c.l.b16 %v2516
  %v2773 = vunpack.c.l.b16 %v2517
  %v2774 = vunpack.c.l.b16 %v2518
  %v2775 = vunpack.c.l.b16 %v2519
  %v2776 = vunpack.c.l.b16 %v2520
  %v2777 = vunpack.c.l.b16 %v2521
  %v2778 = vunpack.c.l.b16 %v2522
  %v2779 = vunpack.c.l.b16 %v2523
  %v2780 = vunpack.c.l.b16 %v2524
  %v2781 = vunpack.c.l.b16 %v2525
  %v2782 = vunpack.c.l.b16 %v2526
  %v2783 = vunpack.c.l.b16 %v2527
  %v2784 = vunpack.c.l.b16 %v2528
  %v2785 = vunpack.c.l.b16 %v2529
  %v2786 = vunpack.c.l.b16 %v2530
  %v2787 = vunpack.c.l.b16 %v2531
  %v2788 = vunpack.c.l.b16 %v2532
  %v2789 = vunpack.c.l.b16 %v2533
  %v2790 = vunpack.c.l.b16 %v2534
  %v2791 = vunpack.c.l.b16 %v2535
  %v2792 = vunpack.c.l.b16 %v2536
  %v2793 = vunpack.c.l.b16 %v2537
  %v2794 = vunpack.c.l.b16 %v2538
  %v2795 = vunpack.c.l.b16 %v2539
  %v2796 = vunpack.c.l.b16 %v2540
  %v2797 = vunpack.c.l.b16 %v2541
  %v2798 = vunpack.c.l.b16 %v2542
  %v2799 = vunpack.c.l.b16 %v2543
  %v2800 = vunpack.c.l.b16 %v2544
  %v2801 = vunpack.c.l.b16 %v2545
  %v2802 = vunpack.c.l.b16 %v2546
  %v2803 = vunpack.c.l.b16 %v2547
  %v2804 = vunpack.c.l.b16 %v2548
  %v2805 = vunpack.c.l.b16 %v2549
  %v2806 = vunpack.c.l.b16 %v2550
  %v2807 = vunpack.c.l.b16 %v2551
  %v2808 = vunpack.c.l.b16 %v2552
  %v2809 = vunpack.c.l.b16 %v2553
  %v2810 = vunpack.c.l.b16 %v2554
  %v2811 = vunpack.c.l.b16 %v2555
  %v2812 = vunpack.c.l.b16 %v2556
  %v2813 = vunpack.c.l.b16 %v2557
  %v2814 = vunpack.c.l.b16 %v2558
  %v2815 = vunpack.c.l.b16 %v2559
  %v2816 = vunpack.c.l.b16 %v2560
  %v2817 = vunpack.c.l.b16 %v2561
  %v2818 = vunpack.c.l.b16 %v2562
  %v2819 = vunpack.c.l.b16 %v2563
  %v2820 = vunpack.c.l.b16 %v2564
  %v2821 = vunpack.c.l.b16 %v2565
  %v2822 = vunpack.c.l.b16 %v2566
  %v2823 = vunpack.c.l.b16 %v2567
  %v2824 = vunpack.c.l.b16 %v2568
  %v2825 = vunpack.c.l.b16 %v2569
  %v2826 = vunpack.c.l.b16 %v2570
  %v2827 = vunpack.c.l.b16 %v2571
  %v2828 = vunpack.c.l.b16 %v2572
  %v2829 = vunpack.c.l.b16 %v2573
  %v2830 = vunpack.c.l.b16 %v2574
  %v2831 = vunpack.c.l.b16 %v2575
  %v2832 = vunpack.c.l.b16 %v2576
  %v2833 = vunpack.c.l.b16 %v2577
  %v2834 = vunpack.c.l.b16 %v2578
  %v2835 = vunpack.c.l.b16 %v2579
  %v2836 = vunpack.c.l.b16 %v2580
  %v2837 = vunpack.c.l.b16 %v2581
  %v2838 = vunpack.c.l.b16 %v2582
  %v2839 = vunpack.c.l.b16 %v2583
  %v2840 = vunpack.c.l.b16 %v2584
  %v2841 = vunpack.c.l.b16 %v2585
  %v2842 = vunpack.c.l.b16 %v2586
  %v2843 = vunpack.c.l.b16 %v2587
  %v2844 = vunpack.c.l.b16 %v2588
  %v2845 = vunpack.c.l.b16 %v2589
  %v2846 = vunpack.c.l.b16 %v2590
  %v2847 = vunpack.c.l.b16 %v2591
  %v2848 = vunpack.c.l.b16 %v2592
  %v2849 = vunpack.c.l.b16 %v2593
  %v2850 = vunpack.c.l.b16 %v2594
  %v2851 = vunpack.c.l.b16 %v2595
  %v2852 = vunpack.c.l.b16 %v2596
  %v2853 = vunpack.c.l.b16 %v2597
  %v2854 = vunpack.c.l.b16 %v2598
  %v2855 = vunpack.c.l.b16 %v2599
  %v2856 = vunpack.c.l.b16 %v2600
  %v2857 = vunpack.c.l.b16 %v2601
  %v2858 = vunpack.c.l.b16 %v2602
  %v2859 = vunpack.c.l.b16 %v2603
  %v2860 = vunpack.c.l.b16 %v2604
  %v2861 = vunpack.c.l.b16 %v2605
  %v2862 = vunpack.c.l.b16 %v2606
  %v2863 = vunpack.c.l.b16 %v2607
  %v2864 = vunpack.c.l.b16 %v2608
  %v2865 = vunpack.c.l.b16 %v2609
  %v2866 = vpack.c.b16 %v2738, %v2738
  %v2867 = vpack.c.b16 %v2739, %v2739
  %v2868 = vpack.c.b16 %v2740, %v2740
  %v2869 = vpack.c.b16 %v2741, %v2741
  %v2870 = vpack.c.b16 %v2742, %v2742
  %v2871 = vpack.c.b16 %v2743, %v2743
  %v2872 = vpack.c.b16 %v2744, %v2744
  %v2873 = vpack.c.b16 %v2745, %v2745
  %v2874 = vpack.c.b16 %v2746, %v2746
  %v2875 = vpack.c.b16 %v2747, %v2747
  %v2876 = vpack.c.b16 %v2748, %v2748
  %v2877 = vpack.c.b16 %v2749, %v2749
  %v2878 = vpack.c.b16 %v2750, %v2750
  %v2879 = vpack.c.b16 %v2751, %v2751
  %v2880 = vpack.c.b16 %v2752, %v2752
  %v2881 = vpack.c.b16 %v2753, %v2753
  %v2882 = vpack.c.b16 %v2754, %v2754
  %v2883 = vpack.c.b16 %v2755, %v2755
  %v2884 = vpack.c.b16 %v2756, %v2756
  %v2885 = vpack.c.b16 %v2757, %v2757
  %v2886 = vpack.c.b16 %v2758, %v2758
  %v2887 = vpack.c.b16 %v2759, %v2759
  %v2888 = vpack.c.b16 %v2760, %v2760
  %v2889 = vpack.c.b16 %v2761, %v2761
  %v2890 = vpack.c.b16 %v2762, %v2762
  %v2891 = vpack.c.b16 %v2763, %v2763
  %v2892 = vpack.c.b16 %v2764, %v2764
  %v2893 = vpack.c.b16 %v2765, %v2765
  %v2894 = vpack.c.b16 %v2766, %v2766
  %v2895 = vpack.c.b16 %v2767, %v2767
  %v2896 = vpack.c.b16 %v2768, %v2768
  %v2897 = vpack.c.b16 %v2769, %v2769
  %v2898 = vpack.c.b16 %v2770, %v2770
  %v2899 = vpack.c.b16 %v2771, %v2771
  %v2900 = vpack.c.b16 %v2772, %v2772
  %v2901 = vpack.c.b16 %v2773, %v2773
  %v2902 = vpack.c.b16 %v2774, %v2774
  %v2903 = vpack.c.b16 %v2775, %v2775
  %v2904 = vpack.c.b16 %v2776, %v2776
  %v2905 = vpack.c.b16 %v2777, %v2777
  %v2906 = vpack.c.b16 %v2778, %v2778
  %v2907 = vpack.c.b16 %v2779, %v2779
  %v2908 = vpack.c.b16 %v2780, %v2780
  %v2909 = vpack.c.b16 %v2781, %v2781
  %v2910 = vpack.c.b16 %v2782, %v2782
  %v2911 = vpack.c.b16 %v2783, %v2783
  %v2912 = vpack.c.b16 %v2784, %v2784
  %v2913 = vpack.c.b16 %v2785, %v2785
  %v2914 = vpack.c.b16 %v2786, %v2786
  %v2915 = vpack.c.b16 %v2787, %v2787
  %v2916 = vpack.c.b16 %v2788, %v2788
  %v2917 = vpack.c.b16 %v2789, %v2789
  %v2918 = vpack.c.b16 %v2790, %v2790
  %v2919 = vpack.c.b16 %v2791, %v2791
  %v2920 = vpack.c.b16 %v2792, %v2792
  %v2921 = vpack.c.b16 %v2793, %v2793
  %v2922 = vpack.c.b16 %v2794, %v2794
  %v2923 = vpack.c.b16 %v2795, %v2795
  %v2924 = vpack.c.b16 %v2796, %v2796
  %v2925 = vpack.c.b16 %v2797, %v2797
  %v2926 = vpack.c.b16 %v2798, %v2798
  %v2927 = vpack.c.b16 %v2799, %v2799
  %v2928 = vpack.c.b16 %v2800, %v2800
  %v2929 = vpack.c.b16 %v2801, %v2801
  %v2930 = vpack.c.b16 %v2802, %v2802
  %v2931 = vpack.c.b16 %v2803, %v2803
  %v2932 = vpack.c.b16 %v2804, %v2804
  %v2933 = vpack.c.b16 %v2805, %v2805
  %v2934 = vpack.c.b16 %v2806, %v2806
  %v2935 = vpack.c.b16 %v2807, %v2807
  %v2936 = vpack.c.b16 %v2808, %v2808
  %v2937 = vpack.c.b16 %v2809, %v2809
  %v2938 = vpack.c.b16 %v2810, %v2810
  %v2939 = vpack.c.b16 %v2811, %v2811
  %v2940 = vpack.c.b16 %v2812, %v2812
  %v2941 = vpack.c.b16 %v2813, %v2813
  %v2942 = vpack.c.b16 %v2814, %v2814
  %v2943 = vpack.c.b16 %v2815, %v2815
  %v2944 = vpack.c.b16 %v2816, %v2816
  %v2945 = vpack.c.b16 %v2817, %v2817
  %v2946 = vpack.c.b16 %v2818, %v2818
  %v2947 = vpack.c.b16 %v2819, %v2819
  %v2948 = vpack.c.b16 %v2820, %v2820
  %v2949 = vpack.c.b16 %v2821, %v2821
  %v2950 = vpack.c.b16 %v2822, %v2822
  %v2951 = vpack.c.b16 %v2823, %v2823
  %v2952 = vpack.c.b16 %v2824, %v2824
  %v2953 = vpack.c.b16 %v2825, %v2825
  %v2954 = vpack.c.b16 %v2826, %v2826
  %v2955 = vpack.c.b16 %v2827, %v2827
  %v2956 = vpack.c.b16 %v2828, %v2828
  %v2957 = vpack.c.b16 %v2829, %v2829
  %v2958 = vpack.c.b16 %v2830, %v2830
  %v2959 = vpack.c.b16 %v2831, %v2831
  %v2960 = vpack.c.b16 %v2832, %v2832
  %v2961 = vpack.c.b16 %v2833, %v2833
  %v2962 = vpack.c.b16 %v2834, %v2834
  %v2963 = vpack.c.b16 %v2835, %v2835
  %v2964 = vpack.c.b16 %v2836, %v2836
  %v2965 = vpack.c.b16 %v2837, %v2837
  %v2966 = vpack.c.b16 %v2838, %v2838
  %v2967 = vpack.c.b16 %v2839, %v2839
  %v2968 = vpack.c.b16 %v2840, %v2840
  %v2969 = vpack.c.b16 %v2841, %v2841
  %v2970 = vpack.c.b16 %v2842, %v2842
  %v2971 = vpack.c.b16 %v2843, %v2843
  %v2972 = vpack.c.b16 %v2844, %v2844
  %v2973 = vpack.c.b16 %v2845, %v2845
  %v2974 = vpack.c.b16 %v2846, %v2846
  %v2975 = vpack.c.b16 %v2847, %v2847
  %v2976 = vpack.c.b16 %v2848, %v2848
  %v2977 = vpack.c.b16 %v2849, %v2849
  %v2978 = vpack.c.b16 %v2850, %v2850
  %v2979 = vpack.c.b16 %v2851, %v2851
  %v2980 = vpack.c.b16 %v2852, %v2852
  %v2981 = vpack.c.b16 %v2853, %v2853
  %v2982 = vpack.c.b16 %v2854, %v2854
  %v2983 = vpack.c.b16 %v2855, %v2855
  %v2984 = vpack.c.b16 %v2856, %v2856
  %v2985 = vpack.c.b16 %v2857, %v2857
  %v2986 = vpack.c.b16 %v2858, %v2858
  %v2987 = vpack.c.b16 %v2859, %v2859
  %v2988 = vpack.c.b16 %v2860, %v2860
  %v2989 = vpack.c.b16 %v2861, %v2861
  %v2990 = vpack.c.b16 %v2862, %v2862
  %v2991 = vpack.c.b16 %v2863, %v2863
  %v2992 = vpack.c.b16 %v2864, %v2864
  %v2993 = vpack.c.b16 %v2865, %v2865
  %v2994 = vunpack.c.l.b16 %v2866
  %v2995 = vunpack.c.l.b16 %v2867
  %v2996 = vunpack.c.l.b16 %v2868
  %v2997 = vunpack.c.l.b16 %v2869
  %v2998 = vunpack.c.l.b16 %v2870
  %v2999 = vunpack.c.l.b16 %v2871
  %v3000 = vunpack.c.l.b16 %v2872
  %v3001 = vunpack.c.l.b16 %v2873
  %v3002 = vunpack.c.l.b16 %v2874
  %v3003 = vunpack.c.l.b16 %v2875
  %v3004 = vunpack.c.l.b16 %v2876
  %v3005 = vunpack.c.l.b16 %v2877
  %v3006 = vunpack.c.l.b16 %v2878
  %v3007 = vunpack.c.l.b16 %v2879
  %v3008 = vunpack.c.l.b16 %v2880
  %v3009 = vunpack.c.l.b16 %v2881
  %v3010 = vunpack.c.l.b16 %v2882
  %v3011 = vunpack.c.l.b16 %v2883
  %v3012 = vunpack.c.l.b16 %v2884
  %v3013 = vunpack.c.l.b16 %v2885
  %v3014 = vunpack.c.l.b16 %v2886
  %v3015 = vunpack.c.l.b16 %v2887
  %v3016 = vunpack.c.l.b16 %v2888
  %v3017 = vunpack.c.l.b16 %v2889
  %v3018 = vunpack.c.l.b16 %v2890
  %v3019 = vunpack.c.l.b16 %v2891
  %v3020 = vunpack.c.l.b16 %v2892
  %v3021 = vunpack.c.l.b16 %v2893
  %v3022 = vunpack.c.l.b16 %v2894
  %v3023 = vunpack.c.l.b16 %v2895
  %v3024 = vunpack.c.l.b16 %v2896
  %v3025 = vunpack.c.l.b16 %v2897
  %v3026 = vunpack.c.l.b16 %v2898
  %v3027 = vunpack.c.l.b16 %v2899
  %v3028 = vunpack.c.l.b16 %v2900
  %v3029 = vunpack.c.l.b16 %v2901
  %v3030 = vunpack.c.l.b16 %v2902
  %v3031 = vunpack.c.l.b16 %v2903
  %v3032 = vunpack.c.l.b16 %v2904
  %v3033 = vunpack.c.l.b16 %v2905
  %v3034 = vunpack.c.l.b16 %v2906
  %v3035 = vunpack.c.l.b16 %v2907
  %v3036 = vunpack.c.l.b16 %v2908
  %v3037 = vunpack.c.l.b16 %v2909
  %v3038 = vunpack.c.l.b16 %v2910
  %v3039 = vunpack.c.l.b16 %v2911
  %v3040 = vunpack.c.l.b16 %v2912
  %v3041 = vunpack.c.l.b16 %v2913
  %v3042 = vunpack.c.l.b16 %v2914
  %v3043 = vunpack.c.l.b16 %v2915
  %v3044 = vunpack.c.l.b16 %v2916
  %v3045 = vunpack.c.l.b16 %v2917
  %v3046 = vunpack.c.l.b16 %v2918
  %v3047 = vunpack.c.l.b16 %v2919
  %v3048 = vunpack.c.l.b16 %v2920
  %v3049 = vunpack.c.l.b16 %v2921
  %v3050 = vunpack.c.l.b16 %v2922
  %v3051 = vunpack.c.l.b16 %v2923
  %v3052 = vunpack.c.l.b16 %v2924
  %v3053 = vunpack.c.l.b16 %v2925
  %v3054 = vunpack.c.l.b16 %v2926
  %v3055 = vunpack.c.l.b16 %v2927
  %v3056 = vunpack.c.l.b16 %v2928
  %v3057 = vunpack.c.l.b16 %v2929
  %v3058 = vunpack.c.l.b16 %v2930
  %v3059 = vunpack.c.l.b16 %v2931
  %v3060 = vunpack.c.l.b16 %v2932
  %v3061 = vunpack.c.l.b16 %v2933
  %v3062 = vunpack.c.l.b16 %v2934
  %v3063 = vunpack.c.l.b16 %v2935
  %v3064 = vunpack.c.l.b16 %v2936
  %v3065 = vunpack.c.l.b16 %v2937
  %v3066 = vunpack.c.l.b16 %v2938
  %v3067 = vunpack.c.l.b16 %v2939
  %v3068 = vunpack.c.l.b16 %v2940
  %v3069 = vunpack.c.l.b16 %v2941
  %v3070 = vunpack.c.l.b16 %v2942
  %v3071 = vunpack.c.l.b16 %v2943
  %v3072 = vunpack.c.l.b16 %v2944
  %v3073 = vunpack.c.l.b16 %v2945
  %v3074 = vunpack.c.l.b16 %v2946
  %v3075 = vunpack.c.l.b16 %v2947
  %v3076 = vunpack.c.l.b16 %v2948
  %v3077 = vunpack.c.l.b16 %v2949
  %v3078 = vunpack.c.l.b16 %v2950
  %v3079 = vunpack.c.l.b16 %v2951
  %v3080 = vunpack.c.l.b16 %v2952
  %v3081 = vunpack.c.l.b16 %v2953
  %v3082 = vunpack.c.l.b16 %v2954
  %v3083 = vunpack.c.l.b16 %v2955
  %v3084 = vunpack.c.l.b16 %v2956
  %v3085 = vunpack.c.l.b16 %v2957
  %v3086 = vunpack.c.l.b16 %v2958
  %v3087 = vunpack.c.l.b16 %v2959
  %v3088 = vunpack.c.l.b16 %v2960
  %v3089 = vunpack.c.l.b16 %v2961
  %v3090 = vunpack.c.l.b16 %v2962
  %v3091 = vunpack.c.l.b16 %v2963
  %v3092 = vunpack.c.l.b16 %v2964
  %v3093 = vunpack.c.l.b16 %v2965
  %v3094 = vunpack.c.l.b16 %v2966
  %v3095 = vunpack.c.l.b16 %v2967
  %v3096 = vunpack.c.l.b16 %v2968
  %v3097 = vunpack.c.l.b16 %v2969
  %v3098 = vunpack.c.l.b16 %v2970
  %v3099 = vunpack.c.l.b16 %v2971
  %v3100 = vunpack.c.l.b16 %v2972
  %v3101 = vunpack.c.l.b16 %v2973
  %v3102 = vunpack.c.l.b16 %v2974
  %v3103 = vunpack.c.l.b16 %v2975
  %v3104 = vunpack.c.l.b16 %v2976
  %v3105 = vunpack.c.l.b16 %v2977
  %v3106 = vunpack.c.l.b16 %v2978
  %v3107 = vunpack.c.l.b16 %v2979
  %v3108 = vunpack.c.l.b16 %v2980
  %v3109 = vunpack.c.l.b16 %v2981
  %v3110 = vunpack.c.l.b16 %v2982
  %v3111 = vunpack.c.l.b16 %v2983
  %v3112 = vunpack.c.l.b16 %v2984
  %v3113 = vunpack.c.l.b16 %v2985
  %v3114 = vunpack.c.l.b16 %v2986
  %v3115 = vunpack.c.l.b16 %v2987
  %v3116 = vunpack.c.l.b16 %v2988
  %v3117 = vunpack.c.l.b16 %v2989
  %v3118 = vunpack.c.l.b16 %v2990
  %v3119 = vunpack.c.l.b16 %v2991
  %v3120 = vunpack.c.l.b16 %v2992
  %v3121 = vunpack.c.l.b16 %v2993
  %vm3122 = vcmask 1042434
  %v3123 = vsel %vm3122, %v2995, %v2994
  %vm3124 = vcmask 1043459
  %v3125 = vsel %vm3124, %v2996, %v3123
  %vm3126 = vcmask 1044484
  %v3127 = vsel %vm3126, %v2997, %v3125
  %vm3128 = vcmask 1045509
  %v3129 = vsel %vm3128, %v2998, %v3127
  %vm3130 = vcmask 1046534
  %v3131 = vsel %vm3130, %v2999, %v3129
  %vm3132 = vcmask 1047559
  %v3133 = vsel %vm3132, %v3000, %v3131
  %v3134 = vsel %vm3122, %v3003, %v3002
  %v3135 = vsel %vm3124, %v3004, %v3134
  %v3136 = vsel %vm3126, %v3005, %v3135
  %v3137 = vsel %vm3128, %v3006, %v3136
  %v3138 = vsel %vm3130, %v3007, %v3137
  %v3139 = vsel %vm3132, %v3008, %v3138
  %v3140 = vsel %vm3122, %v3011, %v3010
  %v3141 = vsel %vm3124, %v3012, %v3140
  %v3142 = vsel %vm3126, %v3013, %v3141
  %v3143 = vsel %vm3128, %v3014, %v3142
  %v3144 = vsel %vm3130, %v3015, %v3143
  %v3145 = vsel %vm3132, %v3016, %v3144
  %v3146 = vsel %vm3122, %v3019, %v3018
  %v3147 = vsel %vm3124, %v3020, %v3146
  %v3148 = vsel %vm3126, %v3021, %v3147
  %v3149 = vsel %vm3128, %v3022, %v3148
  %v3150 = vsel %vm3130, %v3023, %v3149
  %v3151 = vsel %vm3132, %v3024, %v3150
  %v3152 = vsel %vm3122, %v3027, %v3026
  %v3153 = vsel %vm3124, %v3028, %v3152
  %v3154 = vsel %vm3126, %v3029, %v3153
  %v3155 = vsel %vm3128, %v3030, %v3154
  %v3156 = vsel %vm3130, %v3031, %v3155
  %v3157 = vsel %vm3132, %v3032, %v3156
  %v3158 = vsel %vm3122, %v3035, %v3034
  %v3159 = vsel %vm3124, %v3036, %v3158
  %v3160 = vsel %vm3126, %v3037, %v3159
  %v3161 = vsel %vm3128, %v3038, %v3160
  %v3162 = vsel %vm3130, %v3039, %v3161
  %v3163 = vsel %vm3132, %v3040, %v3162
  %v3164 = vsel %vm3122, %v3043, %v3042
  %v3165 = vsel %vm3124, %v3044, %v3164
  %v3166 = vsel %vm3126, %v3045, %v3165
  %v3167 = vsel %vm3128, %v3046, %v3166
  %v3168 = vsel %vm3130, %v3047, %v3167
  %v3169 = vsel %vm3132, %v3048, %v3168
  %v3170 = vsel %vm3122, %v3051, %v3050
  %v3171 = vsel %vm3124, %v3052, %v3170
  %v3172 = vsel %vm3126, %v3053, %v3171
  %v3173 = vsel %vm3128, %v3054, %v3172
  %v3174 = vsel %vm3130, %v3055, %v3173
  %v3175 = vsel %vm3132, %v3056, %v3174
  %v3176 = vsel %vm3122, %v3059, %v3058
  %v3177 = vsel %vm3124, %v3060, %v3176
  %v3178 = vsel %vm3126, %v3061, %v3177
  %v3179 = vsel %vm3128, %v3062, %v3178
  %v3180 = vsel %vm3130, %v3063, %v3179
  %v3181 = vsel %vm3132, %v3064, %v3180
  %v3182 = vsel %vm3122, %v3067, %v3066
  %v3183 = vsel %vm3124, %v3068, %v3182
  %v3184 = vsel %vm3126, %v3069, %v3183
  %v3185 = vsel %vm3128, %v3070, %v3184
  %v3186 = vsel %vm3130, %v3071, %v3185
  %v3187 = vsel %vm3132, %v3072, %v3186
  %v3188 = vsel %vm3122, %v3075, %v3074
  %v3189 = vsel %vm3124, %v3076, %v3188
  %v3190 = vsel %vm3126, %v3077, %v3189
  %v3191 = vsel %vm3128, %v3078, %v3190
  %v3192 = vsel %vm3130, %v3079, %v3191
  %v3193 = vsel %vm3132, %v3080, %v3192
  %v3194 = vsel %vm3122, %v3083, %v3082
  %v3195 = vsel %vm3124, %v3084, %v3194
  %v3196 = vsel %vm3126, %v3085, %v3195
  %v3197 = vsel %vm3128, %v3086, %v3196
  %v3198 = vsel %vm3130, %v3087, %v3197
  %v3199 = vsel %vm3132, %v3088, %v3198
  %v3200 = vsel %vm3122, %v3091, %v3090
  %v3201 = vsel %vm3124, %v3092, %v3200
  %v3202 = vsel %vm3126, %v3093, %v3201
  %v3203 = vsel %vm3128, %v3094, %v3202
  %v3204 = vsel %vm3130, %v3095, %v3203
  %v3205 = vsel %vm3132, %v3096, %v3204
  %v3206 = vsel %vm3122, %v3099, %v3098
  %v3207 = vsel %vm3124, %v3100, %v3206
  %v3208 = vsel %vm3126, %v3101, %v3207
  %v3209 = vsel %vm3128, %v3102, %v3208
  %v3210 = vsel %vm3130, %v3103, %v3209
  %v3211 = vsel %vm3132, %v3104, %v3210
  %v3212 = vsel %vm3122, %v3107, %v3106
  %v3213 = vsel %vm3124, %v3108, %v3212
  %v3214 = vsel %vm3126, %v3109, %v3213
  %v3215 = vsel %vm3128, %v3110, %v3214
  %v3216 = vsel %vm3130, %v3111, %v3215
  %v3217 = vsel %vm3132, %v3112, %v3216
  %v3218 = vsel %vm3122, %v3115, %v3114
  %v3219 = vsel %vm3124, %v3116, %v3218
  %v3220 = vsel %vm3126, %v3117, %v3219
  %v3221 = vsel %vm3128, %v3118, %v3220
  %v3222 = vsel %vm3130, %v3119, %v3221
  %v3223 = vsel %vm3132, %v3120, %v3222
  %v3224 = vpack.c.b16 %v3133, %v3133
  %v3225 = vpack.c.b16 %v3001, %v3001
  %v3226 = vpack.c.b16 %v3139, %v3139
  %v3227 = vpack.c.b16 %v3009, %v3009
  %v3228 = vpack.c.b16 %v3145, %v3145
  %v3229 = vpack.c.b16 %v3017, %v3017
  %v3230 = vpack.c.b16 %v3151, %v3151
  %v3231 = vpack.c.b16 %v3025, %v3025
  %v3232 = vpack.c.b16 %v3157, %v3157
  %v3233 = vpack.c.b16 %v3033, %v3033
  %v3234 = vpack.c.b16 %v3163, %v3163
  %v3235 = vpack.c.b16 %v3041, %v3041
  %v3236 = vpack.c.b16 %v3169, %v3169
  %v3237 = vpack.c.b16 %v3049, %v3049
  %v3238 = vpack.c.b16 %v3175, %v3175
  %v3239 = vpack.c.b16 %v3057, %v3057
  %v3240 = vpack.c.b16 %v3181, %v3181
  %v3241 = vpack.c.b16 %v3065, %v3065
  %v3242 = vpack.c.b16 %v3187, %v3187
  %v3243 = vpack.c.b16 %v3073, %v3073
  %v3244 = vpack.c.b16 %v3193, %v3193
  %v3245 = vpack.c.b16 %v3081, %v3081
  %v3246 = vpack.c.b16 %v3199, %v3199
  %v3247 = vpack.c.b16 %v3089, %v3089
  %v3248 = vpack.c.b16 %v3205, %v3205
  %v3249 = vpack.c.b16 %v3097, %v3097
  %v3250 = vpack.c.b16 %v3211, %v3211
  %v3251 = vpack.c.b16 %v3105, %v3105
  %v3252 = vpack.c.b16 %v3217, %v3217
  %v3253 = vpack.c.b16 %v3113, %v3113
  %v3254 = vpack.c.b16 %v3223, %v3223
  %v3255 = vpack.c.b16 %v3121, %v3121
  %s3288 = scalar_lea.vmem [#allocation2], 8
  %vm3289 = vcmask 257024
  %vm3290 = vsmask.f32 7938
  %vm3291 = vmand %vm3289, %vm3290
  %v3292 = vld [vmem:[%s3288] sm:$0xf]
  %v3293 = vsel %vm3291, %v3224, %v3292
  %3294 = vst [vmem:[%s3288] sm:$0xf] %v3293
  %vm3295 = vcmask 253952
  %vm3296 = vsmask.f32 256
  %vm3297 = vmand %vm3295, %vm3296
  %v3298 = vld [vmem:[%s3288 + $0x4] sm:$0x1]
  %v3299 = vsel %vm3297, %v3225, %v3298
  %3300 = vst [vmem:[%s3288 + $0x4] sm:$0x1] %v3299
  %v3301 = vld [vmem:[%s3288 + $0x8] sm:$0xf]
  %v3302 = vsel %vm3291, %v3226, %v3301
  %3303 = vst [vmem:[%s3288 + $0x8] sm:$0xf] %v3302
  %v3304 = vld [vmem:[%s3288 + $0xc] sm:$0x1]
  %v3305 = vsel %vm3297, %v3227, %v3304
  %3306 = vst [vmem:[%s3288 + $0xc] sm:$0x1] %v3305
  %v3307 = vld [vmem:[%s3288 + $0x10] sm:$0xf]
  %v3308 = vsel %vm3291, %v3228, %v3307
  %3309 = vst [vmem:[%s3288 + $0x10] sm:$0xf] %v3308
  %v3310 = vld [vmem:[%s3288 + $0x14] sm:$0x1]
  %v3311 = vsel %vm3297, %v3229, %v3310
  %3312 = vst [vmem:[%s3288 + $0x14] sm:$0x1] %v3311
  %v3313 = vld [vmem:[%s3288 + $0x18] sm:$0xf]
  %v3314 = vsel %vm3291, %v3230, %v3313
  %3315 = vst [vmem:[%s3288 + $0x18] sm:$0xf] %v3314
  %v3316 = vld [vmem:[%s3288 + $0x1c] sm:$0x1]
  %v3317 = vsel %vm3297, %v3231, %v3316
  %3318 = vst [vmem:[%s3288 + $0x1c] sm:$0x1] %v3317
  %v3319 = vld [vmem:[%s3288 + $0x20] sm:$0xf]
  %v3320 = vsel %vm3291, %v3232, %v3319
  %3321 = vst [vmem:[%s3288 + $0x20] sm:$0xf] %v3320
  %v3322 = vld [vmem:[%s3288 + $0x24] sm:$0x1]
  %v3323 = vsel %vm3297, %v3233, %v3322
  %3324 = vst [vmem:[%s3288 + $0x24] sm:$0x1] %v3323
  %v3325 = vld [vmem:[%s3288 + $0x28] sm:$0xf]
  %v3326 = vsel %vm3291, %v3234, %v3325
  %3327 = vst [vmem:[%s3288 + $0x28] sm:$0xf] %v3326
  %v3328 = vld [vmem:[%s3288 + $0x2c] sm:$0x1]
  %v3329 = vsel %vm3297, %v3235, %v3328
  %3330 = vst [vmem:[%s3288 + $0x2c] sm:$0x1] %v3329
  %v3331 = vld [vmem:[%s3288 + $0x30] sm:$0xf]
  %v3332 = vsel %vm3291, %v3236, %v3331
  %3333 = vst [vmem:[%s3288 + $0x30] sm:$0xf] %v3332
  %v3334 = vld [vmem:[%s3288 + $0x34] sm:$0x1]
  %v3335 = vsel %vm3297, %v3237, %v3334
  %3336 = vst [vmem:[%s3288 + $0x34] sm:$0x1] %v3335
  %v3337 = vld [vmem:[%s3288 + $0x38] sm:$0xf]
  %v3338 = vsel %vm3291, %v3238, %v3337
  %3339 = vst [vmem:[%s3288 + $0x38] sm:$0xf] %v3338
  %v3340 = vld [vmem:[%s3288 + $0x3c] sm:$0x1]
  %v3341 = vsel %vm3297, %v3239, %v3340
  %3342 = vst [vmem:[%s3288 + $0x3c] sm:$0x1] %v3341
  %v3343 = vld [vmem:[%s3288 + $0x50] sm:$0xf]
  %v3344 = vsel %vm3291, %v3240, %v3343
  %3345 = vst [vmem:[%s3288 + $0x50] sm:$0xf] %v3344
  %v3346 = vld [vmem:[%s3288 + $0x54] sm:$0x1]
  %v3347 = vsel %vm3297, %v3241, %v3346
  %3348 = vst [vmem:[%s3288 + $0x54] sm:$0x1] %v3347
  %v3349 = vld [vmem:[%s3288 + $0x58] sm:$0xf]
  %v3350 = vsel %vm3291, %v3242, %v3349
  %3351 = vst [vmem:[%s3288 + $0x58] sm:$0xf] %v3350
  %v3352 = vld [vmem:[%s3288 + $0x5c] sm:$0x1]
  %v3353 = vsel %vm3297, %v3243, %v3352
  %3354 = vst [vmem:[%s3288 + $0x5c] sm:$0x1] %v3353
  %v3355 = vld [vmem:[%s3288 + $0x60] sm:$0xf]
  %v3356 = vsel %vm3291, %v3244, %v3355
  %3357 = vst [vmem:[%s3288 + $0x60] sm:$0xf] %v3356
  %v3358 = vld [vmem:[%s3288 + $0x64] sm:$0x1]
  %v3359 = vsel %vm3297, %v3245, %v3358
  %3360 = vst [vmem:[%s3288 + $0x64] sm:$0x1] %v3359
  %v3361 = vld [vmem:[%s3288 + $0x68] sm:$0xf]
  %v3362 = vsel %vm3291, %v3246, %v3361
  %3363 = vst [vmem:[%s3288 + $0x68] sm:$0xf] %v3362
  %v3364 = vld [vmem:[%s3288 + $0x6c] sm:$0x1]
  %v3365 = vsel %vm3297, %v3247, %v3364
  %3366 = vst [vmem:[%s3288 + $0x6c] sm:$0x1] %v3365
  %v3367 = vld [vmem:[%s3288 + $0x70] sm:$0xf]
  %v3368 = vsel %vm3291, %v3248, %v3367
  %3369 = vst [vmem:[%s3288 + $0x70] sm:$0xf] %v3368
  %v3370 = vld [vmem:[%s3288 + $0x74] sm:$0x1]
  %v3371 = vsel %vm3297, %v3249, %v3370
  %3372 = vst [vmem:[%s3288 + $0x74] sm:$0x1] %v3371
  %v3373 = vld [vmem:[%s3288 + $0x78] sm:$0xf]
  %v3374 = vsel %vm3291, %v3250, %v3373
  %3375 = vst [vmem:[%s3288 + $0x78] sm:$0xf] %v3374
  %v3376 = vld [vmem:[%s3288 + $0x7c] sm:$0x1]
  %v3377 = vsel %vm3297, %v3251, %v3376
  %3378 = vst [vmem:[%s3288 + $0x7c] sm:$0x1] %v3377
  %v3379 = vld [vmem:[%s3288 + $0x80] sm:$0xf]
  %v3380 = vsel %vm3291, %v3252, %v3379
  %3381 = vst [vmem:[%s3288 + $0x80] sm:$0xf] %v3380
  %v3382 = vld [vmem:[%s3288 + $0x84] sm:$0x1]
  %v3383 = vsel %vm3297, %v3253, %v3382
  %3384 = vst [vmem:[%s3288 + $0x84] sm:$0x1] %v3383
  %v3385 = vld [vmem:[%s3288 + $0x88] sm:$0xf]
  %v3386 = vsel %vm3291, %v3254, %v3385
  %3387 = vst [vmem:[%s3288 + $0x88] sm:$0xf] %v3386
  %v3388 = vld [vmem:[%s3288 + $0x8c] sm:$0x1]
  %v3389 = vsel %vm3297, %v3255, %v3388
  %3390 = vst [vmem:[%s3288 + $0x8c] sm:$0x1] %v3389
  %v3391 = vld [vmem:[#allocation2] sm:$0xf]
  %v3392 = vld [vmem:[#allocation2 + $0x8] sm:$0xf]
  %v3393 = vld [vmem:[#allocation2 + $0x10] sm:$0xf]
  %v3394 = vld [vmem:[#allocation2 + $0x18] sm:$0xf]
  %v3395 = vld [vmem:[#allocation2 + $0x20] sm:$0xf]
  %v3396 = vld [vmem:[#allocation2 + $0x28] sm:$0xf]
  %v3397 = vld [vmem:[#allocation2 + $0x30] sm:$0xf]
  %v3398 = vld [vmem:[#allocation2 + $0x38] sm:$0xf]
  %v3399 = vld [vmem:[#allocation2 + $0x50] sm:$0xf]
  %v3400 = vld [vmem:[#allocation2 + $0x58] sm:$0xf]
  %v3401 = vld [vmem:[#allocation2 + $0x60] sm:$0xf]
  %v3402 = vld [vmem:[#allocation2 + $0x68] sm:$0xf]
  %v3403 = vld [vmem:[#allocation2 + $0x70] sm:$0xf]
  %v3404 = vld [vmem:[#allocation2 + $0x78] sm:$0xf]
  %v3405 = vld [vmem:[#allocation2 + $0x80] sm:$0xf]
  %v3406 = vld [vmem:[#allocation2 + $0x88] sm:$0xf]
  %3407 = vst.msk [vmem:[#allocation3] sm:$0xf] %vm2440, %v3391
  %3408 = vst.msk [vmem:[#allocation3 + $0xc] sm:$0xf] %vm2440, %v3392
  %3409 = vst.msk [vmem:[#allocation3 + $0x18] sm:$0xf] %vm2440, %v3393
  %3410 = vst.msk [vmem:[#allocation3 + $0x24] sm:$0xf] %vm2440, %v3394
  %3411 = vst.msk [vmem:[#allocation3 + $0x30] sm:$0xf] %vm2440, %v3395
  %3412 = vst.msk [vmem:[#allocation3 + $0x3c] sm:$0xf] %vm2440, %v3396
  %3413 = vst.msk [vmem:[#allocation3 + $0x48] sm:$0xf] %vm2440, %v3397
  %3414 = vst.msk [vmem:[#allocation3 + $0x54] sm:$0xf] %vm2440, %v3398
  %3415 = vst.msk [vmem:[#allocation3 + $0x60] sm:$0xf] %vm2440, %v3399
  %3416 = vst.msk [vmem:[#allocation3 + $0x6c] sm:$0xf] %vm2440, %v3400
  %3417 = vst.msk [vmem:[#allocation3 + $0x78] sm:$0xf] %vm2440, %v3401
  %3418 = vst.msk [vmem:[#allocation3 + $0x84] sm:$0xf] %vm2440, %v3402
  %3419 = vst.msk [vmem:[#allocation3 + $0x90] sm:$0xf] %vm2440, %v3403
  %3420 = vst.msk [vmem:[#allocation3 + $0x9c] sm:$0xf] %vm2440, %v3404
  %3421 = vst.msk [vmem:[#allocation3 + $0xa8] sm:$0xf] %vm2440, %v3405
  %3422 = vst.msk [vmem:[#allocation3 + $0xb4] sm:$0xf] %vm2440, %v3406
  %v3423 = vld [vmem:[#allocation2] sm:$0xf]
  %v3424 = vld [vmem:[#allocation2 + $0x4] sm:$0x1]
  %v3425 = vld [vmem:[#allocation2 + $0x8] sm:$0xf]
  %v3426 = vld [vmem:[#allocation2 + $0xc] sm:$0x1]
  %v3427 = vld [vmem:[#allocation2 + $0x10] sm:$0xf]
  %v3428 = vld [vmem:[#allocation2 + $0x14] sm:$0x1]
  %v3429 = vld [vmem:[#allocation2 + $0x18] sm:$0xf]
  %v3430 = vld [vmem:[#allocation2 + $0x1c] sm:$0x1]
  %v3431 = vld [vmem:[#allocation2 + $0x20] sm:$0xf]
  %v3432 = vld [vmem:[#allocation2 + $0x24] sm:$0x1]
  %v3433 = vld [vmem:[#allocation2 + $0x28] sm:$0xf]
  %v3434 = vld [vmem:[#allocation2 + $0x2c] sm:$0x1]
  %v3435 = vld [vmem:[#allocation2 + $0x30] sm:$0xf]
  %v3436 = vld [vmem:[#allocation2 + $0x34] sm:$0x1]
  %v3437 = vld [vmem:[#allocation2 + $0x38] sm:$0xf]
  %v3438 = vld [vmem:[#allocation2 + $0x3c] sm:$0x1]
  %v3439 = vld [vmem:[#allocation2 + $0x50] sm:$0xf]
  %v3440 = vld [vmem:[#allocation2 + $0x54] sm:$0x1]
  %v3441 = vld [vmem:[#allocation2 + $0x58] sm:$0xf]
  %v3442 = vld [vmem:[#allocation2 + $0x5c] sm:$0x1]
  %v3443 = vld [vmem:[#allocation2 + $0x60] sm:$0xf]
  %v3444 = vld [vmem:[#allocation2 + $0x64] sm:$0x1]
  %v3445 = vld [vmem:[#allocation2 + $0x68] sm:$0xf]
  %v3446 = vld [vmem:[#allocation2 + $0x6c] sm:$0x1]
  %v3447 = vld [vmem:[#allocation2 + $0x70] sm:$0xf]
  %v3448 = vld [vmem:[#allocation2 + $0x74] sm:$0x1]
  %v3449 = vld [vmem:[#allocation2 + $0x78] sm:$0xf]
  %v3450 = vld [vmem:[#allocation2 + $0x7c] sm:$0x1]
  %v3451 = vld [vmem:[#allocation2 + $0x80] sm:$0xf]
  %v3452 = vld [vmem:[#allocation2 + $0x84] sm:$0x1]
  %v3453 = vld [vmem:[#allocation2 + $0x88] sm:$0xf]
  %v3454 = vld [vmem:[#allocation2 + $0x8c] sm:$0x1]
  %vm3455 = vsmask.f32 3328
  %vm3456 = vsmask.f32 7440
  %vm3457 = vmor %vm3455, %vm3456
  %v3459 = vshrl.u32 %v3423, 16
  %v3461 = vrot.slane %v3459, 4
  %v3462 = vshll.u32 %v3423, 16
  %v3464 = vrot.slane %v3462, 5
  %v3465 = vor.u32 %v3461, %v3464
  %v3466 = vrot.slane %v3465, 4
  %v3468 = vshll.u32 %v3424, 16
  %v3470 = vrot.slane %v3468, 5
  %v3471 = vsel %vm3457, %v3466, %v3470
  %v3473 = vshrl.u32 %v3425, 16
  %v3475 = vrot.slane %v3473, 4
  %v3476 = vshll.u32 %v3425, 16
  %v3478 = vrot.slane %v3476, 5
  %v3479 = vor.u32 %v3475, %v3478
  %v3480 = vrot.slane %v3479, 4
  %v3482 = vshll.u32 %v3426, 16
  %v3484 = vrot.slane %v3482, 5
  %v3485 = vsel %vm3457, %v3480, %v3484
  %v3487 = vshrl.u32 %v3427, 16
  %v3489 = vrot.slane %v3487, 4
  %v3490 = vshll.u32 %v3427, 16
  %v3492 = vrot.slane %v3490, 5
  %v3493 = vor.u32 %v3489, %v3492
  %v3494 = vrot.slane %v3493, 4
  %v3496 = vshll.u32 %v3428, 16
  %v3498 = vrot.slane %v3496, 5
  %v3499 = vsel %vm3457, %v3494, %v3498
  %v3501 = vshrl.u32 %v3429, 16
  %v3503 = vrot.slane %v3501, 4
  %v3504 = vshll.u32 %v3429, 16
  %v3506 = vrot.slane %v3504, 5
  %v3507 = vor.u32 %v3503, %v3506
  %v3508 = vrot.slane %v3507, 4
  %v3510 = vshll.u32 %v3430, 16
  %v3512 = vrot.slane %v3510, 5
  %v3513 = vsel %vm3457, %v3508, %v3512
  %v3515 = vshrl.u32 %v3431, 16
  %v3517 = vrot.slane %v3515, 4
  %v3518 = vshll.u32 %v3431, 16
  %v3520 = vrot.slane %v3518, 5
  %v3521 = vor.u32 %v3517, %v3520
  %v3522 = vrot.slane %v3521, 4
  %v3524 = vshll.u32 %v3432, 16
  %v3526 = vrot.slane %v3524, 5
  %v3527 = vsel %vm3457, %v3522, %v3526
  %v3529 = vshrl.u32 %v3433, 16
  %v3531 = vrot.slane %v3529, 4
  %v3532 = vshll.u32 %v3433, 16
  %v3534 = vrot.slane %v3532, 5
  %v3535 = vor.u32 %v3531, %v3534
  %v3536 = vrot.slane %v3535, 4
  %v3538 = vshll.u32 %v3434, 16
  %v3540 = vrot.slane %v3538, 5
  %v3541 = vsel %vm3457, %v3536, %v3540
  %v3543 = vshrl.u32 %v3435, 16
  %v3545 = vrot.slane %v3543, 4
  %v3546 = vshll.u32 %v3435, 16
  %v3548 = vrot.slane %v3546, 5
  %v3549 = vor.u32 %v3545, %v3548
  %v3550 = vrot.slane %v3549, 4
  %v3552 = vshll.u32 %v3436, 16
  %v3554 = vrot.slane %v3552, 5
  %v3555 = vsel %vm3457, %v3550, %v3554
  %v3557 = vshrl.u32 %v3437, 16
  %v3559 = vrot.slane %v3557, 4
  %v3560 = vshll.u32 %v3437, 16
  %v3562 = vrot.slane %v3560, 5
  %v3563 = vor.u32 %v3559, %v3562
  %v3564 = vrot.slane %v3563, 4
  %v3566 = vshll.u32 %v3438, 16
  %v3568 = vrot.slane %v3566, 5
  %v3569 = vsel %vm3457, %v3564, %v3568
  %v3571 = vshrl.u32 %v3439, 16
  %v3573 = vrot.slane %v3571, 4
  %v3574 = vshll.u32 %v3439, 16
  %v3576 = vrot.slane %v3574, 5
  %v3577 = vor.u32 %v3573, %v3576
  %v3578 = vrot.slane %v3577, 4
  %v3580 = vshll.u32 %v3440, 16
  %v3582 = vrot.slane %v3580, 5
  %v3583 = vsel %vm3457, %v3578, %v3582
  %v3585 = vshrl.u32 %v3441, 16
  %v3587 = vrot.slane %v3585, 4
  %v3588 = vshll.u32 %v3441, 16
  %v3590 = vrot.slane %v3588, 5
  %v3591 = vor.u32 %v3587, %v3590
  %v3592 = vrot.slane %v3591, 4
  %v3594 = vshll.u32 %v3442, 16
  %v3596 = vrot.slane %v3594, 5
  %v3597 = vsel %vm3457, %v3592, %v3596
  %v3599 = vshrl.u32 %v3443, 16
  %v3601 = vrot.slane %v3599, 4
  %v3602 = vshll.u32 %v3443, 16
  %v3604 = vrot.slane %v3602, 5
  %v3605 = vor.u32 %v3601, %v3604
  %v3606 = vrot.slane %v3605, 4
  %v3608 = vshll.u32 %v3444, 16
  %v3610 = vrot.slane %v3608, 5
  %v3611 = vsel %vm3457, %v3606, %v3610
  %v3613 = vshrl.u32 %v3445, 16
  %v3615 = vrot.slane %v3613, 4
  %v3616 = vshll.u32 %v3445, 16
  %v3618 = vrot.slane %v3616, 5
  %v3619 = vor.u32 %v3615, %v3618
  %v3620 = vrot.slane %v3619, 4
  %v3622 = vshll.u32 %v3446, 16
  %v3624 = vrot.slane %v3622, 5
  %v3625 = vsel %vm3457, %v3620, %v3624
  %v3627 = vshrl.u32 %v3447, 16
  %v3629 = vrot.slane %v3627, 4
  %v3630 = vshll.u32 %v3447, 16
  %v3632 = vrot.slane %v3630, 5
  %v3633 = vor.u32 %v3629, %v3632
  %v3634 = vrot.slane %v3633, 4
  %v3636 = vshll.u32 %v3448, 16
  %v3638 = vrot.slane %v3636, 5
  %v3639 = vsel %vm3457, %v3634, %v3638
  %v3641 = vshrl.u32 %v3449, 16
  %v3643 = vrot.slane %v3641, 4
  %v3644 = vshll.u32 %v3449, 16
  %v3646 = vrot.slane %v3644, 5
  %v3647 = vor.u32 %v3643, %v3646
  %v3648 = vrot.slane %v3647, 4
  %v3650 = vshll.u32 %v3450, 16
  %v3652 = vrot.slane %v3650, 5
  %v3653 = vsel %vm3457, %v3648, %v3652
  %v3655 = vshrl.u32 %v3451, 16
  %v3657 = vrot.slane %v3655, 4
  %v3658 = vshll.u32 %v3451, 16
  %v3660 = vrot.slane %v3658, 5
  %v3661 = vor.u32 %v3657, %v3660
  %v3662 = vrot.slane %v3661, 4
  %v3664 = vshll.u32 %v3452, 16
  %v3666 = vrot.slane %v3664, 5
  %v3667 = vsel %vm3457, %v3662, %v3666
  %v3669 = vshrl.u32 %v3453, 16
  %v3671 = vrot.slane %v3669, 4
  %v3672 = vshll.u32 %v3453, 16
  %v3674 = vrot.slane %v3672, 5
  %v3675 = vor.u32 %v3671, %v3674
  %v3676 = vrot.slane %v3675, 4
  %v3678 = vshll.u32 %v3454, 16
  %v3680 = vrot.slane %v3678, 5
  %v3681 = vsel %vm3457, %v3676, %v3680
  %3682 = vrot.lane.b32.xlu0 %v3471, 32
  %v3683 = vpop.permute.xlu0 %3682
  %3684 = vrot.lane.b32.xlu0 %v3485, 32
  %v3685 = vpop.permute.xlu0 %3684
  %3686 = vrot.lane.b32.xlu0 %v3499, 32
  %v3687 = vpop.permute.xlu0 %3686
  %3688 = vrot.lane.b32.xlu0 %v3513, 32
  %v3689 = vpop.permute.xlu0 %3688
  %3690 = vrot.lane.b32.xlu0 %v3527, 32
  %v3691 = vpop.permute.xlu0 %3690
  %3692 = vrot.lane.b32.xlu0 %v3541, 32
  %v3693 = vpop.permute.xlu0 %3692
  %3694 = vrot.lane.b32.xlu0 %v3555, 32
  %v3695 = vpop.permute.xlu0 %3694
  %3696 = vrot.lane.b32.xlu0 %v3569, 32
  %v3697 = vpop.permute.xlu0 %3696
  %3698 = vrot.lane.b32.xlu0 %v3583, 32
  %v3699 = vpop.permute.xlu0 %3698
  %3700 = vrot.lane.b32.xlu0 %v3597, 32
  %v3701 = vpop.permute.xlu0 %3700
  %3702 = vrot.lane.b32.xlu0 %v3611, 32
  %v3703 = vpop.permute.xlu0 %3702
  %3704 = vrot.lane.b32.xlu0 %v3625, 32
  %v3705 = vpop.permute.xlu0 %3704
  %3706 = vrot.lane.b32.xlu0 %v3639, 32
  %v3707 = vpop.permute.xlu0 %3706
  %3708 = vrot.lane.b32.xlu0 %v3653, 32
  %v3709 = vpop.permute.xlu0 %3708
  %3710 = vrot.lane.b32.xlu0 %v3667, 32
  %v3711 = vpop.permute.xlu0 %3710
  %3712 = vrot.lane.b32.xlu0 %v3681, 32
  %v3713 = vpop.permute.xlu0 %3712
  %vm3730 = vcmask 519424
  %3731 = vst.msk [vmem:[#allocation3] sm:$0xf] %vm3730, %v3683
  %3732 = vst.msk [vmem:[#allocation3 + $0xc] sm:$0xf] %vm3730, %v3685
  %3733 = vst.msk [vmem:[#allocation3 + $0x18] sm:$0xf] %vm3730, %v3687
  %3734 = vst.msk [vmem:[#allocation3 + $0x24] sm:$0xf] %vm3730, %v3689
  %3735 = vst.msk [vmem:[#allocation3 + $0x30] sm:$0xf] %vm3730, %v3691
  %3736 = vst.msk [vmem:[#allocation3 + $0x3c] sm:$0xf] %vm3730, %v3693
  %3737 = vst.msk [vmem:[#allocation3 + $0x48] sm:$0xf] %vm3730, %v3695
  %3738 = vst.msk [vmem:[#allocation3 + $0x54] sm:$0xf] %vm3730, %v3697
  %3739 = vst.msk [vmem:[#allocation3 + $0x60] sm:$0xf] %vm3730, %v3699
  %3740 = vst.msk [vmem:[#allocation3 + $0x6c] sm:$0xf] %vm3730, %v3701
  %3741 = vst.msk [vmem:[#allocation3 + $0x78] sm:$0xf] %vm3730, %v3703
  %3742 = vst.msk [vmem:[#allocation3 + $0x84] sm:$0xf] %vm3730, %v3705
  %3743 = vst.msk [vmem:[#allocation3 + $0x90] sm:$0xf] %vm3730, %v3707
  %3744 = vst.msk [vmem:[#allocation3 + $0x9c] sm:$0xf] %vm3730, %v3709
  %3745 = vst.msk [vmem:[#allocation3 + $0xa8] sm:$0xf] %vm3730, %v3711
  %3746 = vst.msk [vmem:[#allocation3 + $0xb4] sm:$0xf] %vm3730, %v3713
  %v3747 = vld [vmem:[#allocation2] sm:$0xe]
  %v3748 = vld [vmem:[#allocation2 + $0x4] sm:$0x1]
  %v3749 = vld [vmem:[#allocation2 + $0x8] sm:$0xe]
  %v3750 = vld [vmem:[#allocation2 + $0xc] sm:$0x1]
  %v3751 = vld [vmem:[#allocation2 + $0x10] sm:$0xe]
  %v3752 = vld [vmem:[#allocation2 + $0x14] sm:$0x1]
  %v3753 = vld [vmem:[#allocation2 + $0x18] sm:$0xe]
  %v3754 = vld [vmem:[#allocation2 + $0x1c] sm:$0x1]
  %v3755 = vld [vmem:[#allocation2 + $0x20] sm:$0xe]
  %v3756 = vld [vmem:[#allocation2 + $0x24] sm:$0x1]
  %v3757 = vld [vmem:[#allocation2 + $0x28] sm:$0xe]
  %v3758 = vld [vmem:[#allocation2 + $0x2c] sm:$0x1]
  %v3759 = vld [vmem:[#allocation2 + $0x30] sm:$0xe]
  %v3760 = vld [vmem:[#allocation2 + $0x34] sm:$0x1]
  %v3761 = vld [vmem:[#allocation2 + $0x38] sm:$0xe]
  %v3762 = vld [vmem:[#allocation2 + $0x3c] sm:$0x1]
  %v3763 = vld [vmem:[#allocation2 + $0x50] sm:$0xe]
  %v3764 = vld [vmem:[#allocation2 + $0x54] sm:$0x1]
  %v3765 = vld [vmem:[#allocation2 + $0x58] sm:$0xe]
  %v3766 = vld [vmem:[#allocation2 + $0x5c] sm:$0x1]
  %v3767 = vld [vmem:[#allocation2 + $0x60] sm:$0xe]
  %v3768 = vld [vmem:[#allocation2 + $0x64] sm:$0x1]
  %v3769 = vld [vmem:[#allocation2 + $0x68] sm:$0xe]
  %v3770 = vld [vmem:[#allocation2 + $0x6c] sm:$0x1]
  %v3771 = vld [vmem:[#allocation2 + $0x70] sm:$0xe]
  %v3772 = vld [vmem:[#allocation2 + $0x74] sm:$0x1]
  %v3773 = vld [vmem:[#allocation2 + $0x78] sm:$0xe]
  %v3774 = vld [vmem:[#allocation2 + $0x7c] sm:$0x1]
  %v3775 = vld [vmem:[#allocation2 + $0x80] sm:$0xe]
  %v3776 = vld [vmem:[#allocation2 + $0x84] sm:$0x1]
  %v3777 = vld [vmem:[#allocation2 + $0x88] sm:$0xe]
  %v3778 = vld [vmem:[#allocation2 + $0x8c] sm:$0x1]
  %vm3811 = vcmask 1042432
  %vm3812 = vcmask 1046532
  %vm3813 = vmor %vm3811, %vm3812
  %v3814 = vrot.slane %v3747, 5
  %v3815 = vrot.slane %v3814, 4
  %v3816 = vrot.slane %v3748, 5
  %v3817 = vsel %vm3813, %v3815, %v3816
  %v3818 = vrot.slane %v3749, 5
  %v3819 = vrot.slane %v3818, 4
  %v3820 = vrot.slane %v3750, 5
  %v3821 = vsel %vm3813, %v3819, %v3820
  %v3822 = vrot.slane %v3751, 5
  %v3823 = vrot.slane %v3822, 4
  %v3824 = vrot.slane %v3752, 5
  %v3825 = vsel %vm3813, %v3823, %v3824
  %v3826 = vrot.slane %v3753, 5
  %v3827 = vrot.slane %v3826, 4
  %v3828 = vrot.slane %v3754, 5
  %v3829 = vsel %vm3813, %v3827, %v3828
  %v3830 = vrot.slane %v3755, 5
  %v3831 = vrot.slane %v3830, 4
  %v3832 = vrot.slane %v3756, 5
  %v3833 = vsel %vm3813, %v3831, %v3832
  %v3834 = vrot.slane %v3757, 5
  %v3835 = vrot.slane %v3834, 4
  %v3836 = vrot.slane %v3758, 5
  %v3837 = vsel %vm3813, %v3835, %v3836
  %v3838 = vrot.slane %v3759, 5
  %v3839 = vrot.slane %v3838, 4
  %v3840 = vrot.slane %v3760, 5
  %v3841 = vsel %vm3813, %v3839, %v3840
  %v3842 = vrot.slane %v3761, 5
  %v3843 = vrot.slane %v3842, 4
  %v3844 = vrot.slane %v3762, 5
  %v3845 = vsel %vm3813, %v3843, %v3844
  %v3846 = vrot.slane %v3763, 5
  %v3847 = vrot.slane %v3846, 4
  %v3848 = vrot.slane %v3764, 5
  %v3849 = vsel %vm3813, %v3847, %v3848
  %v3850 = vrot.slane %v3765, 5
  %v3851 = vrot.slane %v3850, 4
  %v3852 = vrot.slane %v3766, 5
  %v3853 = vsel %vm3813, %v3851, %v3852
  %v3854 = vrot.slane %v3767, 5
  %v3855 = vrot.slane %v3854, 4
  %v3856 = vrot.slane %v3768, 5
  %v3857 = vsel %vm3813, %v3855, %v3856
  %v3858 = vrot.slane %v3769, 5
  %v3859 = vrot.slane %v3858, 4
  %v3860 = vrot.slane %v3770, 5
  %v3861 = vsel %vm3813, %v3859, %v3860
  %v3862 = vrot.slane %v3771, 5
  %v3863 = vrot.slane %v3862, 4
  %v3864 = vrot.slane %v3772, 5
  %v3865 = vsel %vm3813, %v3863, %v3864
  %v3866 = vrot.slane %v3773, 5
  %v3867 = vrot.slane %v3866, 4
  %v3868 = vrot.slane %v3774, 5
  %v3869 = vsel %vm3813, %v3867, %v3868
  %v3870 = vrot.slane %v3775, 5
  %v3871 = vrot.slane %v3870, 4
  %v3872 = vrot.slane %v3776, 5
  %v3873 = vsel %vm3813, %v3871, %v3872
  %v3874 = vrot.slane %v3777, 5
  %v3875 = vrot.slane %v3874, 4
  %v3876 = vrot.slane %v3778, 5
  %v3877 = vsel %vm3813, %v3875, %v3876
  %3878 = vrot.lane.b32.xlu0 %v3817, 64
  %v3879 = vpop.permute.xlu0 %3878
  %3880 = vrot.lane.b32.xlu0 %v3821, 64
  %v3881 = vpop.permute.xlu0 %3880
  %3882 = vrot.lane.b32.xlu0 %v3825, 64
  %v3883 = vpop.permute.xlu0 %3882
  %3884 = vrot.lane.b32.xlu0 %v3829, 64
  %v3885 = vpop.permute.xlu0 %3884
  %3886 = vrot.lane.b32.xlu0 %v3833, 64
  %v3887 = vpop.permute.xlu0 %3886
  %3888 = vrot.lane.b32.xlu0 %v3837, 64
  %v3889 = vpop.permute.xlu0 %3888
  %3890 = vrot.lane.b32.xlu0 %v3841, 64
  %v3891 = vpop.permute.xlu0 %3890
  %3892 = vrot.lane.b32.xlu0 %v3845, 64
  %v3893 = vpop.permute.xlu0 %3892
  %3894 = vrot.lane.b32.xlu0 %v3849, 64
  %v3895 = vpop.permute.xlu0 %3894
  %3896 = vrot.lane.b32.xlu0 %v3853, 64
  %v3897 = vpop.permute.xlu0 %3896
  %3898 = vrot.lane.b32.xlu0 %v3857, 64
  %v3899 = vpop.permute.xlu0 %3898
  %3900 = vrot.lane.b32.xlu0 %v3861, 64
  %v3901 = vpop.permute.xlu0 %3900
  %3902 = vrot.lane.b32.xlu0 %v3865, 64
  %v3903 = vpop.permute.xlu0 %3902
  %3904 = vrot.lane.b32.xlu0 %v3869, 64
  %v3905 = vpop.permute.xlu0 %3904
  %3906 = vrot.lane.b32.xlu0 %v3873, 64
  %v3907 = vpop.permute.xlu0 %3906
  %3908 = vrot.lane.b32.xlu0 %v3877, 64
  %v3909 = vpop.permute.xlu0 %3908
  %vm3926 = vcmask 781824
  %3927 = vst.msk [vmem:[#allocation3] sm:$0xf] %vm3926, %v3879
  %3928 = vst.msk [vmem:[#allocation3 + $0xc] sm:$0xf] %vm3926, %v3881
  %3929 = vst.msk [vmem:[#allocation3 + $0x18] sm:$0xf] %vm3926, %v3883
  %3930 = vst.msk [vmem:[#allocation3 + $0x24] sm:$0xf] %vm3926, %v3885
  %3931 = vst.msk [vmem:[#allocation3 + $0x30] sm:$0xf] %vm3926, %v3887
  %3932 = vst.msk [vmem:[#allocation3 + $0x3c] sm:$0xf] %vm3926, %v3889
  %3933 = vst.msk [vmem:[#allocation3 + $0x48] sm:$0xf] %vm3926, %v3891
  %3934 = vst.msk [vmem:[#allocation3 + $0x54] sm:$0xf] %vm3926, %v3893
  %3935 = vst.msk [vmem:[#allocation3 + $0x60] sm:$0xf] %vm3926, %v3895
  %3936 = vst.msk [vmem:[#allocation3 + $0x6c] sm:$0xf] %vm3926, %v3897
  %3937 = vst.msk [vmem:[#allocation3 + $0x78] sm:$0xf] %vm3926, %v3899
  %3938 = vst.msk [vmem:[#allocation3 + $0x84] sm:$0xf] %vm3926, %v3901
  %3939 = vst.msk [vmem:[#allocation3 + $0x90] sm:$0xf] %vm3926, %v3903
  %3940 = vst.msk [vmem:[#allocation3 + $0x9c] sm:$0xf] %vm3926, %v3905
  %3941 = vst.msk [vmem:[#allocation3 + $0xa8] sm:$0xf] %vm3926, %v3907
  %3942 = vst.msk [vmem:[#allocation3 + $0xb4] sm:$0xf] %vm3926, %v3909
  %v3943 = vld [vmem:[%s3288] sm:$0xf]
  %v3944 = vld [vmem:[%s3288 + $0x8] sm:$0xf]
  %v3945 = vld [vmem:[%s3288 + $0x10] sm:$0xf]
  %v3946 = vld [vmem:[%s3288 + $0x18] sm:$0xf]
  %v3947 = vld [vmem:[%s3288 + $0x20] sm:$0xf]
  %v3948 = vld [vmem:[%s3288 + $0x28] sm:$0xf]
  %v3949 = vld [vmem:[%s3288 + $0x30] sm:$0xf]
  %v3950 = vld [vmem:[%s3288 + $0x38] sm:$0xf]
  %v3951 = vld [vmem:[%s3288 + $0x50] sm:$0xf]
  %v3952 = vld [vmem:[%s3288 + $0x58] sm:$0xf]
  %v3953 = vld [vmem:[%s3288 + $0x60] sm:$0xf]
  %v3954 = vld [vmem:[%s3288 + $0x68] sm:$0xf]
  %v3955 = vld [vmem:[%s3288 + $0x70] sm:$0xf]
  %v3956 = vld [vmem:[%s3288 + $0x78] sm:$0xf]
  %v3957 = vld [vmem:[%s3288 + $0x80] sm:$0xf]
  %v3958 = vld [vmem:[%s3288 + $0x88] sm:$0xf]
  %3975 = vrot.lane.b32.xlu0 %v3943, 96
  %v3976 = vpop.permute.xlu0 %3975
  %3977 = vrot.lane.b32.xlu0 %v3944, 96
  %v3978 = vpop.permute.xlu0 %3977
  %3979 = vrot.lane.b32.xlu0 %v3945, 96
  %v3980 = vpop.permute.xlu0 %3979
  %3981 = vrot.lane.b32.xlu0 %v3946, 96
  %v3982 = vpop.permute.xlu0 %3981
  %3983 = vrot.lane.b32.xlu0 %v3947, 96
  %v3984 = vpop.permute.xlu0 %3983
  %3985 = vrot.lane.b32.xlu0 %v3948, 96
  %v3986 = vpop.permute.xlu0 %3985
  %3987 = vrot.lane.b32.xlu0 %v3949, 96
  %v3988 = vpop.permute.xlu0 %3987
  %3989 = vrot.lane.b32.xlu0 %v3950, 96
  %v3990 = vpop.permute.xlu0 %3989
  %3991 = vrot.lane.b32.xlu0 %v3951, 96
  %v3992 = vpop.permute.xlu0 %3991
  %3993 = vrot.lane.b32.xlu0 %v3952, 96
  %v3994 = vpop.permute.xlu0 %3993
  %3995 = vrot.lane.b32.xlu0 %v3953, 96
  %v3996 = vpop.permute.xlu0 %3995
  %3997 = vrot.lane.b32.xlu0 %v3954, 96
  %v3998 = vpop.permute.xlu0 %3997
  %3999 = vrot.lane.b32.xlu0 %v3955, 96
  %v4000 = vpop.permute.xlu0 %3999
  %4001 = vrot.lane.b32.xlu0 %v3956, 96
  %v4002 = vpop.permute.xlu0 %4001
  %4003 = vrot.lane.b32.xlu0 %v3957, 96
  %v4004 = vpop.permute.xlu0 %4003
  %4005 = vrot.lane.b32.xlu0 %v3958, 96
  %v4006 = vpop.permute.xlu0 %4005
  %vm4023 = vcmask 1044224
  %4024 = vst.msk [vmem:[#allocation3] sm:$0xf] %vm4023, %v3976
  %4025 = vst.msk [vmem:[#allocation3 + $0xc] sm:$0xf] %vm4023, %v3978
  %4026 = vst.msk [vmem:[#allocation3 + $0x18] sm:$0xf] %vm4023, %v3980
  %4027 = vst.msk [vmem:[#allocation3 + $0x24] sm:$0xf] %vm4023, %v3982
  %4028 = vst.msk [vmem:[#allocation3 + $0x30] sm:$0xf] %vm4023, %v3984
  %4029 = vst.msk [vmem:[#allocation3 + $0x3c] sm:$0xf] %vm4023, %v3986
  %4030 = vst.msk [vmem:[#allocation3 + $0x48] sm:$0xf] %vm4023, %v3988
  %4031 = vst.msk [vmem:[#allocation3 + $0x54] sm:$0xf] %vm4023, %v3990
  %4032 = vst.msk [vmem:[#allocation3 + $0x60] sm:$0xf] %vm4023, %v3992
  %4033 = vst.msk [vmem:[#allocation3 + $0x6c] sm:$0xf] %vm4023, %v3994
  %4034 = vst.msk [vmem:[#allocation3 + $0x78] sm:$0xf] %vm4023, %v3996
  %4035 = vst.msk [vmem:[#allocation3 + $0x84] sm:$0xf] %vm4023, %v3998
  %4036 = vst.msk [vmem:[#allocation3 + $0x90] sm:$0xf] %vm4023, %v4000
  %4037 = vst.msk [vmem:[#allocation3 + $0x9c] sm:$0xf] %vm4023, %v4002
  %4038 = vst.msk [vmem:[#allocation3 + $0xa8] sm:$0xf] %vm4023, %v4004
  %4039 = vst.msk [vmem:[#allocation3 + $0xb4] sm:$0xf] %vm4023, %v4006
  %v4040 = vld [vmem:[%s3288] sm:$0xf]
  %v4041 = vld [vmem:[%s3288 + $0x4] sm:$0x1]
  %v4042 = vld [vmem:[%s3288 + $0x8] sm:$0xf]
  %v4043 = vld [vmem:[%s3288 + $0xc] sm:$0x1]
  %v4044 = vld [vmem:[%s3288 + $0x10] sm:$0xf]
  %v4045 = vld [vmem:[%s3288 + $0x14] sm:$0x1]
  %v4046 = vld [vmem:[%s3288 + $0x18] sm:$0xf]
  %v4047 = vld [vmem:[%s3288 + $0x1c] sm:$0x1]
  %v4048 = vld [vmem:[%s3288 + $0x20] sm:$0xf]
  %v4049 = vld [vmem:[%s3288 + $0x24] sm:$0x1]
  %v4050 = vld [vmem:[%s3288 + $0x28] sm:$0xf]
  %v4051 = vld [vmem:[%s3288 + $0x2c] sm:$0x1]
  %v4052 = vld [vmem:[%s3288 + $0x30] sm:$0xf]
  %v4053 = vld [vmem:[%s3288 + $0x34] sm:$0x1]
  %v4054 = vld [vmem:[%s3288 + $0x38] sm:$0xf]
  %v4055 = vld [vmem:[%s3288 + $0x3c] sm:$0x1]
  %v4056 = vld [vmem:[%s3288 + $0x50] sm:$0xf]
  %v4057 = vld [vmem:[%s3288 + $0x54] sm:$0x1]
  %v4058 = vld [vmem:[%s3288 + $0x58] sm:$0xf]
  %v4059 = vld [vmem:[%s3288 + $0x5c] sm:$0x1]
  %v4060 = vld [vmem:[%s3288 + $0x60] sm:$0xf]
  %v4061 = vld [vmem:[%s3288 + $0x64] sm:$0x1]
  %v4062 = vld [vmem:[%s3288 + $0x68] sm:$0xf]
  %v4063 = vld [vmem:[%s3288 + $0x6c] sm:$0x1]
  %v4064 = vld [vmem:[%s3288 + $0x70] sm:$0xf]
  %v4065 = vld [vmem:[%s3288 + $0x74] sm:$0x1]
  %v4066 = vld [vmem:[%s3288 + $0x78] sm:$0xf]
  %v4067 = vld [vmem:[%s3288 + $0x7c] sm:$0x1]
  %v4068 = vld [vmem:[%s3288 + $0x80] sm:$0xf]
  %v4069 = vld [vmem:[%s3288 + $0x84] sm:$0x1]
  %v4070 = vld [vmem:[%s3288 + $0x88] sm:$0xf]
  %v4071 = vld [vmem:[%s3288 + $0x8c] sm:$0x1]
  %v4073 = vshrl.u32 %v4040, 16
  %v4075 = vrot.slane %v4073, 4
  %v4076 = vshll.u32 %v4040, 16
  %v4078 = vrot.slane %v4076, 5
  %v4079 = vor.u32 %v4075, %v4078
  %v4080 = vrot.slane %v4079, 4
  %v4082 = vshll.u32 %v4041, 16
  %v4084 = vrot.slane %v4082, 5
  %v4085 = vsel %vm3457, %v4080, %v4084
  %v4087 = vshrl.u32 %v4042, 16
  %v4089 = vrot.slane %v4087, 4
  %v4090 = vshll.u32 %v4042, 16
  %v4092 = vrot.slane %v4090, 5
  %v4093 = vor.u32 %v4089, %v4092
  %v4094 = vrot.slane %v4093, 4
  %v4096 = vshll.u32 %v4043, 16
  %v4098 = vrot.slane %v4096, 5
  %v4099 = vsel %vm3457, %v4094, %v4098
  %v4101 = vshrl.u32 %v4044, 16
  %v4103 = vrot.slane %v4101, 4
  %v4104 = vshll.u32 %v4044, 16
  %v4106 = vrot.slane %v4104, 5
  %v4107 = vor.u32 %v4103, %v4106
  %v4108 = vrot.slane %v4107, 4
  %v4110 = vshll.u32 %v4045, 16
  %v4112 = vrot.slane %v4110, 5
  %v4113 = vsel %vm3457, %v4108, %v4112
  %v4115 = vshrl.u32 %v4046, 16
  %v4117 = vrot.slane %v4115, 4
  %v4118 = vshll.u32 %v4046, 16
  %v4120 = vrot.slane %v4118, 5
  %v4121 = vor.u32 %v4117, %v4120
  %v4122 = vrot.slane %v4121, 4
  %v4124 = vshll.u32 %v4047, 16
  %v4126 = vrot.slane %v4124, 5
  %v4127 = vsel %vm3457, %v4122, %v4126
  %v4129 = vshrl.u32 %v4048, 16
  %v4131 = vrot.slane %v4129, 4
  %v4132 = vshll.u32 %v4048, 16
  %v4134 = vrot.slane %v4132, 5
  %v4135 = vor.u32 %v4131, %v4134
  %v4136 = vrot.slane %v4135, 4
  %v4138 = vshll.u32 %v4049, 16
  %v4140 = vrot.slane %v4138, 5
  %v4141 = vsel %vm3457, %v4136, %v4140
  %v4143 = vshrl.u32 %v4050, 16
  %v4145 = vrot.slane %v4143, 4
  %v4146 = vshll.u32 %v4050, 16
  %v4148 = vrot.slane %v4146, 5
  %v4149 = vor.u32 %v4145, %v4148
  %v4150 = vrot.slane %v4149, 4
  %v4152 = vshll.u32 %v4051, 16
  %v4154 = vrot.slane %v4152, 5
  %v4155 = vsel %vm3457, %v4150, %v4154
  %v4157 = vshrl.u32 %v4052, 16
  %v4159 = vrot.slane %v4157, 4
  %v4160 = vshll.u32 %v4052, 16
  %v4162 = vrot.slane %v4160, 5
  %v4163 = vor.u32 %v4159, %v4162
  %v4164 = vrot.slane %v4163, 4
  %v4166 = vshll.u32 %v4053, 16
  %v4168 = vrot.slane %v4166, 5
  %v4169 = vsel %vm3457, %v4164, %v4168
  %v4171 = vshrl.u32 %v4054, 16
  %v4173 = vrot.slane %v4171, 4
  %v4174 = vshll.u32 %v4054, 16
  %v4176 = vrot.slane %v4174, 5
  %v4177 = vor.u32 %v4173, %v4176
  %v4178 = vrot.slane %v4177, 4
  %v4180 = vshll.u32 %v4055, 16
  %v4182 = vrot.slane %v4180, 5
  %v4183 = vsel %vm3457, %v4178, %v4182
  %v4185 = vshrl.u32 %v4056, 16
  %v4187 = vrot.slane %v4185, 4
  %v4188 = vshll.u32 %v4056, 16
  %v4190 = vrot.slane %v4188, 5
  %v4191 = vor.u32 %v4187, %v4190
  %v4192 = vrot.slane %v4191, 4
  %v4194 = vshll.u32 %v4057, 16
  %v4196 = vrot.slane %v4194, 5
  %v4197 = vsel %vm3457, %v4192, %v4196
  %v4199 = vshrl.u32 %v4058, 16
  %v4201 = vrot.slane %v4199, 4
  %v4202 = vshll.u32 %v4058, 16
  %v4204 = vrot.slane %v4202, 5
  %v4205 = vor.u32 %v4201, %v4204
  %v4206 = vrot.slane %v4205, 4
  %v4208 = vshll.u32 %v4059, 16
  %v4210 = vrot.slane %v4208, 5
  %v4211 = vsel %vm3457, %v4206, %v4210
  %v4213 = vshrl.u32 %v4060, 16
  %v4215 = vrot.slane %v4213, 4
  %v4216 = vshll.u32 %v4060, 16
  %v4218 = vrot.slane %v4216, 5
  %v4219 = vor.u32 %v4215, %v4218
  %v4220 = vrot.slane %v4219, 4
  %v4222 = vshll.u32 %v4061, 16
  %v4224 = vrot.slane %v4222, 5
  %v4225 = vsel %vm3457, %v4220, %v4224
  %v4227 = vshrl.u32 %v4062, 16
  %v4229 = vrot.slane %v4227, 4
  %v4230 = vshll.u32 %v4062, 16
  %v4232 = vrot.slane %v4230, 5
  %v4233 = vor.u32 %v4229, %v4232
  %v4234 = vrot.slane %v4233, 4
  %v4236 = vshll.u32 %v4063, 16
  %v4238 = vrot.slane %v4236, 5
  %v4239 = vsel %vm3457, %v4234, %v4238
  %v4241 = vshrl.u32 %v4064, 16
  %v4243 = vrot.slane %v4241, 4
  %v4244 = vshll.u32 %v4064, 16
  %v4246 = vrot.slane %v4244, 5
  %v4247 = vor.u32 %v4243, %v4246
  %v4248 = vrot.slane %v4247, 4
  %v4250 = vshll.u32 %v4065, 16
  %v4252 = vrot.slane %v4250, 5
  %v4253 = vsel %vm3457, %v4248, %v4252
  %v4255 = vshrl.u32 %v4066, 16
  %v4257 = vrot.slane %v4255, 4
  %v4258 = vshll.u32 %v4066, 16
  %v4260 = vrot.slane %v4258, 5
  %v4261 = vor.u32 %v4257, %v4260
  %v4262 = vrot.slane %v4261, 4
  %v4264 = vshll.u32 %v4067, 16
  %v4266 = vrot.slane %v4264, 5
  %v4267 = vsel %vm3457, %v4262, %v4266
  %v4269 = vshrl.u32 %v4068, 16
  %v4271 = vrot.slane %v4269, 4
  %v4272 = vshll.u32 %v4068, 16
  %v4274 = vrot.slane %v4272, 5
  %v4275 = vor.u32 %v4271, %v4274
  %v4276 = vrot.slane %v4275, 4
  %v4278 = vshll.u32 %v4069, 16
  %v4280 = vrot.slane %v4278, 5
  %v4281 = vsel %vm3457, %v4276, %v4280
  %v4283 = vshrl.u32 %v4070, 16
  %v4285 = vrot.slane %v4283, 4
  %v4286 = vshll.u32 %v4070, 16
  %v4288 = vrot.slane %v4286, 5
  %v4289 = vor.u32 %v4285, %v4288
  %v4290 = vrot.slane %v4289, 4
  %v4292 = vshll.u32 %v4071, 16
  %v4294 = vrot.slane %v4292, 5
  %v4295 = vsel %vm3457, %v4290, %v4294
  %4312 = vst.msk [vmem:[#allocation3 + $0x4] sm:$0xf] %vm2440, %v4085
  %4313 = vst.msk [vmem:[#allocation3 + $0x10] sm:$0xf] %vm2440, %v4099
  %4314 = vst.msk [vmem:[#allocation3 + $0x1c] sm:$0xf] %vm2440, %v4113
  %4315 = vst.msk [vmem:[#allocation3 + $0x28] sm:$0xf] %vm2440, %v4127
  %4316 = vst.msk [vmem:[#allocation3 + $0x34] sm:$0xf] %vm2440, %v4141
  %4317 = vst.msk [vmem:[#allocation3 + $0x40] sm:$0xf] %vm2440, %v4155
  %4318 = vst.msk [vmem:[#allocation3 + $0x4c] sm:$0xf] %vm2440, %v4169
  %4319 = vst.msk [vmem:[#allocation3 + $0x58] sm:$0xf] %vm2440, %v4183
  %4320 = vst.msk [vmem:[#allocation3 + $0x64] sm:$0xf] %vm2440, %v4197
  %4321 = vst.msk [vmem:[#allocation3 + $0x70] sm:$0xf] %vm2440, %v4211
  %4322 = vst.msk [vmem:[#allocation3 + $0x7c] sm:$0xf] %vm2440, %v4225
  %4323 = vst.msk [vmem:[#allocation3 + $0x88] sm:$0xf] %vm2440, %v4239
  %4324 = vst.msk [vmem:[#allocation3 + $0x94] sm:$0xf] %vm2440, %v4253
  %4325 = vst.msk [vmem:[#allocation3 + $0xa0] sm:$0xf] %vm2440, %v4267
  %4326 = vst.msk [vmem:[#allocation3 + $0xac] sm:$0xf] %vm2440, %v4281
  %4327 = vst.msk [vmem:[#allocation3 + $0xb8] sm:$0xf] %vm2440, %v4295
  %v4328 = vld [vmem:[%s3288] sm:$0xe]
  %v4329 = vld [vmem:[%s3288 + $0x4] sm:$0x1]
  %v4330 = vld [vmem:[%s3288 + $0x8] sm:$0xe]
  %v4331 = vld [vmem:[%s3288 + $0xc] sm:$0x1]
  %v4332 = vld [vmem:[%s3288 + $0x10] sm:$0xe]
  %v4333 = vld [vmem:[%s3288 + $0x14] sm:$0x1]
  %v4334 = vld [vmem:[%s3288 + $0x18] sm:$0xe]
  %v4335 = vld [vmem:[%s3288 + $0x1c] sm:$0x1]
  %v4336 = vld [vmem:[%s3288 + $0x20] sm:$0xe]
  %v4337 = vld [vmem:[%s3288 + $0x24] sm:$0x1]
  %v4338 = vld [vmem:[%s3288 + $0x28] sm:$0xe]
  %v4339 = vld [vmem:[%s3288 + $0x2c] sm:$0x1]
  %v4340 = vld [vmem:[%s3288 + $0x30] sm:$0xe]
  %v4341 = vld [vmem:[%s3288 + $0x34] sm:$0x1]
  %v4342 = vld [vmem:[%s3288 + $0x38] sm:$0xe]
  %v4343 = vld [vmem:[%s3288 + $0x3c] sm:$0x1]
  %v4344 = vld [vmem:[%s3288 + $0x50] sm:$0xe]
  %v4345 = vld [vmem:[%s3288 + $0x54] sm:$0x1]
  %v4346 = vld [vmem:[%s3288 + $0x58] sm:$0xe]
  %v4347 = vld [vmem:[%s3288 + $0x5c] sm:$0x1]
  %v4348 = vld [vmem:[%s3288 + $0x60] sm:$0xe]
  %v4349 = vld [vmem:[%s3288 + $0x64] sm:$0x1]
  %v4350 = vld [vmem:[%s3288 + $0x68] sm:$0xe]
  %v4351 = vld [vmem:[%s3288 + $0x6c] sm:$0x1]
  %v4352 = vld [vmem:[%s3288 + $0x70] sm:$0xe]
  %v4353 = vld [vmem:[%s3288 + $0x74] sm:$0x1]
  %v4354 = vld [vmem:[%s3288 + $0x78] sm:$0xe]
  %v4355 = vld [vmem:[%s3288 + $0x7c] sm:$0x1]
  %v4356 = vld [vmem:[%s3288 + $0x80] sm:$0xe]
  %v4357 = vld [vmem:[%s3288 + $0x84] sm:$0x1]
  %v4358 = vld [vmem:[%s3288 + $0x88] sm:$0xe]
  %v4359 = vld [vmem:[%s3288 + $0x8c] sm:$0x1]
  %v4392 = vrot.slane %v4328, 5
  %v4393 = vrot.slane %v4392, 4
  %v4394 = vrot.slane %v4329, 5
  %v4395 = vsel %vm3813, %v4393, %v4394
  %v4396 = vrot.slane %v4330, 5
  %v4397 = vrot.slane %v4396, 4
  %v4398 = vrot.slane %v4331, 5
  %v4399 = vsel %vm3813, %v4397, %v4398
  %v4400 = vrot.slane %v4332, 5
  %v4401 = vrot.slane %v4400, 4
  %v4402 = vrot.slane %v4333, 5
  %v4403 = vsel %vm3813, %v4401, %v4402
  %v4404 = vrot.slane %v4334, 5
  %v4405 = vrot.slane %v4404, 4
  %v4406 = vrot.slane %v4335, 5
  %v4407 = vsel %vm3813, %v4405, %v4406
  %v4408 = vrot.slane %v4336, 5
  %v4409 = vrot.slane %v4408, 4
  %v4410 = vrot.slane %v4337, 5
  %v4411 = vsel %vm3813, %v4409, %v4410
  %v4412 = vrot.slane %v4338, 5
  %v4413 = vrot.slane %v4412, 4
  %v4414 = vrot.slane %v4339, 5
  %v4415 = vsel %vm3813, %v4413, %v4414
  %v4416 = vrot.slane %v4340, 5
  %v4417 = vrot.slane %v4416, 4
  %v4418 = vrot.slane %v4341, 5
  %v4419 = vsel %vm3813, %v4417, %v4418
  %v4420 = vrot.slane %v4342, 5
  %v4421 = vrot.slane %v4420, 4
  %v4422 = vrot.slane %v4343, 5
  %v4423 = vsel %vm3813, %v4421, %v4422
  %v4424 = vrot.slane %v4344, 5
  %v4425 = vrot.slane %v4424, 4
  %v4426 = vrot.slane %v4345, 5
  %v4427 = vsel %vm3813, %v4425, %v4426
  %v4428 = vrot.slane %v4346, 5
  %v4429 = vrot.slane %v4428, 4
  %v4430 = vrot.slane %v4347, 5
  %v4431 = vsel %vm3813, %v4429, %v4430
  %v4432 = vrot.slane %v4348, 5
  %v4433 = vrot.slane %v4432, 4
  %v4434 = vrot.slane %v4349, 5
  %v4435 = vsel %vm3813, %v4433, %v4434
  %v4436 = vrot.slane %v4350, 5
  %v4437 = vrot.slane %v4436, 4
  %v4438 = vrot.slane %v4351, 5
  %v4439 = vsel %vm3813, %v4437, %v4438
  %v4440 = vrot.slane %v4352, 5
  %v4441 = vrot.slane %v4440, 4
  %v4442 = vrot.slane %v4353, 5
  %v4443 = vsel %vm3813, %v4441, %v4442
  %v4444 = vrot.slane %v4354, 5
  %v4445 = vrot.slane %v4444, 4
  %v4446 = vrot.slane %v4355, 5
  %v4447 = vsel %vm3813, %v4445, %v4446
  %v4448 = vrot.slane %v4356, 5
  %v4449 = vrot.slane %v4448, 4
  %v4450 = vrot.slane %v4357, 5
  %v4451 = vsel %vm3813, %v4449, %v4450
  %v4452 = vrot.slane %v4358, 5
  %v4453 = vrot.slane %v4452, 4
  %v4454 = vrot.slane %v4359, 5
  %v4455 = vsel %vm3813, %v4453, %v4454
  %4456 = vrot.lane.b32.xlu0 %v4395, 32
  %v4457 = vpop.permute.xlu0 %4456
  %4458 = vrot.lane.b32.xlu0 %v4399, 32
  %v4459 = vpop.permute.xlu0 %4458
  %4460 = vrot.lane.b32.xlu0 %v4403, 32
  %v4461 = vpop.permute.xlu0 %4460
  %4462 = vrot.lane.b32.xlu0 %v4407, 32
  %v4463 = vpop.permute.xlu0 %4462
  %4464 = vrot.lane.b32.xlu0 %v4411, 32
  %v4465 = vpop.permute.xlu0 %4464
  %4466 = vrot.lane.b32.xlu0 %v4415, 32
  %v4467 = vpop.permute.xlu0 %4466
  %4468 = vrot.lane.b32.xlu0 %v4419, 32
  %v4469 = vpop.permute.xlu0 %4468
  %4470 = vrot.lane.b32.xlu0 %v4423, 32
  %v4471 = vpop.permute.xlu0 %4470
  %4472 = vrot.lane.b32.xlu0 %v4427, 32
  %v4473 = vpop.permute.xlu0 %4472
  %4474 = vrot.lane.b32.xlu0 %v4431, 32
  %v4475 = vpop.permute.xlu0 %4474
  %4476 = vrot.lane.b32.xlu0 %v4435, 32
  %v4477 = vpop.permute.xlu0 %4476
  %4478 = vrot.lane.b32.xlu0 %v4439, 32
  %v4479 = vpop.permute.xlu0 %4478
  %4480 = vrot.lane.b32.xlu0 %v4443, 32
  %v4481 = vpop.permute.xlu0 %4480
  %4482 = vrot.lane.b32.xlu0 %v4447, 32
  %v4483 = vpop.permute.xlu0 %4482
  %4484 = vrot.lane.b32.xlu0 %v4451, 32
  %v4485 = vpop.permute.xlu0 %4484
  %4486 = vrot.lane.b32.xlu0 %v4455, 32
  %v4487 = vpop.permute.xlu0 %4486
  %4504 = vst.msk [vmem:[#allocation3 + $0x4] sm:$0xf] %vm3730, %v4457
  %4505 = vst.msk [vmem:[#allocation3 + $0x10] sm:$0xf] %vm3730, %v4459
  %4506 = vst.msk [vmem:[#allocation3 + $0x1c] sm:$0xf] %vm3730, %v4461
  %4507 = vst.msk [vmem:[#allocation3 + $0x28] sm:$0xf] %vm3730, %v4463
  %4508 = vst.msk [vmem:[#allocation3 + $0x34] sm:$0xf] %vm3730, %v4465
  %4509 = vst.msk [vmem:[#allocation3 + $0x40] sm:$0xf] %vm3730, %v4467
  %4510 = vst.msk [vmem:[#allocation3 + $0x4c] sm:$0xf] %vm3730, %v4469
  %4511 = vst.msk [vmem:[#allocation3 + $0x58] sm:$0xf] %vm3730, %v4471
  %4512 = vst.msk [vmem:[#allocation3 + $0x64] sm:$0xf] %vm3730, %v4473
  %4513 = vst.msk [vmem:[#allocation3 + $0x70] sm:$0xf] %vm3730, %v4475
  %4514 = vst.msk [vmem:[#allocation3 + $0x7c] sm:$0xf] %vm3730, %v4477
  %4515 = vst.msk [vmem:[#allocation3 + $0x88] sm:$0xf] %vm3730, %v4479
  %4516 = vst.msk [vmem:[#allocation3 + $0x94] sm:$0xf] %vm3730, %v4481
  %4517 = vst.msk [vmem:[#allocation3 + $0xa0] sm:$0xf] %vm3730, %v4483
  %4518 = vst.msk [vmem:[#allocation3 + $0xac] sm:$0xf] %vm3730, %v4485
  %4519 = vst.msk [vmem:[#allocation3 + $0xb8] sm:$0xf] %vm3730, %v4487
  %s4520 = scalar_lea.vmem [#allocation2], 16
  %v4521 = vld [vmem:[%s4520] sm:$0xf]
  %v4522 = vld [vmem:[%s4520 + $0x8] sm:$0xf]
  %v4523 = vld [vmem:[%s4520 + $0x10] sm:$0xf]
  %v4524 = vld [vmem:[%s4520 + $0x18] sm:$0xf]
  %v4525 = vld [vmem:[%s4520 + $0x20] sm:$0xf]
  %v4526 = vld [vmem:[%s4520 + $0x28] sm:$0xf]
  %v4527 = vld [vmem:[%s4520 + $0x30] sm:$0xf]
  %v4528 = vld [vmem:[%s4520 + $0x38] sm:$0xf]
  %v4529 = vld [vmem:[%s4520 + $0x50] sm:$0xf]
  %v4530 = vld [vmem:[%s4520 + $0x58] sm:$0xf]
  %v4531 = vld [vmem:[%s4520 + $0x60] sm:$0xf]
  %v4532 = vld [vmem:[%s4520 + $0x68] sm:$0xf]
  %v4533 = vld [vmem:[%s4520 + $0x70] sm:$0xf]
  %v4534 = vld [vmem:[%s4520 + $0x78] sm:$0xf]
  %v4535 = vld [vmem:[%s4520 + $0x80] sm:$0xf]
  %v4536 = vld [vmem:[%s4520 + $0x88] sm:$0xf]
  %4553 = vrot.lane.b32.xlu0 %v4521, 64
  %v4554 = vpop.permute.xlu0 %4553
  %4555 = vrot.lane.b32.xlu0 %v4522, 64
  %v4556 = vpop.permute.xlu0 %4555
  %4557 = vrot.lane.b32.xlu0 %v4523, 64
  %v4558 = vpop.permute.xlu0 %4557
  %4559 = vrot.lane.b32.xlu0 %v4524, 64
  %v4560 = vpop.permute.xlu0 %4559
  %4561 = vrot.lane.b32.xlu0 %v4525, 64
  %v4562 = vpop.permute.xlu0 %4561
  %4563 = vrot.lane.b32.xlu0 %v4526, 64
  %v4564 = vpop.permute.xlu0 %4563
  %4565 = vrot.lane.b32.xlu0 %v4527, 64
  %v4566 = vpop.permute.xlu0 %4565
  %4567 = vrot.lane.b32.xlu0 %v4528, 64
  %v4568 = vpop.permute.xlu0 %4567
  %4569 = vrot.lane.b32.xlu0 %v4529, 64
  %v4570 = vpop.permute.xlu0 %4569
  %4571 = vrot.lane.b32.xlu0 %v4530, 64
  %v4572 = vpop.permute.xlu0 %4571
  %4573 = vrot.lane.b32.xlu0 %v4531, 64
  %v4574 = vpop.permute.xlu0 %4573
  %4575 = vrot.lane.b32.xlu0 %v4532, 64
  %v4576 = vpop.permute.xlu0 %4575
  %4577 = vrot.lane.b32.xlu0 %v4533, 64
  %v4578 = vpop.permute.xlu0 %4577
  %4579 = vrot.lane.b32.xlu0 %v4534, 64
  %v4580 = vpop.permute.xlu0 %4579
  %4581 = vrot.lane.b32.xlu0 %v4535, 64
  %v4582 = vpop.permute.xlu0 %4581
  %4583 = vrot.lane.b32.xlu0 %v4536, 64
  %v4584 = vpop.permute.xlu0 %4583
  %4601 = vst.msk [vmem:[#allocation3 + $0x4] sm:$0xf] %vm3926, %v4554
  %4602 = vst.msk [vmem:[#allocation3 + $0x10] sm:$0xf] %vm3926, %v4556
  %4603 = vst.msk [vmem:[#allocation3 + $0x1c] sm:$0xf] %vm3926, %v4558
  %4604 = vst.msk [vmem:[#allocation3 + $0x28] sm:$0xf] %vm3926, %v4560
  %4605 = vst.msk [vmem:[#allocation3 + $0x34] sm:$0xf] %vm3926, %v4562
  %4606 = vst.msk [vmem:[#allocation3 + $0x40] sm:$0xf] %vm3926, %v4564
  %4607 = vst.msk [vmem:[#allocation3 + $0x4c] sm:$0xf] %vm3926, %v4566
  %4608 = vst.msk [vmem:[#allocation3 + $0x58] sm:$0xf] %vm3926, %v4568
  %4609 = vst.msk [vmem:[#allocation3 + $0x64] sm:$0xf] %vm3926, %v4570
  %4610 = vst.msk [vmem:[#allocation3 + $0x70] sm:$0xf] %vm3926, %v4572
  %4611 = vst.msk [vmem:[#allocation3 + $0x7c] sm:$0xf] %vm3926, %v4574
  %4612 = vst.msk [vmem:[#allocation3 + $0x88] sm:$0xf] %vm3926, %v4576
  %4613 = vst.msk [vmem:[#allocation3 + $0x94] sm:$0xf] %vm3926, %v4578
  %4614 = vst.msk [vmem:[#allocation3 + $0xa0] sm:$0xf] %vm3926, %v4580
  %4615 = vst.msk [vmem:[#allocation3 + $0xac] sm:$0xf] %vm3926, %v4582
  %4616 = vst.msk [vmem:[#allocation3 + $0xb8] sm:$0xf] %vm3926, %v4584
  %v4617 = vld [vmem:[%s4520] sm:$0xf]
  %v4618 = vld [vmem:[%s4520 + $0x4] sm:$0x1]
  %v4619 = vld [vmem:[%s4520 + $0x8] sm:$0xf]
  %v4620 = vld [vmem:[%s4520 + $0xc] sm:$0x1]
  %v4621 = vld [vmem:[%s4520 + $0x10] sm:$0xf]
  %v4622 = vld [vmem:[%s4520 + $0x14] sm:$0x1]
  %v4623 = vld [vmem:[%s4520 + $0x18] sm:$0xf]
  %v4624 = vld [vmem:[%s4520 + $0x1c] sm:$0x1]
  %v4625 = vld [vmem:[%s4520 + $0x20] sm:$0xf]
  %v4626 = vld [vmem:[%s4520 + $0x24] sm:$0x1]
  %v4627 = vld [vmem:[%s4520 + $0x28] sm:$0xf]
  %v4628 = vld [vmem:[%s4520 + $0x2c] sm:$0x1]
  %v4629 = vld [vmem:[%s4520 + $0x30] sm:$0xf]
  %v4630 = vld [vmem:[%s4520 + $0x34] sm:$0x1]
  %v4631 = vld [vmem:[%s4520 + $0x38] sm:$0xf]
  %v4632 = vld [vmem:[%s4520 + $0x3c] sm:$0x1]
  %v4633 = vld [vmem:[%s4520 + $0x50] sm:$0xf]
  %v4634 = vld [vmem:[%s4520 + $0x54] sm:$0x1]
  %v4635 = vld [vmem:[%s4520 + $0x58] sm:$0xf]
  %v4636 = vld [vmem:[%s4520 + $0x5c] sm:$0x1]
  %v4637 = vld [vmem:[%s4520 + $0x60] sm:$0xf]
  %v4638 = vld [vmem:[%s4520 + $0x64] sm:$0x1]
  %v4639 = vld [vmem:[%s4520 + $0x68] sm:$0xf]
  %v4640 = vld [vmem:[%s4520 + $0x6c] sm:$0x1]
  %v4641 = vld [vmem:[%s4520 + $0x70] sm:$0xf]
  %v4642 = vld [vmem:[%s4520 + $0x74] sm:$0x1]
  %v4643 = vld [vmem:[%s4520 + $0x78] sm:$0xf]
  %v4644 = vld [vmem:[%s4520 + $0x7c] sm:$0x1]
  %v4645 = vld [vmem:[%s4520 + $0x80] sm:$0xf]
  %v4646 = vld [vmem:[%s4520 + $0x84] sm:$0x1]
  %v4647 = vld [vmem:[%s4520 + $0x88] sm:$0xf]
  %v4648 = vld [vmem:[%s4520 + $0x8c] sm:$0x1]
  %v4650 = vshrl.u32 %v4617, 16
  %v4652 = vrot.slane %v4650, 4
  %v4653 = vshll.u32 %v4617, 16
  %v4655 = vrot.slane %v4653, 5
  %v4656 = vor.u32 %v4652, %v4655
  %v4657 = vrot.slane %v4656, 4
  %v4659 = vshll.u32 %v4618, 16
  %v4661 = vrot.slane %v4659, 5
  %v4662 = vsel %vm3457, %v4657, %v4661
  %v4664 = vshrl.u32 %v4619, 16
  %v4666 = vrot.slane %v4664, 4
  %v4667 = vshll.u32 %v4619, 16
  %v4669 = vrot.slane %v4667, 5
  %v4670 = vor.u32 %v4666, %v4669
  %v4671 = vrot.slane %v4670, 4
  %v4673 = vshll.u32 %v4620, 16
  %v4675 = vrot.slane %v4673, 5
  %v4676 = vsel %vm3457, %v4671, %v4675
  %v4678 = vshrl.u32 %v4621, 16
  %v4680 = vrot.slane %v4678, 4
  %v4681 = vshll.u32 %v4621, 16
  %v4683 = vrot.slane %v4681, 5
  %v4684 = vor.u32 %v4680, %v4683
  %v4685 = vrot.slane %v4684, 4
  %v4687 = vshll.u32 %v4622, 16
  %v4689 = vrot.slane %v4687, 5
  %v4690 = vsel %vm3457, %v4685, %v4689
  %v4692 = vshrl.u32 %v4623, 16
  %v4694 = vrot.slane %v4692, 4
  %v4695 = vshll.u32 %v4623, 16
  %v4697 = vrot.slane %v4695, 5
  %v4698 = vor.u32 %v4694, %v4697
  %v4699 = vrot.slane %v4698, 4
  %v4701 = vshll.u32 %v4624, 16
  %v4703 = vrot.slane %v4701, 5
  %v4704 = vsel %vm3457, %v4699, %v4703
  %v4706 = vshrl.u32 %v4625, 16
  %v4708 = vrot.slane %v4706, 4
  %v4709 = vshll.u32 %v4625, 16
  %v4711 = vrot.slane %v4709, 5
  %v4712 = vor.u32 %v4708, %v4711
  %v4713 = vrot.slane %v4712, 4
  %v4715 = vshll.u32 %v4626, 16
  %v4717 = vrot.slane %v4715, 5
  %v4718 = vsel %vm3457, %v4713, %v4717
  %v4720 = vshrl.u32 %v4627, 16
  %v4722 = vrot.slane %v4720, 4
  %v4723 = vshll.u32 %v4627, 16
  %v4725 = vrot.slane %v4723, 5
  %v4726 = vor.u32 %v4722, %v4725
  %v4727 = vrot.slane %v4726, 4
  %v4729 = vshll.u32 %v4628, 16
  %v4731 = vrot.slane %v4729, 5
  %v4732 = vsel %vm3457, %v4727, %v4731
  %v4734 = vshrl.u32 %v4629, 16
  %v4736 = vrot.slane %v4734, 4
  %v4737 = vshll.u32 %v4629, 16
  %v4739 = vrot.slane %v4737, 5
  %v4740 = vor.u32 %v4736, %v4739
  %v4741 = vrot.slane %v4740, 4
  %v4743 = vshll.u32 %v4630, 16
  %v4745 = vrot.slane %v4743, 5
  %v4746 = vsel %vm3457, %v4741, %v4745
  %v4748 = vshrl.u32 %v4631, 16
  %v4750 = vrot.slane %v4748, 4
  %v4751 = vshll.u32 %v4631, 16
  %v4753 = vrot.slane %v4751, 5
  %v4754 = vor.u32 %v4750, %v4753
  %v4755 = vrot.slane %v4754, 4
  %v4757 = vshll.u32 %v4632, 16
  %v4759 = vrot.slane %v4757, 5
  %v4760 = vsel %vm3457, %v4755, %v4759
  %v4762 = vshrl.u32 %v4633, 16
  %v4764 = vrot.slane %v4762, 4
  %v4765 = vshll.u32 %v4633, 16
  %v4767 = vrot.slane %v4765, 5
  %v4768 = vor.u32 %v4764, %v4767
  %v4769 = vrot.slane %v4768, 4
  %v4771 = vshll.u32 %v4634, 16
  %v4773 = vrot.slane %v4771, 5
  %v4774 = vsel %vm3457, %v4769, %v4773
  %v4776 = vshrl.u32 %v4635, 16
  %v4778 = vrot.slane %v4776, 4
  %v4779 = vshll.u32 %v4635, 16
  %v4781 = vrot.slane %v4779, 5
  %v4782 = vor.u32 %v4778, %v4781
  %v4783 = vrot.slane %v4782, 4
  %v4785 = vshll.u32 %v4636, 16
  %v4787 = vrot.slane %v4785, 5
  %v4788 = vsel %vm3457, %v4783, %v4787
  %v4790 = vshrl.u32 %v4637, 16
  %v4792 = vrot.slane %v4790, 4
  %v4793 = vshll.u32 %v4637, 16
  %v4795 = vrot.slane %v4793, 5
  %v4796 = vor.u32 %v4792, %v4795
  %v4797 = vrot.slane %v4796, 4
  %v4799 = vshll.u32 %v4638, 16
  %v4801 = vrot.slane %v4799, 5
  %v4802 = vsel %vm3457, %v4797, %v4801
  %v4804 = vshrl.u32 %v4639, 16
  %v4806 = vrot.slane %v4804, 4
  %v4807 = vshll.u32 %v4639, 16
  %v4809 = vrot.slane %v4807, 5
  %v4810 = vor.u32 %v4806, %v4809
  %v4811 = vrot.slane %v4810, 4
  %v4813 = vshll.u32 %v4640, 16
  %v4815 = vrot.slane %v4813, 5
  %v4816 = vsel %vm3457, %v4811, %v4815
  %v4818 = vshrl.u32 %v4641, 16
  %v4820 = vrot.slane %v4818, 4
  %v4821 = vshll.u32 %v4641, 16
  %v4823 = vrot.slane %v4821, 5
  %v4824 = vor.u32 %v4820, %v4823
  %v4825 = vrot.slane %v4824, 4
  %v4827 = vshll.u32 %v4642, 16
  %v4829 = vrot.slane %v4827, 5
  %v4830 = vsel %vm3457, %v4825, %v4829
  %v4832 = vshrl.u32 %v4643, 16
  %v4834 = vrot.slane %v4832, 4
  %v4835 = vshll.u32 %v4643, 16
  %v4837 = vrot.slane %v4835, 5
  %v4838 = vor.u32 %v4834, %v4837
  %v4839 = vrot.slane %v4838, 4
  %v4841 = vshll.u32 %v4644, 16
  %v4843 = vrot.slane %v4841, 5
  %v4844 = vsel %vm3457, %v4839, %v4843
  %v4846 = vshrl.u32 %v4645, 16
  %v4848 = vrot.slane %v4846, 4
  %v4849 = vshll.u32 %v4645, 16
  %v4851 = vrot.slane %v4849, 5
  %v4852 = vor.u32 %v4848, %v4851
  %v4853 = vrot.slane %v4852, 4
  %v4855 = vshll.u32 %v4646, 16
  %v4857 = vrot.slane %v4855, 5
  %v4858 = vsel %vm3457, %v4853, %v4857
  %v4860 = vshrl.u32 %v4647, 16
  %v4862 = vrot.slane %v4860, 4
  %v4863 = vshll.u32 %v4647, 16
  %v4865 = vrot.slane %v4863, 5
  %v4866 = vor.u32 %v4862, %v4865
  %v4867 = vrot.slane %v4866, 4
  %v4869 = vshll.u32 %v4648, 16
  %v4871 = vrot.slane %v4869, 5
  %v4872 = vsel %vm3457, %v4867, %v4871
  %4873 = vrot.lane.b32.xlu0 %v4662, 96
  %v4874 = vpop.permute.xlu0 %4873
  %4875 = vrot.lane.b32.xlu0 %v4676, 96
  %v4876 = vpop.permute.xlu0 %4875
  %4877 = vrot.lane.b32.xlu0 %v4690, 96
  %v4878 = vpop.permute.xlu0 %4877
  %4879 = vrot.lane.b32.xlu0 %v4704, 96
  %v4880 = vpop.permute.xlu0 %4879
  %4881 = vrot.lane.b32.xlu0 %v4718, 96
  %v4882 = vpop.permute.xlu0 %4881
  %4883 = vrot.lane.b32.xlu0 %v4732, 96
  %v4884 = vpop.permute.xlu0 %4883
  %4885 = vrot.lane.b32.xlu0 %v4746, 96
  %v4886 = vpop.permute.xlu0 %4885
  %4887 = vrot.lane.b32.xlu0 %v4760, 96
  %v4888 = vpop.permute.xlu0 %4887
  %4889 = vrot.lane.b32.xlu0 %v4774, 96
  %v4890 = vpop.permute.xlu0 %4889
  %4891 = vrot.lane.b32.xlu0 %v4788, 96
  %v4892 = vpop.permute.xlu0 %4891
  %4893 = vrot.lane.b32.xlu0 %v4802, 96
  %v4894 = vpop.permute.xlu0 %4893
  %4895 = vrot.lane.b32.xlu0 %v4816, 96
  %v4896 = vpop.permute.xlu0 %4895
  %4897 = vrot.lane.b32.xlu0 %v4830, 96
  %v4898 = vpop.permute.xlu0 %4897
  %4899 = vrot.lane.b32.xlu0 %v4844, 96
  %v4900 = vpop.permute.xlu0 %4899
  %4901 = vrot.lane.b32.xlu0 %v4858, 96
  %v4902 = vpop.permute.xlu0 %4901
  %4903 = vrot.lane.b32.xlu0 %v4872, 96
  %v4904 = vpop.permute.xlu0 %4903
  %4921 = vst.msk [vmem:[#allocation3 + $0x4] sm:$0xf] %vm4023, %v4874
  %4922 = vst.msk [vmem:[#allocation3 + $0x10] sm:$0xf] %vm4023, %v4876
  %4923 = vst.msk [vmem:[#allocation3 + $0x1c] sm:$0xf] %vm4023, %v4878
  %4924 = vst.msk [vmem:[#allocation3 + $0x28] sm:$0xf] %vm4023, %v4880
  %4925 = vst.msk [vmem:[#allocation3 + $0x34] sm:$0xf] %vm4023, %v4882
  %4926 = vst.msk [vmem:[#allocation3 + $0x40] sm:$0xf] %vm4023, %v4884
  %4927 = vst.msk [vmem:[#allocation3 + $0x4c] sm:$0xf] %vm4023, %v4886
  %4928 = vst.msk [vmem:[#allocation3 + $0x58] sm:$0xf] %vm4023, %v4888
  %4929 = vst.msk [vmem:[#allocation3 + $0x64] sm:$0xf] %vm4023, %v4890
  %4930 = vst.msk [vmem:[#allocation3 + $0x70] sm:$0xf] %vm4023, %v4892
  %4931 = vst.msk [vmem:[#allocation3 + $0x7c] sm:$0xf] %vm4023, %v4894
  %4932 = vst.msk [vmem:[#allocation3 + $0x88] sm:$0xf] %vm4023, %v4896
  %4933 = vst.msk [vmem:[#allocation3 + $0x94] sm:$0xf] %vm4023, %v4898
  %4934 = vst.msk [vmem:[#allocation3 + $0xa0] sm:$0xf] %vm4023, %v4900
  %4935 = vst.msk [vmem:[#allocation3 + $0xac] sm:$0xf] %vm4023, %v4902
  %4936 = vst.msk [vmem:[#allocation3 + $0xb8] sm:$0xf] %vm4023, %v4904
  %v4937 = vld [vmem:[%s4520] sm:$0xe]
  %v4938 = vld [vmem:[%s4520 + $0x4] sm:$0x1]
  %v4939 = vld [vmem:[%s4520 + $0x8] sm:$0xe]
  %v4940 = vld [vmem:[%s4520 + $0xc] sm:$0x1]
  %v4941 = vld [vmem:[%s4520 + $0x10] sm:$0xe]
  %v4942 = vld [vmem:[%s4520 + $0x14] sm:$0x1]
  %v4943 = vld [vmem:[%s4520 + $0x18] sm:$0xe]
  %v4944 = vld [vmem:[%s4520 + $0x1c] sm:$0x1]
  %v4945 = vld [vmem:[%s4520 + $0x20] sm:$0xe]
  %v4946 = vld [vmem:[%s4520 + $0x24] sm:$0x1]
  %v4947 = vld [vmem:[%s4520 + $0x28] sm:$0xe]
  %v4948 = vld [vmem:[%s4520 + $0x2c] sm:$0x1]
  %v4949 = vld [vmem:[%s4520 + $0x30] sm:$0xe]
  %v4950 = vld [vmem:[%s4520 + $0x34] sm:$0x1]
  %v4951 = vld [vmem:[%s4520 + $0x38] sm:$0xe]
  %v4952 = vld [vmem:[%s4520 + $0x3c] sm:$0x1]
  %v4953 = vld [vmem:[%s4520 + $0x50] sm:$0xe]
  %v4954 = vld [vmem:[%s4520 + $0x54] sm:$0x1]
  %v4955 = vld [vmem:[%s4520 + $0x58] sm:$0xe]
  %v4956 = vld [vmem:[%s4520 + $0x5c] sm:$0x1]
  %v4957 = vld [vmem:[%s4520 + $0x60] sm:$0xe]
  %v4958 = vld [vmem:[%s4520 + $0x64] sm:$0x1]
  %v4959 = vld [vmem:[%s4520 + $0x68] sm:$0xe]
  %v4960 = vld [vmem:[%s4520 + $0x6c] sm:$0x1]
  %v4961 = vld [vmem:[%s4520 + $0x70] sm:$0xe]
  %v4962 = vld [vmem:[%s4520 + $0x74] sm:$0x1]
  %v4963 = vld [vmem:[%s4520 + $0x78] sm:$0xe]
  %v4964 = vld [vmem:[%s4520 + $0x7c] sm:$0x1]
  %v4965 = vld [vmem:[%s4520 + $0x80] sm:$0xe]
  %v4966 = vld [vmem:[%s4520 + $0x84] sm:$0x1]
  %v4967 = vld [vmem:[%s4520 + $0x88] sm:$0xe]
  %v4968 = vld [vmem:[%s4520 + $0x8c] sm:$0x1]
  %v5001 = vrot.slane %v4937, 5
  %v5002 = vrot.slane %v5001, 4
  %v5003 = vrot.slane %v4938, 5
  %v5004 = vsel %vm3813, %v5002, %v5003
  %v5005 = vrot.slane %v4939, 5
  %v5006 = vrot.slane %v5005, 4
  %v5007 = vrot.slane %v4940, 5
  %v5008 = vsel %vm3813, %v5006, %v5007
  %v5009 = vrot.slane %v4941, 5
  %v5010 = vrot.slane %v5009, 4
  %v5011 = vrot.slane %v4942, 5
  %v5012 = vsel %vm3813, %v5010, %v5011
  %v5013 = vrot.slane %v4943, 5
  %v5014 = vrot.slane %v5013, 4
  %v5015 = vrot.slane %v4944, 5
  %v5016 = vsel %vm3813, %v5014, %v5015
  %v5017 = vrot.slane %v4945, 5
  %v5018 = vrot.slane %v5017, 4
  %v5019 = vrot.slane %v4946, 5
  %v5020 = vsel %vm3813, %v5018, %v5019
  %v5021 = vrot.slane %v4947, 5
  %v5022 = vrot.slane %v5021, 4
  %v5023 = vrot.slane %v4948, 5
  %v5024 = vsel %vm3813, %v5022, %v5023
  %v5025 = vrot.slane %v4949, 5
  %v5026 = vrot.slane %v5025, 4
  %v5027 = vrot.slane %v4950, 5
  %v5028 = vsel %vm3813, %v5026, %v5027
  %v5029 = vrot.slane %v4951, 5
  %v5030 = vrot.slane %v5029, 4
  %v5031 = vrot.slane %v4952, 5
  %v5032 = vsel %vm3813, %v5030, %v5031
  %v5033 = vrot.slane %v4953, 5
  %v5034 = vrot.slane %v5033, 4
  %v5035 = vrot.slane %v4954, 5
  %v5036 = vsel %vm3813, %v5034, %v5035
  %v5037 = vrot.slane %v4955, 5
  %v5038 = vrot.slane %v5037, 4
  %v5039 = vrot.slane %v4956, 5
  %v5040 = vsel %vm3813, %v5038, %v5039
  %v5041 = vrot.slane %v4957, 5
  %v5042 = vrot.slane %v5041, 4
  %v5043 = vrot.slane %v4958, 5
  %v5044 = vsel %vm3813, %v5042, %v5043
  %v5045 = vrot.slane %v4959, 5
  %v5046 = vrot.slane %v5045, 4
  %v5047 = vrot.slane %v4960, 5
  %v5048 = vsel %vm3813, %v5046, %v5047
  %v5049 = vrot.slane %v4961, 5
  %v5050 = vrot.slane %v5049, 4
  %v5051 = vrot.slane %v4962, 5
  %v5052 = vsel %vm3813, %v5050, %v5051
  %v5053 = vrot.slane %v4963, 5
  %v5054 = vrot.slane %v5053, 4
  %v5055 = vrot.slane %v4964, 5
  %v5056 = vsel %vm3813, %v5054, %v5055
  %v5057 = vrot.slane %v4965, 5
  %v5058 = vrot.slane %v5057, 4
  %v5059 = vrot.slane %v4966, 5
  %v5060 = vsel %vm3813, %v5058, %v5059
  %v5061 = vrot.slane %v4967, 5
  %v5062 = vrot.slane %v5061, 4
  %v5063 = vrot.slane %v4968, 5
  %v5064 = vsel %vm3813, %v5062, %v5063
  %5081 = vst.msk [vmem:[#allocation3 + $0x8] sm:$0xf] %vm2440, %v5004
  %5082 = vst.msk [vmem:[#allocation3 + $0x14] sm:$0xf] %vm2440, %v5008
  %5083 = vst.msk [vmem:[#allocation3 + $0x20] sm:$0xf] %vm2440, %v5012
  %5084 = vst.msk [vmem:[#allocation3 + $0x2c] sm:$0xf] %vm2440, %v5016
  %5085 = vst.msk [vmem:[#allocation3 + $0x38] sm:$0xf] %vm2440, %v5020
  %5086 = vst.msk [vmem:[#allocation3 + $0x44] sm:$0xf] %vm2440, %v5024
  %5087 = vst.msk [vmem:[#allocation3 + $0x50] sm:$0xf] %vm2440, %v5028
  %5088 = vst.msk [vmem:[#allocation3 + $0x5c] sm:$0xf] %vm2440, %v5032
  %5089 = vst.msk [vmem:[#allocation3 + $0x68] sm:$0xf] %vm2440, %v5036
  %5090 = vst.msk [vmem:[#allocation3 + $0x74] sm:$0xf] %vm2440, %v5040
  %5091 = vst.msk [vmem:[#allocation3 + $0x80] sm:$0xf] %vm2440, %v5044
  %5092 = vst.msk [vmem:[#allocation3 + $0x8c] sm:$0xf] %vm2440, %v5048
  %5093 = vst.msk [vmem:[#allocation3 + $0x98] sm:$0xf] %vm2440, %v5052
  %5094 = vst.msk [vmem:[#allocation3 + $0xa4] sm:$0xf] %vm2440, %v5056
  %5095 = vst.msk [vmem:[#allocation3 + $0xb0] sm:$0xf] %vm2440, %v5060
  %5096 = vst.msk [vmem:[#allocation3 + $0xbc] sm:$0xf] %vm2440, %v5064
  %v5097 = vld [vmem:[#allocation3] sm:$0xff]
  %v5098 = vld [vmem:[#allocation3 + $0x8] sm:$0xf]
  %v5099 = vld [vmem:[#allocation3 + $0xc] sm:$0xff]
  %v5100 = vld [vmem:[#allocation3 + $0x14] sm:$0xf]
  %v5101 = vld [vmem:[#allocation3 + $0x18] sm:$0xff]
  %v5102 = vld [vmem:[#allocation3 + $0x20] sm:$0xf]
  %v5103 = vld [vmem:[#allocation3 + $0x24] sm:$0xff]
  %v5104 = vld [vmem:[#allocation3 + $0x2c] sm:$0xf]
  %v5105 = vld [vmem:[#allocation3 + $0x30] sm:$0xff]
  %v5106 = vld [vmem:[#allocation3 + $0x38] sm:$0xf]
  %v5107 = vld [vmem:[#allocation3 + $0x3c] sm:$0xff]
  %v5108 = vld [vmem:[#allocation3 + $0x44] sm:$0xf]
  %v5109 = vld [vmem:[#allocation3 + $0x48] sm:$0xff]
  %v5110 = vld [vmem:[#allocation3 + $0x50] sm:$0xf]
  %v5111 = vld [vmem:[#allocation3 + $0x54] sm:$0xff]
  %v5112 = vld [vmem:[#allocation3 + $0x5c] sm:$0xf]
  %v5113 = vld [vmem:[#allocation3 + $0x60] sm:$0xff]
  %v5114 = vld [vmem:[#allocation3 + $0x68] sm:$0xf]
  %v5115 = vld [vmem:[#allocation3 + $0x6c] sm:$0xff]
  %v5116 = vld [vmem:[#allocation3 + $0x74] sm:$0xf]
  %v5117 = vld [vmem:[#allocation3 + $0x78] sm:$0xff]
  %v5118 = vld [vmem:[#allocation3 + $0x80] sm:$0xf]
  %v5119 = vld [vmem:[#allocation3 + $0x84] sm:$0xff]
  %v5120 = vld [vmem:[#allocation3 + $0x8c] sm:$0xf]
  %v5121 = vld [vmem:[#allocation3 + $0x90] sm:$0xff]
  %v5122 = vld [vmem:[#allocation3 + $0x98] sm:$0xf]
  %v5123 = vld [vmem:[#allocation3 + $0x9c] sm:$0xff]
  %v5124 = vld [vmem:[#allocation3 + $0xa4] sm:$0xf]
  %v5125 = vld [vmem:[#allocation3 + $0xa8] sm:$0xff]
  %v5126 = vld [vmem:[#allocation3 + $0xb0] sm:$0xf]
  %v5127 = vld [vmem:[#allocation3 + $0xb4] sm:$0xff]
  %v5128 = vld [vmem:[#allocation3 + $0xbc] sm:$0xf]
  %v5129 = vld [vmem:[%s3] sm:$0xf]
  %v5130 = vld [vmem:[%s3 + $0x4] sm:$0xf]
  %v5131 = vld [vmem:[%s3 + $0x8] sm:$0xf]
  %v5132 = vld [vmem:[%s3 + $0xc] sm:$0xf]
  %v5133 = vld [vmem:[%s3 + $0x10] sm:$0xf]
  %v5134 = vld [vmem:[%s3 + $0x14] sm:$0xf]
  %v5135 = vld [vmem:[%s3 + $0x18] sm:$0xf]
  %v5136 = vld [vmem:[%s3 + $0x1c] sm:$0xf]
  %v5137 = vld [vmem:[%s3 + $0x20] sm:$0xf]
  %v5138 = vld [vmem:[%s3 + $0x24] sm:$0xf]
  %v5139 = vld [vmem:[%s3 + $0x28] sm:$0xf]
  %v5140 = vld [vmem:[%s3 + $0x2c] sm:$0xf]
  %v5141 = vld [vmem:[%s3 + $0x30] sm:$0xf]
  %v5142 = vld [vmem:[%s3 + $0x34] sm:$0xf]
  %v5143 = vld [vmem:[%s3 + $0x38] sm:$0xf]
  %v5144 = vld [vmem:[%s3 + $0x3c] sm:$0xf]
  %v5145 = vld [vmem:[%s3 + $0x40] sm:$0xf]
  %v5146 = vld [vmem:[%s3 + $0x44] sm:$0xf]
  %v5147 = vld [vmem:[%s3 + $0x48] sm:$0xf]
  %v5148 = vld [vmem:[%s3 + $0x4c] sm:$0xf]
  %v5149 = vld [vmem:[%s3 + $0x50] sm:$0xf]
  %v5150 = vld [vmem:[%s3 + $0x54] sm:$0xf]
  %v5151 = vld [vmem:[%s3 + $0x58] sm:$0xf]
  %v5152 = vld [vmem:[%s3 + $0x5c] sm:$0xf]
  %v5153 = vld [vmem:[%s3 + $0x60] sm:$0xf]
  %v5154 = vld [vmem:[%s3 + $0x64] sm:$0xf]
  %v5155 = vld [vmem:[%s3 + $0x68] sm:$0xf]
  %v5156 = vld [vmem:[%s3 + $0x6c] sm:$0xf]
  %v5157 = vld [vmem:[%s3 + $0x70] sm:$0xf]
  %v5158 = vld [vmem:[%s3 + $0x74] sm:$0xf]
  %v5159 = vld [vmem:[%s3 + $0x78] sm:$0xf]
  %v5160 = vld [vmem:[%s3 + $0x7c] sm:$0xf]
  %v5161 = vld [vmem:[%s3 + $0x80] sm:$0xf]
  %v5162 = vld [vmem:[%s3 + $0x84] sm:$0xf]
  %v5163 = vld [vmem:[%s3 + $0x88] sm:$0xf]
  %v5164 = vld [vmem:[%s3 + $0x8c] sm:$0xf]
  %v5165 = vld [vmem:[%s4] sm:$0x1]
  %v5167 = vlaneseq
  %v5168 = vshrl.u32 %v5167, 7
  %v5169 = vsub.s32 0, %v5168
  %v5170 = vrot.slane %v5165, %v5169
  %v5204 = vunpack.c.l.b16 %v5097
  %v5205 = vunpack.c.h.b16 %v5097
  %v5206 = vunpack.c.l.b16 %v5098
  %v5207 = vunpack.c.l.b16 %v5099
  %v5208 = vunpack.c.h.b16 %v5099
  %v5209 = vunpack.c.l.b16 %v5100
  %v5210 = vunpack.c.l.b16 %v5101
  %v5211 = vunpack.c.h.b16 %v5101
  %v5212 = vunpack.c.l.b16 %v5102
  %v5213 = vunpack.c.l.b16 %v5103
  %v5214 = vunpack.c.h.b16 %v5103
  %v5215 = vunpack.c.l.b16 %v5104
  %v5216 = vunpack.c.l.b16 %v5105
  %v5217 = vunpack.c.h.b16 %v5105
  %v5218 = vunpack.c.l.b16 %v5106
  %v5219 = vunpack.c.l.b16 %v5107
  %v5220 = vunpack.c.h.b16 %v5107
  %v5221 = vunpack.c.l.b16 %v5108
  %v5222 = vunpack.c.l.b16 %v5109
  %v5223 = vunpack.c.h.b16 %v5109
  %v5224 = vunpack.c.l.b16 %v5110
  %v5225 = vunpack.c.l.b16 %v5111
  %v5226 = vunpack.c.h.b16 %v5111
  %v5227 = vunpack.c.l.b16 %v5112
  %v5228 = vunpack.c.l.b16 %v5113
  %v5229 = vunpack.c.h.b16 %v5113
  %v5230 = vunpack.c.l.b16 %v5114
  %v5231 = vunpack.c.l.b16 %v5115
  %v5232 = vunpack.c.h.b16 %v5115
  %v5233 = vunpack.c.l.b16 %v5116
  %v5234 = vunpack.c.l.b16 %v5117
  %v5235 = vunpack.c.h.b16 %v5117
  %v5236 = vunpack.c.l.b16 %v5118
  %v5237 = vunpack.c.l.b16 %v5119
  %v5238 = vunpack.c.h.b16 %v5119
  %v5239 = vunpack.c.l.b16 %v5120
  %v5240 = vunpack.c.l.b16 %v5121
  %v5241 = vunpack.c.h.b16 %v5121
  %v5242 = vunpack.c.l.b16 %v5122
  %v5243 = vunpack.c.l.b16 %v5123
  %v5244 = vunpack.c.h.b16 %v5123
  %v5245 = vunpack.c.l.b16 %v5124
  %v5246 = vunpack.c.l.b16 %v5125
  %v5247 = vunpack.c.h.b16 %v5125
  %v5248 = vunpack.c.l.b16 %v5126
  %v5249 = vunpack.c.l.b16 %v5127
  %v5250 = vunpack.c.h.b16 %v5127
  %v5251 = vunpack.c.l.b16 %v5128
  %v5252 = vpack.c.b16 %v5207, %v5204
  %v5253 = vpack.c.b16 %v5208, %v5205
  %v5254 = vpack.c.b16 %v5209, %v5206
  %v5255 = vpack.c.b16 %v5213, %v5210
  %v5256 = vpack.c.b16 %v5214, %v5211
  %v5257 = vpack.c.b16 %v5215, %v5212
  %v5258 = vpack.c.b16 %v5219, %v5216
  %v5259 = vpack.c.b16 %v5220, %v5217
  %v5260 = vpack.c.b16 %v5221, %v5218
  %v5261 = vpack.c.b16 %v5225, %v5222
  %v5262 = vpack.c.b16 %v5226, %v5223
  %v5263 = vpack.c.b16 %v5227, %v5224
  %v5264 = vpack.c.b16 %v5231, %v5228
  %v5265 = vpack.c.b16 %v5232, %v5229
  %v5266 = vpack.c.b16 %v5233, %v5230
  %v5267 = vpack.c.b16 %v5237, %v5234
  %v5268 = vpack.c.b16 %v5238, %v5235
  %v5269 = vpack.c.b16 %v5239, %v5236
  %v5270 = vpack.c.b16 %v5243, %v5240
  %v5271 = vpack.c.b16 %v5244, %v5241
  %v5272 = vpack.c.b16 %v5245, %v5242
  %v5273 = vpack.c.b16 %v5249, %v5246
  %v5274 = vpack.c.b16 %v5250, %v5247
  %v5275 = vpack.c.b16 %v5251, %v5248
  %v5328 = vunpack.c.l.b16 %v5129
  %v5329 = vunpack.c.l.b16 %v5130
  %v5330 = vunpack.c.l.b16 %v5131
  %v5331 = vunpack.c.l.b16 %v5132
  %v5332 = vunpack.c.l.b16 %v5133
  %v5333 = vunpack.c.l.b16 %v5134
  %v5334 = vunpack.c.l.b16 %v5135
  %v5335 = vunpack.c.l.b16 %v5136
  %v5336 = vunpack.c.l.b16 %v5137
  %v5337 = vunpack.c.l.b16 %v5138
  %v5338 = vunpack.c.l.b16 %v5139
  %v5339 = vunpack.c.l.b16 %v5140
  %v5340 = vunpack.c.l.b16 %v5141
  %v5341 = vunpack.c.l.b16 %v5142
  %v5342 = vunpack.c.l.b16 %v5143
  %v5343 = vunpack.c.l.b16 %v5144
  %v5344 = vunpack.c.l.b16 %v5145
  %v5345 = vunpack.c.l.b16 %v5146
  %v5346 = vunpack.c.l.b16 %v5147
  %v5347 = vunpack.c.l.b16 %v5148
  %v5348 = vunpack.c.l.b16 %v5149
  %v5349 = vunpack.c.l.b16 %v5150
  %v5350 = vunpack.c.l.b16 %v5151
  %v5351 = vunpack.c.l.b16 %v5152
  %v5352 = vunpack.c.l.b16 %v5153
  %v5353 = vunpack.c.l.b16 %v5154
  %v5354 = vunpack.c.l.b16 %v5155
  %v5355 = vunpack.c.l.b16 %v5156
  %v5356 = vunpack.c.l.b16 %v5157
  %v5357 = vunpack.c.l.b16 %v5158
  %v5358 = vunpack.c.l.b16 %v5159
  %v5359 = vunpack.c.l.b16 %v5160
  %v5360 = vunpack.c.l.b16 %v5161
  %v5361 = vunpack.c.l.b16 %v5162
  %v5362 = vunpack.c.l.b16 %v5163
  %v5363 = vunpack.c.l.b16 %v5164
  %v5364 = vpack.c.b16 %v5329, %v5328
  %v5365 = vpack.c.b16 %v5331, %v5330
  %v5366 = vpack.c.b16 %v5333, %v5332
  %v5367 = vpack.c.b16 %v5335, %v5334
  %v5368 = vpack.c.b16 %v5337, %v5336
  %v5369 = vpack.c.b16 %v5339, %v5338
  %v5370 = vpack.c.b16 %v5341, %v5340
  %v5371 = vpack.c.b16 %v5343, %v5342
  %v5372 = vpack.c.b16 %v5345, %v5344
  %v5373 = vpack.c.b16 %v5347, %v5346
  %v5374 = vpack.c.b16 %v5349, %v5348
  %v5375 = vpack.c.b16 %v5351, %v5350
  %v5376 = vpack.c.b16 %v5353, %v5352
  %v5377 = vpack.c.b16 %v5355, %v5354
  %v5378 = vpack.c.b16 %v5357, %v5356
  %v5379 = vpack.c.b16 %v5359, %v5358
  %v5380 = vpack.c.b16 %v5361, %v5360
  %v5381 = vpack.c.b16 %v5363, %v5362
  %v5401 = vsel %vm742, %v5254, 0
  %v5404 = vsel %vm742, %v5257, 0
  %v5407 = vsel %vm742, %v5260, 0
  %v5410 = vsel %vm742, %v5263, 0
  %v5413 = vsel %vm742, %v5266, 0
  %v5416 = vsel %vm742, %v5269, 0
  %v5419 = vsel %vm742, %v5272, 0
  %v5422 = vsel %vm742, %v5275, 0
  %5424 = vmatprep.subr.bf16.mxu0 0
  %5425 = vmatpush1.bf16.msra.mxu0 %v5371
  %5426 = vmatprep.subr.bf16.mxu0 0
  %5427 = vmatpush1.bf16.msra.mxu0 %v5370
  %5428 = vmatprep.subr.bf16.mxu0 0
  %5429 = vmatpush1.bf16.msra.mxu0 %v5369
  %5430 = vmatprep.subr.bf16.mxu0 0
  %5431 = vmatpush1.bf16.msra.mxu0 %v5368
  %5432 = vmatprep.subr.bf16.mxu0 0
  %5433 = vmatpush1.bf16.msra.mxu0 %v5367
  %5434 = vmatprep.subr.bf16.mxu0 0
  %5435 = vmatpush1.bf16.msra.mxu0 %v5366
  %5436 = vmatprep.subr.bf16.mxu0 0
  %5437 = vmatpush1.bf16.msra.mxu0 %v5365
  %5438 = vmatprep.subr.bf16.mxu0 0
  %5439 = vmatpush1.bf16.msra.mxu0 %v5364
  %5440 = vmatprep.subr.bf16.mxu0 0
  %5441 = vmatpush2.bf16.msra.mxu0 %v5379
  %5442 = vmatprep.subr.bf16.mxu0 0
  %5443 = vmatpush2.bf16.msra.mxu0 %v5378
  %5444 = vmatprep.subr.bf16.mxu0 0
  %5445 = vmatpush2.bf16.msra.mxu0 %v5377
  %5446 = vmatprep.subr.bf16.mxu0 0
  %5447 = vmatpush2.bf16.msra.mxu0 %v5376
  %5448 = vmatprep.subr.bf16.mxu0 0
  %5449 = vmatpush2.bf16.msra.mxu0 %v5375
  %5450 = vmatprep.subr.bf16.mxu0 0
  %5451 = vmatpush2.bf16.msra.mxu0 %v5374
  %5452 = vmatprep.subr.bf16.mxu0 0
  %5453 = vmatpush2.bf16.msra.mxu0 %v5373
  %5454 = vmatprep.subr.bf16.mxu0 0
  %5455 = vmatpush2.bf16.msra.mxu0 %v5372
  %5456 = vmatprep.mubr.bf16.mxu0 %v5253
  %5457 = vmatmul.mubr.bf16.gmra.mxu0 %v5252
  %v5458 = vpop.f32.mrf.mxu0
  %v5459 = vadd.f32 %v5170, %v5458
  %v5460 = vpop.f32.mrf.mxu0
  %v5461 = vpop.f32.mrf.mxu0
  %v5462 = vadd.f32 %v5170, %v5461
  %v5463 = vpop.f32.mrf.mxu0
  %5464 = vmatprep.mubr.bf16.mxu0 %v5256
  %5465 = vmatmul.mubr.bf16.gmra.mxu0 %v5255
  %v5466 = vpop.f32.mrf.mxu0
  %v5467 = vadd.f32 %v5170, %v5466
  %v5468 = vpop.f32.mrf.mxu0
  %v5469 = vpop.f32.mrf.mxu0
  %v5470 = vadd.f32 %v5170, %v5469
  %v5471 = vpop.f32.mrf.mxu0
  %5472 = vmatprep.mubr.bf16.mxu0 %v5259
  %5473 = vmatmul.mubr.bf16.gmra.mxu0 %v5258
  %v5474 = vpop.f32.mrf.mxu0
  %v5475 = vadd.f32 %v5170, %v5474
  %v5476 = vpop.f32.mrf.mxu0
  %v5477 = vpop.f32.mrf.mxu0
  %v5478 = vadd.f32 %v5170, %v5477
  %v5479 = vpop.f32.mrf.mxu0
  %5480 = vmatprep.mubr.bf16.mxu0 %v5262
  %5481 = vmatmul.mubr.bf16.gmra.mxu0 %v5261
  %v5482 = vpop.f32.mrf.mxu0
  %v5483 = vadd.f32 %v5170, %v5482
  %v5484 = vpop.f32.mrf.mxu0
  %v5485 = vpop.f32.mrf.mxu0
  %v5486 = vadd.f32 %v5170, %v5485
  %v5487 = vpop.f32.mrf.mxu0
  %5488 = vmatprep.mubr.bf16.mxu0 %v5265
  %5489 = vmatmul.mubr.bf16.gmra.mxu0 %v5264
  %v5490 = vpop.f32.mrf.mxu0
  %v5491 = vadd.f32 %v5170, %v5490
  %v5492 = vpop.f32.mrf.mxu0
  %v5493 = vpop.f32.mrf.mxu0
  %v5494 = vadd.f32 %v5170, %v5493
  %v5495 = vpop.f32.mrf.mxu0
  %5496 = vmatprep.mubr.bf16.mxu0 %v5268
  %5497 = vmatmul.mubr.bf16.gmra.mxu0 %v5267
  %v5498 = vpop.f32.mrf.mxu0
  %v5499 = vadd.f32 %v5170, %v5498
  %v5500 = vpop.f32.mrf.mxu0
  %v5501 = vpop.f32.mrf.mxu0
  %v5502 = vadd.f32 %v5170, %v5501
  %v5503 = vpop.f32.mrf.mxu0
  %5504 = vmatprep.mubr.bf16.mxu0 %v5271
  %5505 = vmatmul.mubr.bf16.gmra.mxu0 %v5270
  %v5506 = vpop.f32.mrf.mxu0
  %v5507 = vadd.f32 %v5170, %v5506
  %v5508 = vpop.f32.mrf.mxu0
  %v5509 = vpop.f32.mrf.mxu0
  %v5510 = vadd.f32 %v5170, %v5509
  %v5511 = vpop.f32.mrf.mxu0
  %5512 = vmatprep.mubr.bf16.mxu0 %v5274
  %5513 = vmatmul.mubr.bf16.gmra.mxu0 %v5273
  %v5514 = vpop.f32.mrf.mxu0
  %v5515 = vadd.f32 %v5170, %v5514
  %v5516 = vpop.f32.mrf.mxu0
  %v5517 = vpop.f32.mrf.mxu0
  %v5518 = vadd.f32 %v5170, %v5517
  %v5519 = vpop.f32.mrf.mxu0
  %5520 = vdwg.mxu0
  %5521 = vmatprep.subr.bf16.mxu0 0
  %5522 = vmatpush1.bf16.msra.mxu0 0
  %5523 = vmatprep.subr.bf16.mxu0 0
  %5524 = vmatpush1.bf16.msra.mxu0 0
  %5525 = vmatprep.subr.bf16.mxu0 0
  %5526 = vmatpush1.bf16.msra.mxu0 0
  %5527 = vmatprep.subr.bf16.mxu0 0
  %5528 = vmatpush1.bf16.msra.mxu0 0
  %5529 = vmatprep.subr.bf16.mxu0 0
  %5530 = vmatpush1.bf16.msra.mxu0 0
  %5531 = vmatprep.subr.bf16.mxu0 0
  %5532 = vmatpush1.bf16.msra.mxu0 0
  %5533 = vmatprep.subr.bf16.mxu0 0
  %5534 = vmatpush1.bf16.msra.mxu0 %v5381
  %5535 = vmatprep.subr.bf16.mxu0 0
  %5536 = vmatpush1.bf16.msra.mxu0 %v5380
  %5537 = vmatprep.subr.bf16.mxu0 0
  %5538 = vmatpush2.bf16.msra.mxu0 0
  %5539 = vmatprep.subr.bf16.mxu0 0
  %5540 = vmatpush2.bf16.msra.mxu0 0
  %5541 = vmatprep.subr.bf16.mxu0 0
  %5542 = vmatpush2.bf16.msra.mxu0 0
  %5543 = vmatprep.subr.bf16.mxu0 0
  %5544 = vmatpush2.bf16.msra.mxu0 0
  %5545 = vmatprep.subr.bf16.mxu0 0
  %5546 = vmatpush2.bf16.msra.mxu0 0
  %5547 = vmatprep.subr.bf16.mxu0 0
  %5548 = vmatpush2.bf16.msra.mxu0 0
  %5549 = vmatprep.subr.bf16.mxu0 0
  %5550 = vmatpush2.bf16.msra.mxu0 0
  %5551 = vmatprep.subr.bf16.mxu0 0
  %5552 = vmatpush2.bf16.msra.mxu0 0
  %5553 = vmatprep.mubr.bf16.mxu0 0
  %5554 = vmatmul.mubr.bf16.gmra.mxu0 %v5401
  %v5555 = vpop.f32.mrf.mxu0
  %v5556 = vadd.f32 %v5459, %v5555
  %v5557 = vpop.f32.mrf.mxu0
  %v5558 = vpop.f32.mrf.mxu0
  %v5559 = vadd.f32 %v5462, %v5558
  %v5560 = vpop.f32.mrf.mxu0
  %5561 = vmatprep.mubr.bf16.mxu0 0
  %5562 = vmatmul.mubr.bf16.gmra.mxu0 %v5404
  %v5563 = vpop.f32.mrf.mxu0
  %v5564 = vadd.f32 %v5467, %v5563
  %v5565 = vpop.f32.mrf.mxu0
  %v5566 = vpop.f32.mrf.mxu0
  %v5567 = vadd.f32 %v5470, %v5566
  %v5568 = vpop.f32.mrf.mxu0
  %5569 = vmatprep.mubr.bf16.mxu0 0
  %5570 = vmatmul.mubr.bf16.gmra.mxu0 %v5407
  %v5571 = vpop.f32.mrf.mxu0
  %v5572 = vadd.f32 %v5475, %v5571
  %v5573 = vpop.f32.mrf.mxu0
  %v5574 = vpop.f32.mrf.mxu0
  %v5575 = vadd.f32 %v5478, %v5574
  %v5576 = vpop.f32.mrf.mxu0
  %5577 = vmatprep.mubr.bf16.mxu0 0
  %5578 = vmatmul.mubr.bf16.gmra.mxu0 %v5410
  %v5579 = vpop.f32.mrf.mxu0
  %v5580 = vadd.f32 %v5483, %v5579
  %v5581 = vpop.f32.mrf.mxu0
  %v5582 = vpop.f32.mrf.mxu0
  %v5583 = vadd.f32 %v5486, %v5582
  %v5584 = vpop.f32.mrf.mxu0
  %5585 = vmatprep.mubr.bf16.mxu0 0
  %5586 = vmatmul.mubr.bf16.gmra.mxu0 %v5413
  %v5587 = vpop.f32.mrf.mxu0
  %v5588 = vadd.f32 %v5491, %v5587
  %v5589 = vpop.f32.mrf.mxu0
  %v5590 = vpop.f32.mrf.mxu0
  %v5591 = vadd.f32 %v5494, %v5590
  %v5592 = vpop.f32.mrf.mxu0
  %5593 = vmatprep.mubr.bf16.mxu0 0
  %5594 = vmatmul.mubr.bf16.gmra.mxu0 %v5416
  %v5595 = vpop.f32.mrf.mxu0
  %v5596 = vadd.f32 %v5499, %v5595
  %v5597 = vpop.f32.mrf.mxu0
  %v5598 = vpop.f32.mrf.mxu0
  %v5599 = vadd.f32 %v5502, %v5598
  %v5600 = vpop.f32.mrf.mxu0
  %5601 = vmatprep.mubr.bf16.mxu0 0
  %5602 = vmatmul.mubr.bf16.gmra.mxu0 %v5419
  %v5603 = vpop.f32.mrf.mxu0
  %v5604 = vadd.f32 %v5507, %v5603
  %v5605 = vpop.f32.mrf.mxu0
  %v5606 = vpop.f32.mrf.mxu0
  %v5607 = vadd.f32 %v5510, %v5606
  %v5608 = vpop.f32.mrf.mxu0
  %5609 = vmatprep.mubr.bf16.mxu0 0
  %5610 = vmatmul.mubr.bf16.gmra.mxu0 %v5422
  %v5611 = vpop.f32.mrf.mxu0
  %v5612 = vadd.f32 %v5515, %v5611
  %v5613 = vpop.f32.mrf.mxu0
  %v5614 = vpop.f32.mrf.mxu0
  %v5615 = vadd.f32 %v5518, %v5614
  %v5616 = vpop.f32.mrf.mxu0
  %5617 = vdwg.mxu0
  %v5618 = vmax.f32 %v5556, 0.0
  %v5619 = vmax.f32 %v5559, 0.0
  %v5620 = vmax.f32 %v5564, 0.0
  %v5621 = vmax.f32 %v5567, 0.0
  %v5622 = vmax.f32 %v5572, 0.0
  %v5623 = vmax.f32 %v5575, 0.0
  %v5624 = vmax.f32 %v5580, 0.0
  %v5625 = vmax.f32 %v5583, 0.0
  %v5626 = vmax.f32 %v5588, 0.0
  %v5627 = vmax.f32 %v5591, 0.0
  %v5628 = vmax.f32 %v5596, 0.0
  %v5629 = vmax.f32 %v5599, 0.0
  %v5630 = vmax.f32 %v5604, 0.0
  %v5631 = vmax.f32 %v5607, 0.0
  %v5632 = vmax.f32 %v5612, 0.0
  %v5633 = vmax.f32 %v5615, 0.0
  %vm5634 = vcmask 523264
  %v5635 = vsel %vm5634, %v5618, -inf
  %v5636 = vsel %vm5634, %v5619, -inf
  %v5637 = vmax.f32 %v5635, %v5636
  %v5638 = vsel %vm5634, %v5620, -inf
  %v5639 = vsel %vm5634, %v5621, -inf
  %v5640 = vmax.f32 %v5638, %v5639
  %v5641 = vsel %vm5634, %v5622, -inf
  %v5642 = vsel %vm5634, %v5623, -inf
  %v5643 = vmax.f32 %v5641, %v5642
  %v5644 = vsel %vm5634, %v5624, -inf
  %v5645 = vsel %vm5634, %v5625, -inf
  %v5646 = vmax.f32 %v5644, %v5645
  %v5647 = vsel %vm5634, %v5626, -inf
  %v5648 = vsel %vm5634, %v5627, -inf
  %v5649 = vmax.f32 %v5647, %v5648
  %v5650 = vsel %vm5634, %v5628, -inf
  %v5651 = vsel %vm5634, %v5629, -inf
  %v5652 = vmax.f32 %v5650, %v5651
  %v5653 = vsel %vm5634, %v5630, -inf
  %v5654 = vsel %vm5634, %v5631, -inf
  %v5655 = vmax.f32 %v5653, %v5654
  %v5656 = vsel %vm5634, %v5632, -inf
  %v5657 = vsel %vm5634, %v5633, -inf
  %v5658 = vmax.f32 %v5656, %v5657
  %v5667 = vcombine.high %v5637, %v5637
  %v5669 = vunpack.c.l.s4 1983009808
  %v5670 = vunpack.c.0.s8 %v5669
  %v5671 = vlaneseq
  %v5672 = vshrl.u32 %v5671, 7
  %v5673 = vsub.s32 %v5670, %v5672
  %v5674 = vrot.slane %v5637, %v5673
  %v5676 = vunpack.c.l.s4 1983009808
  %v5677 = vunpack.c.0.s8 %v5676
  %v5678 = vlaneseq
  %v5679 = vshrl.u32 %v5678, 7
  %v5680 = vsub.s32 %v5677, %v5679
  %v5681 = vrot.slane %v5667, %v5680
  %v5682 = vcombine.high %v5674, %v5674
  %v5683 = vcombine.high %v5681, %v5681
  %v5684 = vcombine.high %v5640, %v5640
  %v5686 = vunpack.c.l.s4 1983009808
  %v5687 = vunpack.c.0.s8 %v5686
  %v5688 = vlaneseq
  %v5689 = vshrl.u32 %v5688, 7
  %v5690 = vsub.s32 %v5687, %v5689
  %v5691 = vrot.slane %v5640, %v5690
  %v5693 = vunpack.c.l.s4 1983009808
  %v5694 = vunpack.c.0.s8 %v5693
  %v5695 = vlaneseq
  %v5696 = vshrl.u32 %v5695, 7
  %v5697 = vsub.s32 %v5694, %v5696
  %v5698 = vrot.slane %v5684, %v5697
  %v5699 = vcombine.high %v5691, %v5691
  %v5700 = vcombine.high %v5698, %v5698
  %v5701 = vcombine.high %v5643, %v5643
  %v5703 = vunpack.c.l.s4 1983009808
  %v5704 = vunpack.c.0.s8 %v5703
  %v5705 = vlaneseq
  %v5706 = vshrl.u32 %v5705, 7
  %v5707 = vsub.s32 %v5704, %v5706
  %v5708 = vrot.slane %v5643, %v5707
  %v5710 = vunpack.c.l.s4 1983009808
  %v5711 = vunpack.c.0.s8 %v5710
  %v5712 = vlaneseq
  %v5713 = vshrl.u32 %v5712, 7
  %v5714 = vsub.s32 %v5711, %v5713
  %v5715 = vrot.slane %v5701, %v5714
  %v5716 = vcombine.high %v5708, %v5708
  %v5717 = vcombine.high %v5715, %v5715
  %v5718 = vcombine.high %v5646, %v5646
  %v5720 = vunpack.c.l.s4 1983009808
  %v5721 = vunpack.c.0.s8 %v5720
  %v5722 = vlaneseq
  %v5723 = vshrl.u32 %v5722, 7
  %v5724 = vsub.s32 %v5721, %v5723
  %v5725 = vrot.slane %v5646, %v5724
  %v5727 = vunpack.c.l.s4 1983009808
  %v5728 = vunpack.c.0.s8 %v5727
  %v5729 = vlaneseq
  %v5730 = vshrl.u32 %v5729, 7
  %v5731 = vsub.s32 %v5728, %v5730
  %v5732 = vrot.slane %v5718, %v5731
  %v5733 = vcombine.high %v5725, %v5725
  %v5734 = vcombine.high %v5732, %v5732
  %v5735 = vcombine.high %v5649, %v5649
  %v5737 = vunpack.c.l.s4 1983009808
  %v5738 = vunpack.c.0.s8 %v5737
  %v5739 = vlaneseq
  %v5740 = vshrl.u32 %v5739, 7
  %v5741 = vsub.s32 %v5738, %v5740
  %v5742 = vrot.slane %v5649, %v5741
  %v5744 = vunpack.c.l.s4 1983009808
  %v5745 = vunpack.c.0.s8 %v5744
  %v5746 = vlaneseq
  %v5747 = vshrl.u32 %v5746, 7
  %v5748 = vsub.s32 %v5745, %v5747
  %v5749 = vrot.slane %v5735, %v5748
  %v5750 = vcombine.high %v5742, %v5742
  %v5751 = vcombine.high %v5749, %v5749
  %v5752 = vcombine.high %v5652, %v5652
  %v5754 = vunpack.c.l.s4 1983009808
  %v5755 = vunpack.c.0.s8 %v5754
  %v5756 = vlaneseq
  %v5757 = vshrl.u32 %v5756, 7
  %v5758 = vsub.s32 %v5755, %v5757
  %v5759 = vrot.slane %v5652, %v5758
  %v5761 = vunpack.c.l.s4 1983009808
  %v5762 = vunpack.c.0.s8 %v5761
  %v5763 = vlaneseq
  %v5764 = vshrl.u32 %v5763, 7
  %v5765 = vsub.s32 %v5762, %v5764
  %v5766 = vrot.slane %v5752, %v5765
  %v5767 = vcombine.high %v5759, %v5759
  %v5768 = vcombine.high %v5766, %v5766
  %v5769 = vcombine.high %v5655, %v5655
  %v5771 = vunpack.c.l.s4 1983009808
  %v5772 = vunpack.c.0.s8 %v5771
  %v5773 = vlaneseq
  %v5774 = vshrl.u32 %v5773, 7
  %v5775 = vsub.s32 %v5772, %v5774
  %v5776 = vrot.slane %v5655, %v5775
  %v5778 = vunpack.c.l.s4 1983009808
  %v5779 = vunpack.c.0.s8 %v5778
  %v5780 = vlaneseq
  %v5781 = vshrl.u32 %v5780, 7
  %v5782 = vsub.s32 %v5779, %v5781
  %v5783 = vrot.slane %v5769, %v5782
  %v5784 = vcombine.high %v5776, %v5776
  %v5785 = vcombine.high %v5783, %v5783
  %v5786 = vcombine.high %v5658, %v5658
  %v5788 = vunpack.c.l.s4 1983009808
  %v5789 = vunpack.c.0.s8 %v5788
  %v5790 = vlaneseq
  %v5791 = vshrl.u32 %v5790, 7
  %v5792 = vsub.s32 %v5789, %v5791
  %v5793 = vrot.slane %v5658, %v5792
  %v5795 = vunpack.c.l.s4 1983009808
  %v5796 = vunpack.c.0.s8 %v5795
  %v5797 = vlaneseq
  %v5798 = vshrl.u32 %v5797, 7
  %v5799 = vsub.s32 %v5796, %v5798
  %v5800 = vrot.slane %v5786, %v5799
  %v5801 = vcombine.high %v5793, %v5793
  %v5802 = vcombine.high %v5800, %v5800
  %vm5835 = vcmask 517120
  %v5836 = vsel %vm5835, %v5674, -inf
  %v5837 = vrot.slane %v5836, 4
  %v5838 = vmax.f32 %v5836, %v5837
  %v5839 = vrot.slane %v5838, 2
  %v5840 = vmax.f32 %v5838, %v5839
  %v5841 = vrot.slane %v5840, 1
  %v5842 = vmax.f32 %v5840, %v5841
  %v5843 = vsel %vm5835, %v5682, -inf
  %v5844 = vrot.slane %v5843, 4
  %v5845 = vmax.f32 %v5843, %v5844
  %v5846 = vrot.slane %v5845, 2
  %v5847 = vmax.f32 %v5845, %v5846
  %v5848 = vrot.slane %v5847, 1
  %v5849 = vmax.f32 %v5847, %v5848
  %v5850 = vsel %vm5835, %v5681, -inf
  %v5851 = vrot.slane %v5850, 4
  %v5852 = vmax.f32 %v5850, %v5851
  %v5853 = vrot.slane %v5852, 2
  %v5854 = vmax.f32 %v5852, %v5853
  %v5855 = vrot.slane %v5854, 1
  %v5856 = vmax.f32 %v5854, %v5855
  %v5857 = vsel %vm5835, %v5683, -inf
  %v5858 = vrot.slane %v5857, 4
  %v5859 = vmax.f32 %v5857, %v5858
  %v5860 = vrot.slane %v5859, 2
  %v5861 = vmax.f32 %v5859, %v5860
  %v5862 = vrot.slane %v5861, 1
  %v5863 = vmax.f32 %v5861, %v5862
  %v5864 = vsel %vm5835, %v5691, -inf
  %v5865 = vrot.slane %v5864, 4
  %v5866 = vmax.f32 %v5864, %v5865
  %v5867 = vrot.slane %v5866, 2
  %v5868 = vmax.f32 %v5866, %v5867
  %v5869 = vrot.slane %v5868, 1
  %v5870 = vmax.f32 %v5868, %v5869
  %v5871 = vsel %vm5835, %v5699, -inf
  %v5872 = vrot.slane %v5871, 4
  %v5873 = vmax.f32 %v5871, %v5872
  %v5874 = vrot.slane %v5873, 2
  %v5875 = vmax.f32 %v5873, %v5874
  %v5876 = vrot.slane %v5875, 1
  %v5877 = vmax.f32 %v5875, %v5876
  %v5878 = vsel %vm5835, %v5698, -inf
  %v5879 = vrot.slane %v5878, 4
  %v5880 = vmax.f32 %v5878, %v5879
  %v5881 = vrot.slane %v5880, 2
  %v5882 = vmax.f32 %v5880, %v5881
  %v5883 = vrot.slane %v5882, 1
  %v5884 = vmax.f32 %v5882, %v5883
  %v5885 = vsel %vm5835, %v5700, -inf
  %v5886 = vrot.slane %v5885, 4
  %v5887 = vmax.f32 %v5885, %v5886
  %v5888 = vrot.slane %v5887, 2
  %v5889 = vmax.f32 %v5887, %v5888
  %v5890 = vrot.slane %v5889, 1
  %v5891 = vmax.f32 %v5889, %v5890
  %v5892 = vsel %vm5835, %v5708, -inf
  %v5893 = vrot.slane %v5892, 4
  %v5894 = vmax.f32 %v5892, %v5893
  %v5895 = vrot.slane %v5894, 2
  %v5896 = vmax.f32 %v5894, %v5895
  %v5897 = vrot.slane %v5896, 1
  %v5898 = vmax.f32 %v5896, %v5897
  %v5899 = vsel %vm5835, %v5716, -inf
  %v5900 = vrot.slane %v5899, 4
  %v5901 = vmax.f32 %v5899, %v5900
  %v5902 = vrot.slane %v5901, 2
  %v5903 = vmax.f32 %v5901, %v5902
  %v5904 = vrot.slane %v5903, 1
  %v5905 = vmax.f32 %v5903, %v5904
  %v5906 = vsel %vm5835, %v5715, -inf
  %v5907 = vrot.slane %v5906, 4
  %v5908 = vmax.f32 %v5906, %v5907
  %v5909 = vrot.slane %v5908, 2
  %v5910 = vmax.f32 %v5908, %v5909
  %v5911 = vrot.slane %v5910, 1
  %v5912 = vmax.f32 %v5910, %v5911
  %v5913 = vsel %vm5835, %v5717, -inf
  %v5914 = vrot.slane %v5913, 4
  %v5915 = vmax.f32 %v5913, %v5914
  %v5916 = vrot.slane %v5915, 2
  %v5917 = vmax.f32 %v5915, %v5916
  %v5918 = vrot.slane %v5917, 1
  %v5919 = vmax.f32 %v5917, %v5918
  %v5920 = vsel %vm5835, %v5725, -inf
  %v5921 = vrot.slane %v5920, 4
  %v5922 = vmax.f32 %v5920, %v5921
  %v5923 = vrot.slane %v5922, 2
  %v5924 = vmax.f32 %v5922, %v5923
  %v5925 = vrot.slane %v5924, 1
  %v5926 = vmax.f32 %v5924, %v5925
  %v5927 = vsel %vm5835, %v5733, -inf
  %v5928 = vrot.slane %v5927, 4
  %v5929 = vmax.f32 %v5927, %v5928
  %v5930 = vrot.slane %v5929, 2
  %v5931 = vmax.f32 %v5929, %v5930
  %v5932 = vrot.slane %v5931, 1
  %v5933 = vmax.f32 %v5931, %v5932
  %v5934 = vsel %vm5835, %v5732, -inf
  %v5935 = vrot.slane %v5934, 4
  %v5936 = vmax.f32 %v5934, %v5935
  %v5937 = vrot.slane %v5936, 2
  %v5938 = vmax.f32 %v5936, %v5937
  %v5939 = vrot.slane %v5938, 1
  %v5940 = vmax.f32 %v5938, %v5939
  %v5941 = vsel %vm5835, %v5734, -inf
  %v5942 = vrot.slane %v5941, 4
  %v5943 = vmax.f32 %v5941, %v5942
  %v5944 = vrot.slane %v5943, 2
  %v5945 = vmax.f32 %v5943, %v5944
  %v5946 = vrot.slane %v5945, 1
  %v5947 = vmax.f32 %v5945, %v5946
  %v5948 = vsel %vm5835, %v5742, -inf
  %v5949 = vrot.slane %v5948, 4
  %v5950 = vmax.f32 %v5948, %v5949
  %v5951 = vrot.slane %v5950, 2
  %v5952 = vmax.f32 %v5950, %v5951
  %v5953 = vrot.slane %v5952, 1
  %v5954 = vmax.f32 %v5952, %v5953
  %v5955 = vsel %vm5835, %v5750, -inf
  %v5956 = vrot.slane %v5955, 4
  %v5957 = vmax.f32 %v5955, %v5956
  %v5958 = vrot.slane %v5957, 2
  %v5959 = vmax.f32 %v5957, %v5958
  %v5960 = vrot.slane %v5959, 1
  %v5961 = vmax.f32 %v5959, %v5960
  %v5962 = vsel %vm5835, %v5749, -inf
  %v5963 = vrot.slane %v5962, 4
  %v5964 = vmax.f32 %v5962, %v5963
  %v5965 = vrot.slane %v5964, 2
  %v5966 = vmax.f32 %v5964, %v5965
  %v5967 = vrot.slane %v5966, 1
  %v5968 = vmax.f32 %v5966, %v5967
  %v5969 = vsel %vm5835, %v5751, -inf
  %v5970 = vrot.slane %v5969, 4
  %v5971 = vmax.f32 %v5969, %v5970
  %v5972 = vrot.slane %v5971, 2
  %v5973 = vmax.f32 %v5971, %v5972
  %v5974 = vrot.slane %v5973, 1
  %v5975 = vmax.f32 %v5973, %v5974
  %v5976 = vsel %vm5835, %v5759, -inf
  %v5977 = vrot.slane %v5976, 4
  %v5978 = vmax.f32 %v5976, %v5977
  %v5979 = vrot.slane %v5978, 2
  %v5980 = vmax.f32 %v5978, %v5979
  %v5981 = vrot.slane %v5980, 1
  %v5982 = vmax.f32 %v5980, %v5981
  %v5983 = vsel %vm5835, %v5767, -inf
  %v5984 = vrot.slane %v5983, 4
  %v5985 = vmax.f32 %v5983, %v5984
  %v5986 = vrot.slane %v5985, 2
  %v5987 = vmax.f32 %v5985, %v5986
  %v5988 = vrot.slane %v5987, 1
  %v5989 = vmax.f32 %v5987, %v5988
  %v5990 = vsel %vm5835, %v5766, -inf
  %v5991 = vrot.slane %v5990, 4
  %v5992 = vmax.f32 %v5990, %v5991
  %v5993 = vrot.slane %v5992, 2
  %v5994 = vmax.f32 %v5992, %v5993
  %v5995 = vrot.slane %v5994, 1
  %v5996 = vmax.f32 %v5994, %v5995
  %v5997 = vsel %vm5835, %v5768, -inf
  %v5998 = vrot.slane %v5997, 4
  %v5999 = vmax.f32 %v5997, %v5998
  %v6000 = vrot.slane %v5999, 2
  %v6001 = vmax.f32 %v5999, %v6000
  %v6002 = vrot.slane %v6001, 1
  %v6003 = vmax.f32 %v6001, %v6002
  %v6004 = vsel %vm5835, %v5776, -inf
  %v6005 = vrot.slane %v6004, 4
  %v6006 = vmax.f32 %v6004, %v6005
  %v6007 = vrot.slane %v6006, 2
  %v6008 = vmax.f32 %v6006, %v6007
  %v6009 = vrot.slane %v6008, 1
  %v6010 = vmax.f32 %v6008, %v6009
  %v6011 = vsel %vm5835, %v5784, -inf
  %v6012 = vrot.slane %v6011, 4
  %v6013 = vmax.f32 %v6011, %v6012
  %v6014 = vrot.slane %v6013, 2
  %v6015 = vmax.f32 %v6013, %v6014
  %v6016 = vrot.slane %v6015, 1
  %v6017 = vmax.f32 %v6015, %v6016
  %v6018 = vsel %vm5835, %v5783, -inf
  %v6019 = vrot.slane %v6018, 4
  %v6020 = vmax.f32 %v6018, %v6019
  %v6021 = vrot.slane %v6020, 2
  %v6022 = vmax.f32 %v6020, %v6021
  %v6023 = vrot.slane %v6022, 1
  %v6024 = vmax.f32 %v6022, %v6023
  %v6025 = vsel %vm5835, %v5785, -inf
  %v6026 = vrot.slane %v6025, 4
  %v6027 = vmax.f32 %v6025, %v6026
  %v6028 = vrot.slane %v6027, 2
  %v6029 = vmax.f32 %v6027, %v6028
  %v6030 = vrot.slane %v6029, 1
  %v6031 = vmax.f32 %v6029, %v6030
  %v6032 = vsel %vm5835, %v5793, -inf
  %v6033 = vrot.slane %v6032, 4
  %v6034 = vmax.f32 %v6032, %v6033
  %v6035 = vrot.slane %v6034, 2
  %v6036 = vmax.f32 %v6034, %v6035
  %v6037 = vrot.slane %v6036, 1
  %v6038 = vmax.f32 %v6036, %v6037
  %v6039 = vsel %vm5835, %v5801, -inf
  %v6040 = vrot.slane %v6039, 4
  %v6041 = vmax.f32 %v6039, %v6040
  %v6042 = vrot.slane %v6041, 2
  %v6043 = vmax.f32 %v6041, %v6042
  %v6044 = vrot.slane %v6043, 1
  %v6045 = vmax.f32 %v6043, %v6044
  %v6046 = vsel %vm5835, %v5800, -inf
  %v6047 = vrot.slane %v6046, 4
  %v6048 = vmax.f32 %v6046, %v6047
  %v6049 = vrot.slane %v6048, 2
  %v6050 = vmax.f32 %v6048, %v6049
  %v6051 = vrot.slane %v6050, 1
  %v6052 = vmax.f32 %v6050, %v6051
  %v6053 = vsel %vm5835, %v5802, -inf
  %v6054 = vrot.slane %v6053, 4
  %v6055 = vmax.f32 %v6053, %v6054
  %v6056 = vrot.slane %v6055, 2
  %v6057 = vmax.f32 %v6055, %v6056
  %v6058 = vrot.slane %v6057, 1
  %v6059 = vmax.f32 %v6057, %v6058
  %vm6060 = vcmask 518144
  %6061 = vst.msk [vmem:[#allocation4] sm:$0x7] %vm6060, 0
  %6062 = vst.msk [vmem:[#allocation4 + $0x4] sm:$0x7] %vm6060, 0
  %6063 = vst.msk [vmem:[#allocation4 + $0x8] sm:$0x7] %vm6060, 0
  %6064 = vst.msk [vmem:[#allocation4 + $0xc] sm:$0x7] %vm6060, 0
  %6065 = vst.msk [vmem:[#allocation4 + $0x10] sm:$0x7] %vm6060, 0
  %6066 = vst.msk [vmem:[#allocation4 + $0x14] sm:$0x7] %vm6060, 0
  %6067 = vst.msk [vmem:[#allocation4 + $0x18] sm:$0x7] %vm6060, 0
  %6068 = vst.msk [vmem:[#allocation4 + $0x1c] sm:$0x7] %vm6060, 0
  %6069 = vst.msk [vmem:[#allocation4 + $0x20] sm:$0x7] %vm6060, 0
  %6070 = vst.msk [vmem:[#allocation4 + $0x24] sm:$0x7] %vm6060, 0
  %6071 = vst.msk [vmem:[#allocation4 + $0x28] sm:$0x7] %vm6060, 0
  %6072 = vst.msk [vmem:[#allocation4 + $0x2c] sm:$0x7] %vm6060, 0
  %v6073 = vpack.c.bf16 %v5842, %v5842
  %v6074 = vpack.c.bf16 %v5849, %v5849
  %v6075 = vpack.c.bf16 %v5856, %v5856
  %v6076 = vpack.c.bf16 %v5863, %v5863
  %v6077 = vpack.c.bf16 %v5870, %v5870
  %v6078 = vpack.c.bf16 %v5877, %v5877
  %v6079 = vpack.c.bf16 %v5884, %v5884
  %v6080 = vpack.c.bf16 %v5891, %v5891
  %v6081 = vpack.c.bf16 %v5898, %v5898
  %v6082 = vpack.c.bf16 %v5905, %v5905
  %v6083 = vpack.c.bf16 %v5912, %v5912
  %v6084 = vpack.c.bf16 %v5919, %v5919
  %v6085 = vpack.c.bf16 %v5926, %v5926
  %v6086 = vpack.c.bf16 %v5933, %v5933
  %v6087 = vpack.c.bf16 %v5940, %v5940
  %v6088 = vpack.c.bf16 %v5947, %v5947
  %v6089 = vpack.c.bf16 %v5954, %v5954
  %v6090 = vpack.c.bf16 %v5961, %v5961
  %v6091 = vpack.c.bf16 %v5968, %v5968
  %v6092 = vpack.c.bf16 %v5975, %v5975
  %v6093 = vpack.c.bf16 %v5982, %v5982
  %v6094 = vpack.c.bf16 %v5989, %v5989
  %v6095 = vpack.c.bf16 %v5996, %v5996
  %v6096 = vpack.c.bf16 %v6003, %v6003
  %v6097 = vpack.c.bf16 %v6010, %v6010
  %v6098 = vpack.c.bf16 %v6017, %v6017
  %v6099 = vpack.c.bf16 %v6024, %v6024
  %v6100 = vpack.c.bf16 %v6031, %v6031
  %v6101 = vpack.c.bf16 %v6038, %v6038
  %v6102 = vpack.c.bf16 %v6045, %v6045
  %v6103 = vpack.c.bf16 %v6052, %v6052
  %v6104 = vpack.c.bf16 %v6059, %v6059
  %v6137 = vunpack.c.l.b16 %v6073
  %v6138 = vunpack.c.l.b16 %v6074
  %v6139 = vunpack.c.l.b16 %v6075
  %v6140 = vunpack.c.l.b16 %v6076
  %v6141 = vunpack.c.l.b16 %v6077
  %v6142 = vunpack.c.l.b16 %v6078
  %v6143 = vunpack.c.l.b16 %v6079
  %v6144 = vunpack.c.l.b16 %v6080
  %v6145 = vunpack.c.l.b16 %v6081
  %v6146 = vunpack.c.l.b16 %v6082
  %v6147 = vunpack.c.l.b16 %v6083
  %v6148 = vunpack.c.l.b16 %v6084
  %v6149 = vunpack.c.l.b16 %v6085
  %v6150 = vunpack.c.l.b16 %v6086
  %v6151 = vunpack.c.l.b16 %v6087
  %v6152 = vunpack.c.l.b16 %v6088
  %v6153 = vunpack.c.l.b16 %v6089
  %v6154 = vunpack.c.l.b16 %v6090
  %v6155 = vunpack.c.l.b16 %v6091
  %v6156 = vunpack.c.l.b16 %v6092
  %v6157 = vunpack.c.l.b16 %v6093
  %v6158 = vunpack.c.l.b16 %v6094
  %v6159 = vunpack.c.l.b16 %v6095
  %v6160 = vunpack.c.l.b16 %v6096
  %v6161 = vunpack.c.l.b16 %v6097
  %v6162 = vunpack.c.l.b16 %v6098
  %v6163 = vunpack.c.l.b16 %v6099
  %v6164 = vunpack.c.l.b16 %v6100
  %v6165 = vunpack.c.l.b16 %v6101
  %v6166 = vunpack.c.l.b16 %v6102
  %v6167 = vunpack.c.l.b16 %v6103
  %v6168 = vunpack.c.l.b16 %v6104
  %v6169 = vpack.c.b16 %v6137, %v6137
  %v6170 = vpack.c.b16 %v6138, %v6138
  %v6171 = vpack.c.b16 %v6139, %v6139
  %v6172 = vpack.c.b16 %v6140, %v6140
  %v6173 = vpack.c.b16 %v6141, %v6141
  %v6174 = vpack.c.b16 %v6142, %v6142
  %v6175 = vpack.c.b16 %v6143, %v6143
  %v6176 = vpack.c.b16 %v6144, %v6144
  %v6177 = vpack.c.b16 %v6145, %v6145
  %v6178 = vpack.c.b16 %v6146, %v6146
  %v6179 = vpack.c.b16 %v6147, %v6147
  %v6180 = vpack.c.b16 %v6148, %v6148
  %v6181 = vpack.c.b16 %v6149, %v6149
  %v6182 = vpack.c.b16 %v6150, %v6150
  %v6183 = vpack.c.b16 %v6151, %v6151
  %v6184 = vpack.c.b16 %v6152, %v6152
  %v6185 = vpack.c.b16 %v6153, %v6153
  %v6186 = vpack.c.b16 %v6154, %v6154
  %v6187 = vpack.c.b16 %v6155, %v6155
  %v6188 = vpack.c.b16 %v6156, %v6156
  %v6189 = vpack.c.b16 %v6157, %v6157
  %v6190 = vpack.c.b16 %v6158, %v6158
  %v6191 = vpack.c.b16 %v6159, %v6159
  %v6192 = vpack.c.b16 %v6160, %v6160
  %v6193 = vpack.c.b16 %v6161, %v6161
  %v6194 = vpack.c.b16 %v6162, %v6162
  %v6195 = vpack.c.b16 %v6163, %v6163
  %v6196 = vpack.c.b16 %v6164, %v6164
  %v6197 = vpack.c.b16 %v6165, %v6165
  %v6198 = vpack.c.b16 %v6166, %v6166
  %v6199 = vpack.c.b16 %v6167, %v6167
  %v6200 = vpack.c.b16 %v6168, %v6168
  %v6201 = vunpack.c.l.b16 %v6169
  %v6202 = vunpack.c.l.b16 %v6170
  %v6203 = vunpack.c.l.b16 %v6171
  %v6204 = vunpack.c.l.b16 %v6172
  %v6205 = vunpack.c.l.b16 %v6173
  %v6206 = vunpack.c.l.b16 %v6174
  %v6207 = vunpack.c.l.b16 %v6175
  %v6208 = vunpack.c.l.b16 %v6176
  %v6209 = vunpack.c.l.b16 %v6177
  %v6210 = vunpack.c.l.b16 %v6178
  %v6211 = vunpack.c.l.b16 %v6179
  %v6212 = vunpack.c.l.b16 %v6180
  %v6213 = vunpack.c.l.b16 %v6181
  %v6214 = vunpack.c.l.b16 %v6182
  %v6215 = vunpack.c.l.b16 %v6183
  %v6216 = vunpack.c.l.b16 %v6184
  %v6217 = vunpack.c.l.b16 %v6185
  %v6218 = vunpack.c.l.b16 %v6186
  %v6219 = vunpack.c.l.b16 %v6187
  %v6220 = vunpack.c.l.b16 %v6188
  %v6221 = vunpack.c.l.b16 %v6189
  %v6222 = vunpack.c.l.b16 %v6190
  %v6223 = vunpack.c.l.b16 %v6191
  %v6224 = vunpack.c.l.b16 %v6192
  %v6225 = vunpack.c.l.b16 %v6193
  %v6226 = vunpack.c.l.b16 %v6194
  %v6227 = vunpack.c.l.b16 %v6195
  %v6228 = vunpack.c.l.b16 %v6196
  %v6229 = vunpack.c.l.b16 %v6197
  %v6230 = vunpack.c.l.b16 %v6198
  %v6231 = vunpack.c.l.b16 %v6199
  %v6232 = vunpack.c.l.b16 %v6200
  %v6233 = vsel %vm3122, %v6202, %v6201
  %v6234 = vsel %vm3124, %v6203, %v6233
  %v6235 = vsel %vm3126, %v6204, %v6234
  %v6236 = vsel %vm3122, %v6206, %v6205
  %v6237 = vsel %vm3124, %v6207, %v6236
  %v6238 = vsel %vm3126, %v6208, %v6237
  %v6239 = vsel %vm3122, %v6210, %v6209
  %v6240 = vsel %vm3124, %v6211, %v6239
  %v6241 = vsel %vm3126, %v6212, %v6240
  %v6242 = vsel %vm3122, %v6214, %v6213
  %v6243 = vsel %vm3124, %v6215, %v6242
  %v6244 = vsel %vm3126, %v6216, %v6243
  %v6245 = vsel %vm3122, %v6218, %v6217
  %v6246 = vsel %vm3124, %v6219, %v6245
  %v6247 = vsel %vm3126, %v6220, %v6246
  %v6248 = vsel %vm3122, %v6222, %v6221
  %v6249 = vsel %vm3124, %v6223, %v6248
  %v6250 = vsel %vm3126, %v6224, %v6249
  %v6251 = vsel %vm3122, %v6226, %v6225
  %v6252 = vsel %vm3124, %v6227, %v6251
  %v6253 = vsel %vm3126, %v6228, %v6252
  %v6254 = vsel %vm3122, %v6230, %v6229
  %v6255 = vsel %vm3124, %v6231, %v6254
  %v6256 = vsel %vm3126, %v6232, %v6255
  %v6257 = vpack.c.b16 %v6235, %v6235
  %v6258 = vpack.c.b16 %v6238, %v6238
  %v6259 = vpack.c.b16 %v6241, %v6241
  %v6260 = vpack.c.b16 %v6244, %v6244
  %v6261 = vpack.c.b16 %v6247, %v6247
  %v6262 = vpack.c.b16 %v6250, %v6250
  %v6263 = vpack.c.b16 %v6253, %v6253
  %v6264 = vpack.c.b16 %v6256, %v6256
  %s6273 = scalar_lea.vmem [#allocation4], 4
  %vm6274 = vcmask 518144
  %vm6275 = vsmask.f32 2306
  %vm6276 = vmand %vm6274, %vm6275
  %v6277 = vld [vmem:[%s6273] sm:$0x7]
  %v6278 = vsel %vm6276, %v6257, %v6277
  %6279 = vst [vmem:[%s6273] sm:$0x7] %v6278
  %v6280 = vld [vmem:[%s6273 + $0x4] sm:$0x7]
  %v6281 = vsel %vm6276, %v6258, %v6280
  %6282 = vst [vmem:[%s6273 + $0x4] sm:$0x7] %v6281
  %v6283 = vld [vmem:[%s6273 + $0x8] sm:$0x7]
  %v6284 = vsel %vm6276, %v6259, %v6283
  %6285 = vst [vmem:[%s6273 + $0x8] sm:$0x7] %v6284
  %v6286 = vld [vmem:[%s6273 + $0xc] sm:$0x7]
  %v6287 = vsel %vm6276, %v6260, %v6286
  %6288 = vst [vmem:[%s6273 + $0xc] sm:$0x7] %v6287
  %v6289 = vld [vmem:[%s6273 + $0x18] sm:$0x7]
  %v6290 = vsel %vm6276, %v6261, %v6289
  %6291 = vst [vmem:[%s6273 + $0x18] sm:$0x7] %v6290
  %v6292 = vld [vmem:[%s6273 + $0x1c] sm:$0x7]
  %v6293 = vsel %vm6276, %v6262, %v6292
  %6294 = vst [vmem:[%s6273 + $0x1c] sm:$0x7] %v6293
  %v6295 = vld [vmem:[%s6273 + $0x20] sm:$0x7]
  %v6296 = vsel %vm6276, %v6263, %v6295
  %6297 = vst [vmem:[%s6273 + $0x20] sm:$0x7] %v6296
  %v6298 = vld [vmem:[%s6273 + $0x24] sm:$0x7]
  %v6299 = vsel %vm6276, %v6264, %v6298
  %6300 = vst [vmem:[%s6273 + $0x24] sm:$0x7] %v6299
  %v6301 = vld [vmem:[#allocation4] sm:$0x3]
  %v6302 = vld [vmem:[#allocation4 + $0x4] sm:$0x3]
  %v6303 = vld [vmem:[#allocation4 + $0x8] sm:$0x3]
  %v6304 = vld [vmem:[#allocation4 + $0xc] sm:$0x3]
  %v6305 = vld [vmem:[#allocation4 + $0x18] sm:$0x3]
  %v6306 = vld [vmem:[#allocation4 + $0x1c] sm:$0x3]
  %v6307 = vld [vmem:[#allocation4 + $0x20] sm:$0x3]
  %v6308 = vld [vmem:[#allocation4 + $0x24] sm:$0x3]
  %v6317 = vcombine.low %v6301, %v6302
  %v6319 = vunpack.c.l.s4 1983009808
  %v6320 = vunpack.c.0.s8 %v6319
  %v6321 = vlaneseq
  %v6322 = vshrl.u32 %v6321, 7
  %v6323 = vsub.s32 %v6320, %v6322
  %v6324 = vrot.slane %v6317, %v6323
  %v6325 = vcombine.low %v6303, %v6304
  %v6327 = vunpack.c.l.s4 1983009808
  %v6328 = vunpack.c.0.s8 %v6327
  %v6329 = vlaneseq
  %v6330 = vshrl.u32 %v6329, 7
  %v6331 = vsub.s32 %v6328, %v6330
  %v6332 = vrot.slane %v6325, %v6331
  %v6333 = vcombine.low %v6305, %v6306
  %v6335 = vunpack.c.l.s4 1983009808
  %v6336 = vunpack.c.0.s8 %v6335
  %v6337 = vlaneseq
  %v6338 = vshrl.u32 %v6337, 7
  %v6339 = vsub.s32 %v6336, %v6338
  %v6340 = vrot.slane %v6333, %v6339
  %v6341 = vcombine.low %v6307, %v6308
  %v6343 = vunpack.c.l.s4 1983009808
  %v6344 = vunpack.c.0.s8 %v6343
  %v6345 = vlaneseq
  %v6346 = vshrl.u32 %v6345, 7
  %v6347 = vsub.s32 %v6344, %v6346
  %v6348 = vrot.slane %v6341, %v6347
  %vm6353 = vcmask 519168
  %6354 = vst.msk [vmem:[#allocation5] sm:$0xf] %vm6353, %v6324
  %6355 = vst.msk [vmem:[#allocation5 + $0x14] sm:$0xf] %vm6353, %v6332
  %6356 = vst.msk [vmem:[#allocation5 + $0x28] sm:$0xf] %vm6353, %v6340
  %6357 = vst.msk [vmem:[#allocation5 + $0x3c] sm:$0xf] %vm6353, %v6348
  %v6358 = vld [vmem:[#allocation4] sm:$0x7]
  %v6359 = vld [vmem:[#allocation4 + $0x4] sm:$0x7]
  %v6360 = vld [vmem:[#allocation4 + $0x8] sm:$0x7]
  %v6361 = vld [vmem:[#allocation4 + $0xc] sm:$0x7]
  %v6362 = vld [vmem:[#allocation4 + $0x18] sm:$0x7]
  %v6363 = vld [vmem:[#allocation4 + $0x1c] sm:$0x7]
  %v6364 = vld [vmem:[#allocation4 + $0x20] sm:$0x7]
  %v6365 = vld [vmem:[#allocation4 + $0x24] sm:$0x7]
  %v6375 = vunpack.c.l.s4 1983009808
  %v6376 = vunpack.c.0.s8 %v6375
  %v6377 = vlaneseq
  %v6378 = vshrl.u32 %v6377, 7
  %v6379 = vsub.s32 %v6376, %v6378
  %v6380 = vrot.slane %v6358, %v6379
  %v6381 = vcombine.high %v6380, %v6380
  %v6383 = vunpack.c.l.s4 1983009808
  %v6384 = vunpack.c.0.s8 %v6383
  %v6385 = vlaneseq
  %v6386 = vshrl.u32 %v6385, 7
  %v6387 = vsub.s32 %v6384, %v6386
  %v6388 = vrot.slane %v6359, %v6387
  %v6389 = vcombine.high %v6388, %v6388
  %v6391 = vunpack.c.l.s4 1983009808
  %v6392 = vunpack.c.0.s8 %v6391
  %v6393 = vlaneseq
  %v6394 = vshrl.u32 %v6393, 7
  %v6395 = vsub.s32 %v6392, %v6394
  %v6396 = vrot.slane %v6360, %v6395
  %v6397 = vcombine.high %v6396, %v6396
  %v6399 = vunpack.c.l.s4 1983009808
  %v6400 = vunpack.c.0.s8 %v6399
  %v6401 = vlaneseq
  %v6402 = vshrl.u32 %v6401, 7
  %v6403 = vsub.s32 %v6400, %v6402
  %v6404 = vrot.slane %v6361, %v6403
  %v6405 = vcombine.high %v6404, %v6404
  %v6407 = vunpack.c.l.s4 1983009808
  %v6408 = vunpack.c.0.s8 %v6407
  %v6409 = vlaneseq
  %v6410 = vshrl.u32 %v6409, 7
  %v6411 = vsub.s32 %v6408, %v6410
  %v6412 = vrot.slane %v6362, %v6411
  %v6413 = vcombine.high %v6412, %v6412
  %v6415 = vunpack.c.l.s4 1983009808
  %v6416 = vunpack.c.0.s8 %v6415
  %v6417 = vlaneseq
  %v6418 = vshrl.u32 %v6417, 7
  %v6419 = vsub.s32 %v6416, %v6418
  %v6420 = vrot.slane %v6363, %v6419
  %v6421 = vcombine.high %v6420, %v6420
  %v6423 = vunpack.c.l.s4 1983009808
  %v6424 = vunpack.c.0.s8 %v6423
  %v6425 = vlaneseq
  %v6426 = vshrl.u32 %v6425, 7
  %v6427 = vsub.s32 %v6424, %v6426
  %v6428 = vrot.slane %v6364, %v6427
  %v6429 = vcombine.high %v6428, %v6428
  %v6431 = vunpack.c.l.s4 1983009808
  %v6432 = vunpack.c.0.s8 %v6431
  %v6433 = vlaneseq
  %v6434 = vshrl.u32 %v6433, 7
  %v6435 = vsub.s32 %v6432, %v6434
  %v6436 = vrot.slane %v6365, %v6435
  %v6437 = vcombine.high %v6436, %v6436
  %vm6438 = vsmask.f32 1280
  %vm6439 = vsmask.f32 3336
  %vm6440 = vmor %vm6438, %vm6439
  %vm6441 = vsmask.f32 5392
  %vm6442 = vmor %vm6440, %vm6441
  %vm6443 = vsmask.f32 7448
  %vm6444 = vmor %vm6442, %vm6443
  %v6446 = vshrl.u32 %v6380, 16
  %v6448 = vrot.slane %v6446, 6
  %v6449 = vshll.u32 %v6380, 16
  %v6451 = vrot.slane %v6449, 7
  %v6452 = vor.u32 %v6448, %v6451
  %v6453 = vrot.slane %v6452, 2
  %v6455 = vshll.u32 %v6381, 16
  %v6457 = vrot.slane %v6455, 7
  %v6458 = vsel %vm6444, %v6453, %v6457
  %v6460 = vshrl.u32 %v6388, 16
  %v6462 = vrot.slane %v6460, 6
  %v6463 = vshll.u32 %v6388, 16
  %v6465 = vrot.slane %v6463, 7
  %v6466 = vor.u32 %v6462, %v6465
  %v6467 = vrot.slane %v6466, 2
  %v6469 = vshll.u32 %v6389, 16
  %v6471 = vrot.slane %v6469, 7
  %v6472 = vsel %vm6444, %v6467, %v6471
  %v6474 = vshrl.u32 %v6396, 16
  %v6476 = vrot.slane %v6474, 6
  %v6477 = vshll.u32 %v6396, 16
  %v6479 = vrot.slane %v6477, 7
  %v6480 = vor.u32 %v6476, %v6479
  %v6481 = vrot.slane %v6480, 2
  %v6483 = vshll.u32 %v6397, 16
  %v6485 = vrot.slane %v6483, 7
  %v6486 = vsel %vm6444, %v6481, %v6485
  %v6488 = vshrl.u32 %v6404, 16
  %v6490 = vrot.slane %v6488, 6
  %v6491 = vshll.u32 %v6404, 16
  %v6493 = vrot.slane %v6491, 7
  %v6494 = vor.u32 %v6490, %v6493
  %v6495 = vrot.slane %v6494, 2
  %v6497 = vshll.u32 %v6405, 16
  %v6499 = vrot.slane %v6497, 7
  %v6500 = vsel %vm6444, %v6495, %v6499
  %v6502 = vshrl.u32 %v6412, 16
  %v6504 = vrot.slane %v6502, 6
  %v6505 = vshll.u32 %v6412, 16
  %v6507 = vrot.slane %v6505, 7
  %v6508 = vor.u32 %v6504, %v6507
  %v6509 = vrot.slane %v6508, 2
  %v6511 = vshll.u32 %v6413, 16
  %v6513 = vrot.slane %v6511, 7
  %v6514 = vsel %vm6444, %v6509, %v6513
  %v6516 = vshrl.u32 %v6420, 16
  %v6518 = vrot.slane %v6516, 6
  %v6519 = vshll.u32 %v6420, 16
  %v6521 = vrot.slane %v6519, 7
  %v6522 = vor.u32 %v6518, %v6521
  %v6523 = vrot.slane %v6522, 2
  %v6525 = vshll.u32 %v6421, 16
  %v6527 = vrot.slane %v6525, 7
  %v6528 = vsel %vm6444, %v6523, %v6527
  %v6530 = vshrl.u32 %v6428, 16
  %v6532 = vrot.slane %v6530, 6
  %v6533 = vshll.u32 %v6428, 16
  %v6535 = vrot.slane %v6533, 7
  %v6536 = vor.u32 %v6532, %v6535
  %v6537 = vrot.slane %v6536, 2
  %v6539 = vshll.u32 %v6429, 16
  %v6541 = vrot.slane %v6539, 7
  %v6542 = vsel %vm6444, %v6537, %v6541
  %v6544 = vshrl.u32 %v6436, 16
  %v6546 = vrot.slane %v6544, 6
  %v6547 = vshll.u32 %v6436, 16
  %v6549 = vrot.slane %v6547, 7
  %v6550 = vor.u32 %v6546, %v6549
  %v6551 = vrot.slane %v6550, 2
  %v6553 = vshll.u32 %v6437, 16
  %v6555 = vrot.slane %v6553, 7
  %v6556 = vsel %vm6444, %v6551, %v6555
  %v6557 = vcombine.low %v6458, %v6472
  %v6559 = vunpack.c.l.s4 1983009808
  %v6560 = vunpack.c.0.s8 %v6559
  %v6561 = vlaneseq
  %v6562 = vshrl.u32 %v6561, 7
  %v6563 = vsub.s32 %v6560, %v6562
  %v6564 = vrot.slane %v6557, %v6563
  %v6565 = vcombine.low %v6486, %v6500
  %v6567 = vunpack.c.l.s4 1983009808
  %v6568 = vunpack.c.0.s8 %v6567
  %v6569 = vlaneseq
  %v6570 = vshrl.u32 %v6569, 7
  %v6571 = vsub.s32 %v6568, %v6570
  %v6572 = vrot.slane %v6565, %v6571
  %v6573 = vcombine.low %v6514, %v6528
  %v6575 = vunpack.c.l.s4 1983009808
  %v6576 = vunpack.c.0.s8 %v6575
  %v6577 = vlaneseq
  %v6578 = vshrl.u32 %v6577, 7
  %v6579 = vsub.s32 %v6576, %v6578
  %v6580 = vrot.slane %v6573, %v6579
  %v6581 = vcombine.low %v6542, %v6556
  %v6583 = vunpack.c.l.s4 1983009808
  %v6584 = vunpack.c.0.s8 %v6583
  %v6585 = vlaneseq
  %v6586 = vshrl.u32 %v6585, 7
  %v6587 = vsub.s32 %v6584, %v6586
  %v6588 = vrot.slane %v6581, %v6587
  %6589 = vrot.lane.b32.xlu0 %v6564, 64
  %v6590 = vpop.permute.xlu0 %6589
  %6591 = vrot.lane.b32.xlu0 %v6572, 64
  %v6592 = vpop.permute.xlu0 %6591
  %6593 = vrot.lane.b32.xlu0 %v6580, 64
  %v6594 = vpop.permute.xlu0 %6593
  %6595 = vrot.lane.b32.xlu0 %v6588, 64
  %v6596 = vpop.permute.xlu0 %6595
  %vm6601 = vcmask 1043968
  %6602 = vst.msk [vmem:[#allocation5] sm:$0xf] %vm6601, %v6590
  %6603 = vst.msk [vmem:[#allocation5 + $0x14] sm:$0xf] %vm6601, %v6592
  %6604 = vst.msk [vmem:[#allocation5 + $0x28] sm:$0xf] %vm6601, %v6594
  %6605 = vst.msk [vmem:[#allocation5 + $0x3c] sm:$0xf] %vm6601, %v6596
  %v6606 = vld [vmem:[#allocation4] sm:$0x6]
  %v6607 = vld [vmem:[#allocation4 + $0x4] sm:$0x6]
  %v6608 = vld [vmem:[#allocation4 + $0x8] sm:$0x6]
  %v6609 = vld [vmem:[#allocation4 + $0xc] sm:$0x6]
  %v6610 = vld [vmem:[#allocation4 + $0x18] sm:$0x6]
  %v6611 = vld [vmem:[#allocation4 + $0x1c] sm:$0x6]
  %v6612 = vld [vmem:[#allocation4 + $0x20] sm:$0x6]
  %v6613 = vld [vmem:[#allocation4 + $0x24] sm:$0x6]
  %v6623 = vunpack.c.l.s4 1983009808
  %v6624 = vunpack.c.0.s8 %v6623
  %v6625 = vlaneseq
  %v6626 = vshrl.u32 %v6625, 7
  %v6627 = vsub.s32 %v6624, %v6626
  %v6628 = vrot.slane %v6606, %v6627
  %v6629 = vcombine.high %v6628, %v6628
  %v6631 = vunpack.c.l.s4 1983009808
  %v6632 = vunpack.c.0.s8 %v6631
  %v6633 = vlaneseq
  %v6634 = vshrl.u32 %v6633, 7
  %v6635 = vsub.s32 %v6632, %v6634
  %v6636 = vrot.slane %v6607, %v6635
  %v6637 = vcombine.high %v6636, %v6636
  %v6639 = vunpack.c.l.s4 1983009808
  %v6640 = vunpack.c.0.s8 %v6639
  %v6641 = vlaneseq
  %v6642 = vshrl.u32 %v6641, 7
  %v6643 = vsub.s32 %v6640, %v6642
  %v6644 = vrot.slane %v6608, %v6643
  %v6645 = vcombine.high %v6644, %v6644
  %v6647 = vunpack.c.l.s4 1983009808
  %v6648 = vunpack.c.0.s8 %v6647
  %v6649 = vlaneseq
  %v6650 = vshrl.u32 %v6649, 7
  %v6651 = vsub.s32 %v6648, %v6650
  %v6652 = vrot.slane %v6609, %v6651
  %v6653 = vcombine.high %v6652, %v6652
  %v6655 = vunpack.c.l.s4 1983009808
  %v6656 = vunpack.c.0.s8 %v6655
  %v6657 = vlaneseq
  %v6658 = vshrl.u32 %v6657, 7
  %v6659 = vsub.s32 %v6656, %v6658
  %v6660 = vrot.slane %v6610, %v6659
  %v6661 = vcombine.high %v6660, %v6660
  %v6663 = vunpack.c.l.s4 1983009808
  %v6664 = vunpack.c.0.s8 %v6663
  %v6665 = vlaneseq
  %v6666 = vshrl.u32 %v6665, 7
  %v6667 = vsub.s32 %v6664, %v6666
  %v6668 = vrot.slane %v6611, %v6667
  %v6669 = vcombine.high %v6668, %v6668
  %v6671 = vunpack.c.l.s4 1983009808
  %v6672 = vunpack.c.0.s8 %v6671
  %v6673 = vlaneseq
  %v6674 = vshrl.u32 %v6673, 7
  %v6675 = vsub.s32 %v6672, %v6674
  %v6676 = vrot.slane %v6612, %v6675
  %v6677 = vcombine.high %v6676, %v6676
  %v6679 = vunpack.c.l.s4 1983009808
  %v6680 = vunpack.c.0.s8 %v6679
  %v6681 = vlaneseq
  %v6682 = vshrl.u32 %v6681, 7
  %v6683 = vsub.s32 %v6680, %v6682
  %v6684 = vrot.slane %v6613, %v6683
  %v6685 = vcombine.high %v6684, %v6684
  %vm6686 = vcmask 1040384
  %vm6687 = vcmask 1042434
  %vm6688 = vmor %vm6686, %vm6687
  %vm6689 = vcmask 1044484
  %vm6690 = vmor %vm6688, %vm6689
  %vm6691 = vcmask 1046534
  %vm6692 = vmor %vm6690, %vm6691
  %v6693 = vrot.slane %v6628, 7
  %v6694 = vrot.slane %v6693, 2
  %v6695 = vrot.slane %v6629, 7
  %v6696 = vsel %vm6692, %v6694, %v6695
  %v6697 = vrot.slane %v6636, 7
  %v6698 = vrot.slane %v6697, 2
  %v6699 = vrot.slane %v6637, 7
  %v6700 = vsel %vm6692, %v6698, %v6699
  %v6701 = vrot.slane %v6644, 7
  %v6702 = vrot.slane %v6701, 2
  %v6703 = vrot.slane %v6645, 7
  %v6704 = vsel %vm6692, %v6702, %v6703
  %v6705 = vrot.slane %v6652, 7
  %v6706 = vrot.slane %v6705, 2
  %v6707 = vrot.slane %v6653, 7
  %v6708 = vsel %vm6692, %v6706, %v6707
  %v6709 = vrot.slane %v6660, 7
  %v6710 = vrot.slane %v6709, 2
  %v6711 = vrot.slane %v6661, 7
  %v6712 = vsel %vm6692, %v6710, %v6711
  %v6713 = vrot.slane %v6668, 7
  %v6714 = vrot.slane %v6713, 2
  %v6715 = vrot.slane %v6669, 7
  %v6716 = vsel %vm6692, %v6714, %v6715
  %v6717 = vrot.slane %v6676, 7
  %v6718 = vrot.slane %v6717, 2
  %v6719 = vrot.slane %v6677, 7
  %v6720 = vsel %vm6692, %v6718, %v6719
  %v6721 = vrot.slane %v6684, 7
  %v6722 = vrot.slane %v6721, 2
  %v6723 = vrot.slane %v6685, 7
  %v6724 = vsel %vm6692, %v6722, %v6723
  %v6725 = vcombine.low %v6696, %v6700
  %v6727 = vunpack.c.l.s4 1983009808
  %v6728 = vunpack.c.0.s8 %v6727
  %v6729 = vlaneseq
  %v6730 = vshrl.u32 %v6729, 7
  %v6731 = vsub.s32 %v6728, %v6730
  %v6732 = vrot.slane %v6725, %v6731
  %v6733 = vcombine.low %v6704, %v6708
  %v6735 = vunpack.c.l.s4 1983009808
  %v6736 = vunpack.c.0.s8 %v6735
  %v6737 = vlaneseq
  %v6738 = vshrl.u32 %v6737, 7
  %v6739 = vsub.s32 %v6736, %v6738
  %v6740 = vrot.slane %v6733, %v6739
  %v6741 = vcombine.low %v6712, %v6716
  %v6743 = vunpack.c.l.s4 1983009808
  %v6744 = vunpack.c.0.s8 %v6743
  %v6745 = vlaneseq
  %v6746 = vshrl.u32 %v6745, 7
  %v6747 = vsub.s32 %v6744, %v6746
  %v6748 = vrot.slane %v6741, %v6747
  %v6749 = vcombine.low %v6720, %v6724
  %v6751 = vunpack.c.l.s4 1983009808
  %v6752 = vunpack.c.0.s8 %v6751
  %v6753 = vlaneseq
  %v6754 = vshrl.u32 %v6753, 7
  %v6755 = vsub.s32 %v6752, %v6754
  %v6756 = vrot.slane %v6749, %v6755
  %6761 = vst.msk [vmem:[#allocation5 + $0x4] sm:$0xf] %vm6353, %v6732
  %6762 = vst.msk [vmem:[#allocation5 + $0x18] sm:$0xf] %vm6353, %v6740
  %6763 = vst.msk [vmem:[#allocation5 + $0x2c] sm:$0xf] %vm6353, %v6748
  %6764 = vst.msk [vmem:[#allocation5 + $0x40] sm:$0xf] %vm6353, %v6756
  %v6765 = vld [vmem:[%s6273] sm:$0x3]
  %v6766 = vld [vmem:[%s6273 + $0x4] sm:$0x3]
  %v6767 = vld [vmem:[%s6273 + $0x8] sm:$0x3]
  %v6768 = vld [vmem:[%s6273 + $0xc] sm:$0x3]
  %v6769 = vld [vmem:[%s6273 + $0x18] sm:$0x3]
  %v6770 = vld [vmem:[%s6273 + $0x1c] sm:$0x3]
  %v6771 = vld [vmem:[%s6273 + $0x20] sm:$0x3]
  %v6772 = vld [vmem:[%s6273 + $0x24] sm:$0x3]
  %v6781 = vcombine.low %v6765, %v6766
  %v6783 = vunpack.c.l.s4 1983009808
  %v6784 = vunpack.c.0.s8 %v6783
  %v6785 = vlaneseq
  %v6786 = vshrl.u32 %v6785, 7
  %v6787 = vsub.s32 %v6784, %v6786
  %v6788 = vrot.slane %v6781, %v6787
  %v6789 = vcombine.low %v6767, %v6768
  %v6791 = vunpack.c.l.s4 1983009808
  %v6792 = vunpack.c.0.s8 %v6791
  %v6793 = vlaneseq
  %v6794 = vshrl.u32 %v6793, 7
  %v6795 = vsub.s32 %v6792, %v6794
  %v6796 = vrot.slane %v6789, %v6795
  %v6797 = vcombine.low %v6769, %v6770
  %v6799 = vunpack.c.l.s4 1983009808
  %v6800 = vunpack.c.0.s8 %v6799
  %v6801 = vlaneseq
  %v6802 = vshrl.u32 %v6801, 7
  %v6803 = vsub.s32 %v6800, %v6802
  %v6804 = vrot.slane %v6797, %v6803
  %v6805 = vcombine.low %v6771, %v6772
  %v6807 = vunpack.c.l.s4 1983009808
  %v6808 = vunpack.c.0.s8 %v6807
  %v6809 = vlaneseq
  %v6810 = vshrl.u32 %v6809, 7
  %v6811 = vsub.s32 %v6808, %v6810
  %v6812 = vrot.slane %v6805, %v6811
  %6813 = vrot.lane.b32.xlu0 %v6788, 64
  %v6814 = vpop.permute.xlu0 %6813
  %6815 = vrot.lane.b32.xlu0 %v6796, 64
  %v6816 = vpop.permute.xlu0 %6815
  %6817 = vrot.lane.b32.xlu0 %v6804, 64
  %v6818 = vpop.permute.xlu0 %6817
  %6819 = vrot.lane.b32.xlu0 %v6812, 64
  %v6820 = vpop.permute.xlu0 %6819
  %6825 = vst.msk [vmem:[#allocation5 + $0x4] sm:$0xf] %vm6601, %v6814
  %6826 = vst.msk [vmem:[#allocation5 + $0x18] sm:$0xf] %vm6601, %v6816
  %6827 = vst.msk [vmem:[#allocation5 + $0x2c] sm:$0xf] %vm6601, %v6818
  %6828 = vst.msk [vmem:[#allocation5 + $0x40] sm:$0xf] %vm6601, %v6820
  %v6829 = vld [vmem:[%s6273] sm:$0x7]
  %v6830 = vld [vmem:[%s6273 + $0x4] sm:$0x7]
  %v6831 = vld [vmem:[%s6273 + $0x8] sm:$0x7]
  %v6832 = vld [vmem:[%s6273 + $0xc] sm:$0x7]
  %v6833 = vld [vmem:[%s6273 + $0x18] sm:$0x7]
  %v6834 = vld [vmem:[%s6273 + $0x1c] sm:$0x7]
  %v6835 = vld [vmem:[%s6273 + $0x20] sm:$0x7]
  %v6836 = vld [vmem:[%s6273 + $0x24] sm:$0x7]
  %v6846 = vunpack.c.l.s4 1983009808
  %v6847 = vunpack.c.0.s8 %v6846
  %v6848 = vlaneseq
  %v6849 = vshrl.u32 %v6848, 7
  %v6850 = vsub.s32 %v6847, %v6849
  %v6851 = vrot.slane %v6829, %v6850
  %v6852 = vcombine.high %v6851, %v6851
  %v6854 = vunpack.c.l.s4 1983009808
  %v6855 = vunpack.c.0.s8 %v6854
  %v6856 = vlaneseq
  %v6857 = vshrl.u32 %v6856, 7
  %v6858 = vsub.s32 %v6855, %v6857
  %v6859 = vrot.slane %v6830, %v6858
  %v6860 = vcombine.high %v6859, %v6859
  %v6862 = vunpack.c.l.s4 1983009808
  %v6863 = vunpack.c.0.s8 %v6862
  %v6864 = vlaneseq
  %v6865 = vshrl.u32 %v6864, 7
  %v6866 = vsub.s32 %v6863, %v6865
  %v6867 = vrot.slane %v6831, %v6866
  %v6868 = vcombine.high %v6867, %v6867
  %v6870 = vunpack.c.l.s4 1983009808
  %v6871 = vunpack.c.0.s8 %v6870
  %v6872 = vlaneseq
  %v6873 = vshrl.u32 %v6872, 7
  %v6874 = vsub.s32 %v6871, %v6873
  %v6875 = vrot.slane %v6832, %v6874
  %v6876 = vcombine.high %v6875, %v6875
  %v6878 = vunpack.c.l.s4 1983009808
  %v6879 = vunpack.c.0.s8 %v6878
  %v6880 = vlaneseq
  %v6881 = vshrl.u32 %v6880, 7
  %v6882 = vsub.s32 %v6879, %v6881
  %v6883 = vrot.slane %v6833, %v6882
  %v6884 = vcombine.high %v6883, %v6883
  %v6886 = vunpack.c.l.s4 1983009808
  %v6887 = vunpack.c.0.s8 %v6886
  %v6888 = vlaneseq
  %v6889 = vshrl.u32 %v6888, 7
  %v6890 = vsub.s32 %v6887, %v6889
  %v6891 = vrot.slane %v6834, %v6890
  %v6892 = vcombine.high %v6891, %v6891
  %v6894 = vunpack.c.l.s4 1983009808
  %v6895 = vunpack.c.0.s8 %v6894
  %v6896 = vlaneseq
  %v6897 = vshrl.u32 %v6896, 7
  %v6898 = vsub.s32 %v6895, %v6897
  %v6899 = vrot.slane %v6835, %v6898
  %v6900 = vcombine.high %v6899, %v6899
  %v6902 = vunpack.c.l.s4 1983009808
  %v6903 = vunpack.c.0.s8 %v6902
  %v6904 = vlaneseq
  %v6905 = vshrl.u32 %v6904, 7
  %v6906 = vsub.s32 %v6903, %v6905
  %v6907 = vrot.slane %v6836, %v6906
  %v6908 = vcombine.high %v6907, %v6907
  %v6910 = vshrl.u32 %v6851, 16
  %v6912 = vrot.slane %v6910, 6
  %v6913 = vshll.u32 %v6851, 16
  %v6915 = vrot.slane %v6913, 7
  %v6916 = vor.u32 %v6912, %v6915
  %v6917 = vrot.slane %v6916, 2
  %v6919 = vshll.u32 %v6852, 16
  %v6921 = vrot.slane %v6919, 7
  %v6922 = vsel %vm6444, %v6917, %v6921
  %v6924 = vshrl.u32 %v6859, 16
  %v6926 = vrot.slane %v6924, 6
  %v6927 = vshll.u32 %v6859, 16
  %v6929 = vrot.slane %v6927, 7
  %v6930 = vor.u32 %v6926, %v6929
  %v6931 = vrot.slane %v6930, 2
  %v6933 = vshll.u32 %v6860, 16
  %v6935 = vrot.slane %v6933, 7
  %v6936 = vsel %vm6444, %v6931, %v6935
  %v6938 = vshrl.u32 %v6867, 16
  %v6940 = vrot.slane %v6938, 6
  %v6941 = vshll.u32 %v6867, 16
  %v6943 = vrot.slane %v6941, 7
  %v6944 = vor.u32 %v6940, %v6943
  %v6945 = vrot.slane %v6944, 2
  %v6947 = vshll.u32 %v6868, 16
  %v6949 = vrot.slane %v6947, 7
  %v6950 = vsel %vm6444, %v6945, %v6949
  %v6952 = vshrl.u32 %v6875, 16
  %v6954 = vrot.slane %v6952, 6
  %v6955 = vshll.u32 %v6875, 16
  %v6957 = vrot.slane %v6955, 7
  %v6958 = vor.u32 %v6954, %v6957
  %v6959 = vrot.slane %v6958, 2
  %v6961 = vshll.u32 %v6876, 16
  %v6963 = vrot.slane %v6961, 7
  %v6964 = vsel %vm6444, %v6959, %v6963
  %v6966 = vshrl.u32 %v6883, 16
  %v6968 = vrot.slane %v6966, 6
  %v6969 = vshll.u32 %v6883, 16
  %v6971 = vrot.slane %v6969, 7
  %v6972 = vor.u32 %v6968, %v6971
  %v6973 = vrot.slane %v6972, 2
  %v6975 = vshll.u32 %v6884, 16
  %v6977 = vrot.slane %v6975, 7
  %v6978 = vsel %vm6444, %v6973, %v6977
  %v6980 = vshrl.u32 %v6891, 16
  %v6982 = vrot.slane %v6980, 6
  %v6983 = vshll.u32 %v6891, 16
  %v6985 = vrot.slane %v6983, 7
  %v6986 = vor.u32 %v6982, %v6985
  %v6987 = vrot.slane %v6986, 2
  %v6989 = vshll.u32 %v6892, 16
  %v6991 = vrot.slane %v6989, 7
  %v6992 = vsel %vm6444, %v6987, %v6991
  %v6994 = vshrl.u32 %v6899, 16
  %v6996 = vrot.slane %v6994, 6
  %v6997 = vshll.u32 %v6899, 16
  %v6999 = vrot.slane %v6997, 7
  %v7000 = vor.u32 %v6996, %v6999
  %v7001 = vrot.slane %v7000, 2
  %v7003 = vshll.u32 %v6900, 16
  %v7005 = vrot.slane %v7003, 7
  %v7006 = vsel %vm6444, %v7001, %v7005
  %v7008 = vshrl.u32 %v6907, 16
  %v7010 = vrot.slane %v7008, 6
  %v7011 = vshll.u32 %v6907, 16
  %v7013 = vrot.slane %v7011, 7
  %v7014 = vor.u32 %v7010, %v7013
  %v7015 = vrot.slane %v7014, 2
  %v7017 = vshll.u32 %v6908, 16
  %v7019 = vrot.slane %v7017, 7
  %v7020 = vsel %vm6444, %v7015, %v7019
  %v7021 = vcombine.low %v6922, %v6936
  %v7023 = vunpack.c.l.s4 1983009808
  %v7024 = vunpack.c.0.s8 %v7023
  %v7025 = vlaneseq
  %v7026 = vshrl.u32 %v7025, 7
  %v7027 = vsub.s32 %v7024, %v7026
  %v7028 = vrot.slane %v7021, %v7027
  %v7029 = vcombine.low %v6950, %v6964
  %v7031 = vunpack.c.l.s4 1983009808
  %v7032 = vunpack.c.0.s8 %v7031
  %v7033 = vlaneseq
  %v7034 = vshrl.u32 %v7033, 7
  %v7035 = vsub.s32 %v7032, %v7034
  %v7036 = vrot.slane %v7029, %v7035
  %v7037 = vcombine.low %v6978, %v6992
  %v7039 = vunpack.c.l.s4 1983009808
  %v7040 = vunpack.c.0.s8 %v7039
  %v7041 = vlaneseq
  %v7042 = vshrl.u32 %v7041, 7
  %v7043 = vsub.s32 %v7040, %v7042
  %v7044 = vrot.slane %v7037, %v7043
  %v7045 = vcombine.low %v7006, %v7020
  %v7047 = vunpack.c.l.s4 1983009808
  %v7048 = vunpack.c.0.s8 %v7047
  %v7049 = vlaneseq
  %v7050 = vshrl.u32 %v7049, 7
  %v7051 = vsub.s32 %v7048, %v7050
  %v7052 = vrot.slane %v7045, %v7051
  %7057 = vst.msk [vmem:[#allocation5 + $0x8] sm:$0xf] %vm6353, %v7028
  %7058 = vst.msk [vmem:[#allocation5 + $0x1c] sm:$0xf] %vm6353, %v7036
  %7059 = vst.msk [vmem:[#allocation5 + $0x30] sm:$0xf] %vm6353, %v7044
  %7060 = vst.msk [vmem:[#allocation5 + $0x44] sm:$0xf] %vm6353, %v7052
  %v7061 = vld [vmem:[%s6273] sm:$0x6]
  %v7062 = vld [vmem:[%s6273 + $0x4] sm:$0x6]
  %v7063 = vld [vmem:[%s6273 + $0x8] sm:$0x6]
  %v7064 = vld [vmem:[%s6273 + $0xc] sm:$0x6]
  %v7065 = vld [vmem:[%s6273 + $0x18] sm:$0x6]
  %v7066 = vld [vmem:[%s6273 + $0x1c] sm:$0x6]
  %v7067 = vld [vmem:[%s6273 + $0x20] sm:$0x6]
  %v7068 = vld [vmem:[%s6273 + $0x24] sm:$0x6]
  %v7078 = vunpack.c.l.s4 1983009808
  %v7079 = vunpack.c.0.s8 %v7078
  %v7080 = vlaneseq
  %v7081 = vshrl.u32 %v7080, 7
  %v7082 = vsub.s32 %v7079, %v7081
  %v7083 = vrot.slane %v7061, %v7082
  %v7084 = vcombine.high %v7083, %v7083
  %v7086 = vunpack.c.l.s4 1983009808
  %v7087 = vunpack.c.0.s8 %v7086
  %v7088 = vlaneseq
  %v7089 = vshrl.u32 %v7088, 7
  %v7090 = vsub.s32 %v7087, %v7089
  %v7091 = vrot.slane %v7062, %v7090
  %v7092 = vcombine.high %v7091, %v7091
  %v7094 = vunpack.c.l.s4 1983009808
  %v7095 = vunpack.c.0.s8 %v7094
  %v7096 = vlaneseq
  %v7097 = vshrl.u32 %v7096, 7
  %v7098 = vsub.s32 %v7095, %v7097
  %v7099 = vrot.slane %v7063, %v7098
  %v7100 = vcombine.high %v7099, %v7099
  %v7102 = vunpack.c.l.s4 1983009808
  %v7103 = vunpack.c.0.s8 %v7102
  %v7104 = vlaneseq
  %v7105 = vshrl.u32 %v7104, 7
  %v7106 = vsub.s32 %v7103, %v7105
  %v7107 = vrot.slane %v7064, %v7106
  %v7108 = vcombine.high %v7107, %v7107
  %v7110 = vunpack.c.l.s4 1983009808
  %v7111 = vunpack.c.0.s8 %v7110
  %v7112 = vlaneseq
  %v7113 = vshrl.u32 %v7112, 7
  %v7114 = vsub.s32 %v7111, %v7113
  %v7115 = vrot.slane %v7065, %v7114
  %v7116 = vcombine.high %v7115, %v7115
  %v7118 = vunpack.c.l.s4 1983009808
  %v7119 = vunpack.c.0.s8 %v7118
  %v7120 = vlaneseq
  %v7121 = vshrl.u32 %v7120, 7
  %v7122 = vsub.s32 %v7119, %v7121
  %v7123 = vrot.slane %v7066, %v7122
  %v7124 = vcombine.high %v7123, %v7123
  %v7126 = vunpack.c.l.s4 1983009808
  %v7127 = vunpack.c.0.s8 %v7126
  %v7128 = vlaneseq
  %v7129 = vshrl.u32 %v7128, 7
  %v7130 = vsub.s32 %v7127, %v7129
  %v7131 = vrot.slane %v7067, %v7130
  %v7132 = vcombine.high %v7131, %v7131
  %v7134 = vunpack.c.l.s4 1983009808
  %v7135 = vunpack.c.0.s8 %v7134
  %v7136 = vlaneseq
  %v7137 = vshrl.u32 %v7136, 7
  %v7138 = vsub.s32 %v7135, %v7137
  %v7139 = vrot.slane %v7068, %v7138
  %v7140 = vcombine.high %v7139, %v7139
  %v7141 = vrot.slane %v7083, 7
  %v7142 = vrot.slane %v7141, 2
  %v7143 = vrot.slane %v7084, 7
  %v7144 = vsel %vm6692, %v7142, %v7143
  %v7145 = vrot.slane %v7091, 7
  %v7146 = vrot.slane %v7145, 2
  %v7147 = vrot.slane %v7092, 7
  %v7148 = vsel %vm6692, %v7146, %v7147
  %v7149 = vrot.slane %v7099, 7
  %v7150 = vrot.slane %v7149, 2
  %v7151 = vrot.slane %v7100, 7
  %v7152 = vsel %vm6692, %v7150, %v7151
  %v7153 = vrot.slane %v7107, 7
  %v7154 = vrot.slane %v7153, 2
  %v7155 = vrot.slane %v7108, 7
  %v7156 = vsel %vm6692, %v7154, %v7155
  %v7157 = vrot.slane %v7115, 7
  %v7158 = vrot.slane %v7157, 2
  %v7159 = vrot.slane %v7116, 7
  %v7160 = vsel %vm6692, %v7158, %v7159
  %v7161 = vrot.slane %v7123, 7
  %v7162 = vrot.slane %v7161, 2
  %v7163 = vrot.slane %v7124, 7
  %v7164 = vsel %vm6692, %v7162, %v7163
  %v7165 = vrot.slane %v7131, 7
  %v7166 = vrot.slane %v7165, 2
  %v7167 = vrot.slane %v7132, 7
  %v7168 = vsel %vm6692, %v7166, %v7167
  %v7169 = vrot.slane %v7139, 7
  %v7170 = vrot.slane %v7169, 2
  %v7171 = vrot.slane %v7140, 7
  %v7172 = vsel %vm6692, %v7170, %v7171
  %v7173 = vcombine.low %v7144, %v7148
  %v7175 = vunpack.c.l.s4 1983009808
  %v7176 = vunpack.c.0.s8 %v7175
  %v7177 = vlaneseq
  %v7178 = vshrl.u32 %v7177, 7
  %v7179 = vsub.s32 %v7176, %v7178
  %v7180 = vrot.slane %v7173, %v7179
  %v7181 = vcombine.low %v7152, %v7156
  %v7183 = vunpack.c.l.s4 1983009808
  %v7184 = vunpack.c.0.s8 %v7183
  %v7185 = vlaneseq
  %v7186 = vshrl.u32 %v7185, 7
  %v7187 = vsub.s32 %v7184, %v7186
  %v7188 = vrot.slane %v7181, %v7187
  %v7189 = vcombine.low %v7160, %v7164
  %v7191 = vunpack.c.l.s4 1983009808
  %v7192 = vunpack.c.0.s8 %v7191
  %v7193 = vlaneseq
  %v7194 = vshrl.u32 %v7193, 7
  %v7195 = vsub.s32 %v7192, %v7194
  %v7196 = vrot.slane %v7189, %v7195
  %v7197 = vcombine.low %v7168, %v7172
  %v7199 = vunpack.c.l.s4 1983009808
  %v7200 = vunpack.c.0.s8 %v7199
  %v7201 = vlaneseq
  %v7202 = vshrl.u32 %v7201, 7
  %v7203 = vsub.s32 %v7200, %v7202
  %v7204 = vrot.slane %v7197, %v7203
  %7205 = vrot.lane.b32.xlu0 %v7180, 64
  %v7206 = vpop.permute.xlu0 %7205
  %7207 = vrot.lane.b32.xlu0 %v7188, 64
  %v7208 = vpop.permute.xlu0 %7207
  %7209 = vrot.lane.b32.xlu0 %v7196, 64
  %v7210 = vpop.permute.xlu0 %7209
  %7211 = vrot.lane.b32.xlu0 %v7204, 64
  %v7212 = vpop.permute.xlu0 %7211
  %7217 = vst.msk [vmem:[#allocation5 + $0x8] sm:$0xf] %vm6601, %v7206
  %7218 = vst.msk [vmem:[#allocation5 + $0x1c] sm:$0xf] %vm6601, %v7208
  %7219 = vst.msk [vmem:[#allocation5 + $0x30] sm:$0xf] %vm6601, %v7210
  %7220 = vst.msk [vmem:[#allocation5 + $0x44] sm:$0xf] %vm6601, %v7212
  %s7221 = scalar_lea.vmem [#allocation4], 8
  %v7222 = vld [vmem:[%s7221] sm:$0x3]
  %v7223 = vld [vmem:[%s7221 + $0x4] sm:$0x3]
  %v7224 = vld [vmem:[%s7221 + $0x8] sm:$0x3]
  %v7225 = vld [vmem:[%s7221 + $0xc] sm:$0x3]
  %v7226 = vld [vmem:[%s7221 + $0x18] sm:$0x3]
  %v7227 = vld [vmem:[%s7221 + $0x1c] sm:$0x3]
  %v7228 = vld [vmem:[%s7221 + $0x20] sm:$0x3]
  %v7229 = vld [vmem:[%s7221 + $0x24] sm:$0x3]
  %v7238 = vcombine.low %v7222, %v7223
  %v7240 = vunpack.c.l.s4 1983009808
  %v7241 = vunpack.c.0.s8 %v7240
  %v7242 = vlaneseq
  %v7243 = vshrl.u32 %v7242, 7
  %v7244 = vsub.s32 %v7241, %v7243
  %v7245 = vrot.slane %v7238, %v7244
  %v7246 = vcombine.low %v7224, %v7225
  %v7248 = vunpack.c.l.s4 1983009808
  %v7249 = vunpack.c.0.s8 %v7248
  %v7250 = vlaneseq
  %v7251 = vshrl.u32 %v7250, 7
  %v7252 = vsub.s32 %v7249, %v7251
  %v7253 = vrot.slane %v7246, %v7252
  %v7254 = vcombine.low %v7226, %v7227
  %v7256 = vunpack.c.l.s4 1983009808
  %v7257 = vunpack.c.0.s8 %v7256
  %v7258 = vlaneseq
  %v7259 = vshrl.u32 %v7258, 7
  %v7260 = vsub.s32 %v7257, %v7259
  %v7261 = vrot.slane %v7254, %v7260
  %v7262 = vcombine.low %v7228, %v7229
  %v7264 = vunpack.c.l.s4 1983009808
  %v7265 = vunpack.c.0.s8 %v7264
  %v7266 = vlaneseq
  %v7267 = vshrl.u32 %v7266, 7
  %v7268 = vsub.s32 %v7265, %v7267
  %v7269 = vrot.slane %v7262, %v7268
  %7274 = vst.msk [vmem:[#allocation5 + $0xc] sm:$0xf] %vm6353, %v7245
  %7275 = vst.msk [vmem:[#allocation5 + $0x20] sm:$0xf] %vm6353, %v7253
  %7276 = vst.msk [vmem:[#allocation5 + $0x34] sm:$0xf] %vm6353, %v7261
  %7277 = vst.msk [vmem:[#allocation5 + $0x48] sm:$0xf] %vm6353, %v7269
  %v7278 = vld [vmem:[%s7221] sm:$0x7]
  %v7279 = vld [vmem:[%s7221 + $0x4] sm:$0x7]
  %v7280 = vld [vmem:[%s7221 + $0x8] sm:$0x7]
  %v7281 = vld [vmem:[%s7221 + $0xc] sm:$0x7]
  %v7282 = vld [vmem:[%s7221 + $0x18] sm:$0x7]
  %v7283 = vld [vmem:[%s7221 + $0x1c] sm:$0x7]
  %v7284 = vld [vmem:[%s7221 + $0x20] sm:$0x7]
  %v7285 = vld [vmem:[%s7221 + $0x24] sm:$0x7]
  %v7295 = vunpack.c.l.s4 1983009808
  %v7296 = vunpack.c.0.s8 %v7295
  %v7297 = vlaneseq
  %v7298 = vshrl.u32 %v7297, 7
  %v7299 = vsub.s32 %v7296, %v7298
  %v7300 = vrot.slane %v7278, %v7299
  %v7301 = vcombine.high %v7300, %v7300
  %v7303 = vunpack.c.l.s4 1983009808
  %v7304 = vunpack.c.0.s8 %v7303
  %v7305 = vlaneseq
  %v7306 = vshrl.u32 %v7305, 7
  %v7307 = vsub.s32 %v7304, %v7306
  %v7308 = vrot.slane %v7279, %v7307
  %v7309 = vcombine.high %v7308, %v7308
  %v7311 = vunpack.c.l.s4 1983009808
  %v7312 = vunpack.c.0.s8 %v7311
  %v7313 = vlaneseq
  %v7314 = vshrl.u32 %v7313, 7
  %v7315 = vsub.s32 %v7312, %v7314
  %v7316 = vrot.slane %v7280, %v7315
  %v7317 = vcombine.high %v7316, %v7316
  %v7319 = vunpack.c.l.s4 1983009808
  %v7320 = vunpack.c.0.s8 %v7319
  %v7321 = vlaneseq
  %v7322 = vshrl.u32 %v7321, 7
  %v7323 = vsub.s32 %v7320, %v7322
  %v7324 = vrot.slane %v7281, %v7323
  %v7325 = vcombine.high %v7324, %v7324
  %v7327 = vunpack.c.l.s4 1983009808
  %v7328 = vunpack.c.0.s8 %v7327
  %v7329 = vlaneseq
  %v7330 = vshrl.u32 %v7329, 7
  %v7331 = vsub.s32 %v7328, %v7330
  %v7332 = vrot.slane %v7282, %v7331
  %v7333 = vcombine.high %v7332, %v7332
  %v7335 = vunpack.c.l.s4 1983009808
  %v7336 = vunpack.c.0.s8 %v7335
  %v7337 = vlaneseq
  %v7338 = vshrl.u32 %v7337, 7
  %v7339 = vsub.s32 %v7336, %v7338
  %v7340 = vrot.slane %v7283, %v7339
  %v7341 = vcombine.high %v7340, %v7340
  %v7343 = vunpack.c.l.s4 1983009808
  %v7344 = vunpack.c.0.s8 %v7343
  %v7345 = vlaneseq
  %v7346 = vshrl.u32 %v7345, 7
  %v7347 = vsub.s32 %v7344, %v7346
  %v7348 = vrot.slane %v7284, %v7347
  %v7349 = vcombine.high %v7348, %v7348
  %v7351 = vunpack.c.l.s4 1983009808
  %v7352 = vunpack.c.0.s8 %v7351
  %v7353 = vlaneseq
  %v7354 = vshrl.u32 %v7353, 7
  %v7355 = vsub.s32 %v7352, %v7354
  %v7356 = vrot.slane %v7285, %v7355
  %v7357 = vcombine.high %v7356, %v7356
  %v7359 = vshrl.u32 %v7300, 16
  %v7361 = vrot.slane %v7359, 6
  %v7362 = vshll.u32 %v7300, 16
  %v7364 = vrot.slane %v7362, 7
  %v7365 = vor.u32 %v7361, %v7364
  %v7366 = vrot.slane %v7365, 2
  %v7368 = vshll.u32 %v7301, 16
  %v7370 = vrot.slane %v7368, 7
  %v7371 = vsel %vm6444, %v7366, %v7370
  %v7373 = vshrl.u32 %v7308, 16
  %v7375 = vrot.slane %v7373, 6
  %v7376 = vshll.u32 %v7308, 16
  %v7378 = vrot.slane %v7376, 7
  %v7379 = vor.u32 %v7375, %v7378
  %v7380 = vrot.slane %v7379, 2
  %v7382 = vshll.u32 %v7309, 16
  %v7384 = vrot.slane %v7382, 7
  %v7385 = vsel %vm6444, %v7380, %v7384
  %v7387 = vshrl.u32 %v7316, 16
  %v7389 = vrot.slane %v7387, 6
  %v7390 = vshll.u32 %v7316, 16
  %v7392 = vrot.slane %v7390, 7
  %v7393 = vor.u32 %v7389, %v7392
  %v7394 = vrot.slane %v7393, 2
  %v7396 = vshll.u32 %v7317, 16
  %v7398 = vrot.slane %v7396, 7
  %v7399 = vsel %vm6444, %v7394, %v7398
  %v7401 = vshrl.u32 %v7324, 16
  %v7403 = vrot.slane %v7401, 6
  %v7404 = vshll.u32 %v7324, 16
  %v7406 = vrot.slane %v7404, 7
  %v7407 = vor.u32 %v7403, %v7406
  %v7408 = vrot.slane %v7407, 2
  %v7410 = vshll.u32 %v7325, 16
  %v7412 = vrot.slane %v7410, 7
  %v7413 = vsel %vm6444, %v7408, %v7412
  %v7415 = vshrl.u32 %v7332, 16
  %v7417 = vrot.slane %v7415, 6
  %v7418 = vshll.u32 %v7332, 16
  %v7420 = vrot.slane %v7418, 7
  %v7421 = vor.u32 %v7417, %v7420
  %v7422 = vrot.slane %v7421, 2
  %v7424 = vshll.u32 %v7333, 16
  %v7426 = vrot.slane %v7424, 7
  %v7427 = vsel %vm6444, %v7422, %v7426
  %v7429 = vshrl.u32 %v7340, 16
  %v7431 = vrot.slane %v7429, 6
  %v7432 = vshll.u32 %v7340, 16
  %v7434 = vrot.slane %v7432, 7
  %v7435 = vor.u32 %v7431, %v7434
  %v7436 = vrot.slane %v7435, 2
  %v7438 = vshll.u32 %v7341, 16
  %v7440 = vrot.slane %v7438, 7
  %v7441 = vsel %vm6444, %v7436, %v7440
  %v7443 = vshrl.u32 %v7348, 16
  %v7445 = vrot.slane %v7443, 6
  %v7446 = vshll.u32 %v7348, 16
  %v7448 = vrot.slane %v7446, 7
  %v7449 = vor.u32 %v7445, %v7448
  %v7450 = vrot.slane %v7449, 2
  %v7452 = vshll.u32 %v7349, 16
  %v7454 = vrot.slane %v7452, 7
  %v7455 = vsel %vm6444, %v7450, %v7454
  %v7457 = vshrl.u32 %v7356, 16
  %v7459 = vrot.slane %v7457, 6
  %v7460 = vshll.u32 %v7356, 16
  %v7462 = vrot.slane %v7460, 7
  %v7463 = vor.u32 %v7459, %v7462
  %v7464 = vrot.slane %v7463, 2
  %v7466 = vshll.u32 %v7357, 16
  %v7468 = vrot.slane %v7466, 7
  %v7469 = vsel %vm6444, %v7464, %v7468
  %v7470 = vcombine.low %v7371, %v7385
  %v7472 = vunpack.c.l.s4 1983009808
  %v7473 = vunpack.c.0.s8 %v7472
  %v7474 = vlaneseq
  %v7475 = vshrl.u32 %v7474, 7
  %v7476 = vsub.s32 %v7473, %v7475
  %v7477 = vrot.slane %v7470, %v7476
  %v7478 = vcombine.low %v7399, %v7413
  %v7480 = vunpack.c.l.s4 1983009808
  %v7481 = vunpack.c.0.s8 %v7480
  %v7482 = vlaneseq
  %v7483 = vshrl.u32 %v7482, 7
  %v7484 = vsub.s32 %v7481, %v7483
  %v7485 = vrot.slane %v7478, %v7484
  %v7486 = vcombine.low %v7427, %v7441
  %v7488 = vunpack.c.l.s4 1983009808
  %v7489 = vunpack.c.0.s8 %v7488
  %v7490 = vlaneseq
  %v7491 = vshrl.u32 %v7490, 7
  %v7492 = vsub.s32 %v7489, %v7491
  %v7493 = vrot.slane %v7486, %v7492
  %v7494 = vcombine.low %v7455, %v7469
  %v7496 = vunpack.c.l.s4 1983009808
  %v7497 = vunpack.c.0.s8 %v7496
  %v7498 = vlaneseq
  %v7499 = vshrl.u32 %v7498, 7
  %v7500 = vsub.s32 %v7497, %v7499
  %v7501 = vrot.slane %v7494, %v7500
  %7502 = vrot.lane.b32.xlu0 %v7477, 64
  %v7503 = vpop.permute.xlu0 %7502
  %7504 = vrot.lane.b32.xlu0 %v7485, 64
  %v7505 = vpop.permute.xlu0 %7504
  %7506 = vrot.lane.b32.xlu0 %v7493, 64
  %v7507 = vpop.permute.xlu0 %7506
  %7508 = vrot.lane.b32.xlu0 %v7501, 64
  %v7509 = vpop.permute.xlu0 %7508
  %7514 = vst.msk [vmem:[#allocation5 + $0xc] sm:$0xf] %vm6601, %v7503
  %7515 = vst.msk [vmem:[#allocation5 + $0x20] sm:$0xf] %vm6601, %v7505
  %7516 = vst.msk [vmem:[#allocation5 + $0x34] sm:$0xf] %vm6601, %v7507
  %7517 = vst.msk [vmem:[#allocation5 + $0x48] sm:$0xf] %vm6601, %v7509
  %v7518 = vld [vmem:[%s7221] sm:$0x6]
  %v7519 = vld [vmem:[%s7221 + $0x4] sm:$0x6]
  %v7520 = vld [vmem:[%s7221 + $0x8] sm:$0x6]
  %v7521 = vld [vmem:[%s7221 + $0xc] sm:$0x6]
  %v7522 = vld [vmem:[%s7221 + $0x18] sm:$0x6]
  %v7523 = vld [vmem:[%s7221 + $0x1c] sm:$0x6]
  %v7524 = vld [vmem:[%s7221 + $0x20] sm:$0x6]
  %v7525 = vld [vmem:[%s7221 + $0x24] sm:$0x6]
  %v7535 = vunpack.c.l.s4 1983009808
  %v7536 = vunpack.c.0.s8 %v7535
  %v7537 = vlaneseq
  %v7538 = vshrl.u32 %v7537, 7
  %v7539 = vsub.s32 %v7536, %v7538
  %v7540 = vrot.slane %v7518, %v7539
  %v7541 = vcombine.high %v7540, %v7540
  %v7543 = vunpack.c.l.s4 1983009808
  %v7544 = vunpack.c.0.s8 %v7543
  %v7545 = vlaneseq
  %v7546 = vshrl.u32 %v7545, 7
  %v7547 = vsub.s32 %v7544, %v7546
  %v7548 = vrot.slane %v7519, %v7547
  %v7549 = vcombine.high %v7548, %v7548
  %v7551 = vunpack.c.l.s4 1983009808
  %v7552 = vunpack.c.0.s8 %v7551
  %v7553 = vlaneseq
  %v7554 = vshrl.u32 %v7553, 7
  %v7555 = vsub.s32 %v7552, %v7554
  %v7556 = vrot.slane %v7520, %v7555
  %v7557 = vcombine.high %v7556, %v7556
  %v7559 = vunpack.c.l.s4 1983009808
  %v7560 = vunpack.c.0.s8 %v7559
  %v7561 = vlaneseq
  %v7562 = vshrl.u32 %v7561, 7
  %v7563 = vsub.s32 %v7560, %v7562
  %v7564 = vrot.slane %v7521, %v7563
  %v7565 = vcombine.high %v7564, %v7564
  %v7567 = vunpack.c.l.s4 1983009808
  %v7568 = vunpack.c.0.s8 %v7567
  %v7569 = vlaneseq
  %v7570 = vshrl.u32 %v7569, 7
  %v7571 = vsub.s32 %v7568, %v7570
  %v7572 = vrot.slane %v7522, %v7571
  %v7573 = vcombine.high %v7572, %v7572
  %v7575 = vunpack.c.l.s4 1983009808
  %v7576 = vunpack.c.0.s8 %v7575
  %v7577 = vlaneseq
  %v7578 = vshrl.u32 %v7577, 7
  %v7579 = vsub.s32 %v7576, %v7578
  %v7580 = vrot.slane %v7523, %v7579
  %v7581 = vcombine.high %v7580, %v7580
  %v7583 = vunpack.c.l.s4 1983009808
  %v7584 = vunpack.c.0.s8 %v7583
  %v7585 = vlaneseq
  %v7586 = vshrl.u32 %v7585, 7
  %v7587 = vsub.s32 %v7584, %v7586
  %v7588 = vrot.slane %v7524, %v7587
  %v7589 = vcombine.high %v7588, %v7588
  %v7591 = vunpack.c.l.s4 1983009808
  %v7592 = vunpack.c.0.s8 %v7591
  %v7593 = vlaneseq
  %v7594 = vshrl.u32 %v7593, 7
  %v7595 = vsub.s32 %v7592, %v7594
  %v7596 = vrot.slane %v7525, %v7595
  %v7597 = vcombine.high %v7596, %v7596
  %v7598 = vrot.slane %v7540, 7
  %v7599 = vrot.slane %v7598, 2
  %v7600 = vrot.slane %v7541, 7
  %v7601 = vsel %vm6692, %v7599, %v7600
  %v7602 = vrot.slane %v7548, 7
  %v7603 = vrot.slane %v7602, 2
  %v7604 = vrot.slane %v7549, 7
  %v7605 = vsel %vm6692, %v7603, %v7604
  %v7606 = vrot.slane %v7556, 7
  %v7607 = vrot.slane %v7606, 2
  %v7608 = vrot.slane %v7557, 7
  %v7609 = vsel %vm6692, %v7607, %v7608
  %v7610 = vrot.slane %v7564, 7
  %v7611 = vrot.slane %v7610, 2
  %v7612 = vrot.slane %v7565, 7
  %v7613 = vsel %vm6692, %v7611, %v7612
  %v7614 = vrot.slane %v7572, 7
  %v7615 = vrot.slane %v7614, 2
  %v7616 = vrot.slane %v7573, 7
  %v7617 = vsel %vm6692, %v7615, %v7616
  %v7618 = vrot.slane %v7580, 7
  %v7619 = vrot.slane %v7618, 2
  %v7620 = vrot.slane %v7581, 7
  %v7621 = vsel %vm6692, %v7619, %v7620
  %v7622 = vrot.slane %v7588, 7
  %v7623 = vrot.slane %v7622, 2
  %v7624 = vrot.slane %v7589, 7
  %v7625 = vsel %vm6692, %v7623, %v7624
  %v7626 = vrot.slane %v7596, 7
  %v7627 = vrot.slane %v7626, 2
  %v7628 = vrot.slane %v7597, 7
  %v7629 = vsel %vm6692, %v7627, %v7628
  %v7630 = vcombine.low %v7601, %v7605
  %v7632 = vunpack.c.l.s4 1983009808
  %v7633 = vunpack.c.0.s8 %v7632
  %v7634 = vlaneseq
  %v7635 = vshrl.u32 %v7634, 7
  %v7636 = vsub.s32 %v7633, %v7635
  %v7637 = vrot.slane %v7630, %v7636
  %v7638 = vcombine.low %v7609, %v7613
  %v7640 = vunpack.c.l.s4 1983009808
  %v7641 = vunpack.c.0.s8 %v7640
  %v7642 = vlaneseq
  %v7643 = vshrl.u32 %v7642, 7
  %v7644 = vsub.s32 %v7641, %v7643
  %v7645 = vrot.slane %v7638, %v7644
  %v7646 = vcombine.low %v7617, %v7621
  %v7648 = vunpack.c.l.s4 1983009808
  %v7649 = vunpack.c.0.s8 %v7648
  %v7650 = vlaneseq
  %v7651 = vshrl.u32 %v7650, 7
  %v7652 = vsub.s32 %v7649, %v7651
  %v7653 = vrot.slane %v7646, %v7652
  %v7654 = vcombine.low %v7625, %v7629
  %v7656 = vunpack.c.l.s4 1983009808
  %v7657 = vunpack.c.0.s8 %v7656
  %v7658 = vlaneseq
  %v7659 = vshrl.u32 %v7658, 7
  %v7660 = vsub.s32 %v7657, %v7659
  %v7661 = vrot.slane %v7654, %v7660
  %7666 = vst.msk [vmem:[#allocation5 + $0x10] sm:$0xf] %vm6353, %v7637
  %7667 = vst.msk [vmem:[#allocation5 + $0x24] sm:$0xf] %vm6353, %v7645
  %7668 = vst.msk [vmem:[#allocation5 + $0x38] sm:$0xf] %vm6353, %v7653
  %7669 = vst.msk [vmem:[#allocation5 + $0x4c] sm:$0xf] %vm6353, %v7661
  %v7670 = vld [vmem:[#allocation5] sm:$0xff]
  %v7671 = vld [vmem:[#allocation5 + $0x8] sm:$0xff]
  %v7672 = vld [vmem:[#allocation5 + $0x10] sm:$0xf]
  %v7673 = vld [vmem:[#allocation5 + $0x14] sm:$0xff]
  %v7674 = vld [vmem:[#allocation5 + $0x1c] sm:$0xff]
  %v7675 = vld [vmem:[#allocation5 + $0x24] sm:$0xf]
  %v7676 = vld [vmem:[#allocation5 + $0x28] sm:$0xff]
  %v7677 = vld [vmem:[#allocation5 + $0x30] sm:$0xff]
  %v7678 = vld [vmem:[#allocation5 + $0x38] sm:$0xf]
  %v7679 = vld [vmem:[#allocation5 + $0x3c] sm:$0xff]
  %v7680 = vld [vmem:[#allocation5 + $0x44] sm:$0xff]
  %v7681 = vld [vmem:[#allocation5 + $0x4c] sm:$0xf]
  %v7682 = vld [vmem:[%s5] sm:$0xf]
  %v7683 = vld [vmem:[%s5 + $0x4] sm:$0xf]
  %v7684 = vld [vmem:[%s5 + $0x8] sm:$0xf]
  %v7685 = vld [vmem:[%s5 + $0xc] sm:$0xf]
  %v7686 = vld [vmem:[%s5 + $0x10] sm:$0xf]
  %v7687 = vld [vmem:[%s5 + $0x14] sm:$0xf]
  %v7688 = vld [vmem:[%s5 + $0x18] sm:$0xf]
  %v7689 = vld [vmem:[%s5 + $0x1c] sm:$0xf]
  %v7690 = vld [vmem:[%s5 + $0x20] sm:$0xf]
  %v7691 = vld [vmem:[%s5 + $0x24] sm:$0xf]
  %v7692 = vld [vmem:[%s5 + $0x28] sm:$0xf]
  %v7693 = vld [vmem:[%s5 + $0x2c] sm:$0xf]
  %v7694 = vld [vmem:[%s5 + $0x30] sm:$0xf]
  %v7695 = vld [vmem:[%s5 + $0x34] sm:$0xf]
  %v7696 = vld [vmem:[%s5 + $0x38] sm:$0xf]
  %v7697 = vld [vmem:[%s5 + $0x3c] sm:$0xf]
  %v7698 = vld [vmem:[%s5 + $0x40] sm:$0xf]
  %v7699 = vld [vmem:[%s5 + $0x44] sm:$0xf]
  %v7700 = vld [vmem:[%s5 + $0x48] sm:$0xf]
  %v7701 = vld [vmem:[%s5 + $0x4c] sm:$0xf]
  %v7702 = vld [vmem:[%s5 + $0x50] sm:$0xf]
  %v7703 = vld [vmem:[%s5 + $0x54] sm:$0xf]
  %v7704 = vld [vmem:[%s5 + $0x58] sm:$0xf]
  %v7705 = vld [vmem:[%s5 + $0x5c] sm:$0xf]
  %v7706 = vld [vmem:[%s5 + $0x60] sm:$0xf]
  %v7707 = vld [vmem:[%s5 + $0x64] sm:$0xf]
  %v7708 = vld [vmem:[%s5 + $0x68] sm:$0xf]
  %v7709 = vld [vmem:[%s5 + $0x6c] sm:$0xf]
  %v7710 = vld [vmem:[%s5 + $0x70] sm:$0xf]
  %v7711 = vld [vmem:[%s5 + $0x74] sm:$0xf]
  %v7712 = vld [vmem:[%s5 + $0x78] sm:$0xf]
  %v7713 = vld [vmem:[%s5 + $0x7c] sm:$0xf]
  %v7714 = vld [vmem:[%s5 + $0x80] sm:$0xf]
  %v7715 = vld [vmem:[%s5 + $0x84] sm:$0xf]
  %v7716 = vld [vmem:[%s5 + $0x88] sm:$0xf]
  %v7717 = vld [vmem:[%s5 + $0x8c] sm:$0xf]
  %v7718 = vld [vmem:[%s5 + $0x90] sm:$0xf]
  %v7719 = vld [vmem:[%s5 + $0x94] sm:$0xf]
  %v7720 = vld [vmem:[%s5 + $0x98] sm:$0xf]
  %v7721 = vld [vmem:[%s5 + $0x9c] sm:$0xf]
  %v7722 = vld [vmem:[%s5 + $0xa0] sm:$0xf]
  %v7723 = vld [vmem:[%s5 + $0xa4] sm:$0xf]
  %v7724 = vld [vmem:[%s5 + $0xa8] sm:$0xf]
  %v7725 = vld [vmem:[%s5 + $0xac] sm:$0xf]
  %v7726 = vld [vmem:[%s5 + $0xb0] sm:$0xf]
  %v7727 = vld [vmem:[%s5 + $0xb4] sm:$0xf]
  %v7728 = vld [vmem:[%s5 + $0xb8] sm:$0xf]
  %v7729 = vld [vmem:[%s5 + $0xbc] sm:$0xf]
  %v7730 = vld [vmem:[%s5 + $0xc0] sm:$0xf]
  %v7731 = vld [vmem:[%s5 + $0xc4] sm:$0xf]
  %v7732 = vld [vmem:[%s5 + $0xc8] sm:$0xf]
  %v7733 = vld [vmem:[%s5 + $0xcc] sm:$0xf]
  %v7734 = vld [vmem:[%s5 + $0xd0] sm:$0xf]
  %v7735 = vld [vmem:[%s5 + $0xd4] sm:$0xf]
  %v7736 = vld [vmem:[%s5 + $0xd8] sm:$0xf]
  %v7737 = vld [vmem:[%s5 + $0xdc] sm:$0xf]
  %v7738 = vld [vmem:[%s5 + $0xe0] sm:$0xf]
  %v7739 = vld [vmem:[%s5 + $0xe4] sm:$0xf]
  %v7740 = vld [vmem:[%s5 + $0xe8] sm:$0xf]
  %v7741 = vld [vmem:[%s5 + $0xec] sm:$0xf]
  %v7742 = vld [vmem:[%s5 + $0xf0] sm:$0xf]
  %v7743 = vld [vmem:[%s5 + $0xf4] sm:$0xf]
  %v7744 = vld [vmem:[%s5 + $0xf8] sm:$0xf]
  %v7745 = vld [vmem:[%s5 + $0xfc] sm:$0xf]
  %v7746 = vld [vmem:[%s5 + $0x100] sm:$0xf]
  %v7747 = vld [vmem:[%s5 + $0x104] sm:$0xf]
  %v7748 = vld [vmem:[%s5 + $0x108] sm:$0xf]
  %v7749 = vld [vmem:[%s5 + $0x10c] sm:$0xf]
  %v7750 = vld [vmem:[%s5 + $0x110] sm:$0xf]
  %v7751 = vld [vmem:[%s5 + $0x114] sm:$0xf]
  %v7752 = vld [vmem:[%s5 + $0x118] sm:$0xf]
  %v7753 = vld [vmem:[%s5 + $0x11c] sm:$0xf]
  %v7754 = vld [vmem:[%s6] sm:$0x1]
  %v7756 = vlaneseq
  %v7757 = vshrl.u32 %v7756, 7
  %v7758 = vsub.s32 0, %v7757
  %v7759 = vrot.slane %v7754, %v7758
  %v7773 = vunpack.c.l.b16 %v7670
  %v7774 = vunpack.c.h.b16 %v7670
  %v7775 = vunpack.c.l.b16 %v7671
  %v7776 = vunpack.c.h.b16 %v7671
  %v7777 = vunpack.c.l.b16 %v7672
  %v7778 = vunpack.c.l.b16 %v7673
  %v7779 = vunpack.c.h.b16 %v7673
  %v7780 = vunpack.c.l.b16 %v7674
  %v7781 = vunpack.c.h.b16 %v7674
  %v7782 = vunpack.c.l.b16 %v7675
  %v7783 = vunpack.c.l.b16 %v7676
  %v7784 = vunpack.c.h.b16 %v7676
  %v7785 = vunpack.c.l.b16 %v7677
  %v7786 = vunpack.c.h.b16 %v7677
  %v7787 = vunpack.c.l.b16 %v7678
  %v7788 = vunpack.c.l.b16 %v7679
  %v7789 = vunpack.c.h.b16 %v7679
  %v7790 = vunpack.c.l.b16 %v7680
  %v7791 = vunpack.c.h.b16 %v7680
  %v7792 = vunpack.c.l.b16 %v7681
  %v7793 = vpack.c.b16 %v7778, %v7773
  %v7794 = vpack.c.b16 %v7779, %v7774
  %v7795 = vpack.c.b16 %v7780, %v7775
  %v7796 = vpack.c.b16 %v7781, %v7776
  %v7797 = vpack.c.b16 %v7782, %v7777
  %v7798 = vpack.c.b16 %v7788, %v7783
  %v7799 = vpack.c.b16 %v7789, %v7784
  %v7800 = vpack.c.b16 %v7790, %v7785
  %v7801 = vpack.c.b16 %v7791, %v7786
  %v7802 = vpack.c.b16 %v7792, %v7787
  %v7883 = vunpack.c.l.b16 %v7682
  %v7884 = vunpack.c.l.b16 %v7683
  %v7885 = vunpack.c.l.b16 %v7684
  %v7886 = vunpack.c.l.b16 %v7685
  %v7887 = vunpack.c.l.b16 %v7686
  %v7888 = vunpack.c.l.b16 %v7687
  %v7889 = vunpack.c.l.b16 %v7688
  %v7890 = vunpack.c.l.b16 %v7689
  %v7891 = vunpack.c.l.b16 %v7690
  %v7892 = vunpack.c.l.b16 %v7691
  %v7893 = vunpack.c.l.b16 %v7692
  %v7894 = vunpack.c.l.b16 %v7693
  %v7895 = vunpack.c.l.b16 %v7694
  %v7896 = vunpack.c.l.b16 %v7695
  %v7897 = vunpack.c.l.b16 %v7696
  %v7898 = vunpack.c.l.b16 %v7697
  %v7899 = vunpack.c.l.b16 %v7698
  %v7900 = vunpack.c.l.b16 %v7699
  %v7901 = vunpack.c.l.b16 %v7700
  %v7902 = vunpack.c.l.b16 %v7701
  %v7903 = vunpack.c.l.b16 %v7702
  %v7904 = vunpack.c.l.b16 %v7703
  %v7905 = vunpack.c.l.b16 %v7704
  %v7906 = vunpack.c.l.b16 %v7705
  %v7907 = vunpack.c.l.b16 %v7706
  %v7908 = vunpack.c.l.b16 %v7707
  %v7909 = vunpack.c.l.b16 %v7708
  %v7910 = vunpack.c.l.b16 %v7709
  %v7911 = vunpack.c.l.b16 %v7710
  %v7912 = vunpack.c.l.b16 %v7711
  %v7913 = vunpack.c.l.b16 %v7712
  %v7914 = vunpack.c.l.b16 %v7713
  %v7915 = vunpack.c.l.b16 %v7714
  %v7916 = vunpack.c.l.b16 %v7715
  %v7917 = vunpack.c.l.b16 %v7716
  %v7918 = vunpack.c.l.b16 %v7717
  %v7919 = vunpack.c.l.b16 %v7718
  %v7920 = vunpack.c.l.b16 %v7719
  %v7921 = vunpack.c.l.b16 %v7720
  %v7922 = vunpack.c.l.b16 %v7721
  %v7923 = vunpack.c.l.b16 %v7722
  %v7924 = vunpack.c.l.b16 %v7723
  %v7925 = vunpack.c.l.b16 %v7724
  %v7926 = vunpack.c.l.b16 %v7725
  %v7927 = vunpack.c.l.b16 %v7726
  %v7928 = vunpack.c.l.b16 %v7727
  %v7929 = vunpack.c.l.b16 %v7728
  %v7930 = vunpack.c.l.b16 %v7729
  %v7931 = vunpack.c.l.b16 %v7730
  %v7932 = vunpack.c.l.b16 %v7731
  %v7933 = vunpack.c.l.b16 %v7732
  %v7934 = vunpack.c.l.b16 %v7733
  %v7935 = vunpack.c.l.b16 %v7734
  %v7936 = vunpack.c.l.b16 %v7735
  %v7937 = vunpack.c.l.b16 %v7736
  %v7938 = vunpack.c.l.b16 %v7737
  %v7939 = vunpack.c.l.b16 %v7738
  %v7940 = vunpack.c.l.b16 %v7739
  %v7941 = vunpack.c.l.b16 %v7740
  %v7942 = vunpack.c.l.b16 %v7741
  %v7943 = vunpack.c.l.b16 %v7742
  %v7944 = vunpack.c.l.b16 %v7743
  %v7945 = vunpack.c.l.b16 %v7744
  %v7946 = vunpack.c.l.b16 %v7745
  %v7947 = vunpack.c.l.b16 %v7746
  %v7948 = vunpack.c.l.b16 %v7747
  %v7949 = vunpack.c.l.b16 %v7748
  %v7950 = vunpack.c.l.b16 %v7749
  %v7951 = vunpack.c.l.b16 %v7750
  %v7952 = vunpack.c.l.b16 %v7751
  %v7953 = vunpack.c.l.b16 %v7752
  %v7954 = vunpack.c.l.b16 %v7753
  %v7955 = vpack.c.b16 %v7884, %v7883
  %v7956 = vpack.c.b16 %v7886, %v7885
  %v7957 = vpack.c.b16 %v7888, %v7887
  %v7958 = vpack.c.b16 %v7890, %v7889
  %v7959 = vpack.c.b16 %v7892, %v7891
  %v7960 = vpack.c.b16 %v7894, %v7893
  %v7961 = vpack.c.b16 %v7896, %v7895
  %v7962 = vpack.c.b16 %v7898, %v7897
  %v7963 = vpack.c.b16 %v7900, %v7899
  %v7964 = vpack.c.b16 %v7902, %v7901
  %v7965 = vpack.c.b16 %v7904, %v7903
  %v7966 = vpack.c.b16 %v7906, %v7905
  %v7967 = vpack.c.b16 %v7908, %v7907
  %v7968 = vpack.c.b16 %v7910, %v7909
  %v7969 = vpack.c.b16 %v7912, %v7911
  %v7970 = vpack.c.b16 %v7914, %v7913
  %v7971 = vpack.c.b16 %v7916, %v7915
  %v7972 = vpack.c.b16 %v7918, %v7917
  %v7973 = vpack.c.b16 %v7920, %v7919
  %v7974 = vpack.c.b16 %v7922, %v7921
  %v7975 = vpack.c.b16 %v7924, %v7923
  %v7976 = vpack.c.b16 %v7926, %v7925
  %v7977 = vpack.c.b16 %v7928, %v7927
  %v7978 = vpack.c.b16 %v7930, %v7929
  %v7979 = vpack.c.b16 %v7932, %v7931
  %v7980 = vpack.c.b16 %v7934, %v7933
  %v7981 = vpack.c.b16 %v7936, %v7935
  %v7982 = vpack.c.b16 %v7938, %v7937
  %v7983 = vpack.c.b16 %v7940, %v7939
  %v7984 = vpack.c.b16 %v7942, %v7941
  %v7985 = vpack.c.b16 %v7944, %v7943
  %v7986 = vpack.c.b16 %v7946, %v7945
  %v7987 = vpack.c.b16 %v7948, %v7947
  %v7988 = vpack.c.b16 %v7950, %v7949
  %v7989 = vpack.c.b16 %v7952, %v7951
  %v7990 = vpack.c.b16 %v7954, %v7953
  %v8028 = vsel %vm5634, %v7797, 0
  %v8031 = vsel %vm5634, %v7802, 0
  %8033 = vmatprep.subr.bf16.mxu0 0
  %8034 = vmatpush1.bf16.msra.mxu0 %v7962
  %8035 = vmatprep.subr.bf16.mxu0 0
  %8036 = vmatpush1.bf16.msra.mxu0 %v7961
  %8037 = vmatprep.subr.bf16.mxu0 0
  %8038 = vmatpush1.bf16.msra.mxu0 %v7960
  %8039 = vmatprep.subr.bf16.mxu0 0
  %8040 = vmatpush1.bf16.msra.mxu0 %v7959
  %8041 = vmatprep.subr.bf16.mxu0 0
  %8042 = vmatpush1.bf16.msra.mxu0 %v7958
  %8043 = vmatprep.subr.bf16.mxu0 0
  %8044 = vmatpush1.bf16.msra.mxu0 %v7957
  %8045 = vmatprep.subr.bf16.mxu0 0
  %8046 = vmatpush1.bf16.msra.mxu0 %v7956
  %8047 = vmatprep.subr.bf16.mxu0 0
  %8048 = vmatpush1.bf16.msra.mxu0 %v7955
  %8049 = vmatprep.subr.bf16.mxu0 0
  %8050 = vmatpush2.bf16.msra.mxu0 %v7970
  %8051 = vmatprep.subr.bf16.mxu0 0
  %8052 = vmatpush2.bf16.msra.mxu0 %v7969
  %8053 = vmatprep.subr.bf16.mxu0 0
  %8054 = vmatpush2.bf16.msra.mxu0 %v7968
  %8055 = vmatprep.subr.bf16.mxu0 0
  %8056 = vmatpush2.bf16.msra.mxu0 %v7967
  %8057 = vmatprep.subr.bf16.mxu0 0
  %8058 = vmatpush2.bf16.msra.mxu0 %v7966
  %8059 = vmatprep.subr.bf16.mxu0 0
  %8060 = vmatpush2.bf16.msra.mxu0 %v7965
  %8061 = vmatprep.subr.bf16.mxu0 0
  %8062 = vmatpush2.bf16.msra.mxu0 %v7964
  %8063 = vmatprep.subr.bf16.mxu0 0
  %8064 = vmatpush2.bf16.msra.mxu0 %v7963
  %8065 = vmatprep.mubr.bf16.mxu0 %v7794
  %8066 = vmatmul.mubr.bf16.gmra.mxu0 %v7793
  %v8067 = vpop.f32.mrf.mxu0
  %v8068 = vadd.f32 %v7759, %v8067
  %v8069 = vpop.f32.mrf.mxu0
  %v8070 = vpop.f32.mrf.mxu0
  %v8071 = vadd.f32 %v7759, %v8070
  %v8072 = vpop.f32.mrf.mxu0
  %8073 = vmatprep.mubr.bf16.mxu0 %v7799
  %8074 = vmatmul.mubr.bf16.gmra.mxu0 %v7798
  %v8075 = vpop.f32.mrf.mxu0
  %v8076 = vadd.f32 %v7759, %v8075
  %v8077 = vpop.f32.mrf.mxu0
  %v8078 = vpop.f32.mrf.mxu0
  %v8079 = vadd.f32 %v7759, %v8078
  %v8080 = vpop.f32.mrf.mxu0
  %8081 = vdwg.mxu0
  %8082 = vmatprep.subr.bf16.mxu0 0
  %8083 = vmatpush1.bf16.msra.mxu0 %v7978
  %8084 = vmatprep.subr.bf16.mxu0 0
  %8085 = vmatpush1.bf16.msra.mxu0 %v7977
  %8086 = vmatprep.subr.bf16.mxu0 0
  %8087 = vmatpush1.bf16.msra.mxu0 %v7976
  %8088 = vmatprep.subr.bf16.mxu0 0
  %8089 = vmatpush1.bf16.msra.mxu0 %v7975
  %8090 = vmatprep.subr.bf16.mxu0 0
  %8091 = vmatpush1.bf16.msra.mxu0 %v7974
  %8092 = vmatprep.subr.bf16.mxu0 0
  %8093 = vmatpush1.bf16.msra.mxu0 %v7973
  %8094 = vmatprep.subr.bf16.mxu0 0
  %8095 = vmatpush1.bf16.msra.mxu0 %v7972
  %8096 = vmatprep.subr.bf16.mxu0 0
  %8097 = vmatpush1.bf16.msra.mxu0 %v7971
  %8098 = vmatprep.subr.bf16.mxu0 0
  %8099 = vmatpush2.bf16.msra.mxu0 %v7986
  %8100 = vmatprep.subr.bf16.mxu0 0
  %8101 = vmatpush2.bf16.msra.mxu0 %v7985
  %8102 = vmatprep.subr.bf16.mxu0 0
  %8103 = vmatpush2.bf16.msra.mxu0 %v7984
  %8104 = vmatprep.subr.bf16.mxu0 0
  %8105 = vmatpush2.bf16.msra.mxu0 %v7983
  %8106 = vmatprep.subr.bf16.mxu0 0
  %8107 = vmatpush2.bf16.msra.mxu0 %v7982
  %8108 = vmatprep.subr.bf16.mxu0 0
  %8109 = vmatpush2.bf16.msra.mxu0 %v7981
  %8110 = vmatprep.subr.bf16.mxu0 0
  %8111 = vmatpush2.bf16.msra.mxu0 %v7980
  %8112 = vmatprep.subr.bf16.mxu0 0
  %8113 = vmatpush2.bf16.msra.mxu0 %v7979
  %8114 = vmatprep.mubr.bf16.mxu0 %v7796
  %8115 = vmatmul.mubr.bf16.gmra.mxu0 %v7795
  %v8116 = vpop.f32.mrf.mxu0
  %v8117 = vadd.f32 %v8068, %v8116
  %v8118 = vpop.f32.mrf.mxu0
  %v8119 = vpop.f32.mrf.mxu0
  %v8120 = vadd.f32 %v8071, %v8119
  %v8121 = vpop.f32.mrf.mxu0
  %8122 = vmatprep.mubr.bf16.mxu0 %v7801
  %8123 = vmatmul.mubr.bf16.gmra.mxu0 %v7800
  %v8124 = vpop.f32.mrf.mxu0
  %v8125 = vadd.f32 %v8076, %v8124
  %v8126 = vpop.f32.mrf.mxu0
  %v8127 = vpop.f32.mrf.mxu0
  %v8128 = vadd.f32 %v8079, %v8127
  %v8129 = vpop.f32.mrf.mxu0
  %8130 = vdwg.mxu0
  %8131 = vmatprep.subr.bf16.mxu0 0
  %8132 = vmatpush1.bf16.msra.mxu0 0
  %8133 = vmatprep.subr.bf16.mxu0 0
  %8134 = vmatpush1.bf16.msra.mxu0 0
  %8135 = vmatprep.subr.bf16.mxu0 0
  %8136 = vmatpush1.bf16.msra.mxu0 0
  %8137 = vmatprep.subr.bf16.mxu0 0
  %8138 = vmatpush1.bf16.msra.mxu0 0
  %8139 = vmatprep.subr.bf16.mxu0 0
  %8140 = vmatpush1.bf16.msra.mxu0 %v7990
  %8141 = vmatprep.subr.bf16.mxu0 0
  %8142 = vmatpush1.bf16.msra.mxu0 %v7989
  %8143 = vmatprep.subr.bf16.mxu0 0
  %8144 = vmatpush1.bf16.msra.mxu0 %v7988
  %8145 = vmatprep.subr.bf16.mxu0 0
  %8146 = vmatpush1.bf16.msra.mxu0 %v7987
  %8147 = vmatprep.subr.bf16.mxu0 0
  %8148 = vmatpush2.bf16.msra.mxu0 0
  %8149 = vmatprep.subr.bf16.mxu0 0
  %8150 = vmatpush2.bf16.msra.mxu0 0
  %8151 = vmatprep.subr.bf16.mxu0 0
  %8152 = vmatpush2.bf16.msra.mxu0 0
  %8153 = vmatprep.subr.bf16.mxu0 0
  %8154 = vmatpush2.bf16.msra.mxu0 0
  %8155 = vmatprep.subr.bf16.mxu0 0
  %8156 = vmatpush2.bf16.msra.mxu0 0
  %8157 = vmatprep.subr.bf16.mxu0 0
  %8158 = vmatpush2.bf16.msra.mxu0 0
  %8159 = vmatprep.subr.bf16.mxu0 0
  %8160 = vmatpush2.bf16.msra.mxu0 0
  %8161 = vmatprep.subr.bf16.mxu0 0
  %8162 = vmatpush2.bf16.msra.mxu0 0
  %8163 = vmatprep.mubr.bf16.mxu0 0
  %8164 = vmatmul.mubr.bf16.gmra.mxu0 %v8028
  %v8165 = vpop.f32.mrf.mxu0
  %v8166 = vadd.f32 %v8117, %v8165
  %v8167 = vpop.f32.mrf.mxu0
  %v8168 = vpop.f32.mrf.mxu0
  %v8169 = vadd.f32 %v8120, %v8168
  %v8170 = vpop.f32.mrf.mxu0
  %8171 = vmatprep.mubr.bf16.mxu0 0
  %8172 = vmatmul.mubr.bf16.gmra.mxu0 %v8031
  %v8173 = vpop.f32.mrf.mxu0
  %v8174 = vadd.f32 %v8125, %v8173
  %v8175 = vpop.f32.mrf.mxu0
  %v8176 = vpop.f32.mrf.mxu0
  %v8177 = vadd.f32 %v8128, %v8176
  %v8178 = vpop.f32.mrf.mxu0
  %8179 = vdwg.mxu0
  %v8180 = vmax.f32 %v8166, 0.0
  %v8181 = vmax.f32 %v8169, 0.0
  %v8182 = vmax.f32 %v8174, 0.0
  %v8183 = vmax.f32 %v8177, 0.0
  %v8188 = vcombine.high %v8180, %v8180
  %v8189 = vcombine.high %v8181, %v8181
  %v8190 = vcombine.high %v8182, %v8182
  %v8191 = vcombine.high %v8183, %v8183
  %v8196 = vsel %vm382, %v8180, -inf
  %v8197 = vsel %vm382, %v8188, -inf
  %v8198 = vmax.f32 %v8196, %v8197
  %v8199 = vsel %vm382, %v8181, -inf
  %v8200 = vsel %vm382, %v8189, -inf
  %v8201 = vmax.f32 %v8199, %v8200
  %v8202 = vsel %vm382, %v8182, -inf
  %v8203 = vsel %vm382, %v8190, -inf
  %v8204 = vmax.f32 %v8202, %v8203
  %v8205 = vsel %vm382, %v8183, -inf
  %v8206 = vsel %vm382, %v8191, -inf
  %v8207 = vmax.f32 %v8205, %v8206
  %v8213 = vunpack.c.l.s4 1983009808
  %v8214 = vunpack.c.0.s8 %v8213
  %v8215 = vlaneseq
  %v8216 = vshrl.u32 %v8215, 7
  %v8217 = vsub.s32 %v8214, %v8216
  %v8218 = vrot.slane %v8198, %v8217
  %v8219 = vcombine.high %v8218, %v8218
  %v8221 = vunpack.c.l.s4 1983009808
  %v8222 = vunpack.c.0.s8 %v8221
  %v8223 = vlaneseq
  %v8224 = vshrl.u32 %v8223, 7
  %v8225 = vsub.s32 %v8222, %v8224
  %v8226 = vrot.slane %v8201, %v8225
  %v8227 = vcombine.high %v8226, %v8226
  %v8229 = vunpack.c.l.s4 1983009808
  %v8230 = vunpack.c.0.s8 %v8229
  %v8231 = vlaneseq
  %v8232 = vshrl.u32 %v8231, 7
  %v8233 = vsub.s32 %v8230, %v8232
  %v8234 = vrot.slane %v8204, %v8233
  %v8235 = vcombine.high %v8234, %v8234
  %v8237 = vunpack.c.l.s4 1983009808
  %v8238 = vunpack.c.0.s8 %v8237
  %v8239 = vlaneseq
  %v8240 = vshrl.u32 %v8239, 7
  %v8241 = vsub.s32 %v8238, %v8240
  %v8242 = vrot.slane %v8207, %v8241
  %v8243 = vcombine.high %v8242, %v8242
  %vm8252 = vcmask 1041408
  %v8253 = vsel %vm8252, %v8218, -inf
  %v8254 = vrot.slane %v8253, 4
  %v8255 = vmax.f32 %v8253, %v8254
  %v8256 = vrot.slane %v8255, 2
  %v8257 = vmax.f32 %v8255, %v8256
  %v8258 = vrot.slane %v8257, 1
  %v8259 = vmax.f32 %v8257, %v8258
  %v8260 = vsel %vm8252, %v8219, -inf
  %v8261 = vrot.slane %v8260, 4
  %v8262 = vmax.f32 %v8260, %v8261
  %v8263 = vrot.slane %v8262, 2
  %v8264 = vmax.f32 %v8262, %v8263
  %v8265 = vrot.slane %v8264, 1
  %v8266 = vmax.f32 %v8264, %v8265
  %v8267 = vsel %vm8252, %v8226, -inf
  %v8268 = vrot.slane %v8267, 4
  %v8269 = vmax.f32 %v8267, %v8268
  %v8270 = vrot.slane %v8269, 2
  %v8271 = vmax.f32 %v8269, %v8270
  %v8272 = vrot.slane %v8271, 1
  %v8273 = vmax.f32 %v8271, %v8272
  %v8274 = vsel %vm8252, %v8227, -inf
  %v8275 = vrot.slane %v8274, 4
  %v8276 = vmax.f32 %v8274, %v8275
  %v8277 = vrot.slane %v8276, 2
  %v8278 = vmax.f32 %v8276, %v8277
  %v8279 = vrot.slane %v8278, 1
  %v8280 = vmax.f32 %v8278, %v8279
  %v8281 = vsel %vm8252, %v8234, -inf
  %v8282 = vrot.slane %v8281, 4
  %v8283 = vmax.f32 %v8281, %v8282
  %v8284 = vrot.slane %v8283, 2
  %v8285 = vmax.f32 %v8283, %v8284
  %v8286 = vrot.slane %v8285, 1
  %v8287 = vmax.f32 %v8285, %v8286
  %v8288 = vsel %vm8252, %v8235, -inf
  %v8289 = vrot.slane %v8288, 4
  %v8290 = vmax.f32 %v8288, %v8289
  %v8291 = vrot.slane %v8290, 2
  %v8292 = vmax.f32 %v8290, %v8291
  %v8293 = vrot.slane %v8292, 1
  %v8294 = vmax.f32 %v8292, %v8293
  %v8295 = vsel %vm8252, %v8242, -inf
  %v8296 = vrot.slane %v8295, 4
  %v8297 = vmax.f32 %v8295, %v8296
  %v8298 = vrot.slane %v8297, 2
  %v8299 = vmax.f32 %v8297, %v8298
  %v8300 = vrot.slane %v8299, 1
  %v8301 = vmax.f32 %v8299, %v8300
  %v8302 = vsel %vm8252, %v8243, -inf
  %v8303 = vrot.slane %v8302, 4
  %v8304 = vmax.f32 %v8302, %v8303
  %v8305 = vrot.slane %v8304, 2
  %v8306 = vmax.f32 %v8304, %v8305
  %v8307 = vrot.slane %v8306, 1
  %v8308 = vmax.f32 %v8306, %v8307
  %8309 = vst [vmem:[#allocation6] sm:$0x3] 0
  %8310 = vst [vmem:[#allocation6 + $0x2] sm:$0x3] 0
  %8311 = vst [vmem:[#allocation6 + $0x4] sm:$0x3] 0
  %8312 = vst [vmem:[#allocation6 + $0x6] sm:$0x3] 0
  %8313 = vst [vmem:[#allocation6 + $0x8] sm:$0x3] 0
  %8314 = vst [vmem:[#allocation6 + $0xa] sm:$0x3] 0
  %8315 = vst [vmem:[#allocation6 + $0xc] sm:$0x3] 0
  %8316 = vst [vmem:[#allocation6 + $0xe] sm:$0x3] 0
  %v8317 = vpack.c.bf16 %v8259, %v8259
  %v8318 = vpack.c.bf16 %v8266, %v8266
  %v8319 = vpack.c.bf16 %v8273, %v8273
  %v8320 = vpack.c.bf16 %v8280, %v8280
  %v8321 = vpack.c.bf16 %v8287, %v8287
  %v8322 = vpack.c.bf16 %v8294, %v8294
  %v8323 = vpack.c.bf16 %v8301, %v8301
  %v8324 = vpack.c.bf16 %v8308, %v8308
  %v8334 = vunpack.c.l.s4 1983009808
  %v8335 = vunpack.c.0.s8 %v8334
  %v8336 = vlaneseq
  %v8337 = vshrl.u32 %v8336, 7
  %v8338 = vsub.s32 %v8335, %v8337
  %v8339 = vrot.slane %v8317, %v8338
  %v8341 = vunpack.c.l.s4 1983009808
  %v8342 = vunpack.c.0.s8 %v8341
  %v8343 = vlaneseq
  %v8344 = vshrl.u32 %v8343, 7
  %v8345 = vsub.s32 %v8342, %v8344
  %v8346 = vrot.slane %v8318, %v8345
  %v8348 = vunpack.c.l.s4 1983009808
  %v8349 = vunpack.c.0.s8 %v8348
  %v8350 = vlaneseq
  %v8351 = vshrl.u32 %v8350, 7
  %v8352 = vsub.s32 %v8349, %v8351
  %v8353 = vrot.slane %v8319, %v8352
  %v8355 = vunpack.c.l.s4 1983009808
  %v8356 = vunpack.c.0.s8 %v8355
  %v8357 = vlaneseq
  %v8358 = vshrl.u32 %v8357, 7
  %v8359 = vsub.s32 %v8356, %v8358
  %v8360 = vrot.slane %v8320, %v8359
  %v8362 = vunpack.c.l.s4 1983009808
  %v8363 = vunpack.c.0.s8 %v8362
  %v8364 = vlaneseq
  %v8365 = vshrl.u32 %v8364, 7
  %v8366 = vsub.s32 %v8363, %v8365
  %v8367 = vrot.slane %v8321, %v8366
  %v8369 = vunpack.c.l.s4 1983009808
  %v8370 = vunpack.c.0.s8 %v8369
  %v8371 = vlaneseq
  %v8372 = vshrl.u32 %v8371, 7
  %v8373 = vsub.s32 %v8370, %v8372
  %v8374 = vrot.slane %v8322, %v8373
  %v8376 = vunpack.c.l.s4 1983009808
  %v8377 = vunpack.c.0.s8 %v8376
  %v8378 = vlaneseq
  %v8379 = vshrl.u32 %v8378, 7
  %v8380 = vsub.s32 %v8377, %v8379
  %v8381 = vrot.slane %v8323, %v8380
  %v8383 = vunpack.c.l.s4 1983009808
  %v8384 = vunpack.c.0.s8 %v8383
  %v8385 = vlaneseq
  %v8386 = vshrl.u32 %v8385, 7
  %v8387 = vsub.s32 %v8384, %v8386
  %v8388 = vrot.slane %v8324, %v8387
  %v8390 = vunpack.c.l.s4 1983009808
  %v8391 = vunpack.c.0.s8 %v8390
  %v8392 = vlaneseq
  %v8393 = vshrl.u32 %v8392, 7
  %v8394 = vsub.s32 %v8391, %v8393
  %v8395 = vrot.slane %v8339, %v8394
  %v8397 = vunpack.c.l.s4 1983009808
  %v8398 = vunpack.c.0.s8 %v8397
  %v8399 = vlaneseq
  %v8400 = vshrl.u32 %v8399, 7
  %v8401 = vsub.s32 %v8398, %v8400
  %v8402 = vrot.slane %v8346, %v8401
  %v8404 = vunpack.c.l.s4 1983009808
  %v8405 = vunpack.c.0.s8 %v8404
  %v8406 = vlaneseq
  %v8407 = vshrl.u32 %v8406, 7
  %v8408 = vsub.s32 %v8405, %v8407
  %v8409 = vrot.slane %v8353, %v8408
  %v8411 = vunpack.c.l.s4 1983009808
  %v8412 = vunpack.c.0.s8 %v8411
  %v8413 = vlaneseq
  %v8414 = vshrl.u32 %v8413, 7
  %v8415 = vsub.s32 %v8412, %v8414
  %v8416 = vrot.slane %v8360, %v8415
  %v8418 = vunpack.c.l.s4 1983009808
  %v8419 = vunpack.c.0.s8 %v8418
  %v8420 = vlaneseq
  %v8421 = vshrl.u32 %v8420, 7
  %v8422 = vsub.s32 %v8419, %v8421
  %v8423 = vrot.slane %v8367, %v8422
  %v8425 = vunpack.c.l.s4 1983009808
  %v8426 = vunpack.c.0.s8 %v8425
  %v8427 = vlaneseq
  %v8428 = vshrl.u32 %v8427, 7
  %v8429 = vsub.s32 %v8426, %v8428
  %v8430 = vrot.slane %v8374, %v8429
  %v8432 = vunpack.c.l.s4 1983009808
  %v8433 = vunpack.c.0.s8 %v8432
  %v8434 = vlaneseq
  %v8435 = vshrl.u32 %v8434, 7
  %v8436 = vsub.s32 %v8433, %v8435
  %v8437 = vrot.slane %v8381, %v8436
  %v8439 = vunpack.c.l.s4 1983009808
  %v8440 = vunpack.c.0.s8 %v8439
  %v8441 = vlaneseq
  %v8442 = vshrl.u32 %v8441, 7
  %v8443 = vsub.s32 %v8440, %v8442
  %v8444 = vrot.slane %v8388, %v8443
  %v8445 = vunpack.c.l.b16 %v8395
  %v8446 = vunpack.c.l.b16 %v8402
  %v8447 = vunpack.c.l.b16 %v8409
  %v8448 = vunpack.c.l.b16 %v8416
  %v8449 = vunpack.c.l.b16 %v8423
  %v8450 = vunpack.c.l.b16 %v8430
  %v8451 = vunpack.c.l.b16 %v8437
  %v8452 = vunpack.c.l.b16 %v8444
  %v8453 = vrot.slane %v8445, 7
  %v8454 = vrot.slane %v8446, 6
  %v8455 = vsel %vm3122, %v8454, %v8453
  %v8456 = vrot.slane %v8447, 7
  %v8457 = vrot.slane %v8448, 6
  %v8458 = vsel %vm3122, %v8457, %v8456
  %v8459 = vrot.slane %v8449, 7
  %v8460 = vrot.slane %v8450, 6
  %v8461 = vsel %vm3122, %v8460, %v8459
  %v8462 = vrot.slane %v8451, 7
  %v8463 = vrot.slane %v8452, 6
  %v8464 = vsel %vm3122, %v8463, %v8462
  %v8465 = vpack.c.b16 %v8455, %v8455
  %v8466 = vpack.c.b16 %v8458, %v8458
  %v8467 = vpack.c.b16 %v8461, %v8461
  %v8468 = vpack.c.b16 %v8464, %v8464
  %v8470 = vunpack.c.l.s4 1983009808
  %v8471 = vunpack.c.0.s8 %v8470
  %v8472 = vlaneseq
  %v8473 = vshrl.u32 %v8472, 7
  %v8474 = vsub.s32 %v8471, %v8473
  %v8475 = vrot.slane %v8465, %v8474
  %v8477 = vunpack.c.l.s4 1983009808
  %v8478 = vunpack.c.0.s8 %v8477
  %v8479 = vlaneseq
  %v8480 = vshrl.u32 %v8479, 7
  %v8481 = vsub.s32 %v8478, %v8480
  %v8482 = vrot.slane %v8466, %v8481
  %v8484 = vunpack.c.l.s4 1983009808
  %v8485 = vunpack.c.0.s8 %v8484
  %v8486 = vlaneseq
  %v8487 = vshrl.u32 %v8486, 7
  %v8488 = vsub.s32 %v8485, %v8487
  %v8489 = vrot.slane %v8467, %v8488
  %v8491 = vunpack.c.l.s4 1983009808
  %v8492 = vunpack.c.0.s8 %v8491
  %v8493 = vlaneseq
  %v8494 = vshrl.u32 %v8493, 7
  %v8495 = vsub.s32 %v8492, %v8494
  %v8496 = vrot.slane %v8468, %v8495
  %s8501 = scalar_lea.vmem [#allocation6], 2
  %vm8502 = vcmask 1041408
  %vm8503 = vsmask.f32 1282
  %vm8504 = vmand %vm8502, %vm8503
  %v8505 = vld [vmem:[%s8501] sm:$0x3]
  %v8506 = vsel %vm8504, %v8475, %v8505
  %8507 = vst [vmem:[%s8501] sm:$0x3] %v8506
  %v8508 = vld [vmem:[%s8501 + $0x2] sm:$0x3]
  %v8509 = vsel %vm8504, %v8482, %v8508
  %8510 = vst [vmem:[%s8501 + $0x2] sm:$0x3] %v8509
  %v8511 = vld [vmem:[%s8501 + $0x8] sm:$0x3]
  %v8512 = vsel %vm8504, %v8489, %v8511
  %8513 = vst [vmem:[%s8501 + $0x8] sm:$0x3] %v8512
  %v8514 = vld [vmem:[%s8501 + $0xa] sm:$0x3]
  %v8515 = vsel %vm8504, %v8496, %v8514
  %8516 = vst [vmem:[%s8501 + $0xa] sm:$0x3] %v8515
  %v8517 = vld [vmem:[#allocation6] sm:$0x1]
  %v8518 = vld [vmem:[#allocation6 + $0x2] sm:$0x1]
  %v8519 = vld [vmem:[#allocation6 + $0x8] sm:$0x1]
  %v8520 = vld [vmem:[#allocation6 + $0xa] sm:$0x1]
  %v8525 = vcombine.low %v8517, %v8519
  %v8526 = vcombine.low %v8518, %v8520
  %v8528 = vunpack.c.l.s4 1935823168
  %v8529 = vunpack.c.0.s8 %v8528
  %v8530 = vlaneseq
  %v8531 = vshrl.u32 %v8530, 7
  %v8532 = vsub.s32 %v8529, %v8531
  %v8533 = vrot.slane %v8525, %v8532
  %v8535 = vunpack.c.l.s4 1935823168
  %v8536 = vunpack.c.0.s8 %v8535
  %v8537 = vlaneseq
  %v8538 = vshrl.u32 %v8537, 7
  %v8539 = vsub.s32 %v8536, %v8538
  %v8540 = vrot.slane %v8526, %v8539
  %v8541 = vcombine.low %v8533, %v8540
  %v8543 = vunpack.c.l.s4 1935823168
  %v8544 = vunpack.c.0.s8 %v8543
  %v8545 = vlaneseq
  %v8546 = vshrl.u32 %v8545, 7
  %v8547 = vsub.s32 %v8544, %v8546
  %v8548 = vrot.slane %v8541, %v8547
  %8550 = vst [vmem:[#allocation7] sm:$0xf] %v8548
  %v8551 = vld [vmem:[#allocation6] sm:$0x3]
  %v8552 = vld [vmem:[#allocation6 + $0x2] sm:$0x3]
  %v8553 = vld [vmem:[#allocation6 + $0x8] sm:$0x3]
  %v8554 = vld [vmem:[#allocation6 + $0xa] sm:$0x3]
  %v8560 = vunpack.c.l.s4 1966171168
  %v8561 = vunpack.c.0.s8 %v8560
  %v8562 = vlaneseq
  %v8563 = vshrl.u32 %v8562, 7
  %v8564 = vsub.s32 %v8561, %v8563
  %v8565 = vrot.slane %v8551, %v8564
  %v8566 = vcombine.high %v8565, %v8565
  %v8568 = vunpack.c.l.s4 1966171168
  %v8569 = vunpack.c.0.s8 %v8568
  %v8570 = vlaneseq
  %v8571 = vshrl.u32 %v8570, 7
  %v8572 = vsub.s32 %v8569, %v8571
  %v8573 = vrot.slane %v8552, %v8572
  %v8574 = vcombine.high %v8573, %v8573
  %v8576 = vunpack.c.l.s4 1966171168
  %v8577 = vunpack.c.0.s8 %v8576
  %v8578 = vlaneseq
  %v8579 = vshrl.u32 %v8578, 7
  %v8580 = vsub.s32 %v8577, %v8579
  %v8581 = vrot.slane %v8553, %v8580
  %v8582 = vcombine.high %v8581, %v8581
  %v8584 = vunpack.c.l.s4 1966171168
  %v8585 = vunpack.c.0.s8 %v8584
  %v8586 = vlaneseq
  %v8587 = vshrl.u32 %v8586, 7
  %v8588 = vsub.s32 %v8585, %v8587
  %v8589 = vrot.slane %v8554, %v8588
  %v8590 = vcombine.high %v8589, %v8589
  %vm8591 = vsmask.f32 1284
  %vm8592 = vmor %vm3296, %vm8591
  %vm8593 = vsmask.f32 2312
  %vm8594 = vmor %vm8592, %vm8593
  %vm8595 = vsmask.f32 3340
  %vm8596 = vmor %vm8594, %vm8595
  %vm8597 = vsmask.f32 4368
  %vm8598 = vmor %vm8596, %vm8597
  %vm8599 = vsmask.f32 5396
  %vm8600 = vmor %vm8598, %vm8599
  %vm8601 = vsmask.f32 6424
  %vm8602 = vmor %vm8600, %vm8601
  %vm8603 = vsmask.f32 7452
  %vm8604 = vmor %vm8602, %vm8603
  %v8606 = vshrl.u32 %v8565, 16
  %v8608 = vrot.slane %v8606, 7
  %v8609 = vrot.slane %v8608, 1
  %v8611 = vshll.u32 %v8566, 16
  %v8613 = vsel %vm8604, %v8609, %v8611
  %v8615 = vshrl.u32 %v8573, 16
  %v8617 = vrot.slane %v8615, 7
  %v8618 = vrot.slane %v8617, 1
  %v8620 = vshll.u32 %v8574, 16
  %v8622 = vsel %vm8604, %v8618, %v8620
  %v8624 = vshrl.u32 %v8581, 16
  %v8626 = vrot.slane %v8624, 7
  %v8627 = vrot.slane %v8626, 1
  %v8629 = vshll.u32 %v8582, 16
  %v8631 = vsel %vm8604, %v8627, %v8629
  %v8633 = vshrl.u32 %v8589, 16
  %v8635 = vrot.slane %v8633, 7
  %v8636 = vrot.slane %v8635, 1
  %v8638 = vshll.u32 %v8590, 16
  %v8640 = vsel %vm8604, %v8636, %v8638
  %v8641 = vcombine.low %v8613, %v8631
  %v8642 = vcombine.low %v8622, %v8640
  %v8644 = vunpack.c.l.s4 1935823168
  %v8645 = vunpack.c.0.s8 %v8644
  %v8646 = vlaneseq
  %v8647 = vshrl.u32 %v8646, 7
  %v8648 = vsub.s32 %v8645, %v8647
  %v8649 = vrot.slane %v8641, %v8648
  %v8651 = vunpack.c.l.s4 1935823168
  %v8652 = vunpack.c.0.s8 %v8651
  %v8653 = vlaneseq
  %v8654 = vshrl.u32 %v8653, 7
  %v8655 = vsub.s32 %v8652, %v8654
  %v8656 = vrot.slane %v8642, %v8655
  %v8657 = vcombine.low %v8649, %v8656
  %v8659 = vunpack.c.l.s4 1935823168
  %v8660 = vunpack.c.0.s8 %v8659
  %v8661 = vlaneseq
  %v8662 = vshrl.u32 %v8661, 7
  %v8663 = vsub.s32 %v8660, %v8662
  %v8664 = vrot.slane %v8657, %v8663
  %8666 = vst [vmem:[#allocation7 + $0x4] sm:$0xf] %v8664
  %v8667 = vld [vmem:[#allocation6] sm:$0x2]
  %v8668 = vld [vmem:[#allocation6 + $0x2] sm:$0x2]
  %v8669 = vld [vmem:[#allocation6 + $0x8] sm:$0x2]
  %v8670 = vld [vmem:[#allocation6 + $0xa] sm:$0x2]
  %v8676 = vunpack.c.l.s4 1966171168
  %v8677 = vunpack.c.0.s8 %v8676
  %v8678 = vlaneseq
  %v8679 = vshrl.u32 %v8678, 7
  %v8680 = vsub.s32 %v8677, %v8679
  %v8681 = vrot.slane %v8667, %v8680
  %v8682 = vcombine.high %v8681, %v8681
  %v8684 = vunpack.c.l.s4 1966171168
  %v8685 = vunpack.c.0.s8 %v8684
  %v8686 = vlaneseq
  %v8687 = vshrl.u32 %v8686, 7
  %v8688 = vsub.s32 %v8685, %v8687
  %v8689 = vrot.slane %v8668, %v8688
  %v8690 = vcombine.high %v8689, %v8689
  %v8692 = vunpack.c.l.s4 1966171168
  %v8693 = vunpack.c.0.s8 %v8692
  %v8694 = vlaneseq
  %v8695 = vshrl.u32 %v8694, 7
  %v8696 = vsub.s32 %v8693, %v8695
  %v8697 = vrot.slane %v8669, %v8696
  %v8698 = vcombine.high %v8697, %v8697
  %v8700 = vunpack.c.l.s4 1966171168
  %v8701 = vunpack.c.0.s8 %v8700
  %v8702 = vlaneseq
  %v8703 = vshrl.u32 %v8702, 7
  %v8704 = vsub.s32 %v8701, %v8703
  %v8705 = vrot.slane %v8670, %v8704
  %v8706 = vcombine.high %v8705, %v8705
  %v8707 = vcombine.low %v8682, %v8698
  %v8708 = vcombine.low %v8690, %v8706
  %v8710 = vunpack.c.l.s4 1935823168
  %v8711 = vunpack.c.0.s8 %v8710
  %v8712 = vlaneseq
  %v8713 = vshrl.u32 %v8712, 7
  %v8714 = vsub.s32 %v8711, %v8713
  %v8715 = vrot.slane %v8707, %v8714
  %v8717 = vunpack.c.l.s4 1935823168
  %v8718 = vunpack.c.0.s8 %v8717
  %v8719 = vlaneseq
  %v8720 = vshrl.u32 %v8719, 7
  %v8721 = vsub.s32 %v8718, %v8720
  %v8722 = vrot.slane %v8708, %v8721
  %v8723 = vcombine.low %v8715, %v8722
  %v8725 = vunpack.c.l.s4 1935823168
  %v8726 = vunpack.c.0.s8 %v8725
  %v8727 = vlaneseq
  %v8728 = vshrl.u32 %v8727, 7
  %v8729 = vsub.s32 %v8726, %v8728
  %v8730 = vrot.slane %v8723, %v8729
  %8732 = vst [vmem:[#allocation7 + $0x8] sm:$0xf] %v8730
  %v8733 = vld [vmem:[%s8501] sm:$0x1]
  %v8734 = vld [vmem:[%s8501 + $0x2] sm:$0x1]
  %v8735 = vld [vmem:[%s8501 + $0x8] sm:$0x1]
  %v8736 = vld [vmem:[%s8501 + $0xa] sm:$0x1]
  %v8741 = vcombine.low %v8733, %v8735
  %v8742 = vcombine.low %v8734, %v8736
  %v8744 = vunpack.c.l.s4 1935823168
  %v8745 = vunpack.c.0.s8 %v8744
  %v8746 = vlaneseq
  %v8747 = vshrl.u32 %v8746, 7
  %v8748 = vsub.s32 %v8745, %v8747
  %v8749 = vrot.slane %v8741, %v8748
  %v8751 = vunpack.c.l.s4 1935823168
  %v8752 = vunpack.c.0.s8 %v8751
  %v8753 = vlaneseq
  %v8754 = vshrl.u32 %v8753, 7
  %v8755 = vsub.s32 %v8752, %v8754
  %v8756 = vrot.slane %v8742, %v8755
  %v8757 = vcombine.low %v8749, %v8756
  %v8759 = vunpack.c.l.s4 1935823168
  %v8760 = vunpack.c.0.s8 %v8759
  %v8761 = vlaneseq
  %v8762 = vshrl.u32 %v8761, 7
  %v8763 = vsub.s32 %v8760, %v8762
  %v8764 = vrot.slane %v8757, %v8763
  %8766 = vst [vmem:[#allocation7 + $0xc] sm:$0xf] %v8764
  %v8767 = vld [vmem:[%s8501] sm:$0x3]
  %v8768 = vld [vmem:[%s8501 + $0x2] sm:$0x3]
  %v8769 = vld [vmem:[%s8501 + $0x8] sm:$0x3]
  %v8770 = vld [vmem:[%s8501 + $0xa] sm:$0x3]
  %v8776 = vunpack.c.l.s4 1966171168
  %v8777 = vunpack.c.0.s8 %v8776
  %v8778 = vlaneseq
  %v8779 = vshrl.u32 %v8778, 7
  %v8780 = vsub.s32 %v8777, %v8779
  %v8781 = vrot.slane %v8767, %v8780
  %v8782 = vcombine.high %v8781, %v8781
  %v8784 = vunpack.c.l.s4 1966171168
  %v8785 = vunpack.c.0.s8 %v8784
  %v8786 = vlaneseq
  %v8787 = vshrl.u32 %v8786, 7
  %v8788 = vsub.s32 %v8785, %v8787
  %v8789 = vrot.slane %v8768, %v8788
  %v8790 = vcombine.high %v8789, %v8789
  %v8792 = vunpack.c.l.s4 1966171168
  %v8793 = vunpack.c.0.s8 %v8792
  %v8794 = vlaneseq
  %v8795 = vshrl.u32 %v8794, 7
  %v8796 = vsub.s32 %v8793, %v8795
  %v8797 = vrot.slane %v8769, %v8796
  %v8798 = vcombine.high %v8797, %v8797
  %v8800 = vunpack.c.l.s4 1966171168
  %v8801 = vunpack.c.0.s8 %v8800
  %v8802 = vlaneseq
  %v8803 = vshrl.u32 %v8802, 7
  %v8804 = vsub.s32 %v8801, %v8803
  %v8805 = vrot.slane %v8770, %v8804
  %v8806 = vcombine.high %v8805, %v8805
  %v8808 = vshrl.u32 %v8781, 16
  %v8810 = vrot.slane %v8808, 7
  %v8811 = vrot.slane %v8810, 1
  %v8813 = vshll.u32 %v8782, 16
  %v8815 = vsel %vm8604, %v8811, %v8813
  %v8817 = vshrl.u32 %v8789, 16
  %v8819 = vrot.slane %v8817, 7
  %v8820 = vrot.slane %v8819, 1
  %v8822 = vshll.u32 %v8790, 16
  %v8824 = vsel %vm8604, %v8820, %v8822
  %v8826 = vshrl.u32 %v8797, 16
  %v8828 = vrot.slane %v8826, 7
  %v8829 = vrot.slane %v8828, 1
  %v8831 = vshll.u32 %v8798, 16
  %v8833 = vsel %vm8604, %v8829, %v8831
  %v8835 = vshrl.u32 %v8805, 16
  %v8837 = vrot.slane %v8835, 7
  %v8838 = vrot.slane %v8837, 1
  %v8840 = vshll.u32 %v8806, 16
  %v8842 = vsel %vm8604, %v8838, %v8840
  %v8843 = vcombine.low %v8815, %v8833
  %v8844 = vcombine.low %v8824, %v8842
  %v8846 = vunpack.c.l.s4 1935823168
  %v8847 = vunpack.c.0.s8 %v8846
  %v8848 = vlaneseq
  %v8849 = vshrl.u32 %v8848, 7
  %v8850 = vsub.s32 %v8847, %v8849
  %v8851 = vrot.slane %v8843, %v8850
  %v8853 = vunpack.c.l.s4 1935823168
  %v8854 = vunpack.c.0.s8 %v8853
  %v8855 = vlaneseq
  %v8856 = vshrl.u32 %v8855, 7
  %v8857 = vsub.s32 %v8854, %v8856
  %v8858 = vrot.slane %v8844, %v8857
  %v8859 = vcombine.low %v8851, %v8858
  %v8861 = vunpack.c.l.s4 1935823168
  %v8862 = vunpack.c.0.s8 %v8861
  %v8863 = vlaneseq
  %v8864 = vshrl.u32 %v8863, 7
  %v8865 = vsub.s32 %v8862, %v8864
  %v8866 = vrot.slane %v8859, %v8865
  %8868 = vst [vmem:[#allocation7 + $0x10] sm:$0xf] %v8866
  %v8869 = vld [vmem:[%s8501] sm:$0x2]
  %v8870 = vld [vmem:[%s8501 + $0x2] sm:$0x2]
  %v8871 = vld [vmem:[%s8501 + $0x8] sm:$0x2]
  %v8872 = vld [vmem:[%s8501 + $0xa] sm:$0x2]
  %v8878 = vunpack.c.l.s4 1966171168
  %v8879 = vunpack.c.0.s8 %v8878
  %v8880 = vlaneseq
  %v8881 = vshrl.u32 %v8880, 7
  %v8882 = vsub.s32 %v8879, %v8881
  %v8883 = vrot.slane %v8869, %v8882
  %v8884 = vcombine.high %v8883, %v8883
  %v8886 = vunpack.c.l.s4 1966171168
  %v8887 = vunpack.c.0.s8 %v8886
  %v8888 = vlaneseq
  %v8889 = vshrl.u32 %v8888, 7
  %v8890 = vsub.s32 %v8887, %v8889
  %v8891 = vrot.slane %v8870, %v8890
  %v8892 = vcombine.high %v8891, %v8891
  %v8894 = vunpack.c.l.s4 1966171168
  %v8895 = vunpack.c.0.s8 %v8894
  %v8896 = vlaneseq
  %v8897 = vshrl.u32 %v8896, 7
  %v8898 = vsub.s32 %v8895, %v8897
  %v8899 = vrot.slane %v8871, %v8898
  %v8900 = vcombine.high %v8899, %v8899
  %v8902 = vunpack.c.l.s4 1966171168
  %v8903 = vunpack.c.0.s8 %v8902
  %v8904 = vlaneseq
  %v8905 = vshrl.u32 %v8904, 7
  %v8906 = vsub.s32 %v8903, %v8905
  %v8907 = vrot.slane %v8872, %v8906
  %v8908 = vcombine.high %v8907, %v8907
  %v8909 = vcombine.low %v8884, %v8900
  %v8910 = vcombine.low %v8892, %v8908
  %v8912 = vunpack.c.l.s4 1935823168
  %v8913 = vunpack.c.0.s8 %v8912
  %v8914 = vlaneseq
  %v8915 = vshrl.u32 %v8914, 7
  %v8916 = vsub.s32 %v8913, %v8915
  %v8917 = vrot.slane %v8909, %v8916
  %v8919 = vunpack.c.l.s4 1935823168
  %v8920 = vunpack.c.0.s8 %v8919
  %v8921 = vlaneseq
  %v8922 = vshrl.u32 %v8921, 7
  %v8923 = vsub.s32 %v8920, %v8922
  %v8924 = vrot.slane %v8910, %v8923
  %v8925 = vcombine.low %v8917, %v8924
  %v8927 = vunpack.c.l.s4 1935823168
  %v8928 = vunpack.c.0.s8 %v8927
  %v8929 = vlaneseq
  %v8930 = vshrl.u32 %v8929, 7
  %v8931 = vsub.s32 %v8928, %v8930
  %v8932 = vrot.slane %v8925, %v8931
  %8934 = vst [vmem:[#allocation7 + $0x14] sm:$0xf] %v8932
  %s8935 = scalar_lea.vmem [#allocation6], 4
  %v8936 = vld [vmem:[%s8935] sm:$0x1]
  %v8937 = vld [vmem:[%s8935 + $0x2] sm:$0x1]
  %v8938 = vld [vmem:[%s8935 + $0x8] sm:$0x1]
  %v8939 = vld [vmem:[%s8935 + $0xa] sm:$0x1]
  %v8944 = vcombine.low %v8936, %v8938
  %v8945 = vcombine.low %v8937, %v8939
  %v8947 = vunpack.c.l.s4 1935823168
  %v8948 = vunpack.c.0.s8 %v8947
  %v8949 = vlaneseq
  %v8950 = vshrl.u32 %v8949, 7
  %v8951 = vsub.s32 %v8948, %v8950
  %v8952 = vrot.slane %v8944, %v8951
  %v8954 = vunpack.c.l.s4 1935823168
  %v8955 = vunpack.c.0.s8 %v8954
  %v8956 = vlaneseq
  %v8957 = vshrl.u32 %v8956, 7
  %v8958 = vsub.s32 %v8955, %v8957
  %v8959 = vrot.slane %v8945, %v8958
  %v8960 = vcombine.low %v8952, %v8959
  %v8962 = vunpack.c.l.s4 1935823168
  %v8963 = vunpack.c.0.s8 %v8962
  %v8964 = vlaneseq
  %v8965 = vshrl.u32 %v8964, 7
  %v8966 = vsub.s32 %v8963, %v8965
  %v8967 = vrot.slane %v8960, %v8966
  %8969 = vst [vmem:[#allocation7 + $0x18] sm:$0xf] %v8967
  %v8970 = vld [vmem:[%s8935] sm:$0x3]
  %v8971 = vld [vmem:[%s8935 + $0x2] sm:$0x3]
  %v8972 = vld [vmem:[%s8935 + $0x8] sm:$0x3]
  %v8973 = vld [vmem:[%s8935 + $0xa] sm:$0x3]
  %v8979 = vunpack.c.l.s4 1966171168
  %v8980 = vunpack.c.0.s8 %v8979
  %v8981 = vlaneseq
  %v8982 = vshrl.u32 %v8981, 7
  %v8983 = vsub.s32 %v8980, %v8982
  %v8984 = vrot.slane %v8970, %v8983
  %v8985 = vcombine.high %v8984, %v8984
  %v8987 = vunpack.c.l.s4 1966171168
  %v8988 = vunpack.c.0.s8 %v8987
  %v8989 = vlaneseq
  %v8990 = vshrl.u32 %v8989, 7
  %v8991 = vsub.s32 %v8988, %v8990
  %v8992 = vrot.slane %v8971, %v8991
  %v8993 = vcombine.high %v8992, %v8992
  %v8995 = vunpack.c.l.s4 1966171168
  %v8996 = vunpack.c.0.s8 %v8995
  %v8997 = vlaneseq
  %v8998 = vshrl.u32 %v8997, 7
  %v8999 = vsub.s32 %v8996, %v8998
  %v9000 = vrot.slane %v8972, %v8999
  %v9001 = vcombine.high %v9000, %v9000
  %v9003 = vunpack.c.l.s4 1966171168
  %v9004 = vunpack.c.0.s8 %v9003
  %v9005 = vlaneseq
  %v9006 = vshrl.u32 %v9005, 7
  %v9007 = vsub.s32 %v9004, %v9006
  %v9008 = vrot.slane %v8973, %v9007
  %v9009 = vcombine.high %v9008, %v9008
  %v9011 = vshrl.u32 %v8984, 16
  %v9013 = vrot.slane %v9011, 7
  %v9014 = vrot.slane %v9013, 1
  %v9016 = vshll.u32 %v8985, 16
  %v9018 = vsel %vm8604, %v9014, %v9016
  %v9020 = vshrl.u32 %v8992, 16
  %v9022 = vrot.slane %v9020, 7
  %v9023 = vrot.slane %v9022, 1
  %v9025 = vshll.u32 %v8993, 16
  %v9027 = vsel %vm8604, %v9023, %v9025
  %v9029 = vshrl.u32 %v9000, 16
  %v9031 = vrot.slane %v9029, 7
  %v9032 = vrot.slane %v9031, 1
  %v9034 = vshll.u32 %v9001, 16
  %v9036 = vsel %vm8604, %v9032, %v9034
  %v9038 = vshrl.u32 %v9008, 16
  %v9040 = vrot.slane %v9038, 7
  %v9041 = vrot.slane %v9040, 1
  %v9043 = vshll.u32 %v9009, 16
  %v9045 = vsel %vm8604, %v9041, %v9043
  %v9046 = vcombine.low %v9018, %v9036
  %v9047 = vcombine.low %v9027, %v9045
  %v9049 = vunpack.c.l.s4 1935823168
  %v9050 = vunpack.c.0.s8 %v9049
  %v9051 = vlaneseq
  %v9052 = vshrl.u32 %v9051, 7
  %v9053 = vsub.s32 %v9050, %v9052
  %v9054 = vrot.slane %v9046, %v9053
  %v9056 = vunpack.c.l.s4 1935823168
  %v9057 = vunpack.c.0.s8 %v9056
  %v9058 = vlaneseq
  %v9059 = vshrl.u32 %v9058, 7
  %v9060 = vsub.s32 %v9057, %v9059
  %v9061 = vrot.slane %v9047, %v9060
  %v9062 = vcombine.low %v9054, %v9061
  %v9064 = vunpack.c.l.s4 1935823168
  %v9065 = vunpack.c.0.s8 %v9064
  %v9066 = vlaneseq
  %v9067 = vshrl.u32 %v9066, 7
  %v9068 = vsub.s32 %v9065, %v9067
  %v9069 = vrot.slane %v9062, %v9068
  %9071 = vst [vmem:[#allocation7 + $0x1c] sm:$0xf] %v9069
  %v9072 = vld [vmem:[%s8935] sm:$0x2]
  %v9073 = vld [vmem:[%s8935 + $0x2] sm:$0x2]
  %v9074 = vld [vmem:[%s8935 + $0x8] sm:$0x2]
  %v9075 = vld [vmem:[%s8935 + $0xa] sm:$0x2]
  %v9081 = vunpack.c.l.s4 1966171168
  %v9082 = vunpack.c.0.s8 %v9081
  %v9083 = vlaneseq
  %v9084 = vshrl.u32 %v9083, 7
  %v9085 = vsub.s32 %v9082, %v9084
  %v9086 = vrot.slane %v9072, %v9085
  %v9087 = vcombine.high %v9086, %v9086
  %v9089 = vunpack.c.l.s4 1966171168
  %v9090 = vunpack.c.0.s8 %v9089
  %v9091 = vlaneseq
  %v9092 = vshrl.u32 %v9091, 7
  %v9093 = vsub.s32 %v9090, %v9092
  %v9094 = vrot.slane %v9073, %v9093
  %v9095 = vcombine.high %v9094, %v9094
  %v9097 = vunpack.c.l.s4 1966171168
  %v9098 = vunpack.c.0.s8 %v9097
  %v9099 = vlaneseq
  %v9100 = vshrl.u32 %v9099, 7
  %v9101 = vsub.s32 %v9098, %v9100
  %v9102 = vrot.slane %v9074, %v9101
  %v9103 = vcombine.high %v9102, %v9102
  %v9105 = vunpack.c.l.s4 1966171168
  %v9106 = vunpack.c.0.s8 %v9105
  %v9107 = vlaneseq
  %v9108 = vshrl.u32 %v9107, 7
  %v9109 = vsub.s32 %v9106, %v9108
  %v9110 = vrot.slane %v9075, %v9109
  %v9111 = vcombine.high %v9110, %v9110
  %v9112 = vcombine.low %v9087, %v9103
  %v9113 = vcombine.low %v9095, %v9111
  %v9115 = vunpack.c.l.s4 1935823168
  %v9116 = vunpack.c.0.s8 %v9115
  %v9117 = vlaneseq
  %v9118 = vshrl.u32 %v9117, 7
  %v9119 = vsub.s32 %v9116, %v9118
  %v9120 = vrot.slane %v9112, %v9119
  %v9122 = vunpack.c.l.s4 1935823168
  %v9123 = vunpack.c.0.s8 %v9122
  %v9124 = vlaneseq
  %v9125 = vshrl.u32 %v9124, 7
  %v9126 = vsub.s32 %v9123, %v9125
  %v9127 = vrot.slane %v9113, %v9126
  %v9128 = vcombine.low %v9120, %v9127
  %v9130 = vunpack.c.l.s4 1935823168
  %v9131 = vunpack.c.0.s8 %v9130
  %v9132 = vlaneseq
  %v9133 = vshrl.u32 %v9132, 7
  %v9134 = vsub.s32 %v9131, %v9133
  %v9135 = vrot.slane %v9128, %v9134
  %9137 = vst [vmem:[#allocation7 + $0x20] sm:$0xf] %v9135
  %v9138 = vld [vmem:[#allocation7] sm:$0xff]
  %v9139 = vld [vmem:[#allocation7 + $0x8] sm:$0xff]
  %v9140 = vld [vmem:[#allocation7 + $0x10] sm:$0xff]
  %v9141 = vld [vmem:[#allocation7 + $0x18] sm:$0xff]
  %v9142 = vld [vmem:[#allocation7 + $0x20] sm:$0xf]
  %v9143 = vld [vmem:[%s7] sm:$0xff]
  %v9144 = vld [vmem:[%s7 + $0x8] sm:$0xff]
  %v9145 = vld [vmem:[%s7 + $0x10] sm:$0xff]
  %v9146 = vld [vmem:[%s7 + $0x18] sm:$0xff]
  %v9147 = vld [vmem:[%s7 + $0x20] sm:$0xff]
  %v9148 = vld [vmem:[%s7 + $0x28] sm:$0xff]
  %v9149 = vld [vmem:[%s7 + $0x30] sm:$0xff]
  %v9150 = vld [vmem:[%s7 + $0x38] sm:$0xff]
  %v9151 = vld [vmem:[%s7 + $0x40] sm:$0xff]
  %v9152 = vld [vmem:[%s7 + $0x48] sm:$0xff]
  %v9153 = vld [vmem:[%s7 + $0x50] sm:$0xff]
  %v9154 = vld [vmem:[%s7 + $0x58] sm:$0xff]
  %v9155 = vld [vmem:[%s7 + $0x60] sm:$0xff]
  %v9156 = vld [vmem:[%s7 + $0x68] sm:$0xff]
  %v9157 = vld [vmem:[%s7 + $0x70] sm:$0xff]
  %v9158 = vld [vmem:[%s7 + $0x78] sm:$0xff]
  %v9159 = vld [vmem:[%s7 + $0x80] sm:$0xff]
  %v9160 = vld [vmem:[%s7 + $0x88] sm:$0xff]
  %v9161 = vld [vmem:[%s7 + $0x90] sm:$0xff]
  %v9162 = vld [vmem:[%s7 + $0x98] sm:$0xff]
  %v9163 = vld [vmem:[%s7 + $0xa0] sm:$0xff]
  %v9164 = vld [vmem:[%s7 + $0xa8] sm:$0xff]
  %v9165 = vld [vmem:[%s7 + $0xb0] sm:$0xff]
  %v9166 = vld [vmem:[%s7 + $0xb8] sm:$0xff]
  %v9167 = vld [vmem:[%s7 + $0xc0] sm:$0xff]
  %v9168 = vld [vmem:[%s7 + $0xc8] sm:$0xff]
  %v9169 = vld [vmem:[%s7 + $0xd0] sm:$0xff]
  %v9170 = vld [vmem:[%s7 + $0xd8] sm:$0xff]
  %v9171 = vld [vmem:[%s7 + $0xe0] sm:$0xff]
  %v9172 = vld [vmem:[%s7 + $0xe8] sm:$0xff]
  %v9173 = vld [vmem:[%s7 + $0xf0] sm:$0xff]
  %v9174 = vld [vmem:[%s7 + $0xf8] sm:$0xff]
  %v9175 = vld [vmem:[%s7 + $0x100] sm:$0xff]
  %v9176 = vld [vmem:[%s7 + $0x108] sm:$0xff]
  %v9177 = vld [vmem:[%s7 + $0x110] sm:$0xff]
  %v9178 = vld [vmem:[%s7 + $0x118] sm:$0xff]
  %v9179 = vld [vmem:[%s7 + $0x120] sm:$0xff]
  %v9180 = vld [vmem:[%s7 + $0x128] sm:$0xff]
  %v9181 = vld [vmem:[%s7 + $0x130] sm:$0xff]
  %v9182 = vld [vmem:[%s7 + $0x138] sm:$0xff]
  %v9183 = vld [vmem:[%s7 + $0x140] sm:$0xff]
  %v9184 = vld [vmem:[%s7 + $0x148] sm:$0xff]
  %v9185 = vld [vmem:[%s7 + $0x150] sm:$0xff]
  %v9186 = vld [vmem:[%s7 + $0x158] sm:$0xff]
  %v9187 = vld [vmem:[%s7 + $0x160] sm:$0xff]
  %v9188 = vld [vmem:[%s7 + $0x168] sm:$0xff]
  %v9189 = vld [vmem:[%s7 + $0x170] sm:$0xff]
  %v9190 = vld [vmem:[%s7 + $0x178] sm:$0xff]
  %v9191 = vld [vmem:[%s7 + $0x180] sm:$0xff]
  %v9192 = vld [vmem:[%s7 + $0x188] sm:$0xff]
  %v9193 = vld [vmem:[%s7 + $0x190] sm:$0xff]
  %v9194 = vld [vmem:[%s7 + $0x198] sm:$0xff]
  %v9195 = vld [vmem:[%s7 + $0x1a0] sm:$0xff]
  %v9196 = vld [vmem:[%s7 + $0x1a8] sm:$0xff]
  %v9197 = vld [vmem:[%s7 + $0x1b0] sm:$0xff]
  %v9198 = vld [vmem:[%s7 + $0x1b8] sm:$0xff]
  %v9199 = vld [vmem:[%s7 + $0x1c0] sm:$0xff]
  %v9200 = vld [vmem:[%s7 + $0x1c8] sm:$0xff]
  %v9201 = vld [vmem:[%s7 + $0x1d0] sm:$0xff]
  %v9202 = vld [vmem:[%s7 + $0x1d8] sm:$0xff]
  %v9203 = vld [vmem:[%s7 + $0x1e0] sm:$0xff]
  %v9204 = vld [vmem:[%s7 + $0x1e8] sm:$0xff]
  %v9205 = vld [vmem:[%s7 + $0x1f0] sm:$0xff]
  %v9206 = vld [vmem:[%s7 + $0x1f8] sm:$0xff]
  %v9207 = vld [vmem:[%s7 + $0x200] sm:$0xff]
  %v9208 = vld [vmem:[%s7 + $0x208] sm:$0xff]
  %v9209 = vld [vmem:[%s7 + $0x210] sm:$0xff]
  %v9210 = vld [vmem:[%s7 + $0x218] sm:$0xff]
  %v9211 = vld [vmem:[%s7 + $0x220] sm:$0xff]
  %v9212 = vld [vmem:[%s7 + $0x228] sm:$0xff]
  %v9213 = vld [vmem:[%s7 + $0x230] sm:$0xff]
  %v9214 = vld [vmem:[%s7 + $0x238] sm:$0xff]
  %v9215 = vld [vmem:[%s7 + $0x240] sm:$0xff]
  %v9216 = vld [vmem:[%s7 + $0x248] sm:$0xff]
  %v9217 = vld [vmem:[%s7 + $0x250] sm:$0xff]
  %v9218 = vld [vmem:[%s7 + $0x258] sm:$0xff]
  %v9219 = vld [vmem:[%s7 + $0x260] sm:$0xff]
  %v9220 = vld [vmem:[%s7 + $0x268] sm:$0xff]
  %v9221 = vld [vmem:[%s7 + $0x270] sm:$0xff]
  %v9222 = vld [vmem:[%s7 + $0x278] sm:$0xff]
  %v9223 = vld [vmem:[%s7 + $0x280] sm:$0xff]
  %v9224 = vld [vmem:[%s7 + $0x288] sm:$0xff]
  %v9225 = vld [vmem:[%s7 + $0x290] sm:$0xff]
  %v9226 = vld [vmem:[%s7 + $0x298] sm:$0xff]
  %v9227 = vld [vmem:[%s7 + $0x2a0] sm:$0xff]
  %v9228 = vld [vmem:[%s7 + $0x2a8] sm:$0xff]
  %v9229 = vld [vmem:[%s7 + $0x2b0] sm:$0xff]
  %v9230 = vld [vmem:[%s7 + $0x2b8] sm:$0xff]
  %v9231 = vld [vmem:[%s7 + $0x2c0] sm:$0xff]
  %v9232 = vld [vmem:[%s7 + $0x2c8] sm:$0xff]
  %v9233 = vld [vmem:[%s7 + $0x2d0] sm:$0xff]
  %v9234 = vld [vmem:[%s7 + $0x2d8] sm:$0xff]
  %v9235 = vld [vmem:[%s7 + $0x2e0] sm:$0xff]
  %v9236 = vld [vmem:[%s7 + $0x2e8] sm:$0xff]
  %v9237 = vld [vmem:[%s7 + $0x2f0] sm:$0xff]
  %v9238 = vld [vmem:[%s7 + $0x2f8] sm:$0xff]
  %v9239 = vld [vmem:[%s7 + $0x300] sm:$0xff]
  %v9240 = vld [vmem:[%s7 + $0x308] sm:$0xff]
  %v9241 = vld [vmem:[%s7 + $0x310] sm:$0xff]
  %v9242 = vld [vmem:[%s7 + $0x318] sm:$0xff]
  %v9243 = vld [vmem:[%s7 + $0x320] sm:$0xff]
  %v9244 = vld [vmem:[%s7 + $0x328] sm:$0xff]
  %v9245 = vld [vmem:[%s7 + $0x330] sm:$0xff]
  %v9246 = vld [vmem:[%s7 + $0x338] sm:$0xff]
  %v9247 = vld [vmem:[%s7 + $0x340] sm:$0xff]
  %v9248 = vld [vmem:[%s7 + $0x348] sm:$0xff]
  %v9249 = vld [vmem:[%s7 + $0x350] sm:$0xff]
  %v9250 = vld [vmem:[%s7 + $0x358] sm:$0xff]
  %v9251 = vld [vmem:[%s7 + $0x360] sm:$0xff]
  %v9252 = vld [vmem:[%s7 + $0x368] sm:$0xff]
  %v9253 = vld [vmem:[%s7 + $0x370] sm:$0xff]
  %v9254 = vld [vmem:[%s7 + $0x378] sm:$0xff]
  %v9255 = vld [vmem:[%s7 + $0x380] sm:$0xff]
  %v9256 = vld [vmem:[%s7 + $0x388] sm:$0xff]
  %v9257 = vld [vmem:[%s7 + $0x390] sm:$0xff]
  %v9258 = vld [vmem:[%s7 + $0x398] sm:$0xff]
  %v9259 = vld [vmem:[%s7 + $0x3a0] sm:$0xff]
  %v9260 = vld [vmem:[%s7 + $0x3a8] sm:$0xff]
  %v9261 = vld [vmem:[%s7 + $0x3b0] sm:$0xff]
  %v9262 = vld [vmem:[%s7 + $0x3b8] sm:$0xff]
  %v9263 = vld [vmem:[%s7 + $0x3c0] sm:$0xff]
  %v9264 = vld [vmem:[%s7 + $0x3c8] sm:$0xff]
  %v9265 = vld [vmem:[%s7 + $0x3d0] sm:$0xff]
  %v9266 = vld [vmem:[%s7 + $0x3d8] sm:$0xff]
  %v9267 = vld [vmem:[%s7 + $0x3e0] sm:$0xff]
  %v9268 = vld [vmem:[%s7 + $0x3e8] sm:$0xff]
  %v9269 = vld [vmem:[%s7 + $0x3f0] sm:$0xff]
  %v9270 = vld [vmem:[%s7 + $0x3f8] sm:$0xff]
  %v9271 = vld [vmem:[%s7 + $0x400] sm:$0xff]
  %v9272 = vld [vmem:[%s7 + $0x408] sm:$0xff]
  %v9273 = vld [vmem:[%s7 + $0x410] sm:$0xff]
  %v9274 = vld [vmem:[%s7 + $0x418] sm:$0xff]
  %v9275 = vld [vmem:[%s7 + $0x420] sm:$0xff]
  %v9276 = vld [vmem:[%s7 + $0x428] sm:$0xff]
  %v9277 = vld [vmem:[%s7 + $0x430] sm:$0xff]
  %v9278 = vld [vmem:[%s7 + $0x438] sm:$0xff]
  %v9279 = vld [vmem:[%s7 + $0x440] sm:$0xff]
  %v9280 = vld [vmem:[%s7 + $0x448] sm:$0xff]
  %v9281 = vld [vmem:[%s7 + $0x450] sm:$0xff]
  %v9282 = vld [vmem:[%s7 + $0x458] sm:$0xff]
  %v9283 = vld [vmem:[%s7 + $0x460] sm:$0xff]
  %v9284 = vld [vmem:[%s7 + $0x468] sm:$0xff]
  %v9285 = vld [vmem:[%s7 + $0x470] sm:$0xff]
  %v9286 = vld [vmem:[%s7 + $0x478] sm:$0xff]
  %v9287 = vld [vmem:[%s8] sm:$0x3]
  %v9289 = vlaneseq
  %v9290 = vshrl.u32 %v9289, 7
  %v9291 = vsub.s32 0, %v9290
  %v9292 = vrot.slane %v9287, %v9291
  %v9293 = vlaneseq
  %v9294 = vshrl.u32 %v9293, 7
  %v9295 = vsub.s32 1, %v9294
  %v9296 = vrot.slane %v9287, %v9295
  %v9304 = vunpack.c.l.b16 %v9138
  %v9305 = vunpack.c.h.b16 %v9138
  %v9306 = vunpack.c.l.b16 %v9139
  %v9307 = vunpack.c.h.b16 %v9139
  %v9308 = vunpack.c.l.b16 %v9140
  %v9309 = vunpack.c.h.b16 %v9140
  %v9310 = vunpack.c.l.b16 %v9141
  %v9311 = vunpack.c.h.b16 %v9141
  %v9312 = vunpack.c.l.b16 %v9142
  %v9313 = vpack.c.b16 %v9304, %v9304
  %v9314 = vpack.c.b16 %v9305, %v9305
  %v9315 = vpack.c.b16 %v9306, %v9306
  %v9316 = vpack.c.b16 %v9307, %v9307
  %v9317 = vpack.c.b16 %v9308, %v9308
  %v9318 = vpack.c.b16 %v9309, %v9309
  %v9319 = vpack.c.b16 %v9310, %v9310
  %v9320 = vpack.c.b16 %v9311, %v9311
  %v9321 = vpack.c.b16 %v9312, %v9312
  %v9475 = vunpack.c.l.b16 %v9143
  %v9476 = vunpack.c.h.b16 %v9143
  %v9477 = vunpack.c.l.b16 %v9144
  %v9478 = vunpack.c.h.b16 %v9144
  %v9479 = vunpack.c.l.b16 %v9145
  %v9480 = vunpack.c.h.b16 %v9145
  %v9481 = vunpack.c.l.b16 %v9146
  %v9482 = vunpack.c.h.b16 %v9146
  %v9483 = vunpack.c.l.b16 %v9147
  %v9484 = vunpack.c.h.b16 %v9147
  %v9485 = vunpack.c.l.b16 %v9148
  %v9486 = vunpack.c.h.b16 %v9148
  %v9487 = vunpack.c.l.b16 %v9149
  %v9488 = vunpack.c.h.b16 %v9149
  %v9489 = vunpack.c.l.b16 %v9150
  %v9490 = vunpack.c.h.b16 %v9150
  %v9491 = vunpack.c.l.b16 %v9151
  %v9492 = vunpack.c.h.b16 %v9151
  %v9493 = vunpack.c.l.b16 %v9152
  %v9494 = vunpack.c.h.b16 %v9152
  %v9495 = vunpack.c.l.b16 %v9153
  %v9496 = vunpack.c.h.b16 %v9153
  %v9497 = vunpack.c.l.b16 %v9154
  %v9498 = vunpack.c.h.b16 %v9154
  %v9499 = vunpack.c.l.b16 %v9155
  %v9500 = vunpack.c.h.b16 %v9155
  %v9501 = vunpack.c.l.b16 %v9156
  %v9502 = vunpack.c.h.b16 %v9156
  %v9503 = vunpack.c.l.b16 %v9157
  %v9504 = vunpack.c.h.b16 %v9157
  %v9505 = vunpack.c.l.b16 %v9158
  %v9506 = vunpack.c.h.b16 %v9158
  %v9507 = vunpack.c.l.b16 %v9159
  %v9508 = vunpack.c.h.b16 %v9159
  %v9509 = vunpack.c.l.b16 %v9160
  %v9510 = vunpack.c.h.b16 %v9160
  %v9511 = vunpack.c.l.b16 %v9161
  %v9512 = vunpack.c.h.b16 %v9161
  %v9513 = vunpack.c.l.b16 %v9162
  %v9514 = vunpack.c.h.b16 %v9162
  %v9515 = vunpack.c.l.b16 %v9163
  %v9516 = vunpack.c.h.b16 %v9163
  %v9517 = vunpack.c.l.b16 %v9164
  %v9518 = vunpack.c.h.b16 %v9164
  %v9519 = vunpack.c.l.b16 %v9165
  %v9520 = vunpack.c.h.b16 %v9165
  %v9521 = vunpack.c.l.b16 %v9166
  %v9522 = vunpack.c.h.b16 %v9166
  %v9523 = vunpack.c.l.b16 %v9167
  %v9524 = vunpack.c.h.b16 %v9167
  %v9525 = vunpack.c.l.b16 %v9168
  %v9526 = vunpack.c.h.b16 %v9168
  %v9527 = vunpack.c.l.b16 %v9169
  %v9528 = vunpack.c.h.b16 %v9169
  %v9529 = vunpack.c.l.b16 %v9170
  %v9530 = vunpack.c.h.b16 %v9170
  %v9531 = vunpack.c.l.b16 %v9171
  %v9532 = vunpack.c.h.b16 %v9171
  %v9533 = vunpack.c.l.b16 %v9172
  %v9534 = vunpack.c.h.b16 %v9172
  %v9535 = vunpack.c.l.b16 %v9173
  %v9536 = vunpack.c.h.b16 %v9173
  %v9537 = vunpack.c.l.b16 %v9174
  %v9538 = vunpack.c.h.b16 %v9174
  %v9539 = vunpack.c.l.b16 %v9175
  %v9540 = vunpack.c.h.b16 %v9175
  %v9541 = vunpack.c.l.b16 %v9176
  %v9542 = vunpack.c.h.b16 %v9176
  %v9543 = vunpack.c.l.b16 %v9177
  %v9544 = vunpack.c.h.b16 %v9177
  %v9545 = vunpack.c.l.b16 %v9178
  %v9546 = vunpack.c.h.b16 %v9178
  %v9547 = vunpack.c.l.b16 %v9179
  %v9548 = vunpack.c.h.b16 %v9179
  %v9549 = vunpack.c.l.b16 %v9180
  %v9550 = vunpack.c.h.b16 %v9180
  %v9551 = vunpack.c.l.b16 %v9181
  %v9552 = vunpack.c.h.b16 %v9181
  %v9553 = vunpack.c.l.b16 %v9182
  %v9554 = vunpack.c.h.b16 %v9182
  %v9555 = vunpack.c.l.b16 %v9183
  %v9556 = vunpack.c.h.b16 %v9183
  %v9557 = vunpack.c.l.b16 %v9184
  %v9558 = vunpack.c.h.b16 %v9184
  %v9559 = vunpack.c.l.b16 %v9185
  %v9560 = vunpack.c.h.b16 %v9185
  %v9561 = vunpack.c.l.b16 %v9186
  %v9562 = vunpack.c.h.b16 %v9186
  %v9563 = vunpack.c.l.b16 %v9187
  %v9564 = vunpack.c.h.b16 %v9187
  %v9565 = vunpack.c.l.b16 %v9188
  %v9566 = vunpack.c.h.b16 %v9188
  %v9567 = vunpack.c.l.b16 %v9189
  %v9568 = vunpack.c.h.b16 %v9189
  %v9569 = vunpack.c.l.b16 %v9190
  %v9570 = vunpack.c.h.b16 %v9190
  %v9571 = vunpack.c.l.b16 %v9191
  %v9572 = vunpack.c.h.b16 %v9191
  %v9573 = vunpack.c.l.b16 %v9192
  %v9574 = vunpack.c.h.b16 %v9192
  %v9575 = vunpack.c.l.b16 %v9193
  %v9576 = vunpack.c.h.b16 %v9193
  %v9577 = vunpack.c.l.b16 %v9194
  %v9578 = vunpack.c.h.b16 %v9194
  %v9579 = vunpack.c.l.b16 %v9195
  %v9580 = vunpack.c.h.b16 %v9195
  %v9581 = vunpack.c.l.b16 %v9196
  %v9582 = vunpack.c.h.b16 %v9196
  %v9583 = vunpack.c.l.b16 %v9197
  %v9584 = vunpack.c.h.b16 %v9197
  %v9585 = vunpack.c.l.b16 %v9198
  %v9586 = vunpack.c.h.b16 %v9198
  %v9587 = vunpack.c.l.b16 %v9199
  %v9588 = vunpack.c.h.b16 %v9199
  %v9589 = vunpack.c.l.b16 %v9200
  %v9590 = vunpack.c.h.b16 %v9200
  %v9591 = vunpack.c.l.b16 %v9201
  %v9592 = vunpack.c.h.b16 %v9201
  %v9593 = vunpack.c.l.b16 %v9202
  %v9594 = vunpack.c.h.b16 %v9202
  %v9595 = vunpack.c.l.b16 %v9203
  %v9596 = vunpack.c.h.b16 %v9203
  %v9597 = vunpack.c.l.b16 %v9204
  %v9598 = vunpack.c.h.b16 %v9204
  %v9599 = vunpack.c.l.b16 %v9205
  %v9600 = vunpack.c.h.b16 %v9205
  %v9601 = vunpack.c.l.b16 %v9206
  %v9602 = vunpack.c.h.b16 %v9206
  %v9603 = vunpack.c.l.b16 %v9207
  %v9604 = vunpack.c.h.b16 %v9207
  %v9605 = vunpack.c.l.b16 %v9208
  %v9606 = vunpack.c.h.b16 %v9208
  %v9607 = vunpack.c.l.b16 %v9209
  %v9608 = vunpack.c.h.b16 %v9209
  %v9609 = vunpack.c.l.b16 %v9210
  %v9610 = vunpack.c.h.b16 %v9210
  %v9611 = vunpack.c.l.b16 %v9211
  %v9612 = vunpack.c.h.b16 %v9211
  %v9613 = vunpack.c.l.b16 %v9212
  %v9614 = vunpack.c.h.b16 %v9212
  %v9615 = vunpack.c.l.b16 %v9213
  %v9616 = vunpack.c.h.b16 %v9213
  %v9617 = vunpack.c.l.b16 %v9214
  %v9618 = vunpack.c.h.b16 %v9214
  %v9619 = vunpack.c.l.b16 %v9215
  %v9620 = vunpack.c.h.b16 %v9215
  %v9621 = vunpack.c.l.b16 %v9216
  %v9622 = vunpack.c.h.b16 %v9216
  %v9623 = vunpack.c.l.b16 %v9217
  %v9624 = vunpack.c.h.b16 %v9217
  %v9625 = vunpack.c.l.b16 %v9218
  %v9626 = vunpack.c.h.b16 %v9218
  %v9627 = vunpack.c.l.b16 %v9219
  %v9628 = vunpack.c.h.b16 %v9219
  %v9629 = vunpack.c.l.b16 %v9220
  %v9630 = vunpack.c.h.b16 %v9220
  %v9631 = vunpack.c.l.b16 %v9221
  %v9632 = vunpack.c.h.b16 %v9221
  %v9633 = vunpack.c.l.b16 %v9222
  %v9634 = vunpack.c.h.b16 %v9222
  %v9635 = vunpack.c.l.b16 %v9223
  %v9636 = vunpack.c.h.b16 %v9223
  %v9637 = vunpack.c.l.b16 %v9224
  %v9638 = vunpack.c.h.b16 %v9224
  %v9639 = vunpack.c.l.b16 %v9225
  %v9640 = vunpack.c.h.b16 %v9225
  %v9641 = vunpack.c.l.b16 %v9226
  %v9642 = vunpack.c.h.b16 %v9226
  %v9643 = vunpack.c.l.b16 %v9227
  %v9644 = vunpack.c.h.b16 %v9227
  %v9645 = vunpack.c.l.b16 %v9228
  %v9646 = vunpack.c.h.b16 %v9228
  %v9647 = vunpack.c.l.b16 %v9229
  %v9648 = vunpack.c.h.b16 %v9229
  %v9649 = vunpack.c.l.b16 %v9230
  %v9650 = vunpack.c.h.b16 %v9230
  %v9651 = vunpack.c.l.b16 %v9231
  %v9652 = vunpack.c.h.b16 %v9231
  %v9653 = vunpack.c.l.b16 %v9232
  %v9654 = vunpack.c.h.b16 %v9232
  %v9655 = vunpack.c.l.b16 %v9233
  %v9656 = vunpack.c.h.b16 %v9233
  %v9657 = vunpack.c.l.b16 %v9234
  %v9658 = vunpack.c.h.b16 %v9234
  %v9659 = vunpack.c.l.b16 %v9235
  %v9660 = vunpack.c.h.b16 %v9235
  %v9661 = vunpack.c.l.b16 %v9236
  %v9662 = vunpack.c.h.b16 %v9236
  %v9663 = vunpack.c.l.b16 %v9237
  %v9664 = vunpack.c.h.b16 %v9237
  %v9665 = vunpack.c.l.b16 %v9238
  %v9666 = vunpack.c.h.b16 %v9238
  %v9667 = vunpack.c.l.b16 %v9239
  %v9668 = vunpack.c.h.b16 %v9239
  %v9669 = vunpack.c.l.b16 %v9240
  %v9670 = vunpack.c.h.b16 %v9240
  %v9671 = vunpack.c.l.b16 %v9241
  %v9672 = vunpack.c.h.b16 %v9241
  %v9673 = vunpack.c.l.b16 %v9242
  %v9674 = vunpack.c.h.b16 %v9242
  %v9675 = vunpack.c.l.b16 %v9243
  %v9676 = vunpack.c.h.b16 %v9243
  %v9677 = vunpack.c.l.b16 %v9244
  %v9678 = vunpack.c.h.b16 %v9244
  %v9679 = vunpack.c.l.b16 %v9245
  %v9680 = vunpack.c.h.b16 %v9245
  %v9681 = vunpack.c.l.b16 %v9246
  %v9682 = vunpack.c.h.b16 %v9246
  %v9683 = vunpack.c.l.b16 %v9247
  %v9684 = vunpack.c.h.b16 %v9247
  %v9685 = vunpack.c.l.b16 %v9248
  %v9686 = vunpack.c.h.b16 %v9248
  %v9687 = vunpack.c.l.b16 %v9249
  %v9688 = vunpack.c.h.b16 %v9249
  %v9689 = vunpack.c.l.b16 %v9250
  %v9690 = vunpack.c.h.b16 %v9250
  %v9691 = vunpack.c.l.b16 %v9251
  %v9692 = vunpack.c.h.b16 %v9251
  %v9693 = vunpack.c.l.b16 %v9252
  %v9694 = vunpack.c.h.b16 %v9252
  %v9695 = vunpack.c.l.b16 %v9253
  %v9696 = vunpack.c.h.b16 %v9253
  %v9697 = vunpack.c.l.b16 %v9254
  %v9698 = vunpack.c.h.b16 %v9254
  %v9699 = vunpack.c.l.b16 %v9255
  %v9700 = vunpack.c.h.b16 %v9255
  %v9701 = vunpack.c.l.b16 %v9256
  %v9702 = vunpack.c.h.b16 %v9256
  %v9703 = vunpack.c.l.b16 %v9257
  %v9704 = vunpack.c.h.b16 %v9257
  %v9705 = vunpack.c.l.b16 %v9258
  %v9706 = vunpack.c.h.b16 %v9258
  %v9707 = vunpack.c.l.b16 %v9259
  %v9708 = vunpack.c.h.b16 %v9259
  %v9709 = vunpack.c.l.b16 %v9260
  %v9710 = vunpack.c.h.b16 %v9260
  %v9711 = vunpack.c.l.b16 %v9261
  %v9712 = vunpack.c.h.b16 %v9261
  %v9713 = vunpack.c.l.b16 %v9262
  %v9714 = vunpack.c.h.b16 %v9262
  %v9715 = vunpack.c.l.b16 %v9263
  %v9716 = vunpack.c.h.b16 %v9263
  %v9717 = vunpack.c.l.b16 %v9264
  %v9718 = vunpack.c.h.b16 %v9264
  %v9719 = vunpack.c.l.b16 %v9265
  %v9720 = vunpack.c.h.b16 %v9265
  %v9721 = vunpack.c.l.b16 %v9266
  %v9722 = vunpack.c.h.b16 %v9266
  %v9723 = vunpack.c.l.b16 %v9267
  %v9724 = vunpack.c.h.b16 %v9267
  %v9725 = vunpack.c.l.b16 %v9268
  %v9726 = vunpack.c.h.b16 %v9268
  %v9727 = vunpack.c.l.b16 %v9269
  %v9728 = vunpack.c.h.b16 %v9269
  %v9729 = vunpack.c.l.b16 %v9270
  %v9730 = vunpack.c.h.b16 %v9270
  %v9731 = vunpack.c.l.b16 %v9271
  %v9732 = vunpack.c.h.b16 %v9271
  %v9733 = vunpack.c.l.b16 %v9272
  %v9734 = vunpack.c.h.b16 %v9272
  %v9735 = vunpack.c.l.b16 %v9273
  %v9736 = vunpack.c.h.b16 %v9273
  %v9737 = vunpack.c.l.b16 %v9274
  %v9738 = vunpack.c.h.b16 %v9274
  %v9739 = vunpack.c.l.b16 %v9275
  %v9740 = vunpack.c.h.b16 %v9275
  %v9741 = vunpack.c.l.b16 %v9276
  %v9742 = vunpack.c.h.b16 %v9276
  %v9743 = vunpack.c.l.b16 %v9277
  %v9744 = vunpack.c.h.b16 %v9277
  %v9745 = vunpack.c.l.b16 %v9278
  %v9746 = vunpack.c.h.b16 %v9278
  %v9747 = vunpack.c.l.b16 %v9279
  %v9748 = vunpack.c.h.b16 %v9279
  %v9749 = vunpack.c.l.b16 %v9280
  %v9750 = vunpack.c.h.b16 %v9280
  %v9751 = vunpack.c.l.b16 %v9281
  %v9752 = vunpack.c.h.b16 %v9281
  %v9753 = vunpack.c.l.b16 %v9282
  %v9754 = vunpack.c.h.b16 %v9282
  %v9755 = vunpack.c.l.b16 %v9283
  %v9756 = vunpack.c.h.b16 %v9283
  %v9757 = vunpack.c.l.b16 %v9284
  %v9758 = vunpack.c.h.b16 %v9284
  %v9759 = vunpack.c.l.b16 %v9285
  %v9760 = vunpack.c.h.b16 %v9285
  %v9761 = vunpack.c.l.b16 %v9286
  %v9762 = vunpack.c.h.b16 %v9286
  %v9763 = vpack.c.b16 %v9477, %v9475
  %v9764 = vpack.c.b16 %v9478, %v9476
  %v9765 = vpack.c.b16 %v9481, %v9479
  %v9766 = vpack.c.b16 %v9482, %v9480
  %v9767 = vpack.c.b16 %v9485, %v9483
  %v9768 = vpack.c.b16 %v9486, %v9484
  %v9769 = vpack.c.b16 %v9489, %v9487
  %v9770 = vpack.c.b16 %v9490, %v9488
  %v9771 = vpack.c.b16 %v9493, %v9491
  %v9772 = vpack.c.b16 %v9494, %v9492
  %v9773 = vpack.c.b16 %v9497, %v9495
  %v9774 = vpack.c.b16 %v9498, %v9496
  %v9775 = vpack.c.b16 %v9501, %v9499
  %v9776 = vpack.c.b16 %v9502, %v9500
  %v9777 = vpack.c.b16 %v9505, %v9503
  %v9778 = vpack.c.b16 %v9506, %v9504
  %v9779 = vpack.c.b16 %v9509, %v9507
  %v9780 = vpack.c.b16 %v9510, %v9508
  %v9781 = vpack.c.b16 %v9513, %v9511
  %v9782 = vpack.c.b16 %v9514, %v9512
  %v9783 = vpack.c.b16 %v9517, %v9515
  %v9784 = vpack.c.b16 %v9518, %v9516
  %v9785 = vpack.c.b16 %v9521, %v9519
  %v9786 = vpack.c.b16 %v9522, %v9520
  %v9787 = vpack.c.b16 %v9525, %v9523
  %v9788 = vpack.c.b16 %v9526, %v9524
  %v9789 = vpack.c.b16 %v9529, %v9527
  %v9790 = vpack.c.b16 %v9530, %v9528
  %v9791 = vpack.c.b16 %v9533, %v9531
  %v9792 = vpack.c.b16 %v9534, %v9532
  %v9793 = vpack.c.b16 %v9537, %v9535
  %v9794 = vpack.c.b16 %v9538, %v9536
  %v9795 = vpack.c.b16 %v9541, %v9539
  %v9796 = vpack.c.b16 %v9542, %v9540
  %v9797 = vpack.c.b16 %v9545, %v9543
  %v9798 = vpack.c.b16 %v9546, %v9544
  %v9799 = vpack.c.b16 %v9549, %v9547
  %v9800 = vpack.c.b16 %v9550, %v9548
  %v9801 = vpack.c.b16 %v9553, %v9551
  %v9802 = vpack.c.b16 %v9554, %v9552
  %v9803 = vpack.c.b16 %v9557, %v9555
  %v9804 = vpack.c.b16 %v9558, %v9556
  %v9805 = vpack.c.b16 %v9561, %v9559
  %v9806 = vpack.c.b16 %v9562, %v9560
  %v9807 = vpack.c.b16 %v9565, %v9563
  %v9808 = vpack.c.b16 %v9566, %v9564
  %v9809 = vpack.c.b16 %v9569, %v9567
  %v9810 = vpack.c.b16 %v9570, %v9568
  %v9811 = vpack.c.b16 %v9573, %v9571
  %v9812 = vpack.c.b16 %v9574, %v9572
  %v9813 = vpack.c.b16 %v9577, %v9575
  %v9814 = vpack.c.b16 %v9578, %v9576
  %v9815 = vpack.c.b16 %v9581, %v9579
  %v9816 = vpack.c.b16 %v9582, %v9580
  %v9817 = vpack.c.b16 %v9585, %v9583
  %v9818 = vpack.c.b16 %v9586, %v9584
  %v9819 = vpack.c.b16 %v9589, %v9587
  %v9820 = vpack.c.b16 %v9590, %v9588
  %v9821 = vpack.c.b16 %v9593, %v9591
  %v9822 = vpack.c.b16 %v9594, %v9592
  %v9823 = vpack.c.b16 %v9597, %v9595
  %v9824 = vpack.c.b16 %v9598, %v9596
  %v9825 = vpack.c.b16 %v9601, %v9599
  %v9826 = vpack.c.b16 %v9602, %v9600
  %v9827 = vpack.c.b16 %v9605, %v9603
  %v9828 = vpack.c.b16 %v9606, %v9604
  %v9829 = vpack.c.b16 %v9609, %v9607
  %v9830 = vpack.c.b16 %v9610, %v9608
  %v9831 = vpack.c.b16 %v9613, %v9611
  %v9832 = vpack.c.b16 %v9614, %v9612
  %v9833 = vpack.c.b16 %v9617, %v9615
  %v9834 = vpack.c.b16 %v9618, %v9616
  %v9835 = vpack.c.b16 %v9621, %v9619
  %v9836 = vpack.c.b16 %v9622, %v9620
  %v9837 = vpack.c.b16 %v9625, %v9623
  %v9838 = vpack.c.b16 %v9626, %v9624
  %v9839 = vpack.c.b16 %v9629, %v9627
  %v9840 = vpack.c.b16 %v9630, %v9628
  %v9841 = vpack.c.b16 %v9633, %v9631
  %v9842 = vpack.c.b16 %v9634, %v9632
  %v9843 = vpack.c.b16 %v9637, %v9635
  %v9844 = vpack.c.b16 %v9638, %v9636
  %v9845 = vpack.c.b16 %v9641, %v9639
  %v9846 = vpack.c.b16 %v9642, %v9640
  %v9847 = vpack.c.b16 %v9645, %v9643
  %v9848 = vpack.c.b16 %v9646, %v9644
  %v9849 = vpack.c.b16 %v9649, %v9647
  %v9850 = vpack.c.b16 %v9650, %v9648
  %v9851 = vpack.c.b16 %v9653, %v9651
  %v9852 = vpack.c.b16 %v9654, %v9652
  %v9853 = vpack.c.b16 %v9657, %v9655
  %v9854 = vpack.c.b16 %v9658, %v9656
  %v9855 = vpack.c.b16 %v9661, %v9659
  %v9856 = vpack.c.b16 %v9662, %v9660
  %v9857 = vpack.c.b16 %v9665, %v9663
  %v9858 = vpack.c.b16 %v9666, %v9664
  %v9859 = vpack.c.b16 %v9669, %v9667
  %v9860 = vpack.c.b16 %v9670, %v9668
  %v9861 = vpack.c.b16 %v9673, %v9671
  %v9862 = vpack.c.b16 %v9674, %v9672
  %v9863 = vpack.c.b16 %v9677, %v9675
  %v9864 = vpack.c.b16 %v9678, %v9676
  %v9865 = vpack.c.b16 %v9681, %v9679
  %v9866 = vpack.c.b16 %v9682, %v9680
  %v9867 = vpack.c.b16 %v9685, %v9683
  %v9868 = vpack.c.b16 %v9686, %v9684
  %v9869 = vpack.c.b16 %v9689, %v9687
  %v9870 = vpack.c.b16 %v9690, %v9688
  %v9871 = vpack.c.b16 %v9693, %v9691
  %v9872 = vpack.c.b16 %v9694, %v9692
  %v9873 = vpack.c.b16 %v9697, %v9695
  %v9874 = vpack.c.b16 %v9698, %v9696
  %v9875 = vpack.c.b16 %v9701, %v9699
  %v9876 = vpack.c.b16 %v9702, %v9700
  %v9877 = vpack.c.b16 %v9705, %v9703
  %v9878 = vpack.c.b16 %v9706, %v9704
  %v9879 = vpack.c.b16 %v9709, %v9707
  %v9880 = vpack.c.b16 %v9710, %v9708
  %v9881 = vpack.c.b16 %v9713, %v9711
  %v9882 = vpack.c.b16 %v9714, %v9712
  %v9883 = vpack.c.b16 %v9717, %v9715
  %v9884 = vpack.c.b16 %v9718, %v9716
  %v9885 = vpack.c.b16 %v9721, %v9719
  %v9886 = vpack.c.b16 %v9722, %v9720
  %v9887 = vpack.c.b16 %v9725, %v9723
  %v9888 = vpack.c.b16 %v9726, %v9724
  %v9889 = vpack.c.b16 %v9729, %v9727
  %v9890 = vpack.c.b16 %v9730, %v9728
  %v9891 = vpack.c.b16 %v9733, %v9731
  %v9892 = vpack.c.b16 %v9734, %v9732
  %v9893 = vpack.c.b16 %v9737, %v9735
  %v9894 = vpack.c.b16 %v9738, %v9736
  %v9895 = vpack.c.b16 %v9741, %v9739
  %v9896 = vpack.c.b16 %v9742, %v9740
  %v9897 = vpack.c.b16 %v9745, %v9743
  %v9898 = vpack.c.b16 %v9746, %v9744
  %v9899 = vpack.c.b16 %v9749, %v9747
  %v9900 = vpack.c.b16 %v9750, %v9748
  %v9901 = vpack.c.b16 %v9753, %v9751
  %v9902 = vpack.c.b16 %v9754, %v9752
  %v9903 = vpack.c.b16 %v9757, %v9755
  %v9904 = vpack.c.b16 %v9758, %v9756
  %v9905 = vpack.c.b16 %v9761, %v9759
  %v9906 = vpack.c.b16 %v9762, %v9760
  %10051 = vmatprep.subr.bf16.mxu0 %v9778
  %10052 = vmatpush1.bf16.msra.mxu0 %v9777
  %10053 = vmatprep.subr.bf16.mxu0 %v9776
  %10054 = vmatpush1.bf16.msra.mxu0 %v9775
  %10055 = vmatprep.subr.bf16.mxu0 %v9774
  %10056 = vmatpush1.bf16.msra.mxu0 %v9773
  %10057 = vmatprep.subr.bf16.mxu0 %v9772
  %10058 = vmatpush1.bf16.msra.mxu0 %v9771
  %10059 = vmatprep.subr.bf16.mxu0 %v9770
  %10060 = vmatpush1.bf16.msra.mxu0 %v9769
  %10061 = vmatprep.subr.bf16.mxu0 %v9768
  %10062 = vmatpush1.bf16.msra.mxu0 %v9767
  %10063 = vmatprep.subr.bf16.mxu0 %v9766
  %10064 = vmatpush1.bf16.msra.mxu0 %v9765
  %10065 = vmatprep.subr.bf16.mxu0 %v9764
  %10066 = vmatpush1.bf16.msra.mxu0 %v9763
  %10067 = vmatprep.subr.bf16.mxu0 %v9794
  %10068 = vmatpush2.bf16.msra.mxu0 %v9793
  %10069 = vmatprep.subr.bf16.mxu0 %v9792
  %10070 = vmatpush2.bf16.msra.mxu0 %v9791
  %10071 = vmatprep.subr.bf16.mxu0 %v9790
  %10072 = vmatpush2.bf16.msra.mxu0 %v9789
  %10073 = vmatprep.subr.bf16.mxu0 %v9788
  %10074 = vmatpush2.bf16.msra.mxu0 %v9787
  %10075 = vmatprep.subr.bf16.mxu0 %v9786
  %10076 = vmatpush2.bf16.msra.mxu0 %v9785
  %10077 = vmatprep.subr.bf16.mxu0 %v9784
  %10078 = vmatpush2.bf16.msra.mxu0 %v9783
  %10079 = vmatprep.subr.bf16.mxu0 %v9782
  %10080 = vmatpush2.bf16.msra.mxu0 %v9781
  %10081 = vmatprep.subr.bf16.mxu0 %v9780
  %10082 = vmatpush2.bf16.msra.mxu0 %v9779
  %10083 = vmatprep.mubr.bf16.mxu0 %v9314
  %10084 = vmatmul.mubr.bf16.gmra.mxu0 %v9313
  %v10085 = vpop.f32.mrf.mxu0
  %v10086 = vadd.f32 %v9292, %v10085
  %v10087 = vpop.f32.mrf.mxu0
  %v10088 = vadd.f32 %v9296, %v10087
  %v10089 = vpop.f32.mrf.mxu0
  %v10090 = vpop.f32.mrf.mxu0
  %10091 = vdwg.mxu0
  %10092 = vmatprep.subr.bf16.mxu0 %v9810
  %10093 = vmatpush1.bf16.msra.mxu0 %v9809
  %10094 = vmatprep.subr.bf16.mxu0 %v9808
  %10095 = vmatpush1.bf16.msra.mxu0 %v9807
  %10096 = vmatprep.subr.bf16.mxu0 %v9806
  %10097 = vmatpush1.bf16.msra.mxu0 %v9805
  %10098 = vmatprep.subr.bf16.mxu0 %v9804
  %10099 = vmatpush1.bf16.msra.mxu0 %v9803
  %10100 = vmatprep.subr.bf16.mxu0 %v9802
  %10101 = vmatpush1.bf16.msra.mxu0 %v9801
  %10102 = vmatprep.subr.bf16.mxu0 %v9800
  %10103 = vmatpush1.bf16.msra.mxu0 %v9799
  %10104 = vmatprep.subr.bf16.mxu0 %v9798
  %10105 = vmatpush1.bf16.msra.mxu0 %v9797
  %10106 = vmatprep.subr.bf16.mxu0 %v9796
  %10107 = vmatpush1.bf16.msra.mxu0 %v9795
  %10108 = vmatprep.subr.bf16.mxu0 %v9826
  %10109 = vmatpush2.bf16.msra.mxu0 %v9825
  %10110 = vmatprep.subr.bf16.mxu0 %v9824
  %10111 = vmatpush2.bf16.msra.mxu0 %v9823
  %10112 = vmatprep.subr.bf16.mxu0 %v9822
  %10113 = vmatpush2.bf16.msra.mxu0 %v9821
  %10114 = vmatprep.subr.bf16.mxu0 %v9820
  %10115 = vmatpush2.bf16.msra.mxu0 %v9819
  %10116 = vmatprep.subr.bf16.mxu0 %v9818
  %10117 = vmatpush2.bf16.msra.mxu0 %v9817
  %10118 = vmatprep.subr.bf16.mxu0 %v9816
  %10119 = vmatpush2.bf16.msra.mxu0 %v9815
  %10120 = vmatprep.subr.bf16.mxu0 %v9814
  %10121 = vmatpush2.bf16.msra.mxu0 %v9813
  %10122 = vmatprep.subr.bf16.mxu0 %v9812
  %10123 = vmatpush2.bf16.msra.mxu0 %v9811
  %10124 = vmatprep.mubr.bf16.mxu0 %v9316
  %10125 = vmatmul.mubr.bf16.gmra.mxu0 %v9315
  %v10126 = vpop.f32.mrf.mxu0
  %v10127 = vadd.f32 %v10086, %v10126
  %v10128 = vpop.f32.mrf.mxu0
  %v10129 = vadd.f32 %v10088, %v10128
  %v10130 = vpop.f32.mrf.mxu0
  %v10131 = vpop.f32.mrf.mxu0
  %10132 = vdwg.mxu0
  %10133 = vmatprep.subr.bf16.mxu0 %v9842
  %10134 = vmatpush1.bf16.msra.mxu0 %v9841
  %10135 = vmatprep.subr.bf16.mxu0 %v9840
  %10136 = vmatpush1.bf16.msra.mxu0 %v9839
  %10137 = vmatprep.subr.bf16.mxu0 %v9838
  %10138 = vmatpush1.bf16.msra.mxu0 %v9837
  %10139 = vmatprep.subr.bf16.mxu0 %v9836
  %10140 = vmatpush1.bf16.msra.mxu0 %v9835
  %10141 = vmatprep.subr.bf16.mxu0 %v9834
  %10142 = vmatpush1.bf16.msra.mxu0 %v9833
  %10143 = vmatprep.subr.bf16.mxu0 %v9832
  %10144 = vmatpush1.bf16.msra.mxu0 %v9831
  %10145 = vmatprep.subr.bf16.mxu0 %v9830
  %10146 = vmatpush1.bf16.msra.mxu0 %v9829
  %10147 = vmatprep.subr.bf16.mxu0 %v9828
  %10148 = vmatpush1.bf16.msra.mxu0 %v9827
  %10149 = vmatprep.subr.bf16.mxu0 %v9858
  %10150 = vmatpush2.bf16.msra.mxu0 %v9857
  %10151 = vmatprep.subr.bf16.mxu0 %v9856
  %10152 = vmatpush2.bf16.msra.mxu0 %v9855
  %10153 = vmatprep.subr.bf16.mxu0 %v9854
  %10154 = vmatpush2.bf16.msra.mxu0 %v9853
  %10155 = vmatprep.subr.bf16.mxu0 %v9852
  %10156 = vmatpush2.bf16.msra.mxu0 %v9851
  %10157 = vmatprep.subr.bf16.mxu0 %v9850
  %10158 = vmatpush2.bf16.msra.mxu0 %v9849
  %10159 = vmatprep.subr.bf16.mxu0 %v9848
  %10160 = vmatpush2.bf16.msra.mxu0 %v9847
  %10161 = vmatprep.subr.bf16.mxu0 %v9846
  %10162 = vmatpush2.bf16.msra.mxu0 %v9845
  %10163 = vmatprep.subr.bf16.mxu0 %v9844
  %10164 = vmatpush2.bf16.msra.mxu0 %v9843
  %10165 = vmatprep.mubr.bf16.mxu0 %v9318
  %10166 = vmatmul.mubr.bf16.gmra.mxu0 %v9317
  %v10167 = vpop.f32.mrf.mxu0
  %v10168 = vadd.f32 %v10127, %v10167
  %v10169 = vpop.f32.mrf.mxu0
  %v10170 = vadd.f32 %v10129, %v10169
  %v10171 = vpop.f32.mrf.mxu0
  %v10172 = vpop.f32.mrf.mxu0
  %10173 = vdwg.mxu0
  %10174 = vmatprep.subr.bf16.mxu0 %v9874
  %10175 = vmatpush1.bf16.msra.mxu0 %v9873
  %10176 = vmatprep.subr.bf16.mxu0 %v9872
  %10177 = vmatpush1.bf16.msra.mxu0 %v9871
  %10178 = vmatprep.subr.bf16.mxu0 %v9870
  %10179 = vmatpush1.bf16.msra.mxu0 %v9869
  %10180 = vmatprep.subr.bf16.mxu0 %v9868
  %10181 = vmatpush1.bf16.msra.mxu0 %v9867
  %10182 = vmatprep.subr.bf16.mxu0 %v9866
  %10183 = vmatpush1.bf16.msra.mxu0 %v9865
  %10184 = vmatprep.subr.bf16.mxu0 %v9864
  %10185 = vmatpush1.bf16.msra.mxu0 %v9863
  %10186 = vmatprep.subr.bf16.mxu0 %v9862
  %10187 = vmatpush1.bf16.msra.mxu0 %v9861
  %10188 = vmatprep.subr.bf16.mxu0 %v9860
  %10189 = vmatpush1.bf16.msra.mxu0 %v9859
  %10190 = vmatprep.subr.bf16.mxu0 %v9890
  %10191 = vmatpush2.bf16.msra.mxu0 %v9889
  %10192 = vmatprep.subr.bf16.mxu0 %v9888
  %10193 = vmatpush2.bf16.msra.mxu0 %v9887
  %10194 = vmatprep.subr.bf16.mxu0 %v9886
  %10195 = vmatpush2.bf16.msra.mxu0 %v9885
  %10196 = vmatprep.subr.bf16.mxu0 %v9884
  %10197 = vmatpush2.bf16.msra.mxu0 %v9883
  %10198 = vmatprep.subr.bf16.mxu0 %v9882
  %10199 = vmatpush2.bf16.msra.mxu0 %v9881
  %10200 = vmatprep.subr.bf16.mxu0 %v9880
  %10201 = vmatpush2.bf16.msra.mxu0 %v9879
  %10202 = vmatprep.subr.bf16.mxu0 %v9878
  %10203 = vmatpush2.bf16.msra.mxu0 %v9877
  %10204 = vmatprep.subr.bf16.mxu0 %v9876
  %10205 = vmatpush2.bf16.msra.mxu0 %v9875
  %10206 = vmatprep.mubr.bf16.mxu0 %v9320
  %10207 = vmatmul.mubr.bf16.gmra.mxu0 %v9319
  %v10208 = vpop.f32.mrf.mxu0
  %v10209 = vadd.f32 %v10168, %v10208
  %v10210 = vpop.f32.mrf.mxu0
  %v10211 = vadd.f32 %v10170, %v10210
  %v10212 = vpop.f32.mrf.mxu0
  %v10213 = vpop.f32.mrf.mxu0
  %10214 = vdwg.mxu0
  %10215 = vmatprep.subr.bf16.mxu0 %v9906
  %10216 = vmatpush1.bf16.msra.mxu0 %v9905
  %10217 = vmatprep.subr.bf16.mxu0 %v9904
  %10218 = vmatpush1.bf16.msra.mxu0 %v9903
  %10219 = vmatprep.subr.bf16.mxu0 %v9902
  %10220 = vmatpush1.bf16.msra.mxu0 %v9901
  %10221 = vmatprep.subr.bf16.mxu0 %v9900
  %10222 = vmatpush1.bf16.msra.mxu0 %v9899
  %10223 = vmatprep.subr.bf16.mxu0 %v9898
  %10224 = vmatpush1.bf16.msra.mxu0 %v9897
  %10225 = vmatprep.subr.bf16.mxu0 %v9896
  %10226 = vmatpush1.bf16.msra.mxu0 %v9895
  %10227 = vmatprep.subr.bf16.mxu0 %v9894
  %10228 = vmatpush1.bf16.msra.mxu0 %v9893
  %10229 = vmatprep.subr.bf16.mxu0 %v9892
  %10230 = vmatpush1.bf16.msra.mxu0 %v9891
  %10231 = vmatprep.subr.bf16.mxu0 0
  %10232 = vmatpush2.bf16.msra.mxu0 0
  %10233 = vmatprep.subr.bf16.mxu0 0
  %10234 = vmatpush2.bf16.msra.mxu0 0
  %10235 = vmatprep.subr.bf16.mxu0 0
  %10236 = vmatpush2.bf16.msra.mxu0 0
  %10237 = vmatprep.subr.bf16.mxu0 0
  %10238 = vmatpush2.bf16.msra.mxu0 0
  %10239 = vmatprep.subr.bf16.mxu0 0
  %10240 = vmatpush2.bf16.msra.mxu0 0
  %10241 = vmatprep.subr.bf16.mxu0 0
  %10242 = vmatpush2.bf16.msra.mxu0 0
  %10243 = vmatprep.subr.bf16.mxu0 0
  %10244 = vmatpush2.bf16.msra.mxu0 0
  %10245 = vmatprep.subr.bf16.mxu0 0
  %10246 = vmatpush2.bf16.msra.mxu0 0
  %10247 = vmatprep.mubr.bf16.mxu0 0
  %10248 = vmatmul.mubr.bf16.gmra.mxu0 %v9321
  %v10249 = vpop.f32.mrf.mxu0
  %v10250 = vadd.f32 %v10209, %v10249
  %v10251 = vpop.f32.mrf.mxu0
  %v10252 = vadd.f32 %v10211, %v10251
  %v10253 = vpop.f32.mrf.mxu0
  %v10254 = vpop.f32.mrf.mxu0
  %10255 = vdwg.mxu0
  %v10256 = vmax.f32 %v10250, 0.0
  %v10257 = vmax.f32 %v10252, 0.0
  %v10260 = vcombine.low %v10256, %v10257
  %v10261 = vcombine.high %v10256, %v10257
  %v10263 = vunpack.c.l.s4 1983009808
  %v10264 = vunpack.c.0.s8 %v10263
  %v10265 = vlaneseq
  %v10266 = vshrl.u32 %v10265, 7
  %v10267 = vsub.s32 %v10264, %v10266
  %v10268 = vrot.slane %v10260, %v10267
  %v10270 = vunpack.c.l.s4 1983009808
  %v10271 = vunpack.c.0.s8 %v10270
  %v10272 = vlaneseq
  %v10273 = vshrl.u32 %v10272, 7
  %v10274 = vsub.s32 %v10271, %v10273
  %v10275 = vrot.slane %v10261, %v10274
  %v10276 = vcombine.high %v10268, %v10268
  %v10277 = vcombine.high %v10275, %v10275
  %vm10282 = vcmask 1043458
  %vm10283 = vmor %vm10282, %vm8252
  %v10284 = vsel %vm10283, %v10268, -inf
  %v10285 = vsel %vm10283, %v10276, -inf
  %v10286 = vmax.f32 %v10284, %v10285
  %v10287 = vsel %vm10283, %v10275, -inf
  %v10288 = vsel %vm10283, %v10277, -inf
  %v10289 = vmax.f32 %v10287, %v10288
  %v10293 = vunpack.c.l.s4 1983009808
  %v10294 = vunpack.c.0.s8 %v10293
  %v10295 = vlaneseq
  %v10296 = vshrl.u32 %v10295, 7
  %v10297 = vsub.s32 %v10294, %v10296
  %v10298 = vrot.slane %v10286, %v10297
  %v10299 = vcombine.high %v10298, %v10298
  %v10301 = vunpack.c.l.s4 1983009808
  %v10302 = vunpack.c.0.s8 %v10301
  %v10303 = vlaneseq
  %v10304 = vshrl.u32 %v10303, 7
  %v10305 = vsub.s32 %v10302, %v10304
  %v10306 = vrot.slane %v10289, %v10305
  %v10307 = vcombine.high %v10306, %v10306
  %v10312 = vsel %vm8252, %v10298, -inf
  %v10313 = vrot.slane %v10312, 4
  %v10314 = vmax.f32 %v10312, %v10313
  %v10315 = vrot.slane %v10314, 2
  %v10316 = vmax.f32 %v10314, %v10315
  %v10317 = vrot.slane %v10316, 1
  %v10318 = vmax.f32 %v10316, %v10317
  %v10319 = vsel %vm8252, %v10299, -inf
  %v10320 = vrot.slane %v10319, 4
  %v10321 = vmax.f32 %v10319, %v10320
  %v10322 = vrot.slane %v10321, 2
  %v10323 = vmax.f32 %v10321, %v10322
  %v10324 = vrot.slane %v10323, 1
  %v10325 = vmax.f32 %v10323, %v10324
  %v10326 = vsel %vm8252, %v10306, -inf
  %v10327 = vrot.slane %v10326, 4
  %v10328 = vmax.f32 %v10326, %v10327
  %v10329 = vrot.slane %v10328, 2
  %v10330 = vmax.f32 %v10328, %v10329
  %v10331 = vrot.slane %v10330, 1
  %v10332 = vmax.f32 %v10330, %v10331
  %v10333 = vsel %vm8252, %v10307, -inf
  %v10334 = vrot.slane %v10333, 4
  %v10335 = vmax.f32 %v10333, %v10334
  %v10336 = vrot.slane %v10335, 2
  %v10337 = vmax.f32 %v10335, %v10336
  %v10338 = vrot.slane %v10337, 1
  %v10339 = vmax.f32 %v10337, %v10338
  %v10340 = vadd.f32 %v10318, 0.0
  %v10341 = vadd.f32 %v10325, 0.0
  %v10342 = vadd.f32 %v10332, 0.0
  %v10343 = vadd.f32 %v10339, 0.0
  %v10344 = vadd.f32 %v10340, 0.0
  %v10345 = vadd.f32 %v10341, 0.0
  %v10346 = vadd.f32 %v10342, 0.0
  %v10347 = vadd.f32 %v10343, 0.0
  %v10348 = vpack.c.bf16 %v10344, %v10344
  %v10349 = vpack.c.bf16 %v10345, %v10345
  %v10350 = vpack.c.bf16 %v10346, %v10346
  %v10351 = vpack.c.bf16 %v10347, %v10347
  %v10352 = vld [vmem:[%s9] sm:$0xff]
  %v10353 = vld [vmem:[%s9 + $0x8] sm:$0xff]
  %v10354 = vld [vmem:[%s9 + $0x10] sm:$0xff]
  %v10355 = vld [vmem:[%s9 + $0x18] sm:$0xff]
  %v10356 = vld [vmem:[%s9 + $0x20] sm:$0xff]
  %v10357 = vld [vmem:[%s9 + $0x28] sm:$0xff]
  %v10358 = vld [vmem:[%s9 + $0x30] sm:$0xff]
  %v10359 = vld [vmem:[%s9 + $0x38] sm:$0xff]
  %v10360 = vld [vmem:[%s9 + $0x40] sm:$0xff]
  %v10361 = vld [vmem:[%s9 + $0x48] sm:$0xff]
  %v10362 = vld [vmem:[%s9 + $0x50] sm:$0xff]
  %v10363 = vld [vmem:[%s9 + $0x58] sm:$0xff]
  %v10364 = vld [vmem:[%s9 + $0x60] sm:$0xff]
  %v10365 = vld [vmem:[%s9 + $0x68] sm:$0xff]
  %v10366 = vld [vmem:[%s9 + $0x70] sm:$0xff]
  %v10367 = vld [vmem:[%s9 + $0x78] sm:$0xff]
  %v10368 = vld [vmem:[%s9 + $0x80] sm:$0xff]
  %v10369 = vld [vmem:[%s9 + $0x88] sm:$0xff]
  %v10370 = vld [vmem:[%s9 + $0x90] sm:$0xff]
  %v10371 = vld [vmem:[%s9 + $0x98] sm:$0xff]
  %v10372 = vld [vmem:[%s9 + $0xa0] sm:$0xff]
  %v10373 = vld [vmem:[%s9 + $0xa8] sm:$0xff]
  %v10374 = vld [vmem:[%s9 + $0xb0] sm:$0xff]
  %v10375 = vld [vmem:[%s9 + $0xb8] sm:$0xff]
  %v10376 = vld [vmem:[%s9 + $0xc0] sm:$0xff]
  %v10377 = vld [vmem:[%s9 + $0xc8] sm:$0xff]
  %v10378 = vld [vmem:[%s9 + $0xd0] sm:$0xff]
  %v10379 = vld [vmem:[%s9 + $0xd8] sm:$0xff]
  %v10380 = vld [vmem:[%s9 + $0xe0] sm:$0xff]
  %v10381 = vld [vmem:[%s9 + $0xe8] sm:$0xff]
  %v10382 = vld [vmem:[%s9 + $0xf0] sm:$0xff]
  %v10383 = vld [vmem:[%s9 + $0xf8] sm:$0xff]
  %v10384 = vld [vmem:[%s9 + $0x100] sm:$0xff]
  %v10385 = vld [vmem:[%s9 + $0x108] sm:$0xff]
  %v10386 = vld [vmem:[%s9 + $0x110] sm:$0xff]
  %v10387 = vld [vmem:[%s9 + $0x118] sm:$0xff]
  %v10388 = vld [vmem:[%s9 + $0x120] sm:$0xff]
  %v10389 = vld [vmem:[%s9 + $0x128] sm:$0xff]
  %v10390 = vld [vmem:[%s9 + $0x130] sm:$0xff]
  %v10391 = vld [vmem:[%s9 + $0x138] sm:$0xff]
  %v10392 = vld [vmem:[%s9 + $0x140] sm:$0xff]
  %v10393 = vld [vmem:[%s9 + $0x148] sm:$0xff]
  %v10394 = vld [vmem:[%s9 + $0x150] sm:$0xff]
  %v10395 = vld [vmem:[%s9 + $0x158] sm:$0xff]
  %v10396 = vld [vmem:[%s9 + $0x160] sm:$0xff]
  %v10397 = vld [vmem:[%s9 + $0x168] sm:$0xff]
  %v10398 = vld [vmem:[%s9 + $0x170] sm:$0xff]
  %v10399 = vld [vmem:[%s9 + $0x178] sm:$0xff]
  %v10400 = vld [vmem:[%s9 + $0x180] sm:$0xff]
  %v10401 = vld [vmem:[%s9 + $0x188] sm:$0xff]
  %v10402 = vld [vmem:[%s9 + $0x190] sm:$0xff]
  %v10403 = vld [vmem:[%s9 + $0x198] sm:$0xff]
  %v10404 = vld [vmem:[%s9 + $0x1a0] sm:$0xff]
  %v10405 = vld [vmem:[%s9 + $0x1a8] sm:$0xff]
  %v10406 = vld [vmem:[%s9 + $0x1b0] sm:$0xff]
  %v10407 = vld [vmem:[%s9 + $0x1b8] sm:$0xff]
  %v10408 = vld [vmem:[%s9 + $0x1c0] sm:$0xff]
  %v10409 = vld [vmem:[%s9 + $0x1c8] sm:$0xff]
  %v10410 = vld [vmem:[%s9 + $0x1d0] sm:$0xff]
  %v10411 = vld [vmem:[%s9 + $0x1d8] sm:$0xff]
  %v10412 = vld [vmem:[%s9 + $0x1e0] sm:$0xff]
  %v10413 = vld [vmem:[%s9 + $0x1e8] sm:$0xff]
  %v10414 = vld [vmem:[%s9 + $0x1f0] sm:$0xff]
  %v10415 = vld [vmem:[%s9 + $0x1f8] sm:$0xff]
  %v10416 = vld [vmem:[%s10] sm:$0xf]
  %v10418 = vlaneseq
  %v10419 = vshrl.u32 %v10418, 7
  %v10420 = vsub.s32 0, %v10419
  %v10421 = vrot.slane %v10416, %v10420
  %v10422 = vlaneseq
  %v10423 = vshrl.u32 %v10422, 7
  %v10424 = vsub.s32 1, %v10423
  %v10425 = vrot.slane %v10416, %v10424
  %v10426 = vlaneseq
  %v10427 = vshrl.u32 %v10426, 7
  %v10428 = vsub.s32 2, %v10427
  %v10429 = vrot.slane %v10416, %v10428
  %v10430 = vlaneseq
  %v10431 = vshrl.u32 %v10430, 7
  %v10432 = vsub.s32 3, %v10431
  %v10433 = vrot.slane %v10416, %v10432
  %v10442 = vunpack.c.l.b16 %v10348
  %v10443 = vunpack.c.l.b16 %v10349
  %v10444 = vunpack.c.l.b16 %v10350
  %v10445 = vunpack.c.l.b16 %v10351
  %vm10446 = vcmask 1041409
  %v10447 = vsel %vm10446, %v10444, %v10442
  %v10448 = vsel %vm10446, %v10445, %v10443
  %v10449 = vpack.c.b16 %v10447, %v10447
  %v10450 = vpack.c.b16 %v10448, %v10448
  %v10517 = vunpack.c.l.b16 %v10352
  %v10518 = vunpack.c.h.b16 %v10352
  %v10519 = vunpack.c.l.b16 %v10353
  %v10520 = vunpack.c.h.b16 %v10353
  %v10521 = vunpack.c.l.b16 %v10354
  %v10522 = vunpack.c.h.b16 %v10354
  %v10523 = vunpack.c.l.b16 %v10355
  %v10524 = vunpack.c.h.b16 %v10355
  %v10525 = vunpack.c.l.b16 %v10356
  %v10526 = vunpack.c.h.b16 %v10356
  %v10527 = vunpack.c.l.b16 %v10357
  %v10528 = vunpack.c.h.b16 %v10357
  %v10529 = vunpack.c.l.b16 %v10358
  %v10530 = vunpack.c.h.b16 %v10358
  %v10531 = vunpack.c.l.b16 %v10359
  %v10532 = vunpack.c.h.b16 %v10359
  %v10533 = vunpack.c.l.b16 %v10360
  %v10534 = vunpack.c.h.b16 %v10360
  %v10535 = vunpack.c.l.b16 %v10361
  %v10536 = vunpack.c.h.b16 %v10361
  %v10537 = vunpack.c.l.b16 %v10362
  %v10538 = vunpack.c.h.b16 %v10362
  %v10539 = vunpack.c.l.b16 %v10363
  %v10540 = vunpack.c.h.b16 %v10363
  %v10541 = vunpack.c.l.b16 %v10364
  %v10542 = vunpack.c.h.b16 %v10364
  %v10543 = vunpack.c.l.b16 %v10365
  %v10544 = vunpack.c.h.b16 %v10365
  %v10545 = vunpack.c.l.b16 %v10366
  %v10546 = vunpack.c.h.b16 %v10366
  %v10547 = vunpack.c.l.b16 %v10367
  %v10548 = vunpack.c.h.b16 %v10367
  %v10549 = vunpack.c.l.b16 %v10368
  %v10550 = vunpack.c.h.b16 %v10368
  %v10551 = vunpack.c.l.b16 %v10369
  %v10552 = vunpack.c.h.b16 %v10369
  %v10553 = vunpack.c.l.b16 %v10370
  %v10554 = vunpack.c.h.b16 %v10370
  %v10555 = vunpack.c.l.b16 %v10371
  %v10556 = vunpack.c.h.b16 %v10371
  %v10557 = vunpack.c.l.b16 %v10372
  %v10558 = vunpack.c.h.b16 %v10372
  %v10559 = vunpack.c.l.b16 %v10373
  %v10560 = vunpack.c.h.b16 %v10373
  %v10561 = vunpack.c.l.b16 %v10374
  %v10562 = vunpack.c.h.b16 %v10374
  %v10563 = vunpack.c.l.b16 %v10375
  %v10564 = vunpack.c.h.b16 %v10375
  %v10565 = vunpack.c.l.b16 %v10376
  %v10566 = vunpack.c.h.b16 %v10376
  %v10567 = vunpack.c.l.b16 %v10377
  %v10568 = vunpack.c.h.b16 %v10377
  %v10569 = vunpack.c.l.b16 %v10378
  %v10570 = vunpack.c.h.b16 %v10378
  %v10571 = vunpack.c.l.b16 %v10379
  %v10572 = vunpack.c.h.b16 %v10379
  %v10573 = vunpack.c.l.b16 %v10380
  %v10574 = vunpack.c.h.b16 %v10380
  %v10575 = vunpack.c.l.b16 %v10381
  %v10576 = vunpack.c.h.b16 %v10381
  %v10577 = vunpack.c.l.b16 %v10382
  %v10578 = vunpack.c.h.b16 %v10382
  %v10579 = vunpack.c.l.b16 %v10383
  %v10580 = vunpack.c.h.b16 %v10383
  %v10581 = vunpack.c.l.b16 %v10384
  %v10582 = vunpack.c.h.b16 %v10384
  %v10583 = vunpack.c.l.b16 %v10385
  %v10584 = vunpack.c.h.b16 %v10385
  %v10585 = vunpack.c.l.b16 %v10386
  %v10586 = vunpack.c.h.b16 %v10386
  %v10587 = vunpack.c.l.b16 %v10387
  %v10588 = vunpack.c.h.b16 %v10387
  %v10589 = vunpack.c.l.b16 %v10388
  %v10590 = vunpack.c.h.b16 %v10388
  %v10591 = vunpack.c.l.b16 %v10389
  %v10592 = vunpack.c.h.b16 %v10389
  %v10593 = vunpack.c.l.b16 %v10390
  %v10594 = vunpack.c.h.b16 %v10390
  %v10595 = vunpack.c.l.b16 %v10391
  %v10596 = vunpack.c.h.b16 %v10391
  %v10597 = vunpack.c.l.b16 %v10392
  %v10598 = vunpack.c.h.b16 %v10392
  %v10599 = vunpack.c.l.b16 %v10393
  %v10600 = vunpack.c.h.b16 %v10393
  %v10601 = vunpack.c.l.b16 %v10394
  %v10602 = vunpack.c.h.b16 %v10394
  %v10603 = vunpack.c.l.b16 %v10395
  %v10604 = vunpack.c.h.b16 %v10395
  %v10605 = vunpack.c.l.b16 %v10396
  %v10606 = vunpack.c.h.b16 %v10396
  %v10607 = vunpack.c.l.b16 %v10397
  %v10608 = vunpack.c.h.b16 %v10397
  %v10609 = vunpack.c.l.b16 %v10398
  %v10610 = vunpack.c.h.b16 %v10398
  %v10611 = vunpack.c.l.b16 %v10399
  %v10612 = vunpack.c.h.b16 %v10399
  %v10613 = vunpack.c.l.b16 %v10400
  %v10614 = vunpack.c.h.b16 %v10400
  %v10615 = vunpack.c.l.b16 %v10401
  %v10616 = vunpack.c.h.b16 %v10401
  %v10617 = vunpack.c.l.b16 %v10402
  %v10618 = vunpack.c.h.b16 %v10402
  %v10619 = vunpack.c.l.b16 %v10403
  %v10620 = vunpack.c.h.b16 %v10403
  %v10621 = vunpack.c.l.b16 %v10404
  %v10622 = vunpack.c.h.b16 %v10404
  %v10623 = vunpack.c.l.b16 %v10405
  %v10624 = vunpack.c.h.b16 %v10405
  %v10625 = vunpack.c.l.b16 %v10406
  %v10626 = vunpack.c.h.b16 %v10406
  %v10627 = vunpack.c.l.b16 %v10407
  %v10628 = vunpack.c.h.b16 %v10407
  %v10629 = vunpack.c.l.b16 %v10408
  %v10630 = vunpack.c.h.b16 %v10408
  %v10631 = vunpack.c.l.b16 %v10409
  %v10632 = vunpack.c.h.b16 %v10409
  %v10633 = vunpack.c.l.b16 %v10410
  %v10634 = vunpack.c.h.b16 %v10410
  %v10635 = vunpack.c.l.b16 %v10411
  %v10636 = vunpack.c.h.b16 %v10411
  %v10637 = vunpack.c.l.b16 %v10412
  %v10638 = vunpack.c.h.b16 %v10412
  %v10639 = vunpack.c.l.b16 %v10413
  %v10640 = vunpack.c.h.b16 %v10413
  %v10641 = vunpack.c.l.b16 %v10414
  %v10642 = vunpack.c.h.b16 %v10414
  %v10643 = vunpack.c.l.b16 %v10415
  %v10644 = vunpack.c.h.b16 %v10415
  %v10645 = vpack.c.b16 %v10521, %v10517
  %v10646 = vpack.c.b16 %v10522, %v10518
  %v10647 = vpack.c.b16 %v10523, %v10519
  %v10648 = vpack.c.b16 %v10524, %v10520
  %v10649 = vpack.c.b16 %v10529, %v10525
  %v10650 = vpack.c.b16 %v10530, %v10526
  %v10651 = vpack.c.b16 %v10531, %v10527
  %v10652 = vpack.c.b16 %v10532, %v10528
  %v10653 = vpack.c.b16 %v10537, %v10533
  %v10654 = vpack.c.b16 %v10538, %v10534
  %v10655 = vpack.c.b16 %v10539, %v10535
  %v10656 = vpack.c.b16 %v10540, %v10536
  %v10657 = vpack.c.b16 %v10545, %v10541
  %v10658 = vpack.c.b16 %v10546, %v10542
  %v10659 = vpack.c.b16 %v10547, %v10543
  %v10660 = vpack.c.b16 %v10548, %v10544
  %v10661 = vpack.c.b16 %v10553, %v10549
  %v10662 = vpack.c.b16 %v10554, %v10550
  %v10663 = vpack.c.b16 %v10555, %v10551
  %v10664 = vpack.c.b16 %v10556, %v10552
  %v10665 = vpack.c.b16 %v10561, %v10557
  %v10666 = vpack.c.b16 %v10562, %v10558
  %v10667 = vpack.c.b16 %v10563, %v10559
  %v10668 = vpack.c.b16 %v10564, %v10560
  %v10669 = vpack.c.b16 %v10569, %v10565
  %v10670 = vpack.c.b16 %v10570, %v10566
  %v10671 = vpack.c.b16 %v10571, %v10567
  %v10672 = vpack.c.b16 %v10572, %v10568
  %v10673 = vpack.c.b16 %v10577, %v10573
  %v10674 = vpack.c.b16 %v10578, %v10574
  %v10675 = vpack.c.b16 %v10579, %v10575
  %v10676 = vpack.c.b16 %v10580, %v10576
  %v10677 = vpack.c.b16 %v10585, %v10581
  %v10678 = vpack.c.b16 %v10586, %v10582
  %v10679 = vpack.c.b16 %v10587, %v10583
  %v10680 = vpack.c.b16 %v10588, %v10584
  %v10681 = vpack.c.b16 %v10593, %v10589
  %v10682 = vpack.c.b16 %v10594, %v10590
  %v10683 = vpack.c.b16 %v10595, %v10591
  %v10684 = vpack.c.b16 %v10596, %v10592
  %v10685 = vpack.c.b16 %v10601, %v10597
  %v10686 = vpack.c.b16 %v10602, %v10598
  %v10687 = vpack.c.b16 %v10603, %v10599
  %v10688 = vpack.c.b16 %v10604, %v10600
  %v10689 = vpack.c.b16 %v10609, %v10605
  %v10690 = vpack.c.b16 %v10610, %v10606
  %v10691 = vpack.c.b16 %v10611, %v10607
  %v10692 = vpack.c.b16 %v10612, %v10608
  %v10693 = vpack.c.b16 %v10617, %v10613
  %v10694 = vpack.c.b16 %v10618, %v10614
  %v10695 = vpack.c.b16 %v10619, %v10615
  %v10696 = vpack.c.b16 %v10620, %v10616
  %v10697 = vpack.c.b16 %v10625, %v10621
  %v10698 = vpack.c.b16 %v10626, %v10622
  %v10699 = vpack.c.b16 %v10627, %v10623
  %v10700 = vpack.c.b16 %v10628, %v10624
  %v10701 = vpack.c.b16 %v10633, %v10629
  %v10702 = vpack.c.b16 %v10634, %v10630
  %v10703 = vpack.c.b16 %v10635, %v10631
  %v10704 = vpack.c.b16 %v10636, %v10632
  %v10705 = vpack.c.b16 %v10641, %v10637
  %v10706 = vpack.c.b16 %v10642, %v10638
  %v10707 = vpack.c.b16 %v10643, %v10639
  %v10708 = vpack.c.b16 %v10644, %v10640
  %10773 = vmatprep.subr.bf16.mxu0 %v10674
  %10774 = vmatpush1.bf16.msra.mxu0 %v10673
  %10775 = vmatprep.subr.bf16.mxu0 %v10670
  %10776 = vmatpush1.bf16.msra.mxu0 %v10669
  %10777 = vmatprep.subr.bf16.mxu0 %v10666
  %10778 = vmatpush1.bf16.msra.mxu0 %v10665
  %10779 = vmatprep.subr.bf16.mxu0 %v10662
  %10780 = vmatpush1.bf16.msra.mxu0 %v10661
  %10781 = vmatprep.subr.bf16.mxu0 %v10658
  %10782 = vmatpush1.bf16.msra.mxu0 %v10657
  %10783 = vmatprep.subr.bf16.mxu0 %v10654
  %10784 = vmatpush1.bf16.msra.mxu0 %v10653
  %10785 = vmatprep.subr.bf16.mxu0 %v10650
  %10786 = vmatpush1.bf16.msra.mxu0 %v10649
  %10787 = vmatprep.subr.bf16.mxu0 %v10646
  %10788 = vmatpush1.bf16.msra.mxu0 %v10645
  %10789 = vmatprep.subr.bf16.mxu0 %v10706
  %10790 = vmatpush2.bf16.msra.mxu0 %v10705
  %10791 = vmatprep.subr.bf16.mxu0 %v10702
  %10792 = vmatpush2.bf16.msra.mxu0 %v10701
  %10793 = vmatprep.subr.bf16.mxu0 %v10698
  %10794 = vmatpush2.bf16.msra.mxu0 %v10697
  %10795 = vmatprep.subr.bf16.mxu0 %v10694
  %10796 = vmatpush2.bf16.msra.mxu0 %v10693
  %10797 = vmatprep.subr.bf16.mxu0 %v10690
  %10798 = vmatpush2.bf16.msra.mxu0 %v10689
  %10799 = vmatprep.subr.bf16.mxu0 %v10686
  %10800 = vmatpush2.bf16.msra.mxu0 %v10685
  %10801 = vmatprep.subr.bf16.mxu0 %v10682
  %10802 = vmatpush2.bf16.msra.mxu0 %v10681
  %10803 = vmatprep.subr.bf16.mxu0 %v10678
  %10804 = vmatpush2.bf16.msra.mxu0 %v10677
  %10805 = vmatprep.mubr.bf16.mxu0 %v10450
  %10806 = vmatmul.mubr.bf16.gmra.mxu0 %v10449
  %v10807 = vpop.f32.mrf.mxu0
  %v10808 = vadd.f32 %v10421, %v10807
  %v10809 = vpop.f32.mrf.mxu0
  %v10810 = vadd.f32 %v10425, %v10809
  %v10811 = vpop.f32.mrf.mxu0
  %v10812 = vpop.f32.mrf.mxu0
  %10813 = vdwg.mxu0
  %10814 = vmatprep.subr.bf16.mxu0 %v10676
  %10815 = vmatpush1.bf16.msra.mxu0 %v10675
  %10816 = vmatprep.subr.bf16.mxu0 %v10672
  %10817 = vmatpush1.bf16.msra.mxu0 %v10671
  %10818 = vmatprep.subr.bf16.mxu0 %v10668
  %10819 = vmatpush1.bf16.msra.mxu0 %v10667
  %10820 = vmatprep.subr.bf16.mxu0 %v10664
  %10821 = vmatpush1.bf16.msra.mxu0 %v10663
  %10822 = vmatprep.subr.bf16.mxu0 %v10660
  %10823 = vmatpush1.bf16.msra.mxu0 %v10659
  %10824 = vmatprep.subr.bf16.mxu0 %v10656
  %10825 = vmatpush1.bf16.msra.mxu0 %v10655
  %10826 = vmatprep.subr.bf16.mxu0 %v10652
  %10827 = vmatpush1.bf16.msra.mxu0 %v10651
  %10828 = vmatprep.subr.bf16.mxu0 %v10648
  %10829 = vmatpush1.bf16.msra.mxu0 %v10647
  %10830 = vmatprep.subr.bf16.mxu0 %v10708
  %10831 = vmatpush2.bf16.msra.mxu0 %v10707
  %10832 = vmatprep.subr.bf16.mxu0 %v10704
  %10833 = vmatpush2.bf16.msra.mxu0 %v10703
  %10834 = vmatprep.subr.bf16.mxu0 %v10700
  %10835 = vmatpush2.bf16.msra.mxu0 %v10699
  %10836 = vmatprep.subr.bf16.mxu0 %v10696
  %10837 = vmatpush2.bf16.msra.mxu0 %v10695
  %10838 = vmatprep.subr.bf16.mxu0 %v10692
  %10839 = vmatpush2.bf16.msra.mxu0 %v10691
  %10840 = vmatprep.subr.bf16.mxu0 %v10688
  %10841 = vmatpush2.bf16.msra.mxu0 %v10687
  %10842 = vmatprep.subr.bf16.mxu0 %v10684
  %10843 = vmatpush2.bf16.msra.mxu0 %v10683
  %10844 = vmatprep.subr.bf16.mxu0 %v10680
  %10845 = vmatpush2.bf16.msra.mxu0 %v10679
  %10846 = vmatprep.mubr.bf16.mxu0 %v10450
  %10847 = vmatmul.mubr.bf16.gmra.mxu0 %v10449
  %v10848 = vpop.f32.mrf.mxu0
  %v10849 = vadd.f32 %v10429, %v10848
  %v10850 = vpop.f32.mrf.mxu0
  %v10851 = vadd.f32 %v10433, %v10850
  %v10852 = vpop.f32.mrf.mxu0
  %v10853 = vpop.f32.mrf.mxu0
  %10854 = vdwg.mxu0
  %v10855 = vmax.f32 %v10808, 0.0
  %v10856 = vmax.f32 %v10810, 0.0
  %v10857 = vmax.f32 %v10849, 0.0
  %v10858 = vmax.f32 %v10851, 0.0
  %v10859 = vld [vmem:[%s11] sm:$0xf]
  %v10861 = vlaneseq
  %v10862 = vshrl.u32 %v10861, 7
  %v10863 = vsub.s32 0, %v10862
  %v10864 = vrot.slane %v10859, %v10863
  %v10865 = vlaneseq
  %v10866 = vshrl.u32 %v10865, 7
  %v10867 = vsub.s32 1, %v10866
  %v10868 = vrot.slane %v10859, %v10867
  %v10869 = vlaneseq
  %v10870 = vshrl.u32 %v10869, 7
  %v10871 = vsub.s32 2, %v10870
  %v10872 = vrot.slane %v10859, %v10871
  %v10873 = vlaneseq
  %v10874 = vshrl.u32 %v10873, 7
  %v10875 = vsub.s32 3, %v10874
  %v10876 = vrot.slane %v10859, %v10875
  %v10881 = vmul.f32 %v10855, %v10864
  %v10882 = vmul.f32 %v10856, %v10868
  %v10883 = vmul.f32 %v10857, %v10872
  %v10884 = vmul.f32 %v10858, %v10876
  %v10885 = vsel %vm8252, %v10881, 0.0
  %v10886 = vsel %vm8252, %v10882, 0.0
  %v10887 = vadd.f32 %v10885, %v10886
  %v10888 = vsel %vm8252, %v10883, 0.0
  %v10889 = vadd.f32 %v10887, %v10888
  %v10890 = vsel %vm8252, %v10884, 0.0
  %v10891 = vadd.f32 %v10889, %v10890
  %10892 = vadd.xlane.f32.xlu0 %v10891
  %v10893 = vpop.xlane.xlu0 %10892
  %v10894 = vld [vmem:[#allocation8] sm:$0x1]
  %v10896 = vlaneseq
  %v10897 = vshrl.u32 %v10896, 7
  %v10898 = vsub.s32 0, %v10897
  %v10899 = vrot.slane %v10894, %v10898
  %v10901 = vadd.f32 %v10893, %v10899
  %v10902 = vsub.f32 0.0, %v10901
  %v10903 = vmul.f32 %v10902, 1.442695
  %v10904 = vpow.pop %v10903
  %v10905 = vadd.f32 %v10904, 1.0
  %v10906 = vrcp.pop %v10905
  %v10907 = vmul.f32 1.0, %v10906
  %vm10908 = vcmask 1024
  %10909 = vst.msk [vmem:[%s13] sm:$0x3] %vm10908, %v10907
  // Predicated region
  $region54: #{enhanced_cnn_forward.1} parent=0 // pred_check
    _
  $region55: #{enhanced_cnn_forward.1} parent=0 // pred_check_branch
    %10911 = sbr.rel (0) target = $region57
  $region56: #{enhanced_cnn_forward.1} parent=0 // pred_region
    _
  $region57: #{enhanced_cnn_forward.1} parent=0 // pred_fallthru
    _
  // Predicated region
  $region58: #{enhanced_cnn_forward.1} parent=0 // pred_check
    _
  $region59: #{enhanced_cnn_forward.1} parent=0 // pred_check_branch
    %10913 = sbr.rel (0) target = $region61
  $region60: #{enhanced_cnn_forward.1} parent=0 // pred_region
    _
  $region61: #{enhanced_cnn_forward.1} parent=0 // pred_fallthru
    _

</llo_original>
